<compile_context>
chip_gen: v7x
topology: tpu7x:2x2x1
jax: 0.10.0
libtpu: 0.0.40
codegen_flags: <defaults>
</compile_context>

<pallas_src>
import functools

import numpy as np
import jax
import jax.numpy as jnp
from jax.experimental import pallas as pl
from jax.experimental.pallas import tpu as pltpu

LANE = 128


def _pad128(c):
    return ((c + LANE - 1) // LANE) * LANE


# ----------------------------- Pallas kernels ------------------------------

def _conv3x3_bn_relu_kernel(x_ref, w_ref, scale_ref, bias_ref, o_ref,
                            xpad_ref, patch_ref, *, pool):
    # x_ref:     (B, H, W, Cin)          bf16  (same block for every Cout step)
    # w_ref:     (9*Cin, TC)             bf16  (taps stacked along K)
    # scale_ref: (1, TC) f32 ; bias_ref: (1, TC) f32   (folded BN affine)
    # o_ref:     (B, Ho*Wo, TC)          bf16  (flat, lane/sublane-dense store)
    # xpad_ref:  VMEM (B, H+2, W+2, Cin) bf16  halo staging scratch
    # patch_ref: VMEM (B*H*W, 9*Cin)     bf16  im2col operand scratch
    B, H, W, Cin = x_ref.shape
    TC = o_ref.shape[2]
    HW = H * W
    Ho, Wo = (H // 2, W // 2) if pool else (H, W)

    # CORRECTNESS NOTE: the staging below relies on the Cout axis being the
    # innermost grid axis and marked "arbitrary" (sequential, starting at
    # block 0) so the staged patch persists across all Cout blocks of this
    # batch block.  Do NOT reorder the grid or mark that axis "parallel".
    @pl.when(pl.program_id(1) == 0)
    def _stage():
        zrow = jnp.zeros((W + 2, Cin), xpad_ref.dtype)
        zcol = jnp.zeros((H, Cin), xpad_ref.dtype)
        for b in range(B):
            # Zero only the 1-pixel halo border (the interior is overwritten);
            # done per batch block so each megacore's scratch is initialized.
            xpad_ref[b, 0, :, :] = zrow
            xpad_ref[b, H + 1, :, :] = zrow
            xpad_ref[b, 1:H + 1, 0, :] = zcol
            xpad_ref[b, 1:H + 1, W + 1, :] = zcol
            xpad_ref[b, 1:H + 1, 1:W + 1, :] = x_ref[b]
            # im2col: 9 shifted taps stacked along K.
            for dy in range(3):
                for dx in range(3):
                    t = dy * 3 + dx
                    patch_ref[b * HW:(b + 1) * HW, t * Cin:(t + 1) * Cin] = (
                        xpad_ref[b, dy:dy + H, dx:dx + W, :].reshape(HW, Cin))

    # Single K = 9*Cin MXU contraction over all B images, f32 accumulation.
    acc = jnp.dot(patch_ref[...], w_ref[...],
                  preferred_element_type=jnp.float32)            # (B*HW, TC)
    y = jnp.maximum(acc * scale_ref[...] + bias_ref[...], 0.0)

    for b in range(B):
        yb = y[b * HW:(b + 1) * HW]                              # (HW, TC)
        if pool:  # fused MaxPool2d(kernel=2, stride=2) epilogue
            y5 = yb.reshape(H, W, TC)[:2 * Ho, :2 * Wo, :].reshape(
                Ho, 2, Wo, 2, TC)
            pooled = jnp.max(jnp.max(y5, axis=3), axis=1)        # (Ho, Wo, TC)
            o_ref[b] = pooled.reshape(Ho * Wo, TC).astype(o_ref.dtype)
        else:
            o_ref[b] = yb.astype(o_ref.dtype)                    # dense 2-D store


def _maxpool2_kernel(x_ref, o_ref):
    # Standalone MaxPool2d(2,2); only used when an 'M' does not directly follow
    # a conv (never happens in standard VGG configs -- the fused path is used).
    _, H, W, C = x_ref.shape
    Ho, Wo = H // 2, W // 2
    x = x_ref[0]
    if H % 2 != 0 or W % 2 != 0:
        x = x[:2 * Ho, :2 * Wo, :]
    x5 = x.reshape(Ho, 2, Wo, 2, C)
    o_ref[0] = jnp.max(jnp.max(x5, axis=3), axis=1)


def _adaptive_avgpool3_kernel(pm_ref, x_ref, o_ref):
    # AdaptiveAvgPool2d((3,3)) as one bf16 pooling matmul + one dense store.
    # pm_ref: (9, H*W) bf16 ; x_ref: (1, H*W, C) bf16 ; o_ref: (1, 9, C) bf16
    o_ref[0] = jnp.dot(pm_ref[...], x_ref[0],
                       preferred_element_type=jnp.float32).astype(o_ref.dtype)


def _linear_kernel(x_ref, w_ref, b_ref, o_ref):
    # x_ref: (N, F) bf16, w_ref: (F, NCp) bf16, b_ref: (1, NCp) f32, o: f32
    # TODO(synk): K-tiled grid + f32 accumulator scratch for the real
    #             25088x4096 VGG classifier; whole-array blocks only work for
    #             the small 128*3*3 classifier this module defines.
    o_ref[...] = (jnp.dot(x_ref[...], w_ref[...],
                          preferred_element_type=jnp.float32) + b_ref[...])


# ------------------------------ wrappers ------------------------------------

def conv3x3_bn_relu(x_nhwc, w_flat, scale, bias, *, pool):
    N, H, W, Cin = x_nhwc.shape           # Cin already padded to 128-multiple
    Cout = w_flat.shape[1]                # padded to 128-multiple
    TC = 256 if (Cout % 256 == 0) else LANE   # fill 256-wide MXU on v6e/v7x
    nco = Cout // TC
    Ho, Wo = (H // 2, W // 2) if pool else (H, W)

    # --- batch tile size: one weight fetch serves b_tile images -------------
    per_b = (2 * H * W * Cin * 2 +              # x block (double-buffered)
             (H + 2) * (W + 2) * Cin * 2 +      # halo scratch
             H * W * 9 * Cin * 2 +              # im2col patch scratch
             2 * Ho * Wo * TC * 2)              # out block (double-buffered)
    w_bytes = 2 * (9 * Cin * TC * 2 + 2 * TC * 4)   # dbl-buffered w + scale/bias
    budget = 40 * (1 << 20)                     # conservative (fits v7x 64 MiB)
    b_tile = 1
    for d in range(min(N, 8), 0, -1):
        if N % d == 0 and d * per_b + w_bytes <= budget:
            b_tile = d
            break

    needed = b_tile * per_b + w_bytes + (2 << 20)
    vmem_limit = int(min(max(2 * needed, 32 * (1 << 20)), 64 * (1 << 20)))

    flops = 2 * N * H * W * (9 * Cin) * Cout
    bytes_accessed = (x_nhwc.size * 2 + (N // b_tile) * w_flat.size * 2 +
                      scale.size * 4 + bias.size * 4 + N * Ho * Wo * Cout * 2)

    out3 = pl.pallas_call(
        functools.partial(_conv3x3_bn_relu_kernel, pool=pool),
        out_shape=jax.ShapeDtypeStruct((N, Ho * Wo, Cout), jnp.bfloat16),
        grid=(N // b_tile, nco),                # Cout axis MUST stay innermost
        in_specs=[
            pl.BlockSpec((b_tile, H, W, Cin), lambda n, c: (n, 0, 0, 0)),
            pl.BlockSpec((9 * Cin, TC), lambda n, c: (0, c)),
            pl.BlockSpec((1, TC), lambda n, c: (0, c)),
            pl.BlockSpec((1, TC), lambda n, c: (0, c)),
        ],
        out_specs=pl.BlockSpec((b_tile, Ho * Wo, TC), lambda n, c: (n, 0, c)),
        scratch_shapes=[
            pltpu.VMEM((b_tile, H + 2, W + 2, Cin), jnp.bfloat16),  # halo
            pltpu.VMEM((b_tile * H * W, 9 * Cin), jnp.bfloat16),    # im2col
        ],
        compiler_params=pltpu.CompilerParams(
            dimension_semantics=("parallel", "arbitrary"),
            vmem_limit_bytes=vmem_limit),
        cost_estimate=pl.CostEstimate(flops=flops, transcendentals=0,
                                      bytes_accessed=bytes_accessed),
    )(x_nhwc, w_flat, scale, bias)
    return out3.reshape(N, Ho, Wo, Cout)        # free row-major reshape in HBM


def maxpool2(x_nhwc):
    N, H, W, C = x_nhwc.shape
    Ho, Wo = H // 2, W // 2
    return pl.pallas_call(
        _maxpool2_kernel,
        out_shape=jax.ShapeDtypeStruct((N, Ho, Wo, C), x_nhwc.dtype),
        grid=(N,),
        in_specs=[pl.BlockSpec((1, H, W, C), lambda n: (n, 0, 0, 0))],
        out_specs=pl.BlockSpec((1, Ho, Wo, C), lambda n: (n, 0, 0, 0)),
        compiler_params=pltpu.CompilerParams(dimension_semantics=("parallel",)),
    )(x_nhwc)


def _make_pool_matrix(H, W):
    # PyTorch adaptive bins: start=floor(i*H/3), end=ceil((i+1)*H/3).
    pm = np.zeros((9, H * W), np.float32)
    for oi in range(3):
        hs, he = (oi * H) // 3, -((-(oi + 1) * H) // 3)
        for oj in range(3):
            ws, we = (oj * W) // 3, -((-(oj + 1) * W) // 3)
            inv = 1.0 / ((he - hs) * (we - ws))
            for h in range(hs, he):
                pm[oi * 3 + oj, h * W + ws:h * W + we] = inv
    return jnp.asarray(pm, dtype=jnp.bfloat16)


def adaptive_avgpool3(x_nhwc):
    N, H, W, C = x_nhwc.shape
    pm = _make_pool_matrix(H, W)
    x2 = x_nhwc.reshape(N, H * W, C)      # free row-major reshape in HBM
    return pl.pallas_call(
        _adaptive_avgpool3_kernel,
        out_shape=jax.ShapeDtypeStruct((N, 9, C), jnp.bfloat16),
        grid=(N,),
        in_specs=[
            pl.BlockSpec((9, H * W), lambda n: (0, 0)),
            pl.BlockSpec((1, H * W, C), lambda n: (n, 0, 0)),
        ],
        out_specs=pl.BlockSpec((1, 9, C), lambda n: (n, 0, 0)),
        compiler_params=pltpu.CompilerParams(dimension_semantics=("parallel",)),
    )(pm, x2)


def linear(x, w, b):
    N, F = x.shape
    ncp = w.shape[1]
    return pl.pallas_call(
        _linear_kernel,
        out_shape=jax.ShapeDtypeStruct((N, ncp), jnp.float32),
        grid=(1,),
        in_specs=[
            pl.BlockSpec((N, F), lambda i: (0, 0)),
            pl.BlockSpec((F, ncp), lambda i: (0, 0)),
            pl.BlockSpec((1, ncp), lambda i: (0, 0)),
        ],
        out_specs=pl.BlockSpec((N, ncp), lambda i: (0, 0)),
    )(x, w, b)


# --------------------------- parameter init ---------------------------------

def init_vgg_params(key, model_config, in_channels, num_class):
    eps = 1e-5
    convs = []
    cin = in_channels
    last_c = in_channels
    for v in model_config:
        if v == 'M':
            continue
        key, kw, kg, kb, km, kv = jax.random.split(key, 6)
        # PyTorch conv weight layout (Cout, Cin, 3, 3); conv bias-free (BN).
        w = 0.1 * jax.random.normal(kw, (v, cin, 3, 3), jnp.float32)
        gamma = 1.0 + 0.1 * jax.random.normal(kg, (v,), jnp.float32)
        beta = 0.1 * jax.random.normal(kb, (v,), jnp.float32)
        rmean = 0.1 * jax.random.normal(km, (v,), jnp.float32)
        rvar = 1.0 + 0.1 * jnp.abs(jax.random.normal(kv, (v,), jnp.float32))
        scale = gamma / jnp.sqrt(rvar + eps)   # folded inference-mode BN
        bias = beta - rmean * scale
        cin_p, cout_p = _pad128(cin), _pad128(v)
        # (Cout,Cin,3,3) -> (3,3,Cin,Cout) -> zero-pad channels -> (9*Cin_p, Cout_p)
        w_hwio = jnp.transpose(w, (2, 3, 1, 0))
        w_hwio = jnp.pad(w_hwio, ((0, 0), (0, 0),
                                  (0, cin_p - cin), (0, cout_p - v)))
        convs.append((
            w_hwio.reshape(9 * cin_p, cout_p).astype(jnp.bfloat16),
            jnp.pad(scale, (0, cout_p - v)).reshape(1, cout_p),
            jnp.pad(bias, (0, cout_p - v)).reshape(1, cout_p),
        ))
        cin = v
        last_c = v
    key, kw, kb = jax.random.split(key, 3)
    F = 128 * 3 * 3   # classifier input fixed by the module definition
    ncp = _pad128(num_class)
    lw = 0.05 * jax.random.normal(kw, (num_class, F), jnp.float32)  # (out, in)
    lb = 0.05 * jax.random.normal(kb, (num_class,), jnp.float32)
    lw_p = jnp.pad(jnp.transpose(lw), ((0, 0), (0, ncp - num_class)))  # (F, ncp)
    lb_p = jnp.pad(lb, (0, ncp - num_class)).reshape(1, ncp)
    return {"convs": convs,
            "linear": (lw_p.astype(jnp.bfloat16), lb_p),
            "num_class": num_class, "last_c": last_c}


# ------------------------------ forward -------------------------------------

def vgg_forward(params, x_nchw, model_config):
    # NCHW -> NHWC, one-time channel pad to a lane multiple, bf16 activations.
    x = jnp.transpose(x_nchw, (0, 2, 3, 1)).astype(jnp.bfloat16)
    cin = x.shape[-1]
    x = jnp.pad(x, ((0, 0), (0, 0), (0, 0), (0, _pad128(cin) - cin)))

    entries = list(model_config)
    i, ci = 0, 0
    while i < len(entries):
        v = entries[i]
        if v == 'M':
            x = maxpool2(x)
            i += 1
        else:
            pool = (i + 1 < len(entries)) and entries[i + 1] == 'M'
            w_flat, scale, bias = params["convs"][ci]
            x = conv3x3_bn_relu(x, w_flat, scale, bias, pool=pool)
            ci += 1
            i += 2 if pool else 1

    a = adaptive_avgpool3(x)                          # (N, 9, C_pad) bf16
    a = a[:, :, :params["last_c"]]                    # drop padded channels
    # flatten in PyTorch NCHW order: (N, C, 3, 3) -> (N, C*9)
    flat = jnp.transpose(a, (0, 2, 1)).reshape(a.shape[0], -1)
    lw, lb = params["linear"]
    out = linear(flat.astype(jnp.bfloat16), lw, lb)   # (N, num_class padded)
    return out[:, :params["num_class"]]


if __name__ == "__main__":
    # Small custom config (module accepts a list); the classifier requires the
    # last conv to have 128 channels (Linear(128*3*3, num_class)).
    model_config = [8, 'M', 16, 'M', 128]
    in_channels, num_class = 4, 10

    key = jax.random.PRNGKey(0)
    kp, kx = jax.random.split(key)
    params = init_vgg_params(kp, model_config, in_channels, num_class)
    x = jax.random.normal(kx, (2, in_channels, 16, 16), jnp.float32)

    out = vgg_forward(params, x, model_config)
    out = jax.block_until_ready(out)
    assert out.shape == (2, num_class) and out.dtype == jnp.float32
    print("KERNEL_OK")
</pallas_src>

<mosaic_0001>
module attributes {stable_mosaic.version = 11 : i64} {
  func.func @_conv3x3_bn_relu_kernel(%arg0: i32, %arg1: i32, %arg2: memref<2x16x16x128xbf16, #tpu.memory_space<vmem>>, %arg3: memref<1152x128xbf16, #tpu.memory_space<vmem>>, %arg4: memref<1x128xf32, #tpu.memory_space<vmem>>, %arg5: memref<1x128xf32, #tpu.memory_space<vmem>>, %arg6: memref<2x64x128xbf16, #tpu.memory_space<vmem>>, %arg7: memref<2x18x18x128xbf16, #tpu.memory_space<vmem>>, %arg8: memref<512x1152xbf16, #tpu.memory_space<vmem>>) attributes {dimension_semantics = [#tpu.dimension_semantics<parallel>, #tpu.dimension_semantics<arbitrary>], iteration_bounds = array<i64: 1, 1>, scalar_prefetch = 0 : i64, scratch_operands = 2 : i64, tpu.core_type = #tpu.core_type<tc>, window_params = [{transform_indices = @transform_0, window_bounds = array<i64: 2, 16, 16, 128>}, {transform_indices = @transform_1, window_bounds = array<i64: 1152, 128>}, {transform_indices = @transform_2, window_bounds = array<i64: 1, 128>}, {transform_indices = @transform_3, window_bounds = array<i64: 1, 128>}, {transform_indices = @transform_4, window_bounds = array<i64: 2, 64, 128>}]} {
    %c0_i32 = arith.constant 0 : i32
    %0 = arith.cmpi eq, %arg1, %c0_i32 : i32
    %1 = arith.extui %0 : i1 to i32
    %c0_i32_0 = arith.constant 0 : i32
    %2 = arith.cmpi ne, %1, %c0_i32_0 : i32
    scf.if %2 {
      %cst_18 = arith.constant 0.000000e+00 : bf16
      %34 = vector.broadcast %cst_18 : bf16 to vector<18x128xbf16>
      %cst_19 = arith.constant 0.000000e+00 : bf16
      %35 = vector.broadcast %cst_19 : bf16 to vector<16x128xbf16>
      %c0_20 = arith.constant 0 : index
      %c0_21 = arith.constant 0 : index
      %c0_22 = arith.constant 0 : index
      %c0_23 = arith.constant 0 : index
      %36 = vector.load %arg7[%c0_20, %c0_21, %c0_22, %c0_23] : memref<2x18x18x128xbf16, #tpu.memory_space<vmem>>, vector<1x1x18x128xbf16>
      %37 = vector.shape_cast %36 : vector<1x1x18x128xbf16> to vector<18x128xbf16>
      %38 = vector.shape_cast %34 : vector<18x128xbf16> to vector<1x1x18x128xbf16>
      tpu.vector_store %arg7[%c0_20, %c0_21, %c0_22, %c0_23], %38 {strides = array<i32>} : memref<2x18x18x128xbf16, #tpu.memory_space<vmem>>, vector<1x1x18x128xbf16>,
      %c0_24 = arith.constant 0 : index
      %c17 = arith.constant 17 : index
      %c0_25 = arith.constant 0 : index
      %c0_26 = arith.constant 0 : index
      %39 = vector.load %arg7[%c0_24, %c17, %c0_25, %c0_26] : memref<2x18x18x128xbf16, #tpu.memory_space<vmem>>, vector<1x1x18x128xbf16>
      %40 = vector.shape_cast %39 : vector<1x1x18x128xbf16> to vector<18x128xbf16>
      %41 = vector.shape_cast %34 : vector<18x128xbf16> to vector<1x1x18x128xbf16>
      tpu.vector_store %arg7[%c0_24, %c17, %c0_25, %c0_26], %41 {strides = array<i32>} : memref<2x18x18x128xbf16, #tpu.memory_space<vmem>>, vector<1x1x18x128xbf16>,
      %c0_27 = arith.constant 0 : index
      %c1_28 = arith.constant 1 : index
      %c0_29 = arith.constant 0 : index
      %c0_30 = arith.constant 0 : index
      %42 = vector.load %arg7[%c0_27, %c1_28, %c0_29, %c0_30] : memref<2x18x18x128xbf16, #tpu.memory_space<vmem>>, vector<1x16x1x128xbf16>
      %43 = vector.shape_cast %42 : vector<1x16x1x128xbf16> to vector<16x128xbf16>
      %44 = vector.shape_cast %35 : vector<16x128xbf16> to vector<1x16x1x128xbf16>
      tpu.vector_store %arg7[%c0_27, %c1_28, %c0_29, %c0_30], %44 {strides = array<i32>} : memref<2x18x18x128xbf16, #tpu.memory_space<vmem>>, vector<1x16x1x128xbf16>,
      %c0_31 = arith.constant 0 : index
      %c1_32 = arith.constant 1 : index
      %c17_33 = arith.constant 17 : index
      %c0_34 = arith.constant 0 : index
      %45 = vector.load %arg7[%c0_31, %c1_32, %c17_33, %c0_34] : memref<2x18x18x128xbf16, #tpu.memory_space<vmem>>, vector<1x16x1x128xbf16>
      %46 = vector.shape_cast %45 : vector<1x16x1x128xbf16> to vector<16x128xbf16>
      %47 = vector.shape_cast %35 : vector<16x128xbf16> to vector<1x16x1x128xbf16>
      tpu.vector_store %arg7[%c0_31, %c1_32, %c17_33, %c0_34], %47 {strides = array<i32>} : memref<2x18x18x128xbf16, #tpu.memory_space<vmem>>, vector<1x16x1x128xbf16>,
      %c0_35 = arith.constant 0 : index
      %c0_36 = arith.constant 0 : index
      %c0_37 = arith.constant 0 : index
      %c0_38 = arith.constant 0 : index
      %48 = vector.load %arg2[%c0_35, %c0_36, %c0_37, %c0_38] : memref<2x16x16x128xbf16, #tpu.memory_space<vmem>>, vector<1x16x16x128xbf16>
      %49 = vector.shape_cast %48 : vector<1x16x16x128xbf16> to vector<16x16x128xbf16>
      %c0_39 = arith.constant 0 : index
      %c1_40 = arith.constant 1 : index
      %c1_41 = arith.constant 1 : index
      %c0_42 = arith.constant 0 : index
      %50 = vector.load %arg7[%c0_39, %c1_40, %c1_41, %c0_42] : memref<2x18x18x128xbf16, #tpu.memory_space<vmem>>, vector<1x16x16x128xbf16>
      %51 = vector.shape_cast %50 : vector<1x16x16x128xbf16> to vector<16x16x128xbf16>
      %52 = vector.shape_cast %49 : vector<16x16x128xbf16> to vector<1x16x16x128xbf16>
      tpu.vector_store %arg7[%c0_39, %c1_40, %c1_41, %c0_42], %52 {strides = array<i32>} : memref<2x18x18x128xbf16, #tpu.memory_space<vmem>>, vector<1x16x16x128xbf16>,
      %c0_43 = arith.constant 0 : index
      %c0_44 = arith.constant 0 : index
      %c0_45 = arith.constant 0 : index
      %c0_46 = arith.constant 0 : index
      %53 = vector.load %arg7[%c0_43, %c0_44, %c0_45, %c0_46] : memref<2x18x18x128xbf16, #tpu.memory_space<vmem>>, vector<1x16x16x128xbf16>
      %54 = vector.shape_cast %53 : vector<1x16x16x128xbf16> to vector<16x16x128xbf16>
      %55 = vector.shape_cast %54 : vector<16x16x128xbf16> to vector<256x128xbf16>
      %c0_47 = arith.constant 0 : index
      %c0_48 = arith.constant 0 : index
      %56 = vector.load %arg8[%c0_47, %c0_48] : memref<512x1152xbf16, #tpu.memory_space<vmem>>, vector<256x128xbf16>
      tpu.vector_store %arg8[%c0_47, %c0_48], %55 {strides = array<i32>} : memref<512x1152xbf16, #tpu.memory_space<vmem>>, vector<256x128xbf16>,
      %c0_49 = arith.constant 0 : index
      %c0_50 = arith.constant 0 : index
      %c1_51 = arith.constant 1 : index
      %c0_52 = arith.constant 0 : index
      %57 = vector.load %arg7[%c0_49, %c0_50, %c1_51, %c0_52] : memref<2x18x18x128xbf16, #tpu.memory_space<vmem>>, vector<1x16x16x128xbf16>
      %58 = vector.shape_cast %57 : vector<1x16x16x128xbf16> to vector<16x16x128xbf16>
      %59 = vector.shape_cast %58 : vector<16x16x128xbf16> to vector<256x128xbf16>
      %c0_53 = arith.constant 0 : index
      %c128 = arith.constant 128 : index
      %60 = vector.load %arg8[%c0_53, %c128] : memref<512x1152xbf16, #tpu.memory_space<vmem>>, vector<256x128xbf16>
      tpu.vector_store %arg8[%c0_53, %c128], %59 {strides = array<i32>} : memref<512x1152xbf16, #tpu.memory_space<vmem>>, vector<256x128xbf16>,
      %c0_54 = arith.constant 0 : index
      %c0_55 = arith.constant 0 : index
      %c2 = arith.constant 2 : index
      %c0_56 = arith.constant 0 : index
      %61 = vector.load %arg7[%c0_54, %c0_55, %c2, %c0_56] : memref<2x18x18x128xbf16, #tpu.memory_space<vmem>>, vector<1x16x16x128xbf16>
      %62 = vector.shape_cast %61 : vector<1x16x16x128xbf16> to vector<16x16x128xbf16>
      %63 = vector.shape_cast %62 : vector<16x16x128xbf16> to vector<256x128xbf16>
      %c0_57 = arith.constant 0 : index
      %c256 = arith.constant 256 : index
      %64 = vector.load %arg8[%c0_57, %c256] : memref<512x1152xbf16, #tpu.memory_space<vmem>>, vector<256x128xbf16>
      tpu.vector_store %arg8[%c0_57, %c256], %63 {strides = array<i32>} : memref<512x1152xbf16, #tpu.memory_space<vmem>>, vector<256x128xbf16>,
      %c0_58 = arith.constant 0 : index
      %c1_59 = arith.constant 1 : index
      %c0_60 = arith.constant 0 : index
      %c0_61 = arith.constant 0 : index
      %65 = vector.load %arg7[%c0_58, %c1_59, %c0_60, %c0_61] : memref<2x18x18x128xbf16, #tpu.memory_space<vmem>>, vector<1x16x16x128xbf16>
      %66 = vector.shape_cast %65 : vector<1x16x16x128xbf16> to vector<16x16x128xbf16>
      %67 = vector.shape_cast %66 : vector<16x16x128xbf16> to vector<256x128xbf16>
      %c0_62 = arith.constant 0 : index
      %c384 = arith.constant 384 : index
      %68 = vector.load %arg8[%c0_62, %c384] : memref<512x1152xbf16, #tpu.memory_space<vmem>>, vector<256x128xbf16>
      tpu.vector_store %arg8[%c0_62, %c384], %67 {strides = array<i32>} : memref<512x1152xbf16, #tpu.memory_space<vmem>>, vector<256x128xbf16>,
      %c0_63 = arith.constant 0 : index
      %c1_64 = arith.constant 1 : index
      %c1_65 = arith.constant 1 : index
      %c0_66 = arith.constant 0 : index
      %69 = vector.load %arg7[%c0_63, %c1_64, %c1_65, %c0_66] : memref<2x18x18x128xbf16, #tpu.memory_space<vmem>>, vector<1x16x16x128xbf16>
      %70 = vector.shape_cast %69 : vector<1x16x16x128xbf16> to vector<16x16x128xbf16>
      %71 = vector.shape_cast %70 : vector<16x16x128xbf16> to vector<256x128xbf16>
      %c0_67 = arith.constant 0 : index
      %c512 = arith.constant 512 : index
      %72 = vector.load %arg8[%c0_67, %c512] : memref<512x1152xbf16, #tpu.memory_space<vmem>>, vector<256x128xbf16>
      tpu.vector_store %arg8[%c0_67, %c512], %71 {strides = array<i32>} : memref<512x1152xbf16, #tpu.memory_space<vmem>>, vector<256x128xbf16>,
      %c0_68 = arith.constant 0 : index
      %c1_69 = arith.constant 1 : index
      %c2_70 = arith.constant 2 : index
      %c0_71 = arith.constant 0 : index
      %73 = vector.load %arg7[%c0_68, %c1_69, %c2_70, %c0_71] : memref<2x18x18x128xbf16, #tpu.memory_space<vmem>>, vector<1x16x16x128xbf16>
      %74 = vector.shape_cast %73 : vector<1x16x16x128xbf16> to vector<16x16x128xbf16>
      %75 = vector.shape_cast %74 : vector<16x16x128xbf16> to vector<256x128xbf16>
      %c0_72 = arith.constant 0 : index
      %c640 = arith.constant 640 : index
      %76 = vector.load %arg8[%c0_72, %c640] : memref<512x1152xbf16, #tpu.memory_space<vmem>>, vector<256x128xbf16>
      tpu.vector_store %arg8[%c0_72, %c640], %75 {strides = array<i32>} : memref<512x1152xbf16, #tpu.memory_space<vmem>>, vector<256x128xbf16>,
      %c0_73 = arith.constant 0 : index
      %c2_74 = arith.constant 2 : index
      %c0_75 = arith.constant 0 : index
      %c0_76 = arith.constant 0 : index
      %77 = vector.load %arg7[%c0_73, %c2_74, %c0_75, %c0_76] : memref<2x18x18x128xbf16, #tpu.memory_space<vmem>>, vector<1x16x16x128xbf16>
      %78 = vector.shape_cast %77 : vector<1x16x16x128xbf16> to vector<16x16x128xbf16>
      %79 = vector.shape_cast %78 : vector<16x16x128xbf16> to vector<256x128xbf16>
      %c0_77 = arith.constant 0 : index
      %c768 = arith.constant 768 : index
      %80 = vector.load %arg8[%c0_77, %c768] : memref<512x1152xbf16, #tpu.memory_space<vmem>>, vector<256x128xbf16>
      tpu.vector_store %arg8[%c0_77, %c768], %79 {strides = array<i32>} : memref<512x1152xbf16, #tpu.memory_space<vmem>>, vector<256x128xbf16>,
      %c0_78 = arith.constant 0 : index
      %c2_79 = arith.constant 2 : index
      %c1_80 = arith.constant 1 : index
      %c0_81 = arith.constant 0 : index
      %81 = vector.load %arg7[%c0_78, %c2_79, %c1_80, %c0_81] : memref<2x18x18x128xbf16, #tpu.memory_space<vmem>>, vector<1x16x16x128xbf16>
      %82 = vector.shape_cast %81 : vector<1x16x16x128xbf16> to vector<16x16x128xbf16>
      %83 = vector.shape_cast %82 : vector<16x16x128xbf16> to vector<256x128xbf16>
      %c0_82 = arith.constant 0 : index
      %c896 = arith.constant 896 : index
      %84 = vector.load %arg8[%c0_82, %c896] : memref<512x1152xbf16, #tpu.memory_space<vmem>>, vector<256x128xbf16>
      tpu.vector_store %arg8[%c0_82, %c896], %83 {strides = array<i32>} : memref<512x1152xbf16, #tpu.memory_space<vmem>>, vector<256x128xbf16>,
      %c0_83 = arith.constant 0 : index
      %c2_84 = arith.constant 2 : index
      %c2_85 = arith.constant 2 : index
      %c0_86 = arith.constant 0 : index
      %85 = vector.load %arg7[%c0_83, %c2_84, %c2_85, %c0_86] : memref<2x18x18x128xbf16, #tpu.memory_space<vmem>>, vector<1x16x16x128xbf16>
      %86 = vector.shape_cast %85 : vector<1x16x16x128xbf16> to vector<16x16x128xbf16>
      %87 = vector.shape_cast %86 : vector<16x16x128xbf16> to vector<256x128xbf16>
      %c0_87 = arith.constant 0 : index
      %c1024 = arith.constant 1024 : index
      %88 = vector.load %arg8[%c0_87, %c1024] : memref<512x1152xbf16, #tpu.memory_space<vmem>>, vector<256x128xbf16>
      tpu.vector_store %arg8[%c0_87, %c1024], %87 {strides = array<i32>} : memref<512x1152xbf16, #tpu.memory_space<vmem>>, vector<256x128xbf16>,
      %c1_88 = arith.constant 1 : index
      %c0_89 = arith.constant 0 : index
      %c0_90 = arith.constant 0 : index
      %c0_91 = arith.constant 0 : index
      %89 = vector.load %arg7[%c1_88, %c0_89, %c0_90, %c0_91] : memref<2x18x18x128xbf16, #tpu.memory_space<vmem>>, vector<1x1x18x128xbf16>
      %90 = vector.shape_cast %89 : vector<1x1x18x128xbf16> to vector<18x128xbf16>
      %91 = vector.shape_cast %34 : vector<18x128xbf16> to vector<1x1x18x128xbf16>
      tpu.vector_store %arg7[%c1_88, %c0_89, %c0_90, %c0_91], %91 {strides = array<i32>} : memref<2x18x18x128xbf16, #tpu.memory_space<vmem>>, vector<1x1x18x128xbf16>,
      %c1_92 = arith.constant 1 : index
      %c17_93 = arith.constant 17 : index
      %c0_94 = arith.constant 0 : index
      %c0_95 = arith.constant 0 : index
      %92 = vector.load %arg7[%c1_92, %c17_93, %c0_94, %c0_95] : memref<2x18x18x128xbf16, #tpu.memory_space<vmem>>, vector<1x1x18x128xbf16>
      %93 = vector.shape_cast %92 : vector<1x1x18x128xbf16> to vector<18x128xbf16>
      %94 = vector.shape_cast %34 : vector<18x128xbf16> to vector<1x1x18x128xbf16>
      tpu.vector_store %arg7[%c1_92, %c17_93, %c0_94, %c0_95], %94 {strides = array<i32>} : memref<2x18x18x128xbf16, #tpu.memory_space<vmem>>, vector<1x1x18x128xbf16>,
      %c1_96 = arith.constant 1 : index
      %c1_97 = arith.constant 1 : index
      %c0_98 = arith.constant 0 : index
      %c0_99 = arith.constant 0 : index
      %95 = vector.load %arg7[%c1_96, %c1_97, %c0_98, %c0_99] : memref<2x18x18x128xbf16, #tpu.memory_space<vmem>>, vector<1x16x1x128xbf16>
      %96 = vector.shape_cast %95 : vector<1x16x1x128xbf16> to vector<16x128xbf16>
      %97 = vector.shape_cast %35 : vector<16x128xbf16> to vector<1x16x1x128xbf16>
      tpu.vector_store %arg7[%c1_96, %c1_97, %c0_98, %c0_99], %97 {strides = array<i32>} : memref<2x18x18x128xbf16, #tpu.memory_space<vmem>>, vector<1x16x1x128xbf16>,
      %c1_100 = arith.constant 1 : index
      %c1_101 = arith.constant 1 : index
      %c17_102 = arith.constant 17 : index
      %c0_103 = arith.constant 0 : index
      %98 = vector.load %arg7[%c1_100, %c1_101, %c17_102, %c0_103] : memref<2x18x18x128xbf16, #tpu.memory_space<vmem>>, vector<1x16x1x128xbf16>
      %99 = vector.shape_cast %98 : vector<1x16x1x128xbf16> to vector<16x128xbf16>
      %100 = vector.shape_cast %35 : vector<16x128xbf16> to vector<1x16x1x128xbf16>
      tpu.vector_store %arg7[%c1_100, %c1_101, %c17_102, %c0_103], %100 {strides = array<i32>} : memref<2x18x18x128xbf16, #tpu.memory_space<vmem>>, vector<1x16x1x128xbf16>,
      %c1_104 = arith.constant 1 : index
      %c0_105 = arith.constant 0 : index
      %c0_106 = arith.constant 0 : index
      %c0_107 = arith.constant 0 : index
      %101 = vector.load %arg2[%c1_104, %c0_105, %c0_106, %c0_107] : memref<2x16x16x128xbf16, #tpu.memory_space<vmem>>, vector<1x16x16x128xbf16>
      %102 = vector.shape_cast %101 : vector<1x16x16x128xbf16> to vector<16x16x128xbf16>
      %c1_108 = arith.constant 1 : index
      %c1_109 = arith.constant 1 : index
      %c1_110 = arith.constant 1 : index
      %c0_111 = arith.constant 0 : index
      %103 = vector.load %arg7[%c1_108, %c1_109, %c1_110, %c0_111] : memref<2x18x18x128xbf16, #tpu.memory_space<vmem>>, vector<1x16x16x128xbf16>
      %104 = vector.shape_cast %103 : vector<1x16x16x128xbf16> to vector<16x16x128xbf16>
      %105 = vector.shape_cast %102 : vector<16x16x128xbf16> to vector<1x16x16x128xbf16>
      tpu.vector_store %arg7[%c1_108, %c1_109, %c1_110, %c0_111], %105 {strides = array<i32>} : memref<2x18x18x128xbf16, #tpu.memory_space<vmem>>, vector<1x16x16x128xbf16>,
      %c1_112 = arith.constant 1 : index
      %c0_113 = arith.constant 0 : index
      %c0_114 = arith.constant 0 : index
      %c0_115 = arith.constant 0 : index
      %106 = vector.load %arg7[%c1_112, %c0_113, %c0_114, %c0_115] : memref<2x18x18x128xbf16, #tpu.memory_space<vmem>>, vector<1x16x16x128xbf16>
      %107 = vector.shape_cast %106 : vector<1x16x16x128xbf16> to vector<16x16x128xbf16>
      %108 = vector.shape_cast %107 : vector<16x16x128xbf16> to vector<256x128xbf16>
      %c256_116 = arith.constant 256 : index
      %c0_117 = arith.constant 0 : index
      %109 = vector.load %arg8[%c256_116, %c0_117] : memref<512x1152xbf16, #tpu.memory_space<vmem>>, vector<256x128xbf16>
      tpu.vector_store %arg8[%c256_116, %c0_117], %108 {strides = array<i32>} : memref<512x1152xbf16, #tpu.memory_space<vmem>>, vector<256x128xbf16>,
      %c1_118 = arith.constant 1 : index
      %c0_119 = arith.constant 0 : index
      %c1_120 = arith.constant 1 : index
      %c0_121 = arith.constant 0 : index
      %110 = vector.load %arg7[%c1_118, %c0_119, %c1_120, %c0_121] : memref<2x18x18x128xbf16, #tpu.memory_space<vmem>>, vector<1x16x16x128xbf16>
      %111 = vector.shape_cast %110 : vector<1x16x16x128xbf16> to vector<16x16x128xbf16>
      %112 = vector.shape_cast %111 : vector<16x16x128xbf16> to vector<256x128xbf16>
      %c256_122 = arith.constant 256 : index
      %c128_123 = arith.constant 128 : index
      %113 = vector.load %arg8[%c256_122, %c128_123] : memref<512x1152xbf16, #tpu.memory_space<vmem>>, vector<256x128xbf16>
      tpu.vector_store %arg8[%c256_122, %c128_123], %112 {strides = array<i32>} : memref<512x1152xbf16, #tpu.memory_space<vmem>>, vector<256x128xbf16>,
      %c1_124 = arith.constant 1 : index
      %c0_125 = arith.constant 0 : index
      %c2_126 = arith.constant 2 : index
      %c0_127 = arith.constant 0 : index
      %114 = vector.load %arg7[%c1_124, %c0_125, %c2_126, %c0_127] : memref<2x18x18x128xbf16, #tpu.memory_space<vmem>>, vector<1x16x16x128xbf16>
      %115 = vector.shape_cast %114 : vector<1x16x16x128xbf16> to vector<16x16x128xbf16>
      %116 = vector.shape_cast %115 : vector<16x16x128xbf16> to vector<256x128xbf16>
      %c256_128 = arith.constant 256 : index
      %c256_129 = arith.constant 256 : index
      %117 = vector.load %arg8[%c256_128, %c256_129] : memref<512x1152xbf16, #tpu.memory_space<vmem>>, vector<256x128xbf16>
      tpu.vector_store %arg8[%c256_128, %c256_129], %116 {strides = array<i32>} : memref<512x1152xbf16, #tpu.memory_space<vmem>>, vector<256x128xbf16>,
      %c1_130 = arith.constant 1 : index
      %c1_131 = arith.constant 1 : index
      %c0_132 = arith.constant 0 : index
      %c0_133 = arith.constant 0 : index
      %118 = vector.load %arg7[%c1_130, %c1_131, %c0_132, %c0_133] : memref<2x18x18x128xbf16, #tpu.memory_space<vmem>>, vector<1x16x16x128xbf16>
      %119 = vector.shape_cast %118 : vector<1x16x16x128xbf16> to vector<16x16x128xbf16>
      %120 = vector.shape_cast %119 : vector<16x16x128xbf16> to vector<256x128xbf16>
      %c256_134 = arith.constant 256 : index
      %c384_135 = arith.constant 384 : index
      %121 = vector.load %arg8[%c256_134, %c384_135] : memref<512x1152xbf16, #tpu.memory_space<vmem>>, vector<256x128xbf16>
      tpu.vector_store %arg8[%c256_134, %c384_135], %120 {strides = array<i32>} : memref<512x1152xbf16, #tpu.memory_space<vmem>>, vector<256x128xbf16>,
      %c1_136 = arith.constant 1 : index
      %c1_137 = arith.constant 1 : index
      %c1_138 = arith.constant 1 : index
      %c0_139 = arith.constant 0 : index
      %122 = vector.load %arg7[%c1_136, %c1_137, %c1_138, %c0_139] : memref<2x18x18x128xbf16, #tpu.memory_space<vmem>>, vector<1x16x16x128xbf16>
      %123 = vector.shape_cast %122 : vector<1x16x16x128xbf16> to vector<16x16x128xbf16>
      %124 = vector.shape_cast %123 : vector<16x16x128xbf16> to vector<256x128xbf16>
      %c256_140 = arith.constant 256 : index
      %c512_141 = arith.constant 512 : index
      %125 = vector.load %arg8[%c256_140, %c512_141] : memref<512x1152xbf16, #tpu.memory_space<vmem>>, vector<256x128xbf16>
      tpu.vector_store %arg8[%c256_140, %c512_141], %124 {strides = array<i32>} : memref<512x1152xbf16, #tpu.memory_space<vmem>>, vector<256x128xbf16>,
      %c1_142 = arith.constant 1 : index
      %c1_143 = arith.constant 1 : index
      %c2_144 = arith.constant 2 : index
      %c0_145 = arith.constant 0 : index
      %126 = vector.load %arg7[%c1_142, %c1_143, %c2_144, %c0_145] : memref<2x18x18x128xbf16, #tpu.memory_space<vmem>>, vector<1x16x16x128xbf16>
      %127 = vector.shape_cast %126 : vector<1x16x16x128xbf16> to vector<16x16x128xbf16>
      %128 = vector.shape_cast %127 : vector<16x16x128xbf16> to vector<256x128xbf16>
      %c256_146 = arith.constant 256 : index
      %c640_147 = arith.constant 640 : index
      %129 = vector.load %arg8[%c256_146, %c640_147] : memref<512x1152xbf16, #tpu.memory_space<vmem>>, vector<256x128xbf16>
      tpu.vector_store %arg8[%c256_146, %c640_147], %128 {strides = array<i32>} : memref<512x1152xbf16, #tpu.memory_space<vmem>>, vector<256x128xbf16>,
      %c1_148 = arith.constant 1 : index
      %c2_149 = arith.constant 2 : index
      %c0_150 = arith.constant 0 : index
      %c0_151 = arith.constant 0 : index
      %130 = vector.load %arg7[%c1_148, %c2_149, %c0_150, %c0_151] : memref<2x18x18x128xbf16, #tpu.memory_space<vmem>>, vector<1x16x16x128xbf16>
      %131 = vector.shape_cast %130 : vector<1x16x16x128xbf16> to vector<16x16x128xbf16>
      %132 = vector.shape_cast %131 : vector<16x16x128xbf16> to vector<256x128xbf16>
      %c256_152 = arith.constant 256 : index
      %c768_153 = arith.constant 768 : index
      %133 = vector.load %arg8[%c256_152, %c768_153] : memref<512x1152xbf16, #tpu.memory_space<vmem>>, vector<256x128xbf16>
      tpu.vector_store %arg8[%c256_152, %c768_153], %132 {strides = array<i32>} : memref<512x1152xbf16, #tpu.memory_space<vmem>>, vector<256x128xbf16>,
      %c1_154 = arith.constant 1 : index
      %c2_155 = arith.constant 2 : index
      %c1_156 = arith.constant 1 : index
      %c0_157 = arith.constant 0 : index
      %134 = vector.load %arg7[%c1_154, %c2_155, %c1_156, %c0_157] : memref<2x18x18x128xbf16, #tpu.memory_space<vmem>>, vector<1x16x16x128xbf16>
      %135 = vector.shape_cast %134 : vector<1x16x16x128xbf16> to vector<16x16x128xbf16>
      %136 = vector.shape_cast %135 : vector<16x16x128xbf16> to vector<256x128xbf16>
      %c256_158 = arith.constant 256 : index
      %c896_159 = arith.constant 896 : index
      %137 = vector.load %arg8[%c256_158, %c896_159] : memref<512x1152xbf16, #tpu.memory_space<vmem>>, vector<256x128xbf16>
      tpu.vector_store %arg8[%c256_158, %c896_159], %136 {strides = array<i32>} : memref<512x1152xbf16, #tpu.memory_space<vmem>>, vector<256x128xbf16>,
      %c1_160 = arith.constant 1 : index
      %c2_161 = arith.constant 2 : index
      %c2_162 = arith.constant 2 : index
      %c0_163 = arith.constant 0 : index
      %138 = vector.load %arg7[%c1_160, %c2_161, %c2_162, %c0_163] : memref<2x18x18x128xbf16, #tpu.memory_space<vmem>>, vector<1x16x16x128xbf16>
      %139 = vector.shape_cast %138 : vector<1x16x16x128xbf16> to vector<16x16x128xbf16>
      %140 = vector.shape_cast %139 : vector<16x16x128xbf16> to vector<256x128xbf16>
      %c256_164 = arith.constant 256 : index
      %c1024_165 = arith.constant 1024 : index
      %141 = vector.load %arg8[%c256_164, %c1024_165] : memref<512x1152xbf16, #tpu.memory_space<vmem>>, vector<256x128xbf16>
      tpu.vector_store %arg8[%c256_164, %c1024_165], %140 {strides = array<i32>} : memref<512x1152xbf16, #tpu.memory_space<vmem>>, vector<256x128xbf16>,
    } else {
    }
    %c0 = arith.constant 0 : index
    %c0_1 = arith.constant 0 : index
    %3 = vector.load %arg8[%c0, %c0_1] : memref<512x1152xbf16, #tpu.memory_space<vmem>>, vector<512x1152xbf16>
    %c0_2 = arith.constant 0 : index
    %c0_3 = arith.constant 0 : index
    %4 = vector.load %arg3[%c0_2, %c0_3] : memref<1152x128xbf16, #tpu.memory_space<vmem>>, vector<1152x128xbf16>
    %cst = arith.constant dense<0.000000e+00> : vector<512x128xf32>
    %5 = tpu.matmul %3, %4, %cst {dimension_numbers = #tpu.dot_dimension_numbers<[1], [0], [0], [1], [0, 0, 1, 1], [], []>} : vector<512x1152xbf16>, vector<1152x128xbf16>, vector<512x128xf32> -> vector<512x128xf32>
    %c0_4 = arith.constant 0 : index
    %c0_5 = arith.constant 0 : index
    %6 = vector.load %arg4[%c0_4, %c0_5] : memref<1x128xf32, #tpu.memory_space<vmem>>, vector<1x128xf32>
    %7 = vector.broadcast %6 : vector<1x128xf32> to vector<512x128xf32>
    %8 = arith.mulf %5, %7 : vector<512x128xf32>
    %c0_6 = arith.constant 0 : index
    %c0_7 = arith.constant 0 : index
    %9 = vector.load %arg5[%c0_6, %c0_7] : memref<1x128xf32, #tpu.memory_space<vmem>>, vector<1x128xf32>
    %10 = vector.broadcast %9 : vector<1x128xf32> to vector<512x128xf32>
    %11 = arith.addf %8, %10 : vector<512x128xf32>
    %cst_8 = arith.constant 0.000000e+00 : f32
    %12 = vector.broadcast %cst_8 : f32 to vector<512x128xf32>
    %13 = arith.maximumf %11, %12 : vector<512x128xf32>
    %14 = vector.extract_strided_slice %13 {offsets = [0, 0], sizes = [256, 128], strides = [1, 1]} : vector<512x128xf32> to vector<256x128xf32>
    %15 = vector.shape_cast %14 : vector<256x128xf32> to vector<16x16x128xf32>
    %16 = vector.shape_cast %15 : vector<16x16x128xf32> to vector<8x2x8x2x128xf32>
    %cst_9 = arith.constant dense<0xFF800000> : vector<8x2x8x128xf32>
    %17 = vector.multi_reduction <maximumf>, %16, %cst_9 [3] : vector<8x2x8x2x128xf32> to vector<8x2x8x128xf32>
    %cst_10 = arith.constant dense<0xFF800000> : vector<8x8x128xf32>
    %18 = vector.multi_reduction <maximumf>, %17, %cst_10 [1] : vector<8x2x8x128xf32> to vector<8x8x128xf32>
    %19 = vector.shape_cast %18 : vector<8x8x128xf32> to vector<64x128xf32>
    %20 = arith.truncf %19 : vector<64x128xf32> to vector<64x128xbf16>
    %c0_11 = arith.constant 0 : index
    %c0_12 = arith.constant 0 : index
    %c0_13 = arith.constant 0 : index
    %21 = vector.load %arg6[%c0_11, %c0_12, %c0_13] : memref<2x64x128xbf16, #tpu.memory_space<vmem>>, vector<1x64x128xbf16>
    %22 = vector.shape_cast %21 : vector<1x64x128xbf16> to vector<64x128xbf16>
    %23 = vector.shape_cast %20 : vector<64x128xbf16> to vector<1x64x128xbf16>
    tpu.vector_store %arg6[%c0_11, %c0_12, %c0_13], %23 {strides = array<i32>} : memref<2x64x128xbf16, #tpu.memory_space<vmem>>, vector<1x64x128xbf16>,
    %24 = vector.extract_strided_slice %13 {offsets = [256, 0], sizes = [256, 128], strides = [1, 1]} : vector<512x128xf32> to vector<256x128xf32>
    %25 = vector.shape_cast %24 : vector<256x128xf32> to vector<16x16x128xf32>
    %26 = vector.shape_cast %25 : vector<16x16x128xf32> to vector<8x2x8x2x128xf32>
    %cst_14 = arith.constant dense<0xFF800000> : vector<8x2x8x128xf32>
    %27 = vector.multi_reduction <maximumf>, %26, %cst_14 [3] : vector<8x2x8x2x128xf32> to vector<8x2x8x128xf32>
    %cst_15 = arith.constant dense<0xFF800000> : vector<8x8x128xf32>
    %28 = vector.multi_reduction <maximumf>, %27, %cst_15 [1] : vector<8x2x8x128xf32> to vector<8x8x128xf32>
    %29 = vector.shape_cast %28 : vector<8x8x128xf32> to vector<64x128xf32>
    %30 = arith.truncf %29 : vector<64x128xf32> to vector<64x128xbf16>
    %c1 = arith.constant 1 : index
    %c0_16 = arith.constant 0 : index
    %c0_17 = arith.constant 0 : index
    %31 = vector.load %arg6[%c1, %c0_16, %c0_17] : memref<2x64x128xbf16, #tpu.memory_space<vmem>>, vector<1x64x128xbf16>
    %32 = vector.shape_cast %31 : vector<1x64x128xbf16> to vector<64x128xbf16>
    %33 = vector.shape_cast %30 : vector<64x128xbf16> to vector<1x64x128xbf16>
    tpu.vector_store %arg6[%c1, %c0_16, %c0_17], %33 {strides = array<i32>} : memref<2x64x128xbf16, #tpu.memory_space<vmem>>, vector<1x64x128xbf16>,
    return
  }
  func.func @transform_0(%arg0: i32, %arg1: i32) -> (i32, i32, i32, i32) {
    %c0_i32 = arith.constant 0 : i32
    %c0_i32_0 = arith.constant 0 : i32
    %c0_i32_1 = arith.constant 0 : i32
    %c0_i32_2 = arith.constant 0 : i32
    return %arg0, %c0_i32, %c0_i32_0, %c0_i32_1 : i32, i32, i32, i32
  }
  func.func @transform_1(%arg0: i32, %arg1: i32) -> (i32, i32) {
    %c0_i32 = arith.constant 0 : i32
    %c0_i32_0 = arith.constant 0 : i32
    return %c0_i32, %arg1 : i32, i32
  }
  func.func @transform_2(%arg0: i32, %arg1: i32) -> (i32, i32) {
    %c0_i32 = arith.constant 0 : i32
    %c0_i32_0 = arith.constant 0 : i32
    return %c0_i32, %arg1 : i32, i32
  }
  func.func @transform_3(%arg0: i32, %arg1: i32) -> (i32, i32) {
    %c0_i32 = arith.constant 0 : i32
    %c0_i32_0 = arith.constant 0 : i32
    return %c0_i32, %arg1 : i32, i32
  }
  func.func @transform_4(%arg0: i32, %arg1: i32) -> (i32, i32, i32) {
    %c0_i32 = arith.constant 0 : i32
    %c0_i32_0 = arith.constant 0 : i32
    return %arg0, %c0_i32, %arg1 : i32, i32, i32
  }
}

</mosaic_0001>

<llo_original>
// kernel: tpu_custom_call.1
$region0: #{tpu_custom_call.1}
  #allocation0 [shape = 'u32[]', space=smem, size = 0x4, offset = 0x4, fixed_abs, tag = 'smem constant byte address 0x4 - core index']
  #allocation1 [shape = 'u32[144,128]{1,0:T(1,128)}', space=vmem, size = 0x12000, scoped, tag = 'internal scratch']
  #allocation2 [shape = 'bf16[2,18,18,128]{3,2,1,0:T(8,128)(2,1)}', space=vmem, size = 0x36000, scoped, tag = 'scratch operand']
  #allocation3 [shape = 'bf16[512,1152]{1,0:T(16,128)(2,1)}', space=vmem, size = 0x120000, scoped, tag = 'scratch operand']
  %s0 = inlined_call_operand.hbm [shape: bf16[2,16,16,128], index: 0, kind: input, shape index: {}]
  %s1 = inlined_call_operand.hbm [shape: bf16[1152,128], index: 1, kind: input, shape index: {}]
  %s2 = inlined_call_operand.vmem [shape: f32[1,128], index: 2, kind: input, shape index: {}]
  %s3 = inlined_call_operand.vmem [shape: f32[1,128], index: 3, kind: input, shape index: {}]
  %s4 = inlined_call_operand.hbm [shape: bf16[2,64,128], index: 4, kind: output, shape index: {}]
  %s5 = sld [smem:[#allocation0]]
  $region38: #{tpu_custom_call.1} parent=0
    _
  %s7 = ssub.s32 1, %s5
  %s8 = scalar_select 0, %s7, %s5
  $region1: #{tpu_custom_call.1} parent=0
    #allocation4 [shape = 'u8[131072]{0}', space=vmem, size = 0x20000, scoped, tag = 'input window, operand 0, single buffered']
    #allocation5 [shape = 's32[1]{0}', space=sflag, size = 0x4, scoped, tag = 'scoped memory for tpu_custom_call.1']
    #allocation6 [shape = 's32[1]{0}', space=sflag, size = 0x4, scoped, tag = 'scoped memory for tpu_custom_call.1']
    #allocation7 [shape = 'u8[294912]{0}', space=vmem, size = 0x48000, scoped, tag = 'input window, operand 1, single buffered']
    #allocation8 [shape = 's32[1]{0}', space=sflag, size = 0x4, scoped, tag = 'scoped memory for tpu_custom_call.1']
    #allocation9 [shape = 'u8[32768]{0}', space=vmem, size = 0x8000, scoped, tag = 'output window, operand 0, single buffered']
    %9 = vsyncpa [#allocation5], 0
    %10 = vsyncpa [#allocation8], 0
    %11 = vsyncpa [#allocation6], 0
    // Predicated region
    $region2: #{tpu_custom_call.1} parent=1 // pred_check
      _
    $region3: #{tpu_custom_call.1} parent=1 // pred_check_branch
      %13 = sbr.rel (0) target = $region5
    $region4: #{tpu_custom_call.1} parent=1 // pred_region
      %s15 = ssub.s32 4096, 4096
      %16 = vsyncadd [#allocation5], %s15
      %s17 = sshll.u32 [#allocation4], 4
      %s18 = int_to_ptr.vmem [resolvable:$true] %s17
      %23 = dma.hbm_to_vmem [thread:$0]  %s0, 4096, %s18, [#allocation5], 64, 64, 4
    $region5: #{tpu_custom_call.1} parent=1 // pred_fallthru
      _
    // Predicated region
    $region6: #{tpu_custom_call.1} parent=1 // pred_check
      _
    $region7: #{tpu_custom_call.1} parent=1 // pred_check_branch
      %25 = sbr.rel (0) target = $region9
    $region8: #{tpu_custom_call.1} parent=1 // pred_region
      %s27 = ssub.s32 9216, 9216
      %28 = vsyncadd [#allocation8], %s27
      %s29 = sshll.u32 [#allocation7], 4
      %s30 = int_to_ptr.vmem [resolvable:$true] %s29
      %35 = dma.hbm_to_vmem [thread:$0]  %s1, 9216, %s30, [#allocation8], 64, 64, 4
    $region9: #{tpu_custom_call.1} parent=1 // pred_fallthru
      _
    // Predicated region
    $region10: #{tpu_custom_call.1} parent=1 // pred_check
      _
    $region11: #{tpu_custom_call.1} parent=1 // pred_check_branch
      %37 = sbr.rel (0) target = $region13
    $region12: #{tpu_custom_call.1} parent=1 // pred_region
      _
    $region13: #{tpu_custom_call.1} parent=1 // pred_fallthru
      _
    // Predicated region
    $region14: #{tpu_custom_call.1} parent=1 // pred_check
      _
    $region15: #{tpu_custom_call.1} parent=1 // pred_check_branch
      %39 = sbr.rel (0) target = $region17
    $region16: #{tpu_custom_call.1} parent=1 // pred_region
      _
    $region17: #{tpu_custom_call.1} parent=1 // pred_fallthru
      _
    // Predicated region
    $region18: #{tpu_custom_call.1} parent=1 // pred_check
      _
    $region19: #{tpu_custom_call.1} parent=1 // pred_check_branch
      %41 = sbr.rel (0) target = $region21
    $region20: #{tpu_custom_call.1} parent=1 // pred_region
      %42 = dma.done [#allocation5], 4096
    $region21: #{tpu_custom_call.1} parent=1 // pred_fallthru
      _
    // Predicated region
    $region22: #{tpu_custom_call.1} parent=1 // pred_check
      _
    $region23: #{tpu_custom_call.1} parent=1 // pred_check_branch
      %44 = sbr.rel (0) target = $region25
    $region24: #{tpu_custom_call.1} parent=1 // pred_region
      %45 = dma.done [#allocation8], 9216
    $region25: #{tpu_custom_call.1} parent=1 // pred_fallthru
      _
    %p47 = scmp.eq.s32.totalorder 0, 0
    // Predicated region
    $region26: #{tpu_custom_call.1} parent=1 // pred_check
      %p48 = pneg %p47
    $region27: #{tpu_custom_call.1} parent=1 // pred_check_branch
      %50 = sbr.rel (%p48) target = $region29
    $region28: #{tpu_custom_call.1} parent=1 // pred_region
      %51 = vst [vmem:[#allocation2] sm:$0xf] 0
      %52 = vst [vmem:[#allocation2 + $0x4] sm:$0xf] 0
      %53 = vst [vmem:[#allocation2 + $0x8] sm:$0x1] 0
      %s54 = scalar_lea.vmem [#allocation2], 204
      %55 = vst [vmem:[%s54] sm:$0xf] 0
      %56 = vst [vmem:[%s54 + $0x4] sm:$0xf] 0
      %57 = vst [vmem:[%s54 + $0x8] sm:$0x1] 0
      %s58 = scalar_lea.vmem [#allocation2], 12
      %vm59 = vcmask 1040384
      %vm60 = vsmask.f32 256
      %vm61 = vmand %vm59, %vm60
      %v62 = vld [vmem:[%s58] sm:$0x1]
      %v63 = vsel %vm61, 0, %v62
      %64 = vst [vmem:[%s58] sm:$0x1] %v63
      %v65 = vld [vmem:[%s58 + $0xc] sm:$0x1]
      %v66 = vsel %vm61, 0, %v65
      %67 = vst [vmem:[%s58 + $0xc] sm:$0x1] %v66
      %v68 = vld [vmem:[%s58 + $0x18] sm:$0x1]
      %v69 = vsel %vm61, 0, %v68
      %70 = vst [vmem:[%s58 + $0x18] sm:$0x1] %v69
      %v71 = vld [vmem:[%s58 + $0x24] sm:$0x1]
      %v72 = vsel %vm61, 0, %v71
      %73 = vst [vmem:[%s58 + $0x24] sm:$0x1] %v72
      %v74 = vld [vmem:[%s58 + $0x30] sm:$0x1]
      %v75 = vsel %vm61, 0, %v74
      %76 = vst [vmem:[%s58 + $0x30] sm:$0x1] %v75
      %v77 = vld [vmem:[%s58 + $0x3c] sm:$0x1]
      %v78 = vsel %vm61, 0, %v77
      %79 = vst [vmem:[%s58 + $0x3c] sm:$0x1] %v78
      %v80 = vld [vmem:[%s58 + $0x48] sm:$0x1]
      %v81 = vsel %vm61, 0, %v80
      %82 = vst [vmem:[%s58 + $0x48] sm:$0x1] %v81
      %v83 = vld [vmem:[%s58 + $0x54] sm:$0x1]
      %v84 = vsel %vm61, 0, %v83
      %85 = vst [vmem:[%s58 + $0x54] sm:$0x1] %v84
      %v86 = vld [vmem:[%s58 + $0x60] sm:$0x1]
      %v87 = vsel %vm61, 0, %v86
      %88 = vst [vmem:[%s58 + $0x60] sm:$0x1] %v87
      %v89 = vld [vmem:[%s58 + $0x6c] sm:$0x1]
      %v90 = vsel %vm61, 0, %v89
      %91 = vst [vmem:[%s58 + $0x6c] sm:$0x1] %v90
      %v92 = vld [vmem:[%s58 + $0x78] sm:$0x1]
      %v93 = vsel %vm61, 0, %v92
      %94 = vst [vmem:[%s58 + $0x78] sm:$0x1] %v93
      %v95 = vld [vmem:[%s58 + $0x84] sm:$0x1]
      %v96 = vsel %vm61, 0, %v95
      %97 = vst [vmem:[%s58 + $0x84] sm:$0x1] %v96
      %v98 = vld [vmem:[%s58 + $0x90] sm:$0x1]
      %v99 = vsel %vm61, 0, %v98
      %100 = vst [vmem:[%s58 + $0x90] sm:$0x1] %v99
      %v101 = vld [vmem:[%s58 + $0x9c] sm:$0x1]
      %v102 = vsel %vm61, 0, %v101
      %103 = vst [vmem:[%s58 + $0x9c] sm:$0x1] %v102
      %v104 = vld [vmem:[%s58 + $0xa8] sm:$0x1]
      %v105 = vsel %vm61, 0, %v104
      %106 = vst [vmem:[%s58 + $0xa8] sm:$0x1] %v105
      %v107 = vld [vmem:[%s58 + $0xb4] sm:$0x1]
      %v108 = vsel %vm61, 0, %v107
      %109 = vst [vmem:[%s58 + $0xb4] sm:$0x1] %v108
      %vm110 = vsmask.f32 7938
      %vm111 = vmand %vm59, %vm110
      %v112 = vld [vmem:[%s58 + $0x8] sm:$0x1]
      %v113 = vsel %vm111, 0, %v112
      %114 = vst [vmem:[%s58 + $0x8] sm:$0x1] %v113
      %v115 = vld [vmem:[%s58 + $0x14] sm:$0x1]
      %v116 = vsel %vm111, 0, %v115
      %117 = vst [vmem:[%s58 + $0x14] sm:$0x1] %v116
      %v118 = vld [vmem:[%s58 + $0x20] sm:$0x1]
      %v119 = vsel %vm111, 0, %v118
      %120 = vst [vmem:[%s58 + $0x20] sm:$0x1] %v119
      %v121 = vld [vmem:[%s58 + $0x2c] sm:$0x1]
      %v122 = vsel %vm111, 0, %v121
      %123 = vst [vmem:[%s58 + $0x2c] sm:$0x1] %v122
      %v124 = vld [vmem:[%s58 + $0x38] sm:$0x1]
      %v125 = vsel %vm111, 0, %v124
      %126 = vst [vmem:[%s58 + $0x38] sm:$0x1] %v125
      %v127 = vld [vmem:[%s58 + $0x44] sm:$0x1]
      %v128 = vsel %vm111, 0, %v127
      %129 = vst [vmem:[%s58 + $0x44] sm:$0x1] %v128
      %v130 = vld [vmem:[%s58 + $0x50] sm:$0x1]
      %v131 = vsel %vm111, 0, %v130
      %132 = vst [vmem:[%s58 + $0x50] sm:$0x1] %v131
      %v133 = vld [vmem:[%s58 + $0x5c] sm:$0x1]
      %v134 = vsel %vm111, 0, %v133
      %135 = vst [vmem:[%s58 + $0x5c] sm:$0x1] %v134
      %v136 = vld [vmem:[%s58 + $0x68] sm:$0x1]
      %v137 = vsel %vm111, 0, %v136
      %138 = vst [vmem:[%s58 + $0x68] sm:$0x1] %v137
      %v139 = vld [vmem:[%s58 + $0x74] sm:$0x1]
      %v140 = vsel %vm111, 0, %v139
      %141 = vst [vmem:[%s58 + $0x74] sm:$0x1] %v140
      %v142 = vld [vmem:[%s58 + $0x80] sm:$0x1]
      %v143 = vsel %vm111, 0, %v142
      %144 = vst [vmem:[%s58 + $0x80] sm:$0x1] %v143
      %v145 = vld [vmem:[%s58 + $0x8c] sm:$0x1]
      %v146 = vsel %vm111, 0, %v145
      %147 = vst [vmem:[%s58 + $0x8c] sm:$0x1] %v146
      %v148 = vld [vmem:[%s58 + $0x98] sm:$0x1]
      %v149 = vsel %vm111, 0, %v148
      %150 = vst [vmem:[%s58 + $0x98] sm:$0x1] %v149
      %v151 = vld [vmem:[%s58 + $0xa4] sm:$0x1]
      %v152 = vsel %vm111, 0, %v151
      %153 = vst [vmem:[%s58 + $0xa4] sm:$0x1] %v152
      %v154 = vld [vmem:[%s58 + $0xb0] sm:$0x1]
      %v155 = vsel %vm111, 0, %v154
      %156 = vst [vmem:[%s58 + $0xb0] sm:$0x1] %v155
      %v157 = vld [vmem:[%s58 + $0xbc] sm:$0x1]
      %v158 = vsel %vm111, 0, %v157
      %159 = vst [vmem:[%s58 + $0xbc] sm:$0x1] %v158
      %v160 = vld [vmem:[#allocation4] sm:$0xf]
      %v161 = vld [vmem:[#allocation4 + $0x4] sm:$0xf]
      %v162 = vld [vmem:[#allocation4 + $0x8] sm:$0xf]
      %v163 = vld [vmem:[#allocation4 + $0xc] sm:$0xf]
      %v164 = vld [vmem:[#allocation4 + $0x10] sm:$0xf]
      %v165 = vld [vmem:[#allocation4 + $0x14] sm:$0xf]
      %v166 = vld [vmem:[#allocation4 + $0x18] sm:$0xf]
      %v167 = vld [vmem:[#allocation4 + $0x1c] sm:$0xf]
      %v168 = vld [vmem:[#allocation4 + $0x20] sm:$0xf]
      %v169 = vld [vmem:[#allocation4 + $0x24] sm:$0xf]
      %v170 = vld [vmem:[#allocation4 + $0x28] sm:$0xf]
      %v171 = vld [vmem:[#allocation4 + $0x2c] sm:$0xf]
      %v172 = vld [vmem:[#allocation4 + $0x30] sm:$0xf]
      %v173 = vld [vmem:[#allocation4 + $0x34] sm:$0xf]
      %v174 = vld [vmem:[#allocation4 + $0x38] sm:$0xf]
      %v175 = vld [vmem:[#allocation4 + $0x3c] sm:$0xf]
      %v176 = vld [vmem:[#allocation4 + $0x40] sm:$0xf]
      %v177 = vld [vmem:[#allocation4 + $0x44] sm:$0xf]
      %v178 = vld [vmem:[#allocation4 + $0x48] sm:$0xf]
      %v179 = vld [vmem:[#allocation4 + $0x4c] sm:$0xf]
      %v180 = vld [vmem:[#allocation4 + $0x50] sm:$0xf]
      %v181 = vld [vmem:[#allocation4 + $0x54] sm:$0xf]
      %v182 = vld [vmem:[#allocation4 + $0x58] sm:$0xf]
      %v183 = vld [vmem:[#allocation4 + $0x5c] sm:$0xf]
      %v184 = vld [vmem:[#allocation4 + $0x60] sm:$0xf]
      %v185 = vld [vmem:[#allocation4 + $0x64] sm:$0xf]
      %v186 = vld [vmem:[#allocation4 + $0x68] sm:$0xf]
      %v187 = vld [vmem:[#allocation4 + $0x6c] sm:$0xf]
      %v188 = vld [vmem:[#allocation4 + $0x70] sm:$0xf]
      %v189 = vld [vmem:[#allocation4 + $0x74] sm:$0xf]
      %v190 = vld [vmem:[#allocation4 + $0x78] sm:$0xf]
      %v191 = vld [vmem:[#allocation4 + $0x7c] sm:$0xf]
      %vm192 = vsmask.f32 4368
      %vm193 = vmor %vm60, %vm192
      %v195 = vshrl.u32 %v160, 16
      %v197 = vrot.slane %v195, 7
      %v198 = vshll.u32 %v160, 16
      %v200 = vor.u32 %v197, %v198
      %v201 = vrot.slane %v197, 4
      %v203 = vshrl.u32 %v161, 16
      %v205 = vrot.slane %v203, 7
      %v206 = vshll.u32 %v161, 16
      %v208 = vor.u32 %v205, %v206
      %v209 = vsel %vm193, %v201, %v208
      %v210 = vrot.slane %v205, 4
      %v212 = vshrl.u32 %v162, 16
      %v214 = vrot.slane %v212, 7
      %v215 = vshll.u32 %v162, 16
      %v217 = vor.u32 %v214, %v215
      %v218 = vrot.slane %v214, 4
      %v220 = vshrl.u32 %v163, 16
      %v222 = vrot.slane %v220, 7
      %v223 = vshll.u32 %v163, 16
      %v225 = vor.u32 %v222, %v223
      %v226 = vsel %vm193, %v218, %v225
      %v227 = vrot.slane %v222, 4
      %v229 = vshrl.u32 %v164, 16
      %v231 = vrot.slane %v229, 7
      %v232 = vshll.u32 %v164, 16
      %v234 = vor.u32 %v231, %v232
      %v235 = vrot.slane %v231, 4
      %v237 = vshrl.u32 %v165, 16
      %v239 = vrot.slane %v237, 7
      %v240 = vshll.u32 %v165, 16
      %v242 = vor.u32 %v239, %v240
      %v243 = vsel %vm193, %v235, %v242
      %v244 = vrot.slane %v239, 4
      %v246 = vshrl.u32 %v166, 16
      %v248 = vrot.slane %v246, 7
      %v249 = vshll.u32 %v166, 16
      %v251 = vor.u32 %v248, %v249
      %v252 = vrot.slane %v248, 4
      %v254 = vshrl.u32 %v167, 16
      %v256 = vrot.slane %v254, 7
      %v257 = vshll.u32 %v167, 16
      %v259 = vor.u32 %v256, %v257
      %v260 = vsel %vm193, %v252, %v259
      %v261 = vrot.slane %v256, 4
      %v263 = vshrl.u32 %v168, 16
      %v265 = vrot.slane %v263, 7
      %v266 = vshll.u32 %v168, 16
      %v268 = vor.u32 %v265, %v266
      %v269 = vrot.slane %v265, 4
      %v271 = vshrl.u32 %v169, 16
      %v273 = vrot.slane %v271, 7
      %v274 = vshll.u32 %v169, 16
      %v276 = vor.u32 %v273, %v274
      %v277 = vsel %vm193, %v269, %v276
      %v278 = vrot.slane %v273, 4
      %v280 = vshrl.u32 %v170, 16
      %v282 = vrot.slane %v280, 7
      %v283 = vshll.u32 %v170, 16
      %v285 = vor.u32 %v282, %v283
      %v286 = vrot.slane %v282, 4
      %v288 = vshrl.u32 %v171, 16
      %v290 = vrot.slane %v288, 7
      %v291 = vshll.u32 %v171, 16
      %v293 = vor.u32 %v290, %v291
      %v294 = vsel %vm193, %v286, %v293
      %v295 = vrot.slane %v290, 4
      %v297 = vshrl.u32 %v172, 16
      %v299 = vrot.slane %v297, 7
      %v300 = vshll.u32 %v172, 16
      %v302 = vor.u32 %v299, %v300
      %v303 = vrot.slane %v299, 4
      %v305 = vshrl.u32 %v173, 16
      %v307 = vrot.slane %v305, 7
      %v308 = vshll.u32 %v173, 16
      %v310 = vor.u32 %v307, %v308
      %v311 = vsel %vm193, %v303, %v310
      %v312 = vrot.slane %v307, 4
      %v314 = vshrl.u32 %v174, 16
      %v316 = vrot.slane %v314, 7
      %v317 = vshll.u32 %v174, 16
      %v319 = vor.u32 %v316, %v317
      %v320 = vrot.slane %v316, 4
      %v322 = vshrl.u32 %v175, 16
      %v324 = vrot.slane %v322, 7
      %v325 = vshll.u32 %v175, 16
      %v327 = vor.u32 %v324, %v325
      %v328 = vsel %vm193, %v320, %v327
      %v329 = vrot.slane %v324, 4
      %v331 = vshrl.u32 %v176, 16
      %v333 = vrot.slane %v331, 7
      %v334 = vshll.u32 %v176, 16
      %v336 = vor.u32 %v333, %v334
      %v337 = vrot.slane %v333, 4
      %v339 = vshrl.u32 %v177, 16
      %v341 = vrot.slane %v339, 7
      %v342 = vshll.u32 %v177, 16
      %v344 = vor.u32 %v341, %v342
      %v345 = vsel %vm193, %v337, %v344
      %v346 = vrot.slane %v341, 4
      %v348 = vshrl.u32 %v178, 16
      %v350 = vrot.slane %v348, 7
      %v351 = vshll.u32 %v178, 16
      %v353 = vor.u32 %v350, %v351
      %v354 = vrot.slane %v350, 4
      %v356 = vshrl.u32 %v179, 16
      %v358 = vrot.slane %v356, 7
      %v359 = vshll.u32 %v179, 16
      %v361 = vor.u32 %v358, %v359
      %v362 = vsel %vm193, %v354, %v361
      %v363 = vrot.slane %v358, 4
      %v365 = vshrl.u32 %v180, 16
      %v367 = vrot.slane %v365, 7
      %v368 = vshll.u32 %v180, 16
      %v370 = vor.u32 %v367, %v368
      %v371 = vrot.slane %v367, 4
      %v373 = vshrl.u32 %v181, 16
      %v375 = vrot.slane %v373, 7
      %v376 = vshll.u32 %v181, 16
      %v378 = vor.u32 %v375, %v376
      %v379 = vsel %vm193, %v371, %v378
      %v380 = vrot.slane %v375, 4
      %v382 = vshrl.u32 %v182, 16
      %v384 = vrot.slane %v382, 7
      %v385 = vshll.u32 %v182, 16
      %v387 = vor.u32 %v384, %v385
      %v388 = vrot.slane %v384, 4
      %v390 = vshrl.u32 %v183, 16
      %v392 = vrot.slane %v390, 7
      %v393 = vshll.u32 %v183, 16
      %v395 = vor.u32 %v392, %v393
      %v396 = vsel %vm193, %v388, %v395
      %v397 = vrot.slane %v392, 4
      %v399 = vshrl.u32 %v184, 16
      %v401 = vrot.slane %v399, 7
      %v402 = vshll.u32 %v184, 16
      %v404 = vor.u32 %v401, %v402
      %v405 = vrot.slane %v401, 4
      %v407 = vshrl.u32 %v185, 16
      %v409 = vrot.slane %v407, 7
      %v410 = vshll.u32 %v185, 16
      %v412 = vor.u32 %v409, %v410
      %v413 = vsel %vm193, %v405, %v412
      %v414 = vrot.slane %v409, 4
      %v416 = vshrl.u32 %v186, 16
      %v418 = vrot.slane %v416, 7
      %v419 = vshll.u32 %v186, 16
      %v421 = vor.u32 %v418, %v419
      %v422 = vrot.slane %v418, 4
      %v424 = vshrl.u32 %v187, 16
      %v426 = vrot.slane %v424, 7
      %v427 = vshll.u32 %v187, 16
      %v429 = vor.u32 %v426, %v427
      %v430 = vsel %vm193, %v422, %v429
      %v431 = vrot.slane %v426, 4
      %v433 = vshrl.u32 %v188, 16
      %v435 = vrot.slane %v433, 7
      %v436 = vshll.u32 %v188, 16
      %v438 = vor.u32 %v435, %v436
      %v439 = vrot.slane %v435, 4
      %v441 = vshrl.u32 %v189, 16
      %v443 = vrot.slane %v441, 7
      %v444 = vshll.u32 %v189, 16
      %v446 = vor.u32 %v443, %v444
      %v447 = vsel %vm193, %v439, %v446
      %v448 = vrot.slane %v443, 4
      %v450 = vshrl.u32 %v190, 16
      %v452 = vrot.slane %v450, 7
      %v453 = vshll.u32 %v190, 16
      %v455 = vor.u32 %v452, %v453
      %v456 = vrot.slane %v452, 4
      %v458 = vshrl.u32 %v191, 16
      %v460 = vrot.slane %v458, 7
      %v461 = vshll.u32 %v191, 16
      %v463 = vor.u32 %v460, %v461
      %v464 = vsel %vm193, %v456, %v463
      %v465 = vrot.slane %v460, 4
      %vm514 = vcmask 1043456
      %vm515 = vmand %vm514, %vm110
      %v516 = vld [vmem:[%s58] sm:$0xf]
      %v517 = vsel %vm515, %v200, %v516
      %518 = vst [vmem:[%s58] sm:$0xf] %v517
      %519 = vst [vmem:[%s58 + $0x4] sm:$0xf] %v209
      %v520 = vld [vmem:[%s58 + $0x8] sm:$0x1]
      %v521 = vsel %vm61, %v210, %v520
      %522 = vst [vmem:[%s58 + $0x8] sm:$0x1] %v521
      %v523 = vld [vmem:[%s58 + $0xc] sm:$0xf]
      %v524 = vsel %vm515, %v217, %v523
      %525 = vst [vmem:[%s58 + $0xc] sm:$0xf] %v524
      %526 = vst [vmem:[%s58 + $0x10] sm:$0xf] %v226
      %v527 = vld [vmem:[%s58 + $0x14] sm:$0x1]
      %v528 = vsel %vm61, %v227, %v527
      %529 = vst [vmem:[%s58 + $0x14] sm:$0x1] %v528
      %v530 = vld [vmem:[%s58 + $0x18] sm:$0xf]
      %v531 = vsel %vm515, %v234, %v530
      %532 = vst [vmem:[%s58 + $0x18] sm:$0xf] %v531
      %533 = vst [vmem:[%s58 + $0x1c] sm:$0xf] %v243
      %v534 = vld [vmem:[%s58 + $0x20] sm:$0x1]
      %v535 = vsel %vm61, %v244, %v534
      %536 = vst [vmem:[%s58 + $0x20] sm:$0x1] %v535
      %v537 = vld [vmem:[%s58 + $0x24] sm:$0xf]
      %v538 = vsel %vm515, %v251, %v537
      %539 = vst [vmem:[%s58 + $0x24] sm:$0xf] %v538
      %540 = vst [vmem:[%s58 + $0x28] sm:$0xf] %v260
      %v541 = vld [vmem:[%s58 + $0x2c] sm:$0x1]
      %v542 = vsel %vm61, %v261, %v541
      %543 = vst [vmem:[%s58 + $0x2c] sm:$0x1] %v542
      %v544 = vld [vmem:[%s58 + $0x30] sm:$0xf]
      %v545 = vsel %vm515, %v268, %v544
      %546 = vst [vmem:[%s58 + $0x30] sm:$0xf] %v545
      %547 = vst [vmem:[%s58 + $0x34] sm:$0xf] %v277
      %v548 = vld [vmem:[%s58 + $0x38] sm:$0x1]
      %v549 = vsel %vm61, %v278, %v548
      %550 = vst [vmem:[%s58 + $0x38] sm:$0x1] %v549
      %v551 = vld [vmem:[%s58 + $0x3c] sm:$0xf]
      %v552 = vsel %vm515, %v285, %v551
      %553 = vst [vmem:[%s58 + $0x3c] sm:$0xf] %v552
      %554 = vst [vmem:[%s58 + $0x40] sm:$0xf] %v294
      %v555 = vld [vmem:[%s58 + $0x44] sm:$0x1]
      %v556 = vsel %vm61, %v295, %v555
      %557 = vst [vmem:[%s58 + $0x44] sm:$0x1] %v556
      %v558 = vld [vmem:[%s58 + $0x48] sm:$0xf]
      %v559 = vsel %vm515, %v302, %v558
      %560 = vst [vmem:[%s58 + $0x48] sm:$0xf] %v559
      %561 = vst [vmem:[%s58 + $0x4c] sm:$0xf] %v311
      %v562 = vld [vmem:[%s58 + $0x50] sm:$0x1]
      %v563 = vsel %vm61, %v312, %v562
      %564 = vst [vmem:[%s58 + $0x50] sm:$0x1] %v563
      %v565 = vld [vmem:[%s58 + $0x54] sm:$0xf]
      %v566 = vsel %vm515, %v319, %v565
      %567 = vst [vmem:[%s58 + $0x54] sm:$0xf] %v566
      %568 = vst [vmem:[%s58 + $0x58] sm:$0xf] %v328
      %v569 = vld [vmem:[%s58 + $0x5c] sm:$0x1]
      %v570 = vsel %vm61, %v329, %v569
      %571 = vst [vmem:[%s58 + $0x5c] sm:$0x1] %v570
      %v572 = vld [vmem:[%s58 + $0x60] sm:$0xf]
      %v573 = vsel %vm515, %v336, %v572
      %574 = vst [vmem:[%s58 + $0x60] sm:$0xf] %v573
      %575 = vst [vmem:[%s58 + $0x64] sm:$0xf] %v345
      %v576 = vld [vmem:[%s58 + $0x68] sm:$0x1]
      %v577 = vsel %vm61, %v346, %v576
      %578 = vst [vmem:[%s58 + $0x68] sm:$0x1] %v577
      %v579 = vld [vmem:[%s58 + $0x6c] sm:$0xf]
      %v580 = vsel %vm515, %v353, %v579
      %581 = vst [vmem:[%s58 + $0x6c] sm:$0xf] %v580
      %582 = vst [vmem:[%s58 + $0x70] sm:$0xf] %v362
      %v583 = vld [vmem:[%s58 + $0x74] sm:$0x1]
      %v584 = vsel %vm61, %v363, %v583
      %585 = vst [vmem:[%s58 + $0x74] sm:$0x1] %v584
      %v586 = vld [vmem:[%s58 + $0x78] sm:$0xf]
      %v587 = vsel %vm515, %v370, %v586
      %588 = vst [vmem:[%s58 + $0x78] sm:$0xf] %v587
      %589 = vst [vmem:[%s58 + $0x7c] sm:$0xf] %v379
      %v590 = vld [vmem:[%s58 + $0x80] sm:$0x1]
      %v591 = vsel %vm61, %v380, %v590
      %592 = vst [vmem:[%s58 + $0x80] sm:$0x1] %v591
      %v593 = vld [vmem:[%s58 + $0x84] sm:$0xf]
      %v594 = vsel %vm515, %v387, %v593
      %595 = vst [vmem:[%s58 + $0x84] sm:$0xf] %v594
      %596 = vst [vmem:[%s58 + $0x88] sm:$0xf] %v396
      %v597 = vld [vmem:[%s58 + $0x8c] sm:$0x1]
      %v598 = vsel %vm61, %v397, %v597
      %599 = vst [vmem:[%s58 + $0x8c] sm:$0x1] %v598
      %v600 = vld [vmem:[%s58 + $0x90] sm:$0xf]
      %v601 = vsel %vm515, %v404, %v600
      %602 = vst [vmem:[%s58 + $0x90] sm:$0xf] %v601
      %603 = vst [vmem:[%s58 + $0x94] sm:$0xf] %v413
      %v604 = vld [vmem:[%s58 + $0x98] sm:$0x1]
      %v605 = vsel %vm61, %v414, %v604
      %606 = vst [vmem:[%s58 + $0x98] sm:$0x1] %v605
      %v607 = vld [vmem:[%s58 + $0x9c] sm:$0xf]
      %v608 = vsel %vm515, %v421, %v607
      %609 = vst [vmem:[%s58 + $0x9c] sm:$0xf] %v608
      %610 = vst [vmem:[%s58 + $0xa0] sm:$0xf] %v430
      %v611 = vld [vmem:[%s58 + $0xa4] sm:$0x1]
      %v612 = vsel %vm61, %v431, %v611
      %613 = vst [vmem:[%s58 + $0xa4] sm:$0x1] %v612
      %v614 = vld [vmem:[%s58 + $0xa8] sm:$0xf]
      %v615 = vsel %vm515, %v438, %v614
      %616 = vst [vmem:[%s58 + $0xa8] sm:$0xf] %v615
      %617 = vst [vmem:[%s58 + $0xac] sm:$0xf] %v447
      %v618 = vld [vmem:[%s58 + $0xb0] sm:$0x1]
      %v619 = vsel %vm61, %v448, %v618
      %620 = vst [vmem:[%s58 + $0xb0] sm:$0x1] %v619
      %v621 = vld [vmem:[%s58 + $0xb4] sm:$0xf]
      %v622 = vsel %vm515, %v455, %v621
      %623 = vst [vmem:[%s58 + $0xb4] sm:$0xf] %v622
      %624 = vst [vmem:[%s58 + $0xb8] sm:$0xf] %v464
      %v625 = vld [vmem:[%s58 + $0xbc] sm:$0x1]
      %v626 = vsel %vm61, %v465, %v625
      %627 = vst [vmem:[%s58 + $0xbc] sm:$0x1] %v626
      %v628 = vld [vmem:[#allocation2] sm:$0xf]
      %v629 = vld [vmem:[#allocation2 + $0x4] sm:$0xf]
      %v630 = vld [vmem:[#allocation2 + $0xc] sm:$0xf]
      %v631 = vld [vmem:[#allocation2 + $0x10] sm:$0xf]
      %v632 = vld [vmem:[#allocation2 + $0x18] sm:$0xf]
      %v633 = vld [vmem:[#allocation2 + $0x1c] sm:$0xf]
      %v634 = vld [vmem:[#allocation2 + $0x24] sm:$0xf]
      %v635 = vld [vmem:[#allocation2 + $0x28] sm:$0xf]
      %v636 = vld [vmem:[#allocation2 + $0x30] sm:$0xf]
      %v637 = vld [vmem:[#allocation2 + $0x34] sm:$0xf]
      %v638 = vld [vmem:[#allocation2 + $0x3c] sm:$0xf]
      %v639 = vld [vmem:[#allocation2 + $0x40] sm:$0xf]
      %v640 = vld [vmem:[#allocation2 + $0x48] sm:$0xf]
      %v641 = vld [vmem:[#allocation2 + $0x4c] sm:$0xf]
      %v642 = vld [vmem:[#allocation2 + $0x54] sm:$0xf]
      %v643 = vld [vmem:[#allocation2 + $0x58] sm:$0xf]
      %v644 = vld [vmem:[#allocation2 + $0x60] sm:$0xf]
      %v645 = vld [vmem:[#allocation2 + $0x64] sm:$0xf]
      %v646 = vld [vmem:[#allocation2 + $0x6c] sm:$0xf]
      %v647 = vld [vmem:[#allocation2 + $0x70] sm:$0xf]
      %v648 = vld [vmem:[#allocation2 + $0x78] sm:$0xf]
      %v649 = vld [vmem:[#allocation2 + $0x7c] sm:$0xf]
      %v650 = vld [vmem:[#allocation2 + $0x84] sm:$0xf]
      %v651 = vld [vmem:[#allocation2 + $0x88] sm:$0xf]
      %v652 = vld [vmem:[#allocation2 + $0x90] sm:$0xf]
      %v653 = vld [vmem:[#allocation2 + $0x94] sm:$0xf]
      %v654 = vld [vmem:[#allocation2 + $0x9c] sm:$0xf]
      %v655 = vld [vmem:[#allocation2 + $0xa0] sm:$0xf]
      %v656 = vld [vmem:[#allocation2 + $0xa8] sm:$0xf]
      %v657 = vld [vmem:[#allocation2 + $0xac] sm:$0xf]
      %v658 = vld [vmem:[#allocation2 + $0xb4] sm:$0xf]
      %v659 = vld [vmem:[#allocation2 + $0xb8] sm:$0xf]
      %v692 = vunpack.c.l.b16 %v628
      %v693 = vunpack.c.l.b16 %v629
      %v694 = vunpack.c.l.b16 %v630
      %v695 = vunpack.c.l.b16 %v631
      %v696 = vunpack.c.l.b16 %v632
      %v697 = vunpack.c.l.b16 %v633
      %v698 = vunpack.c.l.b16 %v634
      %v699 = vunpack.c.l.b16 %v635
      %v700 = vunpack.c.l.b16 %v636
      %v701 = vunpack.c.l.b16 %v637
      %v702 = vunpack.c.l.b16 %v638
      %v703 = vunpack.c.l.b16 %v639
      %v704 = vunpack.c.l.b16 %v640
      %v705 = vunpack.c.l.b16 %v641
      %v706 = vunpack.c.l.b16 %v642
      %v707 = vunpack.c.l.b16 %v643
      %v708 = vunpack.c.l.b16 %v644
      %v709 = vunpack.c.l.b16 %v645
      %v710 = vunpack.c.l.b16 %v646
      %v711 = vunpack.c.l.b16 %v647
      %v712 = vunpack.c.l.b16 %v648
      %v713 = vunpack.c.l.b16 %v649
      %v714 = vunpack.c.l.b16 %v650
      %v715 = vunpack.c.l.b16 %v651
      %v716 = vunpack.c.l.b16 %v652
      %v717 = vunpack.c.l.b16 %v653
      %v718 = vunpack.c.l.b16 %v654
      %v719 = vunpack.c.l.b16 %v655
      %v720 = vunpack.c.l.b16 %v656
      %v721 = vunpack.c.l.b16 %v657
      %v722 = vunpack.c.l.b16 %v658
      %v723 = vunpack.c.l.b16 %v659
      %v724 = vpack.c.b16 %v693, %v692
      %v725 = vpack.c.b16 %v695, %v694
      %v726 = vpack.c.b16 %v697, %v696
      %v727 = vpack.c.b16 %v699, %v698
      %v728 = vpack.c.b16 %v701, %v700
      %v729 = vpack.c.b16 %v703, %v702
      %v730 = vpack.c.b16 %v705, %v704
      %v731 = vpack.c.b16 %v707, %v706
      %v732 = vpack.c.b16 %v709, %v708
      %v733 = vpack.c.b16 %v711, %v710
      %v734 = vpack.c.b16 %v713, %v712
      %v735 = vpack.c.b16 %v715, %v714
      %v736 = vpack.c.b16 %v717, %v716
      %v737 = vpack.c.b16 %v719, %v718
      %v738 = vpack.c.b16 %v721, %v720
      %v739 = vpack.c.b16 %v723, %v722
      %756 = vst [vmem:[#allocation3] sm:$0xff] %v724
      %757 = vst [vmem:[#allocation3 + $0x48] sm:$0xff] %v725
      %758 = vst [vmem:[#allocation3 + $0x90] sm:$0xff] %v726
      %759 = vst [vmem:[#allocation3 + $0xd8] sm:$0xff] %v727
      %760 = vst [vmem:[#allocation3 + $0x120] sm:$0xff] %v728
      %761 = vst [vmem:[#allocation3 + $0x168] sm:$0xff] %v729
      %762 = vst [vmem:[#allocation3 + $0x1b0] sm:$0xff] %v730
      %763 = vst [vmem:[#allocation3 + $0x1f8] sm:$0xff] %v731
      %764 = vst [vmem:[#allocation3 + $0x240] sm:$0xff] %v732
      %765 = vst [vmem:[#allocation3 + $0x288] sm:$0xff] %v733
      %766 = vst [vmem:[#allocation3 + $0x2d0] sm:$0xff] %v734
      %767 = vst [vmem:[#allocation3 + $0x318] sm:$0xff] %v735
      %768 = vst [vmem:[#allocation3 + $0x360] sm:$0xff] %v736
      %769 = vst [vmem:[#allocation3 + $0x3a8] sm:$0xff] %v737
      %770 = vst [vmem:[#allocation3 + $0x3f0] sm:$0xff] %v738
      %771 = vst [vmem:[#allocation3 + $0x438] sm:$0xff] %v739
      %v772 = vld [vmem:[#allocation2] sm:$0xf]
      %v773 = vld [vmem:[#allocation2 + $0x4] sm:$0xf]
      %v774 = vld [vmem:[#allocation2 + $0x8] sm:$0x1]
      %v775 = vld [vmem:[#allocation2 + $0xc] sm:$0xf]
      %v776 = vld [vmem:[#allocation2 + $0x10] sm:$0xf]
      %v777 = vld [vmem:[#allocation2 + $0x14] sm:$0x1]
      %v778 = vld [vmem:[#allocation2 + $0x18] sm:$0xf]
      %v779 = vld [vmem:[#allocation2 + $0x1c] sm:$0xf]
      %v780 = vld [vmem:[#allocation2 + $0x20] sm:$0x1]
      %v781 = vld [vmem:[#allocation2 + $0x24] sm:$0xf]
      %v782 = vld [vmem:[#allocation2 + $0x28] sm:$0xf]
      %v783 = vld [vmem:[#allocation2 + $0x2c] sm:$0x1]
      %v784 = vld [vmem:[#allocation2 + $0x30] sm:$0xf]
      %v785 = vld [vmem:[#allocation2 + $0x34] sm:$0xf]
      %v786 = vld [vmem:[#allocation2 + $0x38] sm:$0x1]
      %v787 = vld [vmem:[#allocation2 + $0x3c] sm:$0xf]
      %v788 = vld [vmem:[#allocation2 + $0x40] sm:$0xf]
      %v789 = vld [vmem:[#allocation2 + $0x44] sm:$0x1]
      %v790 = vld [vmem:[#allocation2 + $0x48] sm:$0xf]
      %v791 = vld [vmem:[#allocation2 + $0x4c] sm:$0xf]
      %v792 = vld [vmem:[#allocation2 + $0x50] sm:$0x1]
      %v793 = vld [vmem:[#allocation2 + $0x54] sm:$0xf]
      %v794 = vld [vmem:[#allocation2 + $0x58] sm:$0xf]
      %v795 = vld [vmem:[#allocation2 + $0x5c] sm:$0x1]
      %v796 = vld [vmem:[#allocation2 + $0x60] sm:$0xf]
      %v797 = vld [vmem:[#allocation2 + $0x64] sm:$0xf]
      %v798 = vld [vmem:[#allocation2 + $0x68] sm:$0x1]
      %v799 = vld [vmem:[#allocation2 + $0x6c] sm:$0xf]
      %v800 = vld [vmem:[#allocation2 + $0x70] sm:$0xf]
      %v801 = vld [vmem:[#allocation2 + $0x74] sm:$0x1]
      %v802 = vld [vmem:[#allocation2 + $0x78] sm:$0xf]
      %v803 = vld [vmem:[#allocation2 + $0x7c] sm:$0xf]
      %v804 = vld [vmem:[#allocation2 + $0x80] sm:$0x1]
      %v805 = vld [vmem:[#allocation2 + $0x84] sm:$0xf]
      %v806 = vld [vmem:[#allocation2 + $0x88] sm:$0xf]
      %v807 = vld [vmem:[#allocation2 + $0x8c] sm:$0x1]
      %v808 = vld [vmem:[#allocation2 + $0x90] sm:$0xf]
      %v809 = vld [vmem:[#allocation2 + $0x94] sm:$0xf]
      %v810 = vld [vmem:[#allocation2 + $0x98] sm:$0x1]
      %v811 = vld [vmem:[#allocation2 + $0x9c] sm:$0xf]
      %v812 = vld [vmem:[#allocation2 + $0xa0] sm:$0xf]
      %v813 = vld [vmem:[#allocation2 + $0xa4] sm:$0x1]
      %v814 = vld [vmem:[#allocation2 + $0xa8] sm:$0xf]
      %v815 = vld [vmem:[#allocation2 + $0xac] sm:$0xf]
      %v816 = vld [vmem:[#allocation2 + $0xb0] sm:$0x1]
      %v817 = vld [vmem:[#allocation2 + $0xb4] sm:$0xf]
      %v818 = vld [vmem:[#allocation2 + $0xb8] sm:$0xf]
      %v819 = vld [vmem:[#allocation2 + $0xbc] sm:$0x1]
      %vm820 = vsmask.f32 3328
      %vm821 = vsmask.f32 7440
      %vm822 = vmor %vm820, %vm821
      %v824 = vshrl.u32 %v772, 16
      %v826 = vrot.slane %v824, 4
      %v827 = vshll.u32 %v772, 16
      %v829 = vrot.slane %v827, 5
      %v830 = vor.u32 %v826, %v829
      %v831 = vrot.slane %v830, 4
      %v833 = vshll.u32 %v773, 16
      %v835 = vrot.slane %v833, 5
      %v836 = vsel %vm822, %v831, %v835
      %v837 = vshrl.u32 %v773, 16
      %v839 = vrot.slane %v837, 4
      %v840 = vor.u32 %v839, %v835
      %v841 = vrot.slane %v840, 4
      %v843 = vshll.u32 %v774, 16
      %v845 = vrot.slane %v843, 5
      %v846 = vsel %vm822, %v841, %v845
      %v848 = vshrl.u32 %v775, 16
      %v850 = vrot.slane %v848, 4
      %v851 = vshll.u32 %v775, 16
      %v853 = vrot.slane %v851, 5
      %v854 = vor.u32 %v850, %v853
      %v855 = vrot.slane %v854, 4
      %v857 = vshll.u32 %v776, 16
      %v859 = vrot.slane %v857, 5
      %v860 = vsel %vm822, %v855, %v859
      %v861 = vshrl.u32 %v776, 16
      %v863 = vrot.slane %v861, 4
      %v864 = vor.u32 %v863, %v859
      %v865 = vrot.slane %v864, 4
      %v867 = vshll.u32 %v777, 16
      %v869 = vrot.slane %v867, 5
      %v870 = vsel %vm822, %v865, %v869
      %v872 = vshrl.u32 %v778, 16
      %v874 = vrot.slane %v872, 4
      %v875 = vshll.u32 %v778, 16
      %v877 = vrot.slane %v875, 5
      %v878 = vor.u32 %v874, %v877
      %v879 = vrot.slane %v878, 4
      %v881 = vshll.u32 %v779, 16
      %v883 = vrot.slane %v881, 5
      %v884 = vsel %vm822, %v879, %v883
      %v885 = vshrl.u32 %v779, 16
      %v887 = vrot.slane %v885, 4
      %v888 = vor.u32 %v887, %v883
      %v889 = vrot.slane %v888, 4
      %v891 = vshll.u32 %v780, 16
      %v893 = vrot.slane %v891, 5
      %v894 = vsel %vm822, %v889, %v893
      %v896 = vshrl.u32 %v781, 16
      %v898 = vrot.slane %v896, 4
      %v899 = vshll.u32 %v781, 16
      %v901 = vrot.slane %v899, 5
      %v902 = vor.u32 %v898, %v901
      %v903 = vrot.slane %v902, 4
      %v905 = vshll.u32 %v782, 16
      %v907 = vrot.slane %v905, 5
      %v908 = vsel %vm822, %v903, %v907
      %v909 = vshrl.u32 %v782, 16
      %v911 = vrot.slane %v909, 4
      %v912 = vor.u32 %v911, %v907
      %v913 = vrot.slane %v912, 4
      %v915 = vshll.u32 %v783, 16
      %v917 = vrot.slane %v915, 5
      %v918 = vsel %vm822, %v913, %v917
      %v920 = vshrl.u32 %v784, 16
      %v922 = vrot.slane %v920, 4
      %v923 = vshll.u32 %v784, 16
      %v925 = vrot.slane %v923, 5
      %v926 = vor.u32 %v922, %v925
      %v927 = vrot.slane %v926, 4
      %v929 = vshll.u32 %v785, 16
      %v931 = vrot.slane %v929, 5
      %v932 = vsel %vm822, %v927, %v931
      %v933 = vshrl.u32 %v785, 16
      %v935 = vrot.slane %v933, 4
      %v936 = vor.u32 %v935, %v931
      %v937 = vrot.slane %v936, 4
      %v939 = vshll.u32 %v786, 16
      %v941 = vrot.slane %v939, 5
      %v942 = vsel %vm822, %v937, %v941
      %v944 = vshrl.u32 %v787, 16
      %v946 = vrot.slane %v944, 4
      %v947 = vshll.u32 %v787, 16
      %v949 = vrot.slane %v947, 5
      %v950 = vor.u32 %v946, %v949
      %v951 = vrot.slane %v950, 4
      %v953 = vshll.u32 %v788, 16
      %v955 = vrot.slane %v953, 5
      %v956 = vsel %vm822, %v951, %v955
      %v957 = vshrl.u32 %v788, 16
      %v959 = vrot.slane %v957, 4
      %v960 = vor.u32 %v959, %v955
      %v961 = vrot.slane %v960, 4
      %v963 = vshll.u32 %v789, 16
      %v965 = vrot.slane %v963, 5
      %v966 = vsel %vm822, %v961, %v965
      %v968 = vshrl.u32 %v790, 16
      %v970 = vrot.slane %v968, 4
      %v971 = vshll.u32 %v790, 16
      %v973 = vrot.slane %v971, 5
      %v974 = vor.u32 %v970, %v973
      %v975 = vrot.slane %v974, 4
      %v977 = vshll.u32 %v791, 16
      %v979 = vrot.slane %v977, 5
      %v980 = vsel %vm822, %v975, %v979
      %v981 = vshrl.u32 %v791, 16
      %v983 = vrot.slane %v981, 4
      %v984 = vor.u32 %v983, %v979
      %v985 = vrot.slane %v984, 4
      %v987 = vshll.u32 %v792, 16
      %v989 = vrot.slane %v987, 5
      %v990 = vsel %vm822, %v985, %v989
      %v992 = vshrl.u32 %v793, 16
      %v994 = vrot.slane %v992, 4
      %v995 = vshll.u32 %v793, 16
      %v997 = vrot.slane %v995, 5
      %v998 = vor.u32 %v994, %v997
      %v999 = vrot.slane %v998, 4
      %v1001 = vshll.u32 %v794, 16
      %v1003 = vrot.slane %v1001, 5
      %v1004 = vsel %vm822, %v999, %v1003
      %v1005 = vshrl.u32 %v794, 16
      %v1007 = vrot.slane %v1005, 4
      %v1008 = vor.u32 %v1007, %v1003
      %v1009 = vrot.slane %v1008, 4
      %v1011 = vshll.u32 %v795, 16
      %v1013 = vrot.slane %v1011, 5
      %v1014 = vsel %vm822, %v1009, %v1013
      %v1016 = vshrl.u32 %v796, 16
      %v1018 = vrot.slane %v1016, 4
      %v1019 = vshll.u32 %v796, 16
      %v1021 = vrot.slane %v1019, 5
      %v1022 = vor.u32 %v1018, %v1021
      %v1023 = vrot.slane %v1022, 4
      %v1025 = vshll.u32 %v797, 16
      %v1027 = vrot.slane %v1025, 5
      %v1028 = vsel %vm822, %v1023, %v1027
      %v1029 = vshrl.u32 %v797, 16
      %v1031 = vrot.slane %v1029, 4
      %v1032 = vor.u32 %v1031, %v1027
      %v1033 = vrot.slane %v1032, 4
      %v1035 = vshll.u32 %v798, 16
      %v1037 = vrot.slane %v1035, 5
      %v1038 = vsel %vm822, %v1033, %v1037
      %v1040 = vshrl.u32 %v799, 16
      %v1042 = vrot.slane %v1040, 4
      %v1043 = vshll.u32 %v799, 16
      %v1045 = vrot.slane %v1043, 5
      %v1046 = vor.u32 %v1042, %v1045
      %v1047 = vrot.slane %v1046, 4
      %v1049 = vshll.u32 %v800, 16
      %v1051 = vrot.slane %v1049, 5
      %v1052 = vsel %vm822, %v1047, %v1051
      %v1053 = vshrl.u32 %v800, 16
      %v1055 = vrot.slane %v1053, 4
      %v1056 = vor.u32 %v1055, %v1051
      %v1057 = vrot.slane %v1056, 4
      %v1059 = vshll.u32 %v801, 16
      %v1061 = vrot.slane %v1059, 5
      %v1062 = vsel %vm822, %v1057, %v1061
      %v1064 = vshrl.u32 %v802, 16
      %v1066 = vrot.slane %v1064, 4
      %v1067 = vshll.u32 %v802, 16
      %v1069 = vrot.slane %v1067, 5
      %v1070 = vor.u32 %v1066, %v1069
      %v1071 = vrot.slane %v1070, 4
      %v1073 = vshll.u32 %v803, 16
      %v1075 = vrot.slane %v1073, 5
      %v1076 = vsel %vm822, %v1071, %v1075
      %v1077 = vshrl.u32 %v803, 16
      %v1079 = vrot.slane %v1077, 4
      %v1080 = vor.u32 %v1079, %v1075
      %v1081 = vrot.slane %v1080, 4
      %v1083 = vshll.u32 %v804, 16
      %v1085 = vrot.slane %v1083, 5
      %v1086 = vsel %vm822, %v1081, %v1085
      %v1088 = vshrl.u32 %v805, 16
      %v1090 = vrot.slane %v1088, 4
      %v1091 = vshll.u32 %v805, 16
      %v1093 = vrot.slane %v1091, 5
      %v1094 = vor.u32 %v1090, %v1093
      %v1095 = vrot.slane %v1094, 4
      %v1097 = vshll.u32 %v806, 16
      %v1099 = vrot.slane %v1097, 5
      %v1100 = vsel %vm822, %v1095, %v1099
      %v1101 = vshrl.u32 %v806, 16
      %v1103 = vrot.slane %v1101, 4
      %v1104 = vor.u32 %v1103, %v1099
      %v1105 = vrot.slane %v1104, 4
      %v1107 = vshll.u32 %v807, 16
      %v1109 = vrot.slane %v1107, 5
      %v1110 = vsel %vm822, %v1105, %v1109
      %v1112 = vshrl.u32 %v808, 16
      %v1114 = vrot.slane %v1112, 4
      %v1115 = vshll.u32 %v808, 16
      %v1117 = vrot.slane %v1115, 5
      %v1118 = vor.u32 %v1114, %v1117
      %v1119 = vrot.slane %v1118, 4
      %v1121 = vshll.u32 %v809, 16
      %v1123 = vrot.slane %v1121, 5
      %v1124 = vsel %vm822, %v1119, %v1123
      %v1125 = vshrl.u32 %v809, 16
      %v1127 = vrot.slane %v1125, 4
      %v1128 = vor.u32 %v1127, %v1123
      %v1129 = vrot.slane %v1128, 4
      %v1131 = vshll.u32 %v810, 16
      %v1133 = vrot.slane %v1131, 5
      %v1134 = vsel %vm822, %v1129, %v1133
      %v1136 = vshrl.u32 %v811, 16
      %v1138 = vrot.slane %v1136, 4
      %v1139 = vshll.u32 %v811, 16
      %v1141 = vrot.slane %v1139, 5
      %v1142 = vor.u32 %v1138, %v1141
      %v1143 = vrot.slane %v1142, 4
      %v1145 = vshll.u32 %v812, 16
      %v1147 = vrot.slane %v1145, 5
      %v1148 = vsel %vm822, %v1143, %v1147
      %v1149 = vshrl.u32 %v812, 16
      %v1151 = vrot.slane %v1149, 4
      %v1152 = vor.u32 %v1151, %v1147
      %v1153 = vrot.slane %v1152, 4
      %v1155 = vshll.u32 %v813, 16
      %v1157 = vrot.slane %v1155, 5
      %v1158 = vsel %vm822, %v1153, %v1157
      %v1160 = vshrl.u32 %v814, 16
      %v1162 = vrot.slane %v1160, 4
      %v1163 = vshll.u32 %v814, 16
      %v1165 = vrot.slane %v1163, 5
      %v1166 = vor.u32 %v1162, %v1165
      %v1167 = vrot.slane %v1166, 4
      %v1169 = vshll.u32 %v815, 16
      %v1171 = vrot.slane %v1169, 5
      %v1172 = vsel %vm822, %v1167, %v1171
      %v1173 = vshrl.u32 %v815, 16
      %v1175 = vrot.slane %v1173, 4
      %v1176 = vor.u32 %v1175, %v1171
      %v1177 = vrot.slane %v1176, 4
      %v1179 = vshll.u32 %v816, 16
      %v1181 = vrot.slane %v1179, 5
      %v1182 = vsel %vm822, %v1177, %v1181
      %v1184 = vshrl.u32 %v817, 16
      %v1186 = vrot.slane %v1184, 4
      %v1187 = vshll.u32 %v817, 16
      %v1189 = vrot.slane %v1187, 5
      %v1190 = vor.u32 %v1186, %v1189
      %v1191 = vrot.slane %v1190, 4
      %v1193 = vshll.u32 %v818, 16
      %v1195 = vrot.slane %v1193, 5
      %v1196 = vsel %vm822, %v1191, %v1195
      %v1197 = vshrl.u32 %v818, 16
      %v1199 = vrot.slane %v1197, 4
      %v1200 = vor.u32 %v1199, %v1195
      %v1201 = vrot.slane %v1200, 4
      %v1203 = vshll.u32 %v819, 16
      %v1205 = vrot.slane %v1203, 5
      %v1206 = vsel %vm822, %v1201, %v1205
      %v1207 = vunpack.c.l.b16 %v836
      %v1208 = vunpack.c.l.b16 %v846
      %v1209 = vunpack.c.l.b16 %v860
      %v1210 = vunpack.c.l.b16 %v870
      %v1211 = vunpack.c.l.b16 %v884
      %v1212 = vunpack.c.l.b16 %v894
      %v1213 = vunpack.c.l.b16 %v908
      %v1214 = vunpack.c.l.b16 %v918
      %v1215 = vunpack.c.l.b16 %v932
      %v1216 = vunpack.c.l.b16 %v942
      %v1217 = vunpack.c.l.b16 %v956
      %v1218 = vunpack.c.l.b16 %v966
      %v1219 = vunpack.c.l.b16 %v980
      %v1220 = vunpack.c.l.b16 %v990
      %v1221 = vunpack.c.l.b16 %v1004
      %v1222 = vunpack.c.l.b16 %v1014
      %v1223 = vunpack.c.l.b16 %v1028
      %v1224 = vunpack.c.l.b16 %v1038
      %v1225 = vunpack.c.l.b16 %v1052
      %v1226 = vunpack.c.l.b16 %v1062
      %v1227 = vunpack.c.l.b16 %v1076
      %v1228 = vunpack.c.l.b16 %v1086
      %v1229 = vunpack.c.l.b16 %v1100
      %v1230 = vunpack.c.l.b16 %v1110
      %v1231 = vunpack.c.l.b16 %v1124
      %v1232 = vunpack.c.l.b16 %v1134
      %v1233 = vunpack.c.l.b16 %v1148
      %v1234 = vunpack.c.l.b16 %v1158
      %v1235 = vunpack.c.l.b16 %v1172
      %v1236 = vunpack.c.l.b16 %v1182
      %v1237 = vunpack.c.l.b16 %v1196
      %v1238 = vunpack.c.l.b16 %v1206
      %v1239 = vpack.c.b16 %v1208, %v1207
      %v1240 = vpack.c.b16 %v1210, %v1209
      %v1241 = vpack.c.b16 %v1212, %v1211
      %v1242 = vpack.c.b16 %v1214, %v1213
      %v1243 = vpack.c.b16 %v1216, %v1215
      %v1244 = vpack.c.b16 %v1218, %v1217
      %v1245 = vpack.c.b16 %v1220, %v1219
      %v1246 = vpack.c.b16 %v1222, %v1221
      %v1247 = vpack.c.b16 %v1224, %v1223
      %v1248 = vpack.c.b16 %v1226, %v1225
      %v1249 = vpack.c.b16 %v1228, %v1227
      %v1250 = vpack.c.b16 %v1230, %v1229
      %v1251 = vpack.c.b16 %v1232, %v1231
      %v1252 = vpack.c.b16 %v1234, %v1233
      %v1253 = vpack.c.b16 %v1236, %v1235
      %v1254 = vpack.c.b16 %v1238, %v1237
      %1271 = vst [vmem:[#allocation3 + $0x8] sm:$0xff] %v1239
      %1272 = vst [vmem:[#allocation3 + $0x50] sm:$0xff] %v1240
      %1273 = vst [vmem:[#allocation3 + $0x98] sm:$0xff] %v1241
      %1274 = vst [vmem:[#allocation3 + $0xe0] sm:$0xff] %v1242
      %1275 = vst [vmem:[#allocation3 + $0x128] sm:$0xff] %v1243
      %1276 = vst [vmem:[#allocation3 + $0x170] sm:$0xff] %v1244
      %1277 = vst [vmem:[#allocation3 + $0x1b8] sm:$0xff] %v1245
      %1278 = vst [vmem:[#allocation3 + $0x200] sm:$0xff] %v1246
      %1279 = vst [vmem:[#allocation3 + $0x248] sm:$0xff] %v1247
      %1280 = vst [vmem:[#allocation3 + $0x290] sm:$0xff] %v1248
      %1281 = vst [vmem:[#allocation3 + $0x2d8] sm:$0xff] %v1249
      %1282 = vst [vmem:[#allocation3 + $0x320] sm:$0xff] %v1250
      %1283 = vst [vmem:[#allocation3 + $0x368] sm:$0xff] %v1251
      %1284 = vst [vmem:[#allocation3 + $0x3b0] sm:$0xff] %v1252
      %1285 = vst [vmem:[#allocation3 + $0x3f8] sm:$0xff] %v1253
      %1286 = vst [vmem:[#allocation3 + $0x440] sm:$0xff] %v1254
      %v1287 = vld [vmem:[#allocation2] sm:$0xe]
      %v1288 = vld [vmem:[#allocation2 + $0x4] sm:$0xf]
      %v1289 = vld [vmem:[#allocation2 + $0x8] sm:$0x1]
      %v1290 = vld [vmem:[#allocation2 + $0xc] sm:$0xe]
      %v1291 = vld [vmem:[#allocation2 + $0x10] sm:$0xf]
      %v1292 = vld [vmem:[#allocation2 + $0x14] sm:$0x1]
      %v1293 = vld [vmem:[#allocation2 + $0x18] sm:$0xe]
      %v1294 = vld [vmem:[#allocation2 + $0x1c] sm:$0xf]
      %v1295 = vld [vmem:[#allocation2 + $0x20] sm:$0x1]
      %v1296 = vld [vmem:[#allocation2 + $0x24] sm:$0xe]
      %v1297 = vld [vmem:[#allocation2 + $0x28] sm:$0xf]
      %v1298 = vld [vmem:[#allocation2 + $0x2c] sm:$0x1]
      %v1299 = vld [vmem:[#allocation2 + $0x30] sm:$0xe]
      %v1300 = vld [vmem:[#allocation2 + $0x34] sm:$0xf]
      %v1301 = vld [vmem:[#allocation2 + $0x38] sm:$0x1]
      %v1302 = vld [vmem:[#allocation2 + $0x3c] sm:$0xe]
      %v1303 = vld [vmem:[#allocation2 + $0x40] sm:$0xf]
      %v1304 = vld [vmem:[#allocation2 + $0x44] sm:$0x1]
      %v1305 = vld [vmem:[#allocation2 + $0x48] sm:$0xe]
      %v1306 = vld [vmem:[#allocation2 + $0x4c] sm:$0xf]
      %v1307 = vld [vmem:[#allocation2 + $0x50] sm:$0x1]
      %v1308 = vld [vmem:[#allocation2 + $0x54] sm:$0xe]
      %v1309 = vld [vmem:[#allocation2 + $0x58] sm:$0xf]
      %v1310 = vld [vmem:[#allocation2 + $0x5c] sm:$0x1]
      %v1311 = vld [vmem:[#allocation2 + $0x60] sm:$0xe]
      %v1312 = vld [vmem:[#allocation2 + $0x64] sm:$0xf]
      %v1313 = vld [vmem:[#allocation2 + $0x68] sm:$0x1]
      %v1314 = vld [vmem:[#allocation2 + $0x6c] sm:$0xe]
      %v1315 = vld [vmem:[#allocation2 + $0x70] sm:$0xf]
      %v1316 = vld [vmem:[#allocation2 + $0x74] sm:$0x1]
      %v1317 = vld [vmem:[#allocation2 + $0x78] sm:$0xe]
      %v1318 = vld [vmem:[#allocation2 + $0x7c] sm:$0xf]
      %v1319 = vld [vmem:[#allocation2 + $0x80] sm:$0x1]
      %v1320 = vld [vmem:[#allocation2 + $0x84] sm:$0xe]
      %v1321 = vld [vmem:[#allocation2 + $0x88] sm:$0xf]
      %v1322 = vld [vmem:[#allocation2 + $0x8c] sm:$0x1]
      %v1323 = vld [vmem:[#allocation2 + $0x90] sm:$0xe]
      %v1324 = vld [vmem:[#allocation2 + $0x94] sm:$0xf]
      %v1325 = vld [vmem:[#allocation2 + $0x98] sm:$0x1]
      %v1326 = vld [vmem:[#allocation2 + $0x9c] sm:$0xe]
      %v1327 = vld [vmem:[#allocation2 + $0xa0] sm:$0xf]
      %v1328 = vld [vmem:[#allocation2 + $0xa4] sm:$0x1]
      %v1329 = vld [vmem:[#allocation2 + $0xa8] sm:$0xe]
      %v1330 = vld [vmem:[#allocation2 + $0xac] sm:$0xf]
      %v1331 = vld [vmem:[#allocation2 + $0xb0] sm:$0x1]
      %v1332 = vld [vmem:[#allocation2 + $0xb4] sm:$0xe]
      %v1333 = vld [vmem:[#allocation2 + $0xb8] sm:$0xf]
      %v1334 = vld [vmem:[#allocation2 + $0xbc] sm:$0x1]
      %vm1383 = vcmask 1042432
      %vm1384 = vcmask 1046532
      %vm1385 = vmor %vm1383, %vm1384
      %v1386 = vrot.slane %v1287, 5
      %v1387 = vrot.slane %v1386, 4
      %v1388 = vrot.slane %v1288, 5
      %v1389 = vsel %vm1385, %v1387, %v1388
      %v1390 = vrot.slane %v1388, 4
      %v1391 = vrot.slane %v1289, 5
      %v1392 = vsel %vm1385, %v1390, %v1391
      %v1393 = vrot.slane %v1290, 5
      %v1394 = vrot.slane %v1393, 4
      %v1395 = vrot.slane %v1291, 5
      %v1396 = vsel %vm1385, %v1394, %v1395
      %v1397 = vrot.slane %v1395, 4
      %v1398 = vrot.slane %v1292, 5
      %v1399 = vsel %vm1385, %v1397, %v1398
      %v1400 = vrot.slane %v1293, 5
      %v1401 = vrot.slane %v1400, 4
      %v1402 = vrot.slane %v1294, 5
      %v1403 = vsel %vm1385, %v1401, %v1402
      %v1404 = vrot.slane %v1402, 4
      %v1405 = vrot.slane %v1295, 5
      %v1406 = vsel %vm1385, %v1404, %v1405
      %v1407 = vrot.slane %v1296, 5
      %v1408 = vrot.slane %v1407, 4
      %v1409 = vrot.slane %v1297, 5
      %v1410 = vsel %vm1385, %v1408, %v1409
      %v1411 = vrot.slane %v1409, 4
      %v1412 = vrot.slane %v1298, 5
      %v1413 = vsel %vm1385, %v1411, %v1412
      %v1414 = vrot.slane %v1299, 5
      %v1415 = vrot.slane %v1414, 4
      %v1416 = vrot.slane %v1300, 5
      %v1417 = vsel %vm1385, %v1415, %v1416
      %v1418 = vrot.slane %v1416, 4
      %v1419 = vrot.slane %v1301, 5
      %v1420 = vsel %vm1385, %v1418, %v1419
      %v1421 = vrot.slane %v1302, 5
      %v1422 = vrot.slane %v1421, 4
      %v1423 = vrot.slane %v1303, 5
      %v1424 = vsel %vm1385, %v1422, %v1423
      %v1425 = vrot.slane %v1423, 4
      %v1426 = vrot.slane %v1304, 5
      %v1427 = vsel %vm1385, %v1425, %v1426
      %v1428 = vrot.slane %v1305, 5
      %v1429 = vrot.slane %v1428, 4
      %v1430 = vrot.slane %v1306, 5
      %v1431 = vsel %vm1385, %v1429, %v1430
      %v1432 = vrot.slane %v1430, 4
      %v1433 = vrot.slane %v1307, 5
      %v1434 = vsel %vm1385, %v1432, %v1433
      %v1435 = vrot.slane %v1308, 5
      %v1436 = vrot.slane %v1435, 4
      %v1437 = vrot.slane %v1309, 5
      %v1438 = vsel %vm1385, %v1436, %v1437
      %v1439 = vrot.slane %v1437, 4
      %v1440 = vrot.slane %v1310, 5
      %v1441 = vsel %vm1385, %v1439, %v1440
      %v1442 = vrot.slane %v1311, 5
      %v1443 = vrot.slane %v1442, 4
      %v1444 = vrot.slane %v1312, 5
      %v1445 = vsel %vm1385, %v1443, %v1444
      %v1446 = vrot.slane %v1444, 4
      %v1447 = vrot.slane %v1313, 5
      %v1448 = vsel %vm1385, %v1446, %v1447
      %v1449 = vrot.slane %v1314, 5
      %v1450 = vrot.slane %v1449, 4
      %v1451 = vrot.slane %v1315, 5
      %v1452 = vsel %vm1385, %v1450, %v1451
      %v1453 = vrot.slane %v1451, 4
      %v1454 = vrot.slane %v1316, 5
      %v1455 = vsel %vm1385, %v1453, %v1454
      %v1456 = vrot.slane %v1317, 5
      %v1457 = vrot.slane %v1456, 4
      %v1458 = vrot.slane %v1318, 5
      %v1459 = vsel %vm1385, %v1457, %v1458
      %v1460 = vrot.slane %v1458, 4
      %v1461 = vrot.slane %v1319, 5
      %v1462 = vsel %vm1385, %v1460, %v1461
      %v1463 = vrot.slane %v1320, 5
      %v1464 = vrot.slane %v1463, 4
      %v1465 = vrot.slane %v1321, 5
      %v1466 = vsel %vm1385, %v1464, %v1465
      %v1467 = vrot.slane %v1465, 4
      %v1468 = vrot.slane %v1322, 5
      %v1469 = vsel %vm1385, %v1467, %v1468
      %v1470 = vrot.slane %v1323, 5
      %v1471 = vrot.slane %v1470, 4
      %v1472 = vrot.slane %v1324, 5
      %v1473 = vsel %vm1385, %v1471, %v1472
      %v1474 = vrot.slane %v1472, 4
      %v1475 = vrot.slane %v1325, 5
      %v1476 = vsel %vm1385, %v1474, %v1475
      %v1477 = vrot.slane %v1326, 5
      %v1478 = vrot.slane %v1477, 4
      %v1479 = vrot.slane %v1327, 5
      %v1480 = vsel %vm1385, %v1478, %v1479
      %v1481 = vrot.slane %v1479, 4
      %v1482 = vrot.slane %v1328, 5
      %v1483 = vsel %vm1385, %v1481, %v1482
      %v1484 = vrot.slane %v1329, 5
      %v1485 = vrot.slane %v1484, 4
      %v1486 = vrot.slane %v1330, 5
      %v1487 = vsel %vm1385, %v1485, %v1486
      %v1488 = vrot.slane %v1486, 4
      %v1489 = vrot.slane %v1331, 5
      %v1490 = vsel %vm1385, %v1488, %v1489
      %v1491 = vrot.slane %v1332, 5
      %v1492 = vrot.slane %v1491, 4
      %v1493 = vrot.slane %v1333, 5
      %v1494 = vsel %vm1385, %v1492, %v1493
      %v1495 = vrot.slane %v1493, 4
      %v1496 = vrot.slane %v1334, 5
      %v1497 = vsel %vm1385, %v1495, %v1496
      %v1498 = vunpack.c.l.b16 %v1389
      %v1499 = vunpack.c.l.b16 %v1392
      %v1500 = vunpack.c.l.b16 %v1396
      %v1501 = vunpack.c.l.b16 %v1399
      %v1502 = vunpack.c.l.b16 %v1403
      %v1503 = vunpack.c.l.b16 %v1406
      %v1504 = vunpack.c.l.b16 %v1410
      %v1505 = vunpack.c.l.b16 %v1413
      %v1506 = vunpack.c.l.b16 %v1417
      %v1507 = vunpack.c.l.b16 %v1420
      %v1508 = vunpack.c.l.b16 %v1424
      %v1509 = vunpack.c.l.b16 %v1427
      %v1510 = vunpack.c.l.b16 %v1431
      %v1511 = vunpack.c.l.b16 %v1434
      %v1512 = vunpack.c.l.b16 %v1438
      %v1513 = vunpack.c.l.b16 %v1441
      %v1514 = vunpack.c.l.b16 %v1445
      %v1515 = vunpack.c.l.b16 %v1448
      %v1516 = vunpack.c.l.b16 %v1452
      %v1517 = vunpack.c.l.b16 %v1455
      %v1518 = vunpack.c.l.b16 %v1459
      %v1519 = vunpack.c.l.b16 %v1462
      %v1520 = vunpack.c.l.b16 %v1466
      %v1521 = vunpack.c.l.b16 %v1469
      %v1522 = vunpack.c.l.b16 %v1473
      %v1523 = vunpack.c.l.b16 %v1476
      %v1524 = vunpack.c.l.b16 %v1480
      %v1525 = vunpack.c.l.b16 %v1483
      %v1526 = vunpack.c.l.b16 %v1487
      %v1527 = vunpack.c.l.b16 %v1490
      %v1528 = vunpack.c.l.b16 %v1494
      %v1529 = vunpack.c.l.b16 %v1497
      %v1530 = vpack.c.b16 %v1499, %v1498
      %v1531 = vpack.c.b16 %v1501, %v1500
      %v1532 = vpack.c.b16 %v1503, %v1502
      %v1533 = vpack.c.b16 %v1505, %v1504
      %v1534 = vpack.c.b16 %v1507, %v1506
      %v1535 = vpack.c.b16 %v1509, %v1508
      %v1536 = vpack.c.b16 %v1511, %v1510
      %v1537 = vpack.c.b16 %v1513, %v1512
      %v1538 = vpack.c.b16 %v1515, %v1514
      %v1539 = vpack.c.b16 %v1517, %v1516
      %v1540 = vpack.c.b16 %v1519, %v1518
      %v1541 = vpack.c.b16 %v1521, %v1520
      %v1542 = vpack.c.b16 %v1523, %v1522
      %v1543 = vpack.c.b16 %v1525, %v1524
      %v1544 = vpack.c.b16 %v1527, %v1526
      %v1545 = vpack.c.b16 %v1529, %v1528
      %1562 = vst [vmem:[#allocation3 + $0x10] sm:$0xff] %v1530
      %1563 = vst [vmem:[#allocation3 + $0x58] sm:$0xff] %v1531
      %1564 = vst [vmem:[#allocation3 + $0xa0] sm:$0xff] %v1532
      %1565 = vst [vmem:[#allocation3 + $0xe8] sm:$0xff] %v1533
      %1566 = vst [vmem:[#allocation3 + $0x130] sm:$0xff] %v1534
      %1567 = vst [vmem:[#allocation3 + $0x178] sm:$0xff] %v1535
      %1568 = vst [vmem:[#allocation3 + $0x1c0] sm:$0xff] %v1536
      %1569 = vst [vmem:[#allocation3 + $0x208] sm:$0xff] %v1537
      %1570 = vst [vmem:[#allocation3 + $0x250] sm:$0xff] %v1538
      %1571 = vst [vmem:[#allocation3 + $0x298] sm:$0xff] %v1539
      %1572 = vst [vmem:[#allocation3 + $0x2e0] sm:$0xff] %v1540
      %1573 = vst [vmem:[#allocation3 + $0x328] sm:$0xff] %v1541
      %1574 = vst [vmem:[#allocation3 + $0x370] sm:$0xff] %v1542
      %1575 = vst [vmem:[#allocation3 + $0x3b8] sm:$0xff] %v1543
      %1576 = vst [vmem:[#allocation3 + $0x400] sm:$0xff] %v1544
      %1577 = vst [vmem:[#allocation3 + $0x448] sm:$0xff] %v1545
      %v1578 = vld [vmem:[%s58] sm:$0xf]
      %v1579 = vld [vmem:[%s58 + $0x4] sm:$0xf]
      %v1580 = vld [vmem:[%s58 + $0xc] sm:$0xf]
      %v1581 = vld [vmem:[%s58 + $0x10] sm:$0xf]
      %v1582 = vld [vmem:[%s58 + $0x18] sm:$0xf]
      %v1583 = vld [vmem:[%s58 + $0x1c] sm:$0xf]
      %v1584 = vld [vmem:[%s58 + $0x24] sm:$0xf]
      %v1585 = vld [vmem:[%s58 + $0x28] sm:$0xf]
      %v1586 = vld [vmem:[%s58 + $0x30] sm:$0xf]
      %v1587 = vld [vmem:[%s58 + $0x34] sm:$0xf]
      %v1588 = vld [vmem:[%s58 + $0x3c] sm:$0xf]
      %v1589 = vld [vmem:[%s58 + $0x40] sm:$0xf]
      %v1590 = vld [vmem:[%s58 + $0x48] sm:$0xf]
      %v1591 = vld [vmem:[%s58 + $0x4c] sm:$0xf]
      %v1592 = vld [vmem:[%s58 + $0x54] sm:$0xf]
      %v1593 = vld [vmem:[%s58 + $0x58] sm:$0xf]
      %v1594 = vld [vmem:[%s58 + $0x60] sm:$0xf]
      %v1595 = vld [vmem:[%s58 + $0x64] sm:$0xf]
      %v1596 = vld [vmem:[%s58 + $0x6c] sm:$0xf]
      %v1597 = vld [vmem:[%s58 + $0x70] sm:$0xf]
      %v1598 = vld [vmem:[%s58 + $0x78] sm:$0xf]
      %v1599 = vld [vmem:[%s58 + $0x7c] sm:$0xf]
      %v1600 = vld [vmem:[%s58 + $0x84] sm:$0xf]
      %v1601 = vld [vmem:[%s58 + $0x88] sm:$0xf]
      %v1602 = vld [vmem:[%s58 + $0x90] sm:$0xf]
      %v1603 = vld [vmem:[%s58 + $0x94] sm:$0xf]
      %v1604 = vld [vmem:[%s58 + $0x9c] sm:$0xf]
      %v1605 = vld [vmem:[%s58 + $0xa0] sm:$0xf]
      %v1606 = vld [vmem:[%s58 + $0xa8] sm:$0xf]
      %v1607 = vld [vmem:[%s58 + $0xac] sm:$0xf]
      %v1608 = vld [vmem:[%s58 + $0xb4] sm:$0xf]
      %v1609 = vld [vmem:[%s58 + $0xb8] sm:$0xf]
      %v1642 = vunpack.c.l.b16 %v1578
      %v1643 = vunpack.c.l.b16 %v1579
      %v1644 = vunpack.c.l.b16 %v1580
      %v1645 = vunpack.c.l.b16 %v1581
      %v1646 = vunpack.c.l.b16 %v1582
      %v1647 = vunpack.c.l.b16 %v1583
      %v1648 = vunpack.c.l.b16 %v1584
      %v1649 = vunpack.c.l.b16 %v1585
      %v1650 = vunpack.c.l.b16 %v1586
      %v1651 = vunpack.c.l.b16 %v1587
      %v1652 = vunpack.c.l.b16 %v1588
      %v1653 = vunpack.c.l.b16 %v1589
      %v1654 = vunpack.c.l.b16 %v1590
      %v1655 = vunpack.c.l.b16 %v1591
      %v1656 = vunpack.c.l.b16 %v1592
      %v1657 = vunpack.c.l.b16 %v1593
      %v1658 = vunpack.c.l.b16 %v1594
      %v1659 = vunpack.c.l.b16 %v1595
      %v1660 = vunpack.c.l.b16 %v1596
      %v1661 = vunpack.c.l.b16 %v1597
      %v1662 = vunpack.c.l.b16 %v1598
      %v1663 = vunpack.c.l.b16 %v1599
      %v1664 = vunpack.c.l.b16 %v1600
      %v1665 = vunpack.c.l.b16 %v1601
      %v1666 = vunpack.c.l.b16 %v1602
      %v1667 = vunpack.c.l.b16 %v1603
      %v1668 = vunpack.c.l.b16 %v1604
      %v1669 = vunpack.c.l.b16 %v1605
      %v1670 = vunpack.c.l.b16 %v1606
      %v1671 = vunpack.c.l.b16 %v1607
      %v1672 = vunpack.c.l.b16 %v1608
      %v1673 = vunpack.c.l.b16 %v1609
      %v1674 = vpack.c.b16 %v1643, %v1642
      %v1675 = vpack.c.b16 %v1645, %v1644
      %v1676 = vpack.c.b16 %v1647, %v1646
      %v1677 = vpack.c.b16 %v1649, %v1648
      %v1678 = vpack.c.b16 %v1651, %v1650
      %v1679 = vpack.c.b16 %v1653, %v1652
      %v1680 = vpack.c.b16 %v1655, %v1654
      %v1681 = vpack.c.b16 %v1657, %v1656
      %v1682 = vpack.c.b16 %v1659, %v1658
      %v1683 = vpack.c.b16 %v1661, %v1660
      %v1684 = vpack.c.b16 %v1663, %v1662
      %v1685 = vpack.c.b16 %v1665, %v1664
      %v1686 = vpack.c.b16 %v1667, %v1666
      %v1687 = vpack.c.b16 %v1669, %v1668
      %v1688 = vpack.c.b16 %v1671, %v1670
      %v1689 = vpack.c.b16 %v1673, %v1672
      %1706 = vst [vmem:[#allocation3 + $0x18] sm:$0xff] %v1674
      %1707 = vst [vmem:[#allocation3 + $0x60] sm:$0xff] %v1675
      %1708 = vst [vmem:[#allocation3 + $0xa8] sm:$0xff] %v1676
      %1709 = vst [vmem:[#allocation3 + $0xf0] sm:$0xff] %v1677
      %1710 = vst [vmem:[#allocation3 + $0x138] sm:$0xff] %v1678
      %1711 = vst [vmem:[#allocation3 + $0x180] sm:$0xff] %v1679
      %1712 = vst [vmem:[#allocation3 + $0x1c8] sm:$0xff] %v1680
      %1713 = vst [vmem:[#allocation3 + $0x210] sm:$0xff] %v1681
      %1714 = vst [vmem:[#allocation3 + $0x258] sm:$0xff] %v1682
      %1715 = vst [vmem:[#allocation3 + $0x2a0] sm:$0xff] %v1683
      %1716 = vst [vmem:[#allocation3 + $0x2e8] sm:$0xff] %v1684
      %1717 = vst [vmem:[#allocation3 + $0x330] sm:$0xff] %v1685
      %1718 = vst [vmem:[#allocation3 + $0x378] sm:$0xff] %v1686
      %1719 = vst [vmem:[#allocation3 + $0x3c0] sm:$0xff] %v1687
      %1720 = vst [vmem:[#allocation3 + $0x408] sm:$0xff] %v1688
      %1721 = vst [vmem:[#allocation3 + $0x450] sm:$0xff] %v1689
      %v1722 = vld [vmem:[%s58] sm:$0xf]
      %v1723 = vld [vmem:[%s58 + $0x4] sm:$0xf]
      %v1724 = vld [vmem:[%s58 + $0x8] sm:$0x1]
      %v1725 = vld [vmem:[%s58 + $0xc] sm:$0xf]
      %v1726 = vld [vmem:[%s58 + $0x10] sm:$0xf]
      %v1727 = vld [vmem:[%s58 + $0x14] sm:$0x1]
      %v1728 = vld [vmem:[%s58 + $0x18] sm:$0xf]
      %v1729 = vld [vmem:[%s58 + $0x1c] sm:$0xf]
      %v1730 = vld [vmem:[%s58 + $0x20] sm:$0x1]
      %v1731 = vld [vmem:[%s58 + $0x24] sm:$0xf]
      %v1732 = vld [vmem:[%s58 + $0x28] sm:$0xf]
      %v1733 = vld [vmem:[%s58 + $0x2c] sm:$0x1]
      %v1734 = vld [vmem:[%s58 + $0x30] sm:$0xf]
      %v1735 = vld [vmem:[%s58 + $0x34] sm:$0xf]
      %v1736 = vld [vmem:[%s58 + $0x38] sm:$0x1]
      %v1737 = vld [vmem:[%s58 + $0x3c] sm:$0xf]
      %v1738 = vld [vmem:[%s58 + $0x40] sm:$0xf]
      %v1739 = vld [vmem:[%s58 + $0x44] sm:$0x1]
      %v1740 = vld [vmem:[%s58 + $0x48] sm:$0xf]
      %v1741 = vld [vmem:[%s58 + $0x4c] sm:$0xf]
      %v1742 = vld [vmem:[%s58 + $0x50] sm:$0x1]
      %v1743 = vld [vmem:[%s58 + $0x54] sm:$0xf]
      %v1744 = vld [vmem:[%s58 + $0x58] sm:$0xf]
      %v1745 = vld [vmem:[%s58 + $0x5c] sm:$0x1]
      %v1746 = vld [vmem:[%s58 + $0x60] sm:$0xf]
      %v1747 = vld [vmem:[%s58 + $0x64] sm:$0xf]
      %v1748 = vld [vmem:[%s58 + $0x68] sm:$0x1]
      %v1749 = vld [vmem:[%s58 + $0x6c] sm:$0xf]
      %v1750 = vld [vmem:[%s58 + $0x70] sm:$0xf]
      %v1751 = vld [vmem:[%s58 + $0x74] sm:$0x1]
      %v1752 = vld [vmem:[%s58 + $0x78] sm:$0xf]
      %v1753 = vld [vmem:[%s58 + $0x7c] sm:$0xf]
      %v1754 = vld [vmem:[%s58 + $0x80] sm:$0x1]
      %v1755 = vld [vmem:[%s58 + $0x84] sm:$0xf]
      %v1756 = vld [vmem:[%s58 + $0x88] sm:$0xf]
      %v1757 = vld [vmem:[%s58 + $0x8c] sm:$0x1]
      %v1758 = vld [vmem:[%s58 + $0x90] sm:$0xf]
      %v1759 = vld [vmem:[%s58 + $0x94] sm:$0xf]
      %v1760 = vld [vmem:[%s58 + $0x98] sm:$0x1]
      %v1761 = vld [vmem:[%s58 + $0x9c] sm:$0xf]
      %v1762 = vld [vmem:[%s58 + $0xa0] sm:$0xf]
      %v1763 = vld [vmem:[%s58 + $0xa4] sm:$0x1]
      %v1764 = vld [vmem:[%s58 + $0xa8] sm:$0xf]
      %v1765 = vld [vmem:[%s58 + $0xac] sm:$0xf]
      %v1766 = vld [vmem:[%s58 + $0xb0] sm:$0x1]
      %v1767 = vld [vmem:[%s58 + $0xb4] sm:$0xf]
      %v1768 = vld [vmem:[%s58 + $0xb8] sm:$0xf]
      %v1769 = vld [vmem:[%s58 + $0xbc] sm:$0x1]
      %v1771 = vshrl.u32 %v1722, 16
      %v1773 = vrot.slane %v1771, 4
      %v1774 = vshll.u32 %v1722, 16
      %v1776 = vrot.slane %v1774, 5
      %v1777 = vor.u32 %v1773, %v1776
      %v1778 = vrot.slane %v1777, 4
      %v1780 = vshll.u32 %v1723, 16
      %v1782 = vrot.slane %v1780, 5
      %v1783 = vsel %vm822, %v1778, %v1782
      %v1784 = vshrl.u32 %v1723, 16
      %v1786 = vrot.slane %v1784, 4
      %v1787 = vor.u32 %v1786, %v1782
      %v1788 = vrot.slane %v1787, 4
      %v1790 = vshll.u32 %v1724, 16
      %v1792 = vrot.slane %v1790, 5
      %v1793 = vsel %vm822, %v1788, %v1792
      %v1795 = vshrl.u32 %v1725, 16
      %v1797 = vrot.slane %v1795, 4
      %v1798 = vshll.u32 %v1725, 16
      %v1800 = vrot.slane %v1798, 5
      %v1801 = vor.u32 %v1797, %v1800
      %v1802 = vrot.slane %v1801, 4
      %v1804 = vshll.u32 %v1726, 16
      %v1806 = vrot.slane %v1804, 5
      %v1807 = vsel %vm822, %v1802, %v1806
      %v1808 = vshrl.u32 %v1726, 16
      %v1810 = vrot.slane %v1808, 4
      %v1811 = vor.u32 %v1810, %v1806
      %v1812 = vrot.slane %v1811, 4
      %v1814 = vshll.u32 %v1727, 16
      %v1816 = vrot.slane %v1814, 5
      %v1817 = vsel %vm822, %v1812, %v1816
      %v1819 = vshrl.u32 %v1728, 16
      %v1821 = vrot.slane %v1819, 4
      %v1822 = vshll.u32 %v1728, 16
      %v1824 = vrot.slane %v1822, 5
      %v1825 = vor.u32 %v1821, %v1824
      %v1826 = vrot.slane %v1825, 4
      %v1828 = vshll.u32 %v1729, 16
      %v1830 = vrot.slane %v1828, 5
      %v1831 = vsel %vm822, %v1826, %v1830
      %v1832 = vshrl.u32 %v1729, 16
      %v1834 = vrot.slane %v1832, 4
      %v1835 = vor.u32 %v1834, %v1830
      %v1836 = vrot.slane %v1835, 4
      %v1838 = vshll.u32 %v1730, 16
      %v1840 = vrot.slane %v1838, 5
      %v1841 = vsel %vm822, %v1836, %v1840
      %v1843 = vshrl.u32 %v1731, 16
      %v1845 = vrot.slane %v1843, 4
      %v1846 = vshll.u32 %v1731, 16
      %v1848 = vrot.slane %v1846, 5
      %v1849 = vor.u32 %v1845, %v1848
      %v1850 = vrot.slane %v1849, 4
      %v1852 = vshll.u32 %v1732, 16
      %v1854 = vrot.slane %v1852, 5
      %v1855 = vsel %vm822, %v1850, %v1854
      %v1856 = vshrl.u32 %v1732, 16
      %v1858 = vrot.slane %v1856, 4
      %v1859 = vor.u32 %v1858, %v1854
      %v1860 = vrot.slane %v1859, 4
      %v1862 = vshll.u32 %v1733, 16
      %v1864 = vrot.slane %v1862, 5
      %v1865 = vsel %vm822, %v1860, %v1864
      %v1867 = vshrl.u32 %v1734, 16
      %v1869 = vrot.slane %v1867, 4
      %v1870 = vshll.u32 %v1734, 16
      %v1872 = vrot.slane %v1870, 5
      %v1873 = vor.u32 %v1869, %v1872
      %v1874 = vrot.slane %v1873, 4
      %v1876 = vshll.u32 %v1735, 16
      %v1878 = vrot.slane %v1876, 5
      %v1879 = vsel %vm822, %v1874, %v1878
      %v1880 = vshrl.u32 %v1735, 16
      %v1882 = vrot.slane %v1880, 4
      %v1883 = vor.u32 %v1882, %v1878
      %v1884 = vrot.slane %v1883, 4
      %v1886 = vshll.u32 %v1736, 16
      %v1888 = vrot.slane %v1886, 5
      %v1889 = vsel %vm822, %v1884, %v1888
      %v1891 = vshrl.u32 %v1737, 16
      %v1893 = vrot.slane %v1891, 4
      %v1894 = vshll.u32 %v1737, 16
      %v1896 = vrot.slane %v1894, 5
      %v1897 = vor.u32 %v1893, %v1896
      %v1898 = vrot.slane %v1897, 4
      %v1900 = vshll.u32 %v1738, 16
      %v1902 = vrot.slane %v1900, 5
      %v1903 = vsel %vm822, %v1898, %v1902
      %v1904 = vshrl.u32 %v1738, 16
      %v1906 = vrot.slane %v1904, 4
      %v1907 = vor.u32 %v1906, %v1902
      %v1908 = vrot.slane %v1907, 4
      %v1910 = vshll.u32 %v1739, 16
      %v1912 = vrot.slane %v1910, 5
      %v1913 = vsel %vm822, %v1908, %v1912
      %v1915 = vshrl.u32 %v1740, 16
      %v1917 = vrot.slane %v1915, 4
      %v1918 = vshll.u32 %v1740, 16
      %v1920 = vrot.slane %v1918, 5
      %v1921 = vor.u32 %v1917, %v1920
      %v1922 = vrot.slane %v1921, 4
      %v1924 = vshll.u32 %v1741, 16
      %v1926 = vrot.slane %v1924, 5
      %v1927 = vsel %vm822, %v1922, %v1926
      %v1928 = vshrl.u32 %v1741, 16
      %v1930 = vrot.slane %v1928, 4
      %v1931 = vor.u32 %v1930, %v1926
      %v1932 = vrot.slane %v1931, 4
      %v1934 = vshll.u32 %v1742, 16
      %v1936 = vrot.slane %v1934, 5
      %v1937 = vsel %vm822, %v1932, %v1936
      %v1939 = vshrl.u32 %v1743, 16
      %v1941 = vrot.slane %v1939, 4
      %v1942 = vshll.u32 %v1743, 16
      %v1944 = vrot.slane %v1942, 5
      %v1945 = vor.u32 %v1941, %v1944
      %v1946 = vrot.slane %v1945, 4
      %v1948 = vshll.u32 %v1744, 16
      %v1950 = vrot.slane %v1948, 5
      %v1951 = vsel %vm822, %v1946, %v1950
      %v1952 = vshrl.u32 %v1744, 16
      %v1954 = vrot.slane %v1952, 4
      %v1955 = vor.u32 %v1954, %v1950
      %v1956 = vrot.slane %v1955, 4
      %v1958 = vshll.u32 %v1745, 16
      %v1960 = vrot.slane %v1958, 5
      %v1961 = vsel %vm822, %v1956, %v1960
      %v1963 = vshrl.u32 %v1746, 16
      %v1965 = vrot.slane %v1963, 4
      %v1966 = vshll.u32 %v1746, 16
      %v1968 = vrot.slane %v1966, 5
      %v1969 = vor.u32 %v1965, %v1968
      %v1970 = vrot.slane %v1969, 4
      %v1972 = vshll.u32 %v1747, 16
      %v1974 = vrot.slane %v1972, 5
      %v1975 = vsel %vm822, %v1970, %v1974
      %v1976 = vshrl.u32 %v1747, 16
      %v1978 = vrot.slane %v1976, 4
      %v1979 = vor.u32 %v1978, %v1974
      %v1980 = vrot.slane %v1979, 4
      %v1982 = vshll.u32 %v1748, 16
      %v1984 = vrot.slane %v1982, 5
      %v1985 = vsel %vm822, %v1980, %v1984
      %v1987 = vshrl.u32 %v1749, 16
      %v1989 = vrot.slane %v1987, 4
      %v1990 = vshll.u32 %v1749, 16
      %v1992 = vrot.slane %v1990, 5
      %v1993 = vor.u32 %v1989, %v1992
      %v1994 = vrot.slane %v1993, 4
      %v1996 = vshll.u32 %v1750, 16
      %v1998 = vrot.slane %v1996, 5
      %v1999 = vsel %vm822, %v1994, %v1998
      %v2000 = vshrl.u32 %v1750, 16
      %v2002 = vrot.slane %v2000, 4
      %v2003 = vor.u32 %v2002, %v1998
      %v2004 = vrot.slane %v2003, 4
      %v2006 = vshll.u32 %v1751, 16
      %v2008 = vrot.slane %v2006, 5
      %v2009 = vsel %vm822, %v2004, %v2008
      %v2011 = vshrl.u32 %v1752, 16
      %v2013 = vrot.slane %v2011, 4
      %v2014 = vshll.u32 %v1752, 16
      %v2016 = vrot.slane %v2014, 5
      %v2017 = vor.u32 %v2013, %v2016
      %v2018 = vrot.slane %v2017, 4
      %v2020 = vshll.u32 %v1753, 16
      %v2022 = vrot.slane %v2020, 5
      %v2023 = vsel %vm822, %v2018, %v2022
      %v2024 = vshrl.u32 %v1753, 16
      %v2026 = vrot.slane %v2024, 4
      %v2027 = vor.u32 %v2026, %v2022
      %v2028 = vrot.slane %v2027, 4
      %v2030 = vshll.u32 %v1754, 16
      %v2032 = vrot.slane %v2030, 5
      %v2033 = vsel %vm822, %v2028, %v2032
      %v2035 = vshrl.u32 %v1755, 16
      %v2037 = vrot.slane %v2035, 4
      %v2038 = vshll.u32 %v1755, 16
      %v2040 = vrot.slane %v2038, 5
      %v2041 = vor.u32 %v2037, %v2040
      %v2042 = vrot.slane %v2041, 4
      %v2044 = vshll.u32 %v1756, 16
      %v2046 = vrot.slane %v2044, 5
      %v2047 = vsel %vm822, %v2042, %v2046
      %v2048 = vshrl.u32 %v1756, 16
      %v2050 = vrot.slane %v2048, 4
      %v2051 = vor.u32 %v2050, %v2046
      %v2052 = vrot.slane %v2051, 4
      %v2054 = vshll.u32 %v1757, 16
      %v2056 = vrot.slane %v2054, 5
      %v2057 = vsel %vm822, %v2052, %v2056
      %v2059 = vshrl.u32 %v1758, 16
      %v2061 = vrot.slane %v2059, 4
      %v2062 = vshll.u32 %v1758, 16
      %v2064 = vrot.slane %v2062, 5
      %v2065 = vor.u32 %v2061, %v2064
      %v2066 = vrot.slane %v2065, 4
      %v2068 = vshll.u32 %v1759, 16
      %v2070 = vrot.slane %v2068, 5
      %v2071 = vsel %vm822, %v2066, %v2070
      %v2072 = vshrl.u32 %v1759, 16
      %v2074 = vrot.slane %v2072, 4
      %v2075 = vor.u32 %v2074, %v2070
      %v2076 = vrot.slane %v2075, 4
      %v2078 = vshll.u32 %v1760, 16
      %v2080 = vrot.slane %v2078, 5
      %v2081 = vsel %vm822, %v2076, %v2080
      %v2083 = vshrl.u32 %v1761, 16
      %v2085 = vrot.slane %v2083, 4
      %v2086 = vshll.u32 %v1761, 16
      %v2088 = vrot.slane %v2086, 5
      %v2089 = vor.u32 %v2085, %v2088
      %v2090 = vrot.slane %v2089, 4
      %v2092 = vshll.u32 %v1762, 16
      %v2094 = vrot.slane %v2092, 5
      %v2095 = vsel %vm822, %v2090, %v2094
      %v2096 = vshrl.u32 %v1762, 16
      %v2098 = vrot.slane %v2096, 4
      %v2099 = vor.u32 %v2098, %v2094
      %v2100 = vrot.slane %v2099, 4
      %v2102 = vshll.u32 %v1763, 16
      %v2104 = vrot.slane %v2102, 5
      %v2105 = vsel %vm822, %v2100, %v2104
      %v2107 = vshrl.u32 %v1764, 16
      %v2109 = vrot.slane %v2107, 4
      %v2110 = vshll.u32 %v1764, 16
      %v2112 = vrot.slane %v2110, 5
      %v2113 = vor.u32 %v2109, %v2112
      %v2114 = vrot.slane %v2113, 4
      %v2116 = vshll.u32 %v1765, 16
      %v2118 = vrot.slane %v2116, 5
      %v2119 = vsel %vm822, %v2114, %v2118
      %v2120 = vshrl.u32 %v1765, 16
      %v2122 = vrot.slane %v2120, 4
      %v2123 = vor.u32 %v2122, %v2118
      %v2124 = vrot.slane %v2123, 4
      %v2126 = vshll.u32 %v1766, 16
      %v2128 = vrot.slane %v2126, 5
      %v2129 = vsel %vm822, %v2124, %v2128
      %v2131 = vshrl.u32 %v1767, 16
      %v2133 = vrot.slane %v2131, 4
      %v2134 = vshll.u32 %v1767, 16
      %v2136 = vrot.slane %v2134, 5
      %v2137 = vor.u32 %v2133, %v2136
      %v2138 = vrot.slane %v2137, 4
      %v2140 = vshll.u32 %v1768, 16
      %v2142 = vrot.slane %v2140, 5
      %v2143 = vsel %vm822, %v2138, %v2142
      %v2144 = vshrl.u32 %v1768, 16
      %v2146 = vrot.slane %v2144, 4
      %v2147 = vor.u32 %v2146, %v2142
      %v2148 = vrot.slane %v2147, 4
      %v2150 = vshll.u32 %v1769, 16
      %v2152 = vrot.slane %v2150, 5
      %v2153 = vsel %vm822, %v2148, %v2152
      %v2154 = vunpack.c.l.b16 %v1783
      %v2155 = vunpack.c.l.b16 %v1793
      %v2156 = vunpack.c.l.b16 %v1807
      %v2157 = vunpack.c.l.b16 %v1817
      %v2158 = vunpack.c.l.b16 %v1831
      %v2159 = vunpack.c.l.b16 %v1841
      %v2160 = vunpack.c.l.b16 %v1855
      %v2161 = vunpack.c.l.b16 %v1865
      %v2162 = vunpack.c.l.b16 %v1879
      %v2163 = vunpack.c.l.b16 %v1889
      %v2164 = vunpack.c.l.b16 %v1903
      %v2165 = vunpack.c.l.b16 %v1913
      %v2166 = vunpack.c.l.b16 %v1927
      %v2167 = vunpack.c.l.b16 %v1937
      %v2168 = vunpack.c.l.b16 %v1951
      %v2169 = vunpack.c.l.b16 %v1961
      %v2170 = vunpack.c.l.b16 %v1975
      %v2171 = vunpack.c.l.b16 %v1985
      %v2172 = vunpack.c.l.b16 %v1999
      %v2173 = vunpack.c.l.b16 %v2009
      %v2174 = vunpack.c.l.b16 %v2023
      %v2175 = vunpack.c.l.b16 %v2033
      %v2176 = vunpack.c.l.b16 %v2047
      %v2177 = vunpack.c.l.b16 %v2057
      %v2178 = vunpack.c.l.b16 %v2071
      %v2179 = vunpack.c.l.b16 %v2081
      %v2180 = vunpack.c.l.b16 %v2095
      %v2181 = vunpack.c.l.b16 %v2105
      %v2182 = vunpack.c.l.b16 %v2119
      %v2183 = vunpack.c.l.b16 %v2129
      %v2184 = vunpack.c.l.b16 %v2143
      %v2185 = vunpack.c.l.b16 %v2153
      %v2186 = vpack.c.b16 %v2155, %v2154
      %v2187 = vpack.c.b16 %v2157, %v2156
      %v2188 = vpack.c.b16 %v2159, %v2158
      %v2189 = vpack.c.b16 %v2161, %v2160
      %v2190 = vpack.c.b16 %v2163, %v2162
      %v2191 = vpack.c.b16 %v2165, %v2164
      %v2192 = vpack.c.b16 %v2167, %v2166
      %v2193 = vpack.c.b16 %v2169, %v2168
      %v2194 = vpack.c.b16 %v2171, %v2170
      %v2195 = vpack.c.b16 %v2173, %v2172
      %v2196 = vpack.c.b16 %v2175, %v2174
      %v2197 = vpack.c.b16 %v2177, %v2176
      %v2198 = vpack.c.b16 %v2179, %v2178
      %v2199 = vpack.c.b16 %v2181, %v2180
      %v2200 = vpack.c.b16 %v2183, %v2182
      %v2201 = vpack.c.b16 %v2185, %v2184
      %2218 = vst [vmem:[#allocation3 + $0x20] sm:$0xff] %v2186
      %2219 = vst [vmem:[#allocation3 + $0x68] sm:$0xff] %v2187
      %2220 = vst [vmem:[#allocation3 + $0xb0] sm:$0xff] %v2188
      %2221 = vst [vmem:[#allocation3 + $0xf8] sm:$0xff] %v2189
      %2222 = vst [vmem:[#allocation3 + $0x140] sm:$0xff] %v2190
      %2223 = vst [vmem:[#allocation3 + $0x188] sm:$0xff] %v2191
      %2224 = vst [vmem:[#allocation3 + $0x1d0] sm:$0xff] %v2192
      %2225 = vst [vmem:[#allocation3 + $0x218] sm:$0xff] %v2193
      %2226 = vst [vmem:[#allocation3 + $0x260] sm:$0xff] %v2194
      %2227 = vst [vmem:[#allocation3 + $0x2a8] sm:$0xff] %v2195
      %2228 = vst [vmem:[#allocation3 + $0x2f0] sm:$0xff] %v2196
      %2229 = vst [vmem:[#allocation3 + $0x338] sm:$0xff] %v2197
      %2230 = vst [vmem:[#allocation3 + $0x380] sm:$0xff] %v2198
      %2231 = vst [vmem:[#allocation3 + $0x3c8] sm:$0xff] %v2199
      %2232 = vst [vmem:[#allocation3 + $0x410] sm:$0xff] %v2200
      %2233 = vst [vmem:[#allocation3 + $0x458] sm:$0xff] %v2201
      %v2234 = vld [vmem:[%s58] sm:$0xe]
      %v2235 = vld [vmem:[%s58 + $0x4] sm:$0xf]
      %v2236 = vld [vmem:[%s58 + $0x8] sm:$0x1]
      %v2237 = vld [vmem:[%s58 + $0xc] sm:$0xe]
      %v2238 = vld [vmem:[%s58 + $0x10] sm:$0xf]
      %v2239 = vld [vmem:[%s58 + $0x14] sm:$0x1]
      %v2240 = vld [vmem:[%s58 + $0x18] sm:$0xe]
      %v2241 = vld [vmem:[%s58 + $0x1c] sm:$0xf]
      %v2242 = vld [vmem:[%s58 + $0x20] sm:$0x1]
      %v2243 = vld [vmem:[%s58 + $0x24] sm:$0xe]
      %v2244 = vld [vmem:[%s58 + $0x28] sm:$0xf]
      %v2245 = vld [vmem:[%s58 + $0x2c] sm:$0x1]
      %v2246 = vld [vmem:[%s58 + $0x30] sm:$0xe]
      %v2247 = vld [vmem:[%s58 + $0x34] sm:$0xf]
      %v2248 = vld [vmem:[%s58 + $0x38] sm:$0x1]
      %v2249 = vld [vmem:[%s58 + $0x3c] sm:$0xe]
      %v2250 = vld [vmem:[%s58 + $0x40] sm:$0xf]
      %v2251 = vld [vmem:[%s58 + $0x44] sm:$0x1]
      %v2252 = vld [vmem:[%s58 + $0x48] sm:$0xe]
      %v2253 = vld [vmem:[%s58 + $0x4c] sm:$0xf]
      %v2254 = vld [vmem:[%s58 + $0x50] sm:$0x1]
      %v2255 = vld [vmem:[%s58 + $0x54] sm:$0xe]
      %v2256 = vld [vmem:[%s58 + $0x58] sm:$0xf]
      %v2257 = vld [vmem:[%s58 + $0x5c] sm:$0x1]
      %v2258 = vld [vmem:[%s58 + $0x60] sm:$0xe]
      %v2259 = vld [vmem:[%s58 + $0x64] sm:$0xf]
      %v2260 = vld [vmem:[%s58 + $0x68] sm:$0x1]
      %v2261 = vld [vmem:[%s58 + $0x6c] sm:$0xe]
      %v2262 = vld [vmem:[%s58 + $0x70] sm:$0xf]
      %v2263 = vld [vmem:[%s58 + $0x74] sm:$0x1]
      %v2264 = vld [vmem:[%s58 + $0x78] sm:$0xe]
      %v2265 = vld [vmem:[%s58 + $0x7c] sm:$0xf]
      %v2266 = vld [vmem:[%s58 + $0x80] sm:$0x1]
      %v2267 = vld [vmem:[%s58 + $0x84] sm:$0xe]
      %v2268 = vld [vmem:[%s58 + $0x88] sm:$0xf]
      %v2269 = vld [vmem:[%s58 + $0x8c] sm:$0x1]
      %v2270 = vld [vmem:[%s58 + $0x90] sm:$0xe]
      %v2271 = vld [vmem:[%s58 + $0x94] sm:$0xf]
      %v2272 = vld [vmem:[%s58 + $0x98] sm:$0x1]
      %v2273 = vld [vmem:[%s58 + $0x9c] sm:$0xe]
      %v2274 = vld [vmem:[%s58 + $0xa0] sm:$0xf]
      %v2275 = vld [vmem:[%s58 + $0xa4] sm:$0x1]
      %v2276 = vld [vmem:[%s58 + $0xa8] sm:$0xe]
      %v2277 = vld [vmem:[%s58 + $0xac] sm:$0xf]
      %v2278 = vld [vmem:[%s58 + $0xb0] sm:$0x1]
      %v2279 = vld [vmem:[%s58 + $0xb4] sm:$0xe]
      %v2280 = vld [vmem:[%s58 + $0xb8] sm:$0xf]
      %v2281 = vld [vmem:[%s58 + $0xbc] sm:$0x1]
      %v2330 = vrot.slane %v2234, 5
      %v2331 = vrot.slane %v2330, 4
      %v2332 = vrot.slane %v2235, 5
      %v2333 = vsel %vm1385, %v2331, %v2332
      %v2334 = vrot.slane %v2332, 4
      %v2335 = vrot.slane %v2236, 5
      %v2336 = vsel %vm1385, %v2334, %v2335
      %v2337 = vrot.slane %v2237, 5
      %v2338 = vrot.slane %v2337, 4
      %v2339 = vrot.slane %v2238, 5
      %v2340 = vsel %vm1385, %v2338, %v2339
      %v2341 = vrot.slane %v2339, 4
      %v2342 = vrot.slane %v2239, 5
      %v2343 = vsel %vm1385, %v2341, %v2342
      %v2344 = vrot.slane %v2240, 5
      %v2345 = vrot.slane %v2344, 4
      %v2346 = vrot.slane %v2241, 5
      %v2347 = vsel %vm1385, %v2345, %v2346
      %v2348 = vrot.slane %v2346, 4
      %v2349 = vrot.slane %v2242, 5
      %v2350 = vsel %vm1385, %v2348, %v2349
      %v2351 = vrot.slane %v2243, 5
      %v2352 = vrot.slane %v2351, 4
      %v2353 = vrot.slane %v2244, 5
      %v2354 = vsel %vm1385, %v2352, %v2353
      %v2355 = vrot.slane %v2353, 4
      %v2356 = vrot.slane %v2245, 5
      %v2357 = vsel %vm1385, %v2355, %v2356
      %v2358 = vrot.slane %v2246, 5
      %v2359 = vrot.slane %v2358, 4
      %v2360 = vrot.slane %v2247, 5
      %v2361 = vsel %vm1385, %v2359, %v2360
      %v2362 = vrot.slane %v2360, 4
      %v2363 = vrot.slane %v2248, 5
      %v2364 = vsel %vm1385, %v2362, %v2363
      %v2365 = vrot.slane %v2249, 5
      %v2366 = vrot.slane %v2365, 4
      %v2367 = vrot.slane %v2250, 5
      %v2368 = vsel %vm1385, %v2366, %v2367
      %v2369 = vrot.slane %v2367, 4
      %v2370 = vrot.slane %v2251, 5
      %v2371 = vsel %vm1385, %v2369, %v2370
      %v2372 = vrot.slane %v2252, 5
      %v2373 = vrot.slane %v2372, 4
      %v2374 = vrot.slane %v2253, 5
      %v2375 = vsel %vm1385, %v2373, %v2374
      %v2376 = vrot.slane %v2374, 4
      %v2377 = vrot.slane %v2254, 5
      %v2378 = vsel %vm1385, %v2376, %v2377
      %v2379 = vrot.slane %v2255, 5
      %v2380 = vrot.slane %v2379, 4
      %v2381 = vrot.slane %v2256, 5
      %v2382 = vsel %vm1385, %v2380, %v2381
      %v2383 = vrot.slane %v2381, 4
      %v2384 = vrot.slane %v2257, 5
      %v2385 = vsel %vm1385, %v2383, %v2384
      %v2386 = vrot.slane %v2258, 5
      %v2387 = vrot.slane %v2386, 4
      %v2388 = vrot.slane %v2259, 5
      %v2389 = vsel %vm1385, %v2387, %v2388
      %v2390 = vrot.slane %v2388, 4
      %v2391 = vrot.slane %v2260, 5
      %v2392 = vsel %vm1385, %v2390, %v2391
      %v2393 = vrot.slane %v2261, 5
      %v2394 = vrot.slane %v2393, 4
      %v2395 = vrot.slane %v2262, 5
      %v2396 = vsel %vm1385, %v2394, %v2395
      %v2397 = vrot.slane %v2395, 4
      %v2398 = vrot.slane %v2263, 5
      %v2399 = vsel %vm1385, %v2397, %v2398
      %v2400 = vrot.slane %v2264, 5
      %v2401 = vrot.slane %v2400, 4
      %v2402 = vrot.slane %v2265, 5
      %v2403 = vsel %vm1385, %v2401, %v2402
      %v2404 = vrot.slane %v2402, 4
      %v2405 = vrot.slane %v2266, 5
      %v2406 = vsel %vm1385, %v2404, %v2405
      %v2407 = vrot.slane %v2267, 5
      %v2408 = vrot.slane %v2407, 4
      %v2409 = vrot.slane %v2268, 5
      %v2410 = vsel %vm1385, %v2408, %v2409
      %v2411 = vrot.slane %v2409, 4
      %v2412 = vrot.slane %v2269, 5
      %v2413 = vsel %vm1385, %v2411, %v2412
      %v2414 = vrot.slane %v2270, 5
      %v2415 = vrot.slane %v2414, 4
      %v2416 = vrot.slane %v2271, 5
      %v2417 = vsel %vm1385, %v2415, %v2416
      %v2418 = vrot.slane %v2416, 4
      %v2419 = vrot.slane %v2272, 5
      %v2420 = vsel %vm1385, %v2418, %v2419
      %v2421 = vrot.slane %v2273, 5
      %v2422 = vrot.slane %v2421, 4
      %v2423 = vrot.slane %v2274, 5
      %v2424 = vsel %vm1385, %v2422, %v2423
      %v2425 = vrot.slane %v2423, 4
      %v2426 = vrot.slane %v2275, 5
      %v2427 = vsel %vm1385, %v2425, %v2426
      %v2428 = vrot.slane %v2276, 5
      %v2429 = vrot.slane %v2428, 4
      %v2430 = vrot.slane %v2277, 5
      %v2431 = vsel %vm1385, %v2429, %v2430
      %v2432 = vrot.slane %v2430, 4
      %v2433 = vrot.slane %v2278, 5
      %v2434 = vsel %vm1385, %v2432, %v2433
      %v2435 = vrot.slane %v2279, 5
      %v2436 = vrot.slane %v2435, 4
      %v2437 = vrot.slane %v2280, 5
      %v2438 = vsel %vm1385, %v2436, %v2437
      %v2439 = vrot.slane %v2437, 4
      %v2440 = vrot.slane %v2281, 5
      %v2441 = vsel %vm1385, %v2439, %v2440
      %v2442 = vunpack.c.l.b16 %v2333
      %v2443 = vunpack.c.l.b16 %v2336
      %v2444 = vunpack.c.l.b16 %v2340
      %v2445 = vunpack.c.l.b16 %v2343
      %v2446 = vunpack.c.l.b16 %v2347
      %v2447 = vunpack.c.l.b16 %v2350
      %v2448 = vunpack.c.l.b16 %v2354
      %v2449 = vunpack.c.l.b16 %v2357
      %v2450 = vunpack.c.l.b16 %v2361
      %v2451 = vunpack.c.l.b16 %v2364
      %v2452 = vunpack.c.l.b16 %v2368
      %v2453 = vunpack.c.l.b16 %v2371
      %v2454 = vunpack.c.l.b16 %v2375
      %v2455 = vunpack.c.l.b16 %v2378
      %v2456 = vunpack.c.l.b16 %v2382
      %v2457 = vunpack.c.l.b16 %v2385
      %v2458 = vunpack.c.l.b16 %v2389
      %v2459 = vunpack.c.l.b16 %v2392
      %v2460 = vunpack.c.l.b16 %v2396
      %v2461 = vunpack.c.l.b16 %v2399
      %v2462 = vunpack.c.l.b16 %v2403
      %v2463 = vunpack.c.l.b16 %v2406
      %v2464 = vunpack.c.l.b16 %v2410
      %v2465 = vunpack.c.l.b16 %v2413
      %v2466 = vunpack.c.l.b16 %v2417
      %v2467 = vunpack.c.l.b16 %v2420
      %v2468 = vunpack.c.l.b16 %v2424
      %v2469 = vunpack.c.l.b16 %v2427
      %v2470 = vunpack.c.l.b16 %v2431
      %v2471 = vunpack.c.l.b16 %v2434
      %v2472 = vunpack.c.l.b16 %v2438
      %v2473 = vunpack.c.l.b16 %v2441
      %v2474 = vpack.c.b16 %v2443, %v2442
      %v2475 = vpack.c.b16 %v2445, %v2444
      %v2476 = vpack.c.b16 %v2447, %v2446
      %v2477 = vpack.c.b16 %v2449, %v2448
      %v2478 = vpack.c.b16 %v2451, %v2450
      %v2479 = vpack.c.b16 %v2453, %v2452
      %v2480 = vpack.c.b16 %v2455, %v2454
      %v2481 = vpack.c.b16 %v2457, %v2456
      %v2482 = vpack.c.b16 %v2459, %v2458
      %v2483 = vpack.c.b16 %v2461, %v2460
      %v2484 = vpack.c.b16 %v2463, %v2462
      %v2485 = vpack.c.b16 %v2465, %v2464
      %v2486 = vpack.c.b16 %v2467, %v2466
      %v2487 = vpack.c.b16 %v2469, %v2468
      %v2488 = vpack.c.b16 %v2471, %v2470
      %v2489 = vpack.c.b16 %v2473, %v2472
      %2506 = vst [vmem:[#allocation3 + $0x28] sm:$0xff] %v2474
      %2507 = vst [vmem:[#allocation3 + $0x70] sm:$0xff] %v2475
      %2508 = vst [vmem:[#allocation3 + $0xb8] sm:$0xff] %v2476
      %2509 = vst [vmem:[#allocation3 + $0x100] sm:$0xff] %v2477
      %2510 = vst [vmem:[#allocation3 + $0x148] sm:$0xff] %v2478
      %2511 = vst [vmem:[#allocation3 + $0x190] sm:$0xff] %v2479
      %2512 = vst [vmem:[#allocation3 + $0x1d8] sm:$0xff] %v2480
      %2513 = vst [vmem:[#allocation3 + $0x220] sm:$0xff] %v2481
      %2514 = vst [vmem:[#allocation3 + $0x268] sm:$0xff] %v2482
      %2515 = vst [vmem:[#allocation3 + $0x2b0] sm:$0xff] %v2483
      %2516 = vst [vmem:[#allocation3 + $0x2f8] sm:$0xff] %v2484
      %2517 = vst [vmem:[#allocation3 + $0x340] sm:$0xff] %v2485
      %2518 = vst [vmem:[#allocation3 + $0x388] sm:$0xff] %v2486
      %2519 = vst [vmem:[#allocation3 + $0x3d0] sm:$0xff] %v2487
      %2520 = vst [vmem:[#allocation3 + $0x418] sm:$0xff] %v2488
      %2521 = vst [vmem:[#allocation3 + $0x460] sm:$0xff] %v2489
      %s2522 = scalar_lea.vmem [#allocation2], 24
      %v2523 = vld [vmem:[%s2522] sm:$0xf]
      %v2524 = vld [vmem:[%s2522 + $0x4] sm:$0xf]
      %v2525 = vld [vmem:[%s2522 + $0xc] sm:$0xf]
      %v2526 = vld [vmem:[%s2522 + $0x10] sm:$0xf]
      %v2527 = vld [vmem:[%s2522 + $0x18] sm:$0xf]
      %v2528 = vld [vmem:[%s2522 + $0x1c] sm:$0xf]
      %v2529 = vld [vmem:[%s2522 + $0x24] sm:$0xf]
      %v2530 = vld [vmem:[%s2522 + $0x28] sm:$0xf]
      %v2531 = vld [vmem:[%s2522 + $0x30] sm:$0xf]
      %v2532 = vld [vmem:[%s2522 + $0x34] sm:$0xf]
      %v2533 = vld [vmem:[%s2522 + $0x3c] sm:$0xf]
      %v2534 = vld [vmem:[%s2522 + $0x40] sm:$0xf]
      %v2535 = vld [vmem:[%s2522 + $0x48] sm:$0xf]
      %v2536 = vld [vmem:[%s2522 + $0x4c] sm:$0xf]
      %v2537 = vld [vmem:[%s2522 + $0x54] sm:$0xf]
      %v2538 = vld [vmem:[%s2522 + $0x58] sm:$0xf]
      %v2539 = vld [vmem:[%s2522 + $0x60] sm:$0xf]
      %v2540 = vld [vmem:[%s2522 + $0x64] sm:$0xf]
      %v2541 = vld [vmem:[%s2522 + $0x6c] sm:$0xf]
      %v2542 = vld [vmem:[%s2522 + $0x70] sm:$0xf]
      %v2543 = vld [vmem:[%s2522 + $0x78] sm:$0xf]
      %v2544 = vld [vmem:[%s2522 + $0x7c] sm:$0xf]
      %v2545 = vld [vmem:[%s2522 + $0x84] sm:$0xf]
      %v2546 = vld [vmem:[%s2522 + $0x88] sm:$0xf]
      %v2547 = vld [vmem:[%s2522 + $0x90] sm:$0xf]
      %v2548 = vld [vmem:[%s2522 + $0x94] sm:$0xf]
      %v2549 = vld [vmem:[%s2522 + $0x9c] sm:$0xf]
      %v2550 = vld [vmem:[%s2522 + $0xa0] sm:$0xf]
      %v2551 = vld [vmem:[%s2522 + $0xa8] sm:$0xf]
      %v2552 = vld [vmem:[%s2522 + $0xac] sm:$0xf]
      %v2553 = vld [vmem:[%s2522 + $0xb4] sm:$0xf]
      %v2554 = vld [vmem:[%s2522 + $0xb8] sm:$0xf]
      %v2587 = vunpack.c.l.b16 %v2523
      %v2588 = vunpack.c.l.b16 %v2524
      %v2589 = vunpack.c.l.b16 %v2525
      %v2590 = vunpack.c.l.b16 %v2526
      %v2591 = vunpack.c.l.b16 %v2527
      %v2592 = vunpack.c.l.b16 %v2528
      %v2593 = vunpack.c.l.b16 %v2529
      %v2594 = vunpack.c.l.b16 %v2530
      %v2595 = vunpack.c.l.b16 %v2531
      %v2596 = vunpack.c.l.b16 %v2532
      %v2597 = vunpack.c.l.b16 %v2533
      %v2598 = vunpack.c.l.b16 %v2534
      %v2599 = vunpack.c.l.b16 %v2535
      %v2600 = vunpack.c.l.b16 %v2536
      %v2601 = vunpack.c.l.b16 %v2537
      %v2602 = vunpack.c.l.b16 %v2538
      %v2603 = vunpack.c.l.b16 %v2539
      %v2604 = vunpack.c.l.b16 %v2540
      %v2605 = vunpack.c.l.b16 %v2541
      %v2606 = vunpack.c.l.b16 %v2542
      %v2607 = vunpack.c.l.b16 %v2543
      %v2608 = vunpack.c.l.b16 %v2544
      %v2609 = vunpack.c.l.b16 %v2545
      %v2610 = vunpack.c.l.b16 %v2546
      %v2611 = vunpack.c.l.b16 %v2547
      %v2612 = vunpack.c.l.b16 %v2548
      %v2613 = vunpack.c.l.b16 %v2549
      %v2614 = vunpack.c.l.b16 %v2550
      %v2615 = vunpack.c.l.b16 %v2551
      %v2616 = vunpack.c.l.b16 %v2552
      %v2617 = vunpack.c.l.b16 %v2553
      %v2618 = vunpack.c.l.b16 %v2554
      %v2619 = vpack.c.b16 %v2588, %v2587
      %v2620 = vpack.c.b16 %v2590, %v2589
      %v2621 = vpack.c.b16 %v2592, %v2591
      %v2622 = vpack.c.b16 %v2594, %v2593
      %v2623 = vpack.c.b16 %v2596, %v2595
      %v2624 = vpack.c.b16 %v2598, %v2597
      %v2625 = vpack.c.b16 %v2600, %v2599
      %v2626 = vpack.c.b16 %v2602, %v2601
      %v2627 = vpack.c.b16 %v2604, %v2603
      %v2628 = vpack.c.b16 %v2606, %v2605
      %v2629 = vpack.c.b16 %v2608, %v2607
      %v2630 = vpack.c.b16 %v2610, %v2609
      %v2631 = vpack.c.b16 %v2612, %v2611
      %v2632 = vpack.c.b16 %v2614, %v2613
      %v2633 = vpack.c.b16 %v2616, %v2615
      %v2634 = vpack.c.b16 %v2618, %v2617
      %2651 = vst [vmem:[#allocation3 + $0x30] sm:$0xff] %v2619
      %2652 = vst [vmem:[#allocation3 + $0x78] sm:$0xff] %v2620
      %2653 = vst [vmem:[#allocation3 + $0xc0] sm:$0xff] %v2621
      %2654 = vst [vmem:[#allocation3 + $0x108] sm:$0xff] %v2622
      %2655 = vst [vmem:[#allocation3 + $0x150] sm:$0xff] %v2623
      %2656 = vst [vmem:[#allocation3 + $0x198] sm:$0xff] %v2624
      %2657 = vst [vmem:[#allocation3 + $0x1e0] sm:$0xff] %v2625
      %2658 = vst [vmem:[#allocation3 + $0x228] sm:$0xff] %v2626
      %2659 = vst [vmem:[#allocation3 + $0x270] sm:$0xff] %v2627
      %2660 = vst [vmem:[#allocation3 + $0x2b8] sm:$0xff] %v2628
      %2661 = vst [vmem:[#allocation3 + $0x300] sm:$0xff] %v2629
      %2662 = vst [vmem:[#allocation3 + $0x348] sm:$0xff] %v2630
      %2663 = vst [vmem:[#allocation3 + $0x390] sm:$0xff] %v2631
      %2664 = vst [vmem:[#allocation3 + $0x3d8] sm:$0xff] %v2632
      %2665 = vst [vmem:[#allocation3 + $0x420] sm:$0xff] %v2633
      %2666 = vst [vmem:[#allocation3 + $0x468] sm:$0xff] %v2634
      %v2667 = vld [vmem:[%s2522] sm:$0xf]
      %v2668 = vld [vmem:[%s2522 + $0x4] sm:$0xf]
      %v2669 = vld [vmem:[%s2522 + $0x8] sm:$0x1]
      %v2670 = vld [vmem:[%s2522 + $0xc] sm:$0xf]
      %v2671 = vld [vmem:[%s2522 + $0x10] sm:$0xf]
      %v2672 = vld [vmem:[%s2522 + $0x14] sm:$0x1]
      %v2673 = vld [vmem:[%s2522 + $0x18] sm:$0xf]
      %v2674 = vld [vmem:[%s2522 + $0x1c] sm:$0xf]
      %v2675 = vld [vmem:[%s2522 + $0x20] sm:$0x1]
      %v2676 = vld [vmem:[%s2522 + $0x24] sm:$0xf]
      %v2677 = vld [vmem:[%s2522 + $0x28] sm:$0xf]
      %v2678 = vld [vmem:[%s2522 + $0x2c] sm:$0x1]
      %v2679 = vld [vmem:[%s2522 + $0x30] sm:$0xf]
      %v2680 = vld [vmem:[%s2522 + $0x34] sm:$0xf]
      %v2681 = vld [vmem:[%s2522 + $0x38] sm:$0x1]
      %v2682 = vld [vmem:[%s2522 + $0x3c] sm:$0xf]
      %v2683 = vld [vmem:[%s2522 + $0x40] sm:$0xf]
      %v2684 = vld [vmem:[%s2522 + $0x44] sm:$0x1]
      %v2685 = vld [vmem:[%s2522 + $0x48] sm:$0xf]
      %v2686 = vld [vmem:[%s2522 + $0x4c] sm:$0xf]
      %v2687 = vld [vmem:[%s2522 + $0x50] sm:$0x1]
      %v2688 = vld [vmem:[%s2522 + $0x54] sm:$0xf]
      %v2689 = vld [vmem:[%s2522 + $0x58] sm:$0xf]
      %v2690 = vld [vmem:[%s2522 + $0x5c] sm:$0x1]
      %v2691 = vld [vmem:[%s2522 + $0x60] sm:$0xf]
      %v2692 = vld [vmem:[%s2522 + $0x64] sm:$0xf]
      %v2693 = vld [vmem:[%s2522 + $0x68] sm:$0x1]
      %v2694 = vld [vmem:[%s2522 + $0x6c] sm:$0xf]
      %v2695 = vld [vmem:[%s2522 + $0x70] sm:$0xf]
      %v2696 = vld [vmem:[%s2522 + $0x74] sm:$0x1]
      %v2697 = vld [vmem:[%s2522 + $0x78] sm:$0xf]
      %v2698 = vld [vmem:[%s2522 + $0x7c] sm:$0xf]
      %v2699 = vld [vmem:[%s2522 + $0x80] sm:$0x1]
      %v2700 = vld [vmem:[%s2522 + $0x84] sm:$0xf]
      %v2701 = vld [vmem:[%s2522 + $0x88] sm:$0xf]
      %v2702 = vld [vmem:[%s2522 + $0x8c] sm:$0x1]
      %v2703 = vld [vmem:[%s2522 + $0x90] sm:$0xf]
      %v2704 = vld [vmem:[%s2522 + $0x94] sm:$0xf]
      %v2705 = vld [vmem:[%s2522 + $0x98] sm:$0x1]
      %v2706 = vld [vmem:[%s2522 + $0x9c] sm:$0xf]
      %v2707 = vld [vmem:[%s2522 + $0xa0] sm:$0xf]
      %v2708 = vld [vmem:[%s2522 + $0xa4] sm:$0x1]
      %v2709 = vld [vmem:[%s2522 + $0xa8] sm:$0xf]
      %v2710 = vld [vmem:[%s2522 + $0xac] sm:$0xf]
      %v2711 = vld [vmem:[%s2522 + $0xb0] sm:$0x1]
      %v2712 = vld [vmem:[%s2522 + $0xb4] sm:$0xf]
      %v2713 = vld [vmem:[%s2522 + $0xb8] sm:$0xf]
      %v2714 = vld [vmem:[%s2522 + $0xbc] sm:$0x1]
      %v2716 = vshrl.u32 %v2667, 16
      %v2718 = vrot.slane %v2716, 4
      %v2719 = vshll.u32 %v2667, 16
      %v2721 = vrot.slane %v2719, 5
      %v2722 = vor.u32 %v2718, %v2721
      %v2723 = vrot.slane %v2722, 4
      %v2725 = vshll.u32 %v2668, 16
      %v2727 = vrot.slane %v2725, 5
      %v2728 = vsel %vm822, %v2723, %v2727
      %v2729 = vshrl.u32 %v2668, 16
      %v2731 = vrot.slane %v2729, 4
      %v2732 = vor.u32 %v2731, %v2727
      %v2733 = vrot.slane %v2732, 4
      %v2735 = vshll.u32 %v2669, 16
      %v2737 = vrot.slane %v2735, 5
      %v2738 = vsel %vm822, %v2733, %v2737
      %v2740 = vshrl.u32 %v2670, 16
      %v2742 = vrot.slane %v2740, 4
      %v2743 = vshll.u32 %v2670, 16
      %v2745 = vrot.slane %v2743, 5
      %v2746 = vor.u32 %v2742, %v2745
      %v2747 = vrot.slane %v2746, 4
      %v2749 = vshll.u32 %v2671, 16
      %v2751 = vrot.slane %v2749, 5
      %v2752 = vsel %vm822, %v2747, %v2751
      %v2753 = vshrl.u32 %v2671, 16
      %v2755 = vrot.slane %v2753, 4
      %v2756 = vor.u32 %v2755, %v2751
      %v2757 = vrot.slane %v2756, 4
      %v2759 = vshll.u32 %v2672, 16
      %v2761 = vrot.slane %v2759, 5
      %v2762 = vsel %vm822, %v2757, %v2761
      %v2764 = vshrl.u32 %v2673, 16
      %v2766 = vrot.slane %v2764, 4
      %v2767 = vshll.u32 %v2673, 16
      %v2769 = vrot.slane %v2767, 5
      %v2770 = vor.u32 %v2766, %v2769
      %v2771 = vrot.slane %v2770, 4
      %v2773 = vshll.u32 %v2674, 16
      %v2775 = vrot.slane %v2773, 5
      %v2776 = vsel %vm822, %v2771, %v2775
      %v2777 = vshrl.u32 %v2674, 16
      %v2779 = vrot.slane %v2777, 4
      %v2780 = vor.u32 %v2779, %v2775
      %v2781 = vrot.slane %v2780, 4
      %v2783 = vshll.u32 %v2675, 16
      %v2785 = vrot.slane %v2783, 5
      %v2786 = vsel %vm822, %v2781, %v2785
      %v2788 = vshrl.u32 %v2676, 16
      %v2790 = vrot.slane %v2788, 4
      %v2791 = vshll.u32 %v2676, 16
      %v2793 = vrot.slane %v2791, 5
      %v2794 = vor.u32 %v2790, %v2793
      %v2795 = vrot.slane %v2794, 4
      %v2797 = vshll.u32 %v2677, 16
      %v2799 = vrot.slane %v2797, 5
      %v2800 = vsel %vm822, %v2795, %v2799
      %v2801 = vshrl.u32 %v2677, 16
      %v2803 = vrot.slane %v2801, 4
      %v2804 = vor.u32 %v2803, %v2799
      %v2805 = vrot.slane %v2804, 4
      %v2807 = vshll.u32 %v2678, 16
      %v2809 = vrot.slane %v2807, 5
      %v2810 = vsel %vm822, %v2805, %v2809
      %v2812 = vshrl.u32 %v2679, 16
      %v2814 = vrot.slane %v2812, 4
      %v2815 = vshll.u32 %v2679, 16
      %v2817 = vrot.slane %v2815, 5
      %v2818 = vor.u32 %v2814, %v2817
      %v2819 = vrot.slane %v2818, 4
      %v2821 = vshll.u32 %v2680, 16
      %v2823 = vrot.slane %v2821, 5
      %v2824 = vsel %vm822, %v2819, %v2823
      %v2825 = vshrl.u32 %v2680, 16
      %v2827 = vrot.slane %v2825, 4
      %v2828 = vor.u32 %v2827, %v2823
      %v2829 = vrot.slane %v2828, 4
      %v2831 = vshll.u32 %v2681, 16
      %v2833 = vrot.slane %v2831, 5
      %v2834 = vsel %vm822, %v2829, %v2833
      %v2836 = vshrl.u32 %v2682, 16
      %v2838 = vrot.slane %v2836, 4
      %v2839 = vshll.u32 %v2682, 16
      %v2841 = vrot.slane %v2839, 5
      %v2842 = vor.u32 %v2838, %v2841
      %v2843 = vrot.slane %v2842, 4
      %v2845 = vshll.u32 %v2683, 16
      %v2847 = vrot.slane %v2845, 5
      %v2848 = vsel %vm822, %v2843, %v2847
      %v2849 = vshrl.u32 %v2683, 16
      %v2851 = vrot.slane %v2849, 4
      %v2852 = vor.u32 %v2851, %v2847
      %v2853 = vrot.slane %v2852, 4
      %v2855 = vshll.u32 %v2684, 16
      %v2857 = vrot.slane %v2855, 5
      %v2858 = vsel %vm822, %v2853, %v2857
      %v2860 = vshrl.u32 %v2685, 16
      %v2862 = vrot.slane %v2860, 4
      %v2863 = vshll.u32 %v2685, 16
      %v2865 = vrot.slane %v2863, 5
      %v2866 = vor.u32 %v2862, %v2865
      %v2867 = vrot.slane %v2866, 4
      %v2869 = vshll.u32 %v2686, 16
      %v2871 = vrot.slane %v2869, 5
      %v2872 = vsel %vm822, %v2867, %v2871
      %v2873 = vshrl.u32 %v2686, 16
      %v2875 = vrot.slane %v2873, 4
      %v2876 = vor.u32 %v2875, %v2871
      %v2877 = vrot.slane %v2876, 4
      %v2879 = vshll.u32 %v2687, 16
      %v2881 = vrot.slane %v2879, 5
      %v2882 = vsel %vm822, %v2877, %v2881
      %v2884 = vshrl.u32 %v2688, 16
      %v2886 = vrot.slane %v2884, 4
      %v2887 = vshll.u32 %v2688, 16
      %v2889 = vrot.slane %v2887, 5
      %v2890 = vor.u32 %v2886, %v2889
      %v2891 = vrot.slane %v2890, 4
      %v2893 = vshll.u32 %v2689, 16
      %v2895 = vrot.slane %v2893, 5
      %v2896 = vsel %vm822, %v2891, %v2895
      %v2897 = vshrl.u32 %v2689, 16
      %v2899 = vrot.slane %v2897, 4
      %v2900 = vor.u32 %v2899, %v2895
      %v2901 = vrot.slane %v2900, 4
      %v2903 = vshll.u32 %v2690, 16
      %v2905 = vrot.slane %v2903, 5
      %v2906 = vsel %vm822, %v2901, %v2905
      %v2908 = vshrl.u32 %v2691, 16
      %v2910 = vrot.slane %v2908, 4
      %v2911 = vshll.u32 %v2691, 16
      %v2913 = vrot.slane %v2911, 5
      %v2914 = vor.u32 %v2910, %v2913
      %v2915 = vrot.slane %v2914, 4
      %v2917 = vshll.u32 %v2692, 16
      %v2919 = vrot.slane %v2917, 5
      %v2920 = vsel %vm822, %v2915, %v2919
      %v2921 = vshrl.u32 %v2692, 16
      %v2923 = vrot.slane %v2921, 4
      %v2924 = vor.u32 %v2923, %v2919
      %v2925 = vrot.slane %v2924, 4
      %v2927 = vshll.u32 %v2693, 16
      %v2929 = vrot.slane %v2927, 5
      %v2930 = vsel %vm822, %v2925, %v2929
      %v2932 = vshrl.u32 %v2694, 16
      %v2934 = vrot.slane %v2932, 4
      %v2935 = vshll.u32 %v2694, 16
      %v2937 = vrot.slane %v2935, 5
      %v2938 = vor.u32 %v2934, %v2937
      %v2939 = vrot.slane %v2938, 4
      %v2941 = vshll.u32 %v2695, 16
      %v2943 = vrot.slane %v2941, 5
      %v2944 = vsel %vm822, %v2939, %v2943
      %v2945 = vshrl.u32 %v2695, 16
      %v2947 = vrot.slane %v2945, 4
      %v2948 = vor.u32 %v2947, %v2943
      %v2949 = vrot.slane %v2948, 4
      %v2951 = vshll.u32 %v2696, 16
      %v2953 = vrot.slane %v2951, 5
      %v2954 = vsel %vm822, %v2949, %v2953
      %v2956 = vshrl.u32 %v2697, 16
      %v2958 = vrot.slane %v2956, 4
      %v2959 = vshll.u32 %v2697, 16
      %v2961 = vrot.slane %v2959, 5
      %v2962 = vor.u32 %v2958, %v2961
      %v2963 = vrot.slane %v2962, 4
      %v2965 = vshll.u32 %v2698, 16
      %v2967 = vrot.slane %v2965, 5
      %v2968 = vsel %vm822, %v2963, %v2967
      %v2969 = vshrl.u32 %v2698, 16
      %v2971 = vrot.slane %v2969, 4
      %v2972 = vor.u32 %v2971, %v2967
      %v2973 = vrot.slane %v2972, 4
      %v2975 = vshll.u32 %v2699, 16
      %v2977 = vrot.slane %v2975, 5
      %v2978 = vsel %vm822, %v2973, %v2977
      %v2980 = vshrl.u32 %v2700, 16
      %v2982 = vrot.slane %v2980, 4
      %v2983 = vshll.u32 %v2700, 16
      %v2985 = vrot.slane %v2983, 5
      %v2986 = vor.u32 %v2982, %v2985
      %v2987 = vrot.slane %v2986, 4
      %v2989 = vshll.u32 %v2701, 16
      %v2991 = vrot.slane %v2989, 5
      %v2992 = vsel %vm822, %v2987, %v2991
      %v2993 = vshrl.u32 %v2701, 16
      %v2995 = vrot.slane %v2993, 4
      %v2996 = vor.u32 %v2995, %v2991
      %v2997 = vrot.slane %v2996, 4
      %v2999 = vshll.u32 %v2702, 16
      %v3001 = vrot.slane %v2999, 5
      %v3002 = vsel %vm822, %v2997, %v3001
      %v3004 = vshrl.u32 %v2703, 16
      %v3006 = vrot.slane %v3004, 4
      %v3007 = vshll.u32 %v2703, 16
      %v3009 = vrot.slane %v3007, 5
      %v3010 = vor.u32 %v3006, %v3009
      %v3011 = vrot.slane %v3010, 4
      %v3013 = vshll.u32 %v2704, 16
      %v3015 = vrot.slane %v3013, 5
      %v3016 = vsel %vm822, %v3011, %v3015
      %v3017 = vshrl.u32 %v2704, 16
      %v3019 = vrot.slane %v3017, 4
      %v3020 = vor.u32 %v3019, %v3015
      %v3021 = vrot.slane %v3020, 4
      %v3023 = vshll.u32 %v2705, 16
      %v3025 = vrot.slane %v3023, 5
      %v3026 = vsel %vm822, %v3021, %v3025
      %v3028 = vshrl.u32 %v2706, 16
      %v3030 = vrot.slane %v3028, 4
      %v3031 = vshll.u32 %v2706, 16
      %v3033 = vrot.slane %v3031, 5
      %v3034 = vor.u32 %v3030, %v3033
      %v3035 = vrot.slane %v3034, 4
      %v3037 = vshll.u32 %v2707, 16
      %v3039 = vrot.slane %v3037, 5
      %v3040 = vsel %vm822, %v3035, %v3039
      %v3041 = vshrl.u32 %v2707, 16
      %v3043 = vrot.slane %v3041, 4
      %v3044 = vor.u32 %v3043, %v3039
      %v3045 = vrot.slane %v3044, 4
      %v3047 = vshll.u32 %v2708, 16
      %v3049 = vrot.slane %v3047, 5
      %v3050 = vsel %vm822, %v3045, %v3049
      %v3052 = vshrl.u32 %v2709, 16
      %v3054 = vrot.slane %v3052, 4
      %v3055 = vshll.u32 %v2709, 16
      %v3057 = vrot.slane %v3055, 5
      %v3058 = vor.u32 %v3054, %v3057
      %v3059 = vrot.slane %v3058, 4
      %v3061 = vshll.u32 %v2710, 16
      %v3063 = vrot.slane %v3061, 5
      %v3064 = vsel %vm822, %v3059, %v3063
      %v3065 = vshrl.u32 %v2710, 16
      %v3067 = vrot.slane %v3065, 4
      %v3068 = vor.u32 %v3067, %v3063
      %v3069 = vrot.slane %v3068, 4
      %v3071 = vshll.u32 %v2711, 16
      %v3073 = vrot.slane %v3071, 5
      %v3074 = vsel %vm822, %v3069, %v3073
      %v3076 = vshrl.u32 %v2712, 16
      %v3078 = vrot.slane %v3076, 4
      %v3079 = vshll.u32 %v2712, 16
      %v3081 = vrot.slane %v3079, 5
      %v3082 = vor.u32 %v3078, %v3081
      %v3083 = vrot.slane %v3082, 4
      %v3085 = vshll.u32 %v2713, 16
      %v3087 = vrot.slane %v3085, 5
      %v3088 = vsel %vm822, %v3083, %v3087
      %v3089 = vshrl.u32 %v2713, 16
      %v3091 = vrot.slane %v3089, 4
      %v3092 = vor.u32 %v3091, %v3087
      %v3093 = vrot.slane %v3092, 4
      %v3095 = vshll.u32 %v2714, 16
      %v3097 = vrot.slane %v3095, 5
      %v3098 = vsel %vm822, %v3093, %v3097
      %v3099 = vunpack.c.l.b16 %v2728
      %v3100 = vunpack.c.l.b16 %v2738
      %v3101 = vunpack.c.l.b16 %v2752
      %v3102 = vunpack.c.l.b16 %v2762
      %v3103 = vunpack.c.l.b16 %v2776
      %v3104 = vunpack.c.l.b16 %v2786
      %v3105 = vunpack.c.l.b16 %v2800
      %v3106 = vunpack.c.l.b16 %v2810
      %v3107 = vunpack.c.l.b16 %v2824
      %v3108 = vunpack.c.l.b16 %v2834
      %v3109 = vunpack.c.l.b16 %v2848
      %v3110 = vunpack.c.l.b16 %v2858
      %v3111 = vunpack.c.l.b16 %v2872
      %v3112 = vunpack.c.l.b16 %v2882
      %v3113 = vunpack.c.l.b16 %v2896
      %v3114 = vunpack.c.l.b16 %v2906
      %v3115 = vunpack.c.l.b16 %v2920
      %v3116 = vunpack.c.l.b16 %v2930
      %v3117 = vunpack.c.l.b16 %v2944
      %v3118 = vunpack.c.l.b16 %v2954
      %v3119 = vunpack.c.l.b16 %v2968
      %v3120 = vunpack.c.l.b16 %v2978
      %v3121 = vunpack.c.l.b16 %v2992
      %v3122 = vunpack.c.l.b16 %v3002
      %v3123 = vunpack.c.l.b16 %v3016
      %v3124 = vunpack.c.l.b16 %v3026
      %v3125 = vunpack.c.l.b16 %v3040
      %v3126 = vunpack.c.l.b16 %v3050
      %v3127 = vunpack.c.l.b16 %v3064
      %v3128 = vunpack.c.l.b16 %v3074
      %v3129 = vunpack.c.l.b16 %v3088
      %v3130 = vunpack.c.l.b16 %v3098
      %v3131 = vpack.c.b16 %v3100, %v3099
      %v3132 = vpack.c.b16 %v3102, %v3101
      %v3133 = vpack.c.b16 %v3104, %v3103
      %v3134 = vpack.c.b16 %v3106, %v3105
      %v3135 = vpack.c.b16 %v3108, %v3107
      %v3136 = vpack.c.b16 %v3110, %v3109
      %v3137 = vpack.c.b16 %v3112, %v3111
      %v3138 = vpack.c.b16 %v3114, %v3113
      %v3139 = vpack.c.b16 %v3116, %v3115
      %v3140 = vpack.c.b16 %v3118, %v3117
      %v3141 = vpack.c.b16 %v3120, %v3119
      %v3142 = vpack.c.b16 %v3122, %v3121
      %v3143 = vpack.c.b16 %v3124, %v3123
      %v3144 = vpack.c.b16 %v3126, %v3125
      %v3145 = vpack.c.b16 %v3128, %v3127
      %v3146 = vpack.c.b16 %v3130, %v3129
      %3163 = vst [vmem:[#allocation3 + $0x38] sm:$0xff] %v3131
      %3164 = vst [vmem:[#allocation3 + $0x80] sm:$0xff] %v3132
      %3165 = vst [vmem:[#allocation3 + $0xc8] sm:$0xff] %v3133
      %3166 = vst [vmem:[#allocation3 + $0x110] sm:$0xff] %v3134
      %3167 = vst [vmem:[#allocation3 + $0x158] sm:$0xff] %v3135
      %3168 = vst [vmem:[#allocation3 + $0x1a0] sm:$0xff] %v3136
      %3169 = vst [vmem:[#allocation3 + $0x1e8] sm:$0xff] %v3137
      %3170 = vst [vmem:[#allocation3 + $0x230] sm:$0xff] %v3138
      %3171 = vst [vmem:[#allocation3 + $0x278] sm:$0xff] %v3139
      %3172 = vst [vmem:[#allocation3 + $0x2c0] sm:$0xff] %v3140
      %3173 = vst [vmem:[#allocation3 + $0x308] sm:$0xff] %v3141
      %3174 = vst [vmem:[#allocation3 + $0x350] sm:$0xff] %v3142
      %3175 = vst [vmem:[#allocation3 + $0x398] sm:$0xff] %v3143
      %3176 = vst [vmem:[#allocation3 + $0x3e0] sm:$0xff] %v3144
      %3177 = vst [vmem:[#allocation3 + $0x428] sm:$0xff] %v3145
      %3178 = vst [vmem:[#allocation3 + $0x470] sm:$0xff] %v3146
      %v3179 = vld [vmem:[%s2522] sm:$0xe]
      %v3180 = vld [vmem:[%s2522 + $0x4] sm:$0xf]
      %v3181 = vld [vmem:[%s2522 + $0x8] sm:$0x1]
      %v3182 = vld [vmem:[%s2522 + $0xc] sm:$0xe]
      %v3183 = vld [vmem:[%s2522 + $0x10] sm:$0xf]
      %v3184 = vld [vmem:[%s2522 + $0x14] sm:$0x1]
      %v3185 = vld [vmem:[%s2522 + $0x18] sm:$0xe]
      %v3186 = vld [vmem:[%s2522 + $0x1c] sm:$0xf]
      %v3187 = vld [vmem:[%s2522 + $0x20] sm:$0x1]
      %v3188 = vld [vmem:[%s2522 + $0x24] sm:$0xe]
      %v3189 = vld [vmem:[%s2522 + $0x28] sm:$0xf]
      %v3190 = vld [vmem:[%s2522 + $0x2c] sm:$0x1]
      %v3191 = vld [vmem:[%s2522 + $0x30] sm:$0xe]
      %v3192 = vld [vmem:[%s2522 + $0x34] sm:$0xf]
      %v3193 = vld [vmem:[%s2522 + $0x38] sm:$0x1]
      %v3194 = vld [vmem:[%s2522 + $0x3c] sm:$0xe]
      %v3195 = vld [vmem:[%s2522 + $0x40] sm:$0xf]
      %v3196 = vld [vmem:[%s2522 + $0x44] sm:$0x1]
      %v3197 = vld [vmem:[%s2522 + $0x48] sm:$0xe]
      %v3198 = vld [vmem:[%s2522 + $0x4c] sm:$0xf]
      %v3199 = vld [vmem:[%s2522 + $0x50] sm:$0x1]
      %v3200 = vld [vmem:[%s2522 + $0x54] sm:$0xe]
      %v3201 = vld [vmem:[%s2522 + $0x58] sm:$0xf]
      %v3202 = vld [vmem:[%s2522 + $0x5c] sm:$0x1]
      %v3203 = vld [vmem:[%s2522 + $0x60] sm:$0xe]
      %v3204 = vld [vmem:[%s2522 + $0x64] sm:$0xf]
      %v3205 = vld [vmem:[%s2522 + $0x68] sm:$0x1]
      %v3206 = vld [vmem:[%s2522 + $0x6c] sm:$0xe]
      %v3207 = vld [vmem:[%s2522 + $0x70] sm:$0xf]
      %v3208 = vld [vmem:[%s2522 + $0x74] sm:$0x1]
      %v3209 = vld [vmem:[%s2522 + $0x78] sm:$0xe]
      %v3210 = vld [vmem:[%s2522 + $0x7c] sm:$0xf]
      %v3211 = vld [vmem:[%s2522 + $0x80] sm:$0x1]
      %v3212 = vld [vmem:[%s2522 + $0x84] sm:$0xe]
      %v3213 = vld [vmem:[%s2522 + $0x88] sm:$0xf]
      %v3214 = vld [vmem:[%s2522 + $0x8c] sm:$0x1]
      %v3215 = vld [vmem:[%s2522 + $0x90] sm:$0xe]
      %v3216 = vld [vmem:[%s2522 + $0x94] sm:$0xf]
      %v3217 = vld [vmem:[%s2522 + $0x98] sm:$0x1]
      %v3218 = vld [vmem:[%s2522 + $0x9c] sm:$0xe]
      %v3219 = vld [vmem:[%s2522 + $0xa0] sm:$0xf]
      %v3220 = vld [vmem:[%s2522 + $0xa4] sm:$0x1]
      %v3221 = vld [vmem:[%s2522 + $0xa8] sm:$0xe]
      %v3222 = vld [vmem:[%s2522 + $0xac] sm:$0xf]
      %v3223 = vld [vmem:[%s2522 + $0xb0] sm:$0x1]
      %v3224 = vld [vmem:[%s2522 + $0xb4] sm:$0xe]
      %v3225 = vld [vmem:[%s2522 + $0xb8] sm:$0xf]
      %v3226 = vld [vmem:[%s2522 + $0xbc] sm:$0x1]
      %v3275 = vrot.slane %v3179, 5
      %v3276 = vrot.slane %v3275, 4
      %v3277 = vrot.slane %v3180, 5
      %v3278 = vsel %vm1385, %v3276, %v3277
      %v3279 = vrot.slane %v3277, 4
      %v3280 = vrot.slane %v3181, 5
      %v3281 = vsel %vm1385, %v3279, %v3280
      %v3282 = vrot.slane %v3182, 5
      %v3283 = vrot.slane %v3282, 4
      %v3284 = vrot.slane %v3183, 5
      %v3285 = vsel %vm1385, %v3283, %v3284
      %v3286 = vrot.slane %v3284, 4
      %v3287 = vrot.slane %v3184, 5
      %v3288 = vsel %vm1385, %v3286, %v3287
      %v3289 = vrot.slane %v3185, 5
      %v3290 = vrot.slane %v3289, 4
      %v3291 = vrot.slane %v3186, 5
      %v3292 = vsel %vm1385, %v3290, %v3291
      %v3293 = vrot.slane %v3291, 4
      %v3294 = vrot.slane %v3187, 5
      %v3295 = vsel %vm1385, %v3293, %v3294
      %v3296 = vrot.slane %v3188, 5
      %v3297 = vrot.slane %v3296, 4
      %v3298 = vrot.slane %v3189, 5
      %v3299 = vsel %vm1385, %v3297, %v3298
      %v3300 = vrot.slane %v3298, 4
      %v3301 = vrot.slane %v3190, 5
      %v3302 = vsel %vm1385, %v3300, %v3301
      %v3303 = vrot.slane %v3191, 5
      %v3304 = vrot.slane %v3303, 4
      %v3305 = vrot.slane %v3192, 5
      %v3306 = vsel %vm1385, %v3304, %v3305
      %v3307 = vrot.slane %v3305, 4
      %v3308 = vrot.slane %v3193, 5
      %v3309 = vsel %vm1385, %v3307, %v3308
      %v3310 = vrot.slane %v3194, 5
      %v3311 = vrot.slane %v3310, 4
      %v3312 = vrot.slane %v3195, 5
      %v3313 = vsel %vm1385, %v3311, %v3312
      %v3314 = vrot.slane %v3312, 4
      %v3315 = vrot.slane %v3196, 5
      %v3316 = vsel %vm1385, %v3314, %v3315
      %v3317 = vrot.slane %v3197, 5
      %v3318 = vrot.slane %v3317, 4
      %v3319 = vrot.slane %v3198, 5
      %v3320 = vsel %vm1385, %v3318, %v3319
      %v3321 = vrot.slane %v3319, 4
      %v3322 = vrot.slane %v3199, 5
      %v3323 = vsel %vm1385, %v3321, %v3322
      %v3324 = vrot.slane %v3200, 5
      %v3325 = vrot.slane %v3324, 4
      %v3326 = vrot.slane %v3201, 5
      %v3327 = vsel %vm1385, %v3325, %v3326
      %v3328 = vrot.slane %v3326, 4
      %v3329 = vrot.slane %v3202, 5
      %v3330 = vsel %vm1385, %v3328, %v3329
      %v3331 = vrot.slane %v3203, 5
      %v3332 = vrot.slane %v3331, 4
      %v3333 = vrot.slane %v3204, 5
      %v3334 = vsel %vm1385, %v3332, %v3333
      %v3335 = vrot.slane %v3333, 4
      %v3336 = vrot.slane %v3205, 5
      %v3337 = vsel %vm1385, %v3335, %v3336
      %v3338 = vrot.slane %v3206, 5
      %v3339 = vrot.slane %v3338, 4
      %v3340 = vrot.slane %v3207, 5
      %v3341 = vsel %vm1385, %v3339, %v3340
      %v3342 = vrot.slane %v3340, 4
      %v3343 = vrot.slane %v3208, 5
      %v3344 = vsel %vm1385, %v3342, %v3343
      %v3345 = vrot.slane %v3209, 5
      %v3346 = vrot.slane %v3345, 4
      %v3347 = vrot.slane %v3210, 5
      %v3348 = vsel %vm1385, %v3346, %v3347
      %v3349 = vrot.slane %v3347, 4
      %v3350 = vrot.slane %v3211, 5
      %v3351 = vsel %vm1385, %v3349, %v3350
      %v3352 = vrot.slane %v3212, 5
      %v3353 = vrot.slane %v3352, 4
      %v3354 = vrot.slane %v3213, 5
      %v3355 = vsel %vm1385, %v3353, %v3354
      %v3356 = vrot.slane %v3354, 4
      %v3357 = vrot.slane %v3214, 5
      %v3358 = vsel %vm1385, %v3356, %v3357
      %v3359 = vrot.slane %v3215, 5
      %v3360 = vrot.slane %v3359, 4
      %v3361 = vrot.slane %v3216, 5
      %v3362 = vsel %vm1385, %v3360, %v3361
      %v3363 = vrot.slane %v3361, 4
      %v3364 = vrot.slane %v3217, 5
      %v3365 = vsel %vm1385, %v3363, %v3364
      %v3366 = vrot.slane %v3218, 5
      %v3367 = vrot.slane %v3366, 4
      %v3368 = vrot.slane %v3219, 5
      %v3369 = vsel %vm1385, %v3367, %v3368
      %v3370 = vrot.slane %v3368, 4
      %v3371 = vrot.slane %v3220, 5
      %v3372 = vsel %vm1385, %v3370, %v3371
      %v3373 = vrot.slane %v3221, 5
      %v3374 = vrot.slane %v3373, 4
      %v3375 = vrot.slane %v3222, 5
      %v3376 = vsel %vm1385, %v3374, %v3375
      %v3377 = vrot.slane %v3375, 4
      %v3378 = vrot.slane %v3223, 5
      %v3379 = vsel %vm1385, %v3377, %v3378
      %v3380 = vrot.slane %v3224, 5
      %v3381 = vrot.slane %v3380, 4
      %v3382 = vrot.slane %v3225, 5
      %v3383 = vsel %vm1385, %v3381, %v3382
      %v3384 = vrot.slane %v3382, 4
      %v3385 = vrot.slane %v3226, 5
      %v3386 = vsel %vm1385, %v3384, %v3385
      %v3387 = vunpack.c.l.b16 %v3278
      %v3388 = vunpack.c.l.b16 %v3281
      %v3389 = vunpack.c.l.b16 %v3285
      %v3390 = vunpack.c.l.b16 %v3288
      %v3391 = vunpack.c.l.b16 %v3292
      %v3392 = vunpack.c.l.b16 %v3295
      %v3393 = vunpack.c.l.b16 %v3299
      %v3394 = vunpack.c.l.b16 %v3302
      %v3395 = vunpack.c.l.b16 %v3306
      %v3396 = vunpack.c.l.b16 %v3309
      %v3397 = vunpack.c.l.b16 %v3313
      %v3398 = vunpack.c.l.b16 %v3316
      %v3399 = vunpack.c.l.b16 %v3320
      %v3400 = vunpack.c.l.b16 %v3323
      %v3401 = vunpack.c.l.b16 %v3327
      %v3402 = vunpack.c.l.b16 %v3330
      %v3403 = vunpack.c.l.b16 %v3334
      %v3404 = vunpack.c.l.b16 %v3337
      %v3405 = vunpack.c.l.b16 %v3341
      %v3406 = vunpack.c.l.b16 %v3344
      %v3407 = vunpack.c.l.b16 %v3348
      %v3408 = vunpack.c.l.b16 %v3351
      %v3409 = vunpack.c.l.b16 %v3355
      %v3410 = vunpack.c.l.b16 %v3358
      %v3411 = vunpack.c.l.b16 %v3362
      %v3412 = vunpack.c.l.b16 %v3365
      %v3413 = vunpack.c.l.b16 %v3369
      %v3414 = vunpack.c.l.b16 %v3372
      %v3415 = vunpack.c.l.b16 %v3376
      %v3416 = vunpack.c.l.b16 %v3379
      %v3417 = vunpack.c.l.b16 %v3383
      %v3418 = vunpack.c.l.b16 %v3386
      %v3419 = vpack.c.b16 %v3388, %v3387
      %v3420 = vpack.c.b16 %v3390, %v3389
      %v3421 = vpack.c.b16 %v3392, %v3391
      %v3422 = vpack.c.b16 %v3394, %v3393
      %v3423 = vpack.c.b16 %v3396, %v3395
      %v3424 = vpack.c.b16 %v3398, %v3397
      %v3425 = vpack.c.b16 %v3400, %v3399
      %v3426 = vpack.c.b16 %v3402, %v3401
      %v3427 = vpack.c.b16 %v3404, %v3403
      %v3428 = vpack.c.b16 %v3406, %v3405
      %v3429 = vpack.c.b16 %v3408, %v3407
      %v3430 = vpack.c.b16 %v3410, %v3409
      %v3431 = vpack.c.b16 %v3412, %v3411
      %v3432 = vpack.c.b16 %v3414, %v3413
      %v3433 = vpack.c.b16 %v3416, %v3415
      %v3434 = vpack.c.b16 %v3418, %v3417
      %3451 = vst [vmem:[#allocation3 + $0x40] sm:$0xff] %v3419
      %3452 = vst [vmem:[#allocation3 + $0x88] sm:$0xff] %v3420
      %3453 = vst [vmem:[#allocation3 + $0xd0] sm:$0xff] %v3421
      %3454 = vst [vmem:[#allocation3 + $0x118] sm:$0xff] %v3422
      %3455 = vst [vmem:[#allocation3 + $0x160] sm:$0xff] %v3423
      %3456 = vst [vmem:[#allocation3 + $0x1a8] sm:$0xff] %v3424
      %3457 = vst [vmem:[#allocation3 + $0x1f0] sm:$0xff] %v3425
      %3458 = vst [vmem:[#allocation3 + $0x238] sm:$0xff] %v3426
      %3459 = vst [vmem:[#allocation3 + $0x280] sm:$0xff] %v3427
      %3460 = vst [vmem:[#allocation3 + $0x2c8] sm:$0xff] %v3428
      %3461 = vst [vmem:[#allocation3 + $0x310] sm:$0xff] %v3429
      %3462 = vst [vmem:[#allocation3 + $0x358] sm:$0xff] %v3430
      %3463 = vst [vmem:[#allocation3 + $0x3a0] sm:$0xff] %v3431
      %3464 = vst [vmem:[#allocation3 + $0x3e8] sm:$0xff] %v3432
      %3465 = vst [vmem:[#allocation3 + $0x430] sm:$0xff] %v3433
      %3466 = vst [vmem:[#allocation3 + $0x478] sm:$0xff] %v3434
      %s3467 = scalar_lea.vmem [#allocation2], 216
      %3468 = vst [vmem:[%s3467] sm:$0xf] 0
      %3469 = vst [vmem:[%s3467 + $0x4] sm:$0xf] 0
      %3470 = vst [vmem:[%s3467 + $0x8] sm:$0x1] 0
      %s3471 = scalar_lea.vmem [#allocation2], 420
      %3472 = vst [vmem:[%s3471] sm:$0xf] 0
      %3473 = vst [vmem:[%s3471 + $0x4] sm:$0xf] 0
      %3474 = vst [vmem:[%s3471 + $0x8] sm:$0x1] 0
      %s3475 = scalar_lea.vmem [#allocation2], 228
      %v3476 = vld [vmem:[%s3475] sm:$0x1]
      %v3477 = vsel %vm61, 0, %v3476
      %3478 = vst [vmem:[%s3475] sm:$0x1] %v3477
      %v3479 = vld [vmem:[%s3475 + $0xc] sm:$0x1]
      %v3480 = vsel %vm61, 0, %v3479
      %3481 = vst [vmem:[%s3475 + $0xc] sm:$0x1] %v3480
      %v3482 = vld [vmem:[%s3475 + $0x18] sm:$0x1]
      %v3483 = vsel %vm61, 0, %v3482
      %3484 = vst [vmem:[%s3475 + $0x18] sm:$0x1] %v3483
      %v3485 = vld [vmem:[%s3475 + $0x24] sm:$0x1]
      %v3486 = vsel %vm61, 0, %v3485
      %3487 = vst [vmem:[%s3475 + $0x24] sm:$0x1] %v3486
      %v3488 = vld [vmem:[%s3475 + $0x30] sm:$0x1]
      %v3489 = vsel %vm61, 0, %v3488
      %3490 = vst [vmem:[%s3475 + $0x30] sm:$0x1] %v3489
      %v3491 = vld [vmem:[%s3475 + $0x3c] sm:$0x1]
      %v3492 = vsel %vm61, 0, %v3491
      %3493 = vst [vmem:[%s3475 + $0x3c] sm:$0x1] %v3492
      %v3494 = vld [vmem:[%s3475 + $0x48] sm:$0x1]
      %v3495 = vsel %vm61, 0, %v3494
      %3496 = vst [vmem:[%s3475 + $0x48] sm:$0x1] %v3495
      %v3497 = vld [vmem:[%s3475 + $0x54] sm:$0x1]
      %v3498 = vsel %vm61, 0, %v3497
      %3499 = vst [vmem:[%s3475 + $0x54] sm:$0x1] %v3498
      %v3500 = vld [vmem:[%s3475 + $0x60] sm:$0x1]
      %v3501 = vsel %vm61, 0, %v3500
      %3502 = vst [vmem:[%s3475 + $0x60] sm:$0x1] %v3501
      %v3503 = vld [vmem:[%s3475 + $0x6c] sm:$0x1]
      %v3504 = vsel %vm61, 0, %v3503
      %3505 = vst [vmem:[%s3475 + $0x6c] sm:$0x1] %v3504
      %v3506 = vld [vmem:[%s3475 + $0x78] sm:$0x1]
      %v3507 = vsel %vm61, 0, %v3506
      %3508 = vst [vmem:[%s3475 + $0x78] sm:$0x1] %v3507
      %v3509 = vld [vmem:[%s3475 + $0x84] sm:$0x1]
      %v3510 = vsel %vm61, 0, %v3509
      %3511 = vst [vmem:[%s3475 + $0x84] sm:$0x1] %v3510
      %v3512 = vld [vmem:[%s3475 + $0x90] sm:$0x1]
      %v3513 = vsel %vm61, 0, %v3512
      %3514 = vst [vmem:[%s3475 + $0x90] sm:$0x1] %v3513
      %v3515 = vld [vmem:[%s3475 + $0x9c] sm:$0x1]
      %v3516 = vsel %vm61, 0, %v3515
      %3517 = vst [vmem:[%s3475 + $0x9c] sm:$0x1] %v3516
      %v3518 = vld [vmem:[%s3475 + $0xa8] sm:$0x1]
      %v3519 = vsel %vm61, 0, %v3518
      %3520 = vst [vmem:[%s3475 + $0xa8] sm:$0x1] %v3519
      %v3521 = vld [vmem:[%s3475 + $0xb4] sm:$0x1]
      %v3522 = vsel %vm61, 0, %v3521
      %3523 = vst [vmem:[%s3475 + $0xb4] sm:$0x1] %v3522
      %v3524 = vld [vmem:[%s3475 + $0x8] sm:$0x1]
      %v3525 = vsel %vm111, 0, %v3524
      %3526 = vst [vmem:[%s3475 + $0x8] sm:$0x1] %v3525
      %v3527 = vld [vmem:[%s3475 + $0x14] sm:$0x1]
      %v3528 = vsel %vm111, 0, %v3527
      %3529 = vst [vmem:[%s3475 + $0x14] sm:$0x1] %v3528
      %v3530 = vld [vmem:[%s3475 + $0x20] sm:$0x1]
      %v3531 = vsel %vm111, 0, %v3530
      %3532 = vst [vmem:[%s3475 + $0x20] sm:$0x1] %v3531
      %v3533 = vld [vmem:[%s3475 + $0x2c] sm:$0x1]
      %v3534 = vsel %vm111, 0, %v3533
      %3535 = vst [vmem:[%s3475 + $0x2c] sm:$0x1] %v3534
      %v3536 = vld [vmem:[%s3475 + $0x38] sm:$0x1]
      %v3537 = vsel %vm111, 0, %v3536
      %3538 = vst [vmem:[%s3475 + $0x38] sm:$0x1] %v3537
      %v3539 = vld [vmem:[%s3475 + $0x44] sm:$0x1]
      %v3540 = vsel %vm111, 0, %v3539
      %3541 = vst [vmem:[%s3475 + $0x44] sm:$0x1] %v3540
      %v3542 = vld [vmem:[%s3475 + $0x50] sm:$0x1]
      %v3543 = vsel %vm111, 0, %v3542
      %3544 = vst [vmem:[%s3475 + $0x50] sm:$0x1] %v3543
      %v3545 = vld [vmem:[%s3475 + $0x5c] sm:$0x1]
      %v3546 = vsel %vm111, 0, %v3545
      %3547 = vst [vmem:[%s3475 + $0x5c] sm:$0x1] %v3546
      %v3548 = vld [vmem:[%s3475 + $0x68] sm:$0x1]
      %v3549 = vsel %vm111, 0, %v3548
      %3550 = vst [vmem:[%s3475 + $0x68] sm:$0x1] %v3549
      %v3551 = vld [vmem:[%s3475 + $0x74] sm:$0x1]
      %v3552 = vsel %vm111, 0, %v3551
      %3553 = vst [vmem:[%s3475 + $0x74] sm:$0x1] %v3552
      %v3554 = vld [vmem:[%s3475 + $0x80] sm:$0x1]
      %v3555 = vsel %vm111, 0, %v3554
      %3556 = vst [vmem:[%s3475 + $0x80] sm:$0x1] %v3555
      %v3557 = vld [vmem:[%s3475 + $0x8c] sm:$0x1]
      %v3558 = vsel %vm111, 0, %v3557
      %3559 = vst [vmem:[%s3475 + $0x8c] sm:$0x1] %v3558
      %v3560 = vld [vmem:[%s3475 + $0x98] sm:$0x1]
      %v3561 = vsel %vm111, 0, %v3560
      %3562 = vst [vmem:[%s3475 + $0x98] sm:$0x1] %v3561
      %v3563 = vld [vmem:[%s3475 + $0xa4] sm:$0x1]
      %v3564 = vsel %vm111, 0, %v3563
      %3565 = vst [vmem:[%s3475 + $0xa4] sm:$0x1] %v3564
      %v3566 = vld [vmem:[%s3475 + $0xb0] sm:$0x1]
      %v3567 = vsel %vm111, 0, %v3566
      %3568 = vst [vmem:[%s3475 + $0xb0] sm:$0x1] %v3567
      %v3569 = vld [vmem:[%s3475 + $0xbc] sm:$0x1]
      %v3570 = vsel %vm111, 0, %v3569
      %3571 = vst [vmem:[%s3475 + $0xbc] sm:$0x1] %v3570
      %s3572 = scalar_lea.vmem [#allocation4], 128
      %v3573 = vld [vmem:[%s3572] sm:$0xf]
      %v3574 = vld [vmem:[%s3572 + $0x4] sm:$0xf]
      %v3575 = vld [vmem:[%s3572 + $0x8] sm:$0xf]
      %v3576 = vld [vmem:[%s3572 + $0xc] sm:$0xf]
      %v3577 = vld [vmem:[%s3572 + $0x10] sm:$0xf]
      %v3578 = vld [vmem:[%s3572 + $0x14] sm:$0xf]
      %v3579 = vld [vmem:[%s3572 + $0x18] sm:$0xf]
      %v3580 = vld [vmem:[%s3572 + $0x1c] sm:$0xf]
      %v3581 = vld [vmem:[%s3572 + $0x20] sm:$0xf]
      %v3582 = vld [vmem:[%s3572 + $0x24] sm:$0xf]
      %v3583 = vld [vmem:[%s3572 + $0x28] sm:$0xf]
      %v3584 = vld [vmem:[%s3572 + $0x2c] sm:$0xf]
      %v3585 = vld [vmem:[%s3572 + $0x30] sm:$0xf]
      %v3586 = vld [vmem:[%s3572 + $0x34] sm:$0xf]
      %v3587 = vld [vmem:[%s3572 + $0x38] sm:$0xf]
      %v3588 = vld [vmem:[%s3572 + $0x3c] sm:$0xf]
      %v3589 = vld [vmem:[%s3572 + $0x40] sm:$0xf]
      %v3590 = vld [vmem:[%s3572 + $0x44] sm:$0xf]
      %v3591 = vld [vmem:[%s3572 + $0x48] sm:$0xf]
      %v3592 = vld [vmem:[%s3572 + $0x4c] sm:$0xf]
      %v3593 = vld [vmem:[%s3572 + $0x50] sm:$0xf]
      %v3594 = vld [vmem:[%s3572 + $0x54] sm:$0xf]
      %v3595 = vld [vmem:[%s3572 + $0x58] sm:$0xf]
      %v3596 = vld [vmem:[%s3572 + $0x5c] sm:$0xf]
      %v3597 = vld [vmem:[%s3572 + $0x60] sm:$0xf]
      %v3598 = vld [vmem:[%s3572 + $0x64] sm:$0xf]
      %v3599 = vld [vmem:[%s3572 + $0x68] sm:$0xf]
      %v3600 = vld [vmem:[%s3572 + $0x6c] sm:$0xf]
      %v3601 = vld [vmem:[%s3572 + $0x70] sm:$0xf]
      %v3602 = vld [vmem:[%s3572 + $0x74] sm:$0xf]
      %v3603 = vld [vmem:[%s3572 + $0x78] sm:$0xf]
      %v3604 = vld [vmem:[%s3572 + $0x7c] sm:$0xf]
      %v3606 = vshrl.u32 %v3573, 16
      %v3608 = vrot.slane %v3606, 7
      %v3609 = vshll.u32 %v3573, 16
      %v3611 = vor.u32 %v3608, %v3609
      %v3612 = vrot.slane %v3608, 4
      %v3614 = vshrl.u32 %v3574, 16
      %v3616 = vrot.slane %v3614, 7
      %v3617 = vshll.u32 %v3574, 16
      %v3619 = vor.u32 %v3616, %v3617
      %v3620 = vsel %vm193, %v3612, %v3619
      %v3621 = vrot.slane %v3616, 4
      %v3623 = vshrl.u32 %v3575, 16
      %v3625 = vrot.slane %v3623, 7
      %v3626 = vshll.u32 %v3575, 16
      %v3628 = vor.u32 %v3625, %v3626
      %v3629 = vrot.slane %v3625, 4
      %v3631 = vshrl.u32 %v3576, 16
      %v3633 = vrot.slane %v3631, 7
      %v3634 = vshll.u32 %v3576, 16
      %v3636 = vor.u32 %v3633, %v3634
      %v3637 = vsel %vm193, %v3629, %v3636
      %v3638 = vrot.slane %v3633, 4
      %v3640 = vshrl.u32 %v3577, 16
      %v3642 = vrot.slane %v3640, 7
      %v3643 = vshll.u32 %v3577, 16
      %v3645 = vor.u32 %v3642, %v3643
      %v3646 = vrot.slane %v3642, 4
      %v3648 = vshrl.u32 %v3578, 16
      %v3650 = vrot.slane %v3648, 7
      %v3651 = vshll.u32 %v3578, 16
      %v3653 = vor.u32 %v3650, %v3651
      %v3654 = vsel %vm193, %v3646, %v3653
      %v3655 = vrot.slane %v3650, 4
      %v3657 = vshrl.u32 %v3579, 16
      %v3659 = vrot.slane %v3657, 7
      %v3660 = vshll.u32 %v3579, 16
      %v3662 = vor.u32 %v3659, %v3660
      %v3663 = vrot.slane %v3659, 4
      %v3665 = vshrl.u32 %v3580, 16
      %v3667 = vrot.slane %v3665, 7
      %v3668 = vshll.u32 %v3580, 16
      %v3670 = vor.u32 %v3667, %v3668
      %v3671 = vsel %vm193, %v3663, %v3670
      %v3672 = vrot.slane %v3667, 4
      %v3674 = vshrl.u32 %v3581, 16
      %v3676 = vrot.slane %v3674, 7
      %v3677 = vshll.u32 %v3581, 16
      %v3679 = vor.u32 %v3676, %v3677
      %v3680 = vrot.slane %v3676, 4
      %v3682 = vshrl.u32 %v3582, 16
      %v3684 = vrot.slane %v3682, 7
      %v3685 = vshll.u32 %v3582, 16
      %v3687 = vor.u32 %v3684, %v3685
      %v3688 = vsel %vm193, %v3680, %v3687
      %v3689 = vrot.slane %v3684, 4
      %v3691 = vshrl.u32 %v3583, 16
      %v3693 = vrot.slane %v3691, 7
      %v3694 = vshll.u32 %v3583, 16
      %v3696 = vor.u32 %v3693, %v3694
      %v3697 = vrot.slane %v3693, 4
      %v3699 = vshrl.u32 %v3584, 16
      %v3701 = vrot.slane %v3699, 7
      %v3702 = vshll.u32 %v3584, 16
      %v3704 = vor.u32 %v3701, %v3702
      %v3705 = vsel %vm193, %v3697, %v3704
      %v3706 = vrot.slane %v3701, 4
      %v3708 = vshrl.u32 %v3585, 16
      %v3710 = vrot.slane %v3708, 7
      %v3711 = vshll.u32 %v3585, 16
      %v3713 = vor.u32 %v3710, %v3711
      %v3714 = vrot.slane %v3710, 4
      %v3716 = vshrl.u32 %v3586, 16
      %v3718 = vrot.slane %v3716, 7
      %v3719 = vshll.u32 %v3586, 16
      %v3721 = vor.u32 %v3718, %v3719
      %v3722 = vsel %vm193, %v3714, %v3721
      %v3723 = vrot.slane %v3718, 4
      %v3725 = vshrl.u32 %v3587, 16
      %v3727 = vrot.slane %v3725, 7
      %v3728 = vshll.u32 %v3587, 16
      %v3730 = vor.u32 %v3727, %v3728
      %v3731 = vrot.slane %v3727, 4
      %v3733 = vshrl.u32 %v3588, 16
      %v3735 = vrot.slane %v3733, 7
      %v3736 = vshll.u32 %v3588, 16
      %v3738 = vor.u32 %v3735, %v3736
      %v3739 = vsel %vm193, %v3731, %v3738
      %v3740 = vrot.slane %v3735, 4
      %v3742 = vshrl.u32 %v3589, 16
      %v3744 = vrot.slane %v3742, 7
      %v3745 = vshll.u32 %v3589, 16
      %v3747 = vor.u32 %v3744, %v3745
      %v3748 = vrot.slane %v3744, 4
      %v3750 = vshrl.u32 %v3590, 16
      %v3752 = vrot.slane %v3750, 7
      %v3753 = vshll.u32 %v3590, 16
      %v3755 = vor.u32 %v3752, %v3753
      %v3756 = vsel %vm193, %v3748, %v3755
      %v3757 = vrot.slane %v3752, 4
      %v3759 = vshrl.u32 %v3591, 16
      %v3761 = vrot.slane %v3759, 7
      %v3762 = vshll.u32 %v3591, 16
      %v3764 = vor.u32 %v3761, %v3762
      %v3765 = vrot.slane %v3761, 4
      %v3767 = vshrl.u32 %v3592, 16
      %v3769 = vrot.slane %v3767, 7
      %v3770 = vshll.u32 %v3592, 16
      %v3772 = vor.u32 %v3769, %v3770
      %v3773 = vsel %vm193, %v3765, %v3772
      %v3774 = vrot.slane %v3769, 4
      %v3776 = vshrl.u32 %v3593, 16
      %v3778 = vrot.slane %v3776, 7
      %v3779 = vshll.u32 %v3593, 16
      %v3781 = vor.u32 %v3778, %v3779
      %v3782 = vrot.slane %v3778, 4
      %v3784 = vshrl.u32 %v3594, 16
      %v3786 = vrot.slane %v3784, 7
      %v3787 = vshll.u32 %v3594, 16
      %v3789 = vor.u32 %v3786, %v3787
      %v3790 = vsel %vm193, %v3782, %v3789
      %v3791 = vrot.slane %v3786, 4
      %v3793 = vshrl.u32 %v3595, 16
      %v3795 = vrot.slane %v3793, 7
      %v3796 = vshll.u32 %v3595, 16
      %v3798 = vor.u32 %v3795, %v3796
      %v3799 = vrot.slane %v3795, 4
      %v3801 = vshrl.u32 %v3596, 16
      %v3803 = vrot.slane %v3801, 7
      %v3804 = vshll.u32 %v3596, 16
      %v3806 = vor.u32 %v3803, %v3804
      %v3807 = vsel %vm193, %v3799, %v3806
      %v3808 = vrot.slane %v3803, 4
      %v3810 = vshrl.u32 %v3597, 16
      %v3812 = vrot.slane %v3810, 7
      %v3813 = vshll.u32 %v3597, 16
      %v3815 = vor.u32 %v3812, %v3813
      %v3816 = vrot.slane %v3812, 4
      %v3818 = vshrl.u32 %v3598, 16
      %v3820 = vrot.slane %v3818, 7
      %v3821 = vshll.u32 %v3598, 16
      %v3823 = vor.u32 %v3820, %v3821
      %v3824 = vsel %vm193, %v3816, %v3823
      %v3825 = vrot.slane %v3820, 4
      %v3827 = vshrl.u32 %v3599, 16
      %v3829 = vrot.slane %v3827, 7
      %v3830 = vshll.u32 %v3599, 16
      %v3832 = vor.u32 %v3829, %v3830
      %v3833 = vrot.slane %v3829, 4
      %v3835 = vshrl.u32 %v3600, 16
      %v3837 = vrot.slane %v3835, 7
      %v3838 = vshll.u32 %v3600, 16
      %v3840 = vor.u32 %v3837, %v3838
      %v3841 = vsel %vm193, %v3833, %v3840
      %v3842 = vrot.slane %v3837, 4
      %v3844 = vshrl.u32 %v3601, 16
      %v3846 = vrot.slane %v3844, 7
      %v3847 = vshll.u32 %v3601, 16
      %v3849 = vor.u32 %v3846, %v3847
      %v3850 = vrot.slane %v3846, 4
      %v3852 = vshrl.u32 %v3602, 16
      %v3854 = vrot.slane %v3852, 7
      %v3855 = vshll.u32 %v3602, 16
      %v3857 = vor.u32 %v3854, %v3855
      %v3858 = vsel %vm193, %v3850, %v3857
      %v3859 = vrot.slane %v3854, 4
      %v3861 = vshrl.u32 %v3603, 16
      %v3863 = vrot.slane %v3861, 7
      %v3864 = vshll.u32 %v3603, 16
      %v3866 = vor.u32 %v3863, %v3864
      %v3867 = vrot.slane %v3863, 4
      %v3869 = vshrl.u32 %v3604, 16
      %v3871 = vrot.slane %v3869, 7
      %v3872 = vshll.u32 %v3604, 16
      %v3874 = vor.u32 %v3871, %v3872
      %v3875 = vsel %vm193, %v3867, %v3874
      %v3876 = vrot.slane %v3871, 4
      %v3925 = vld [vmem:[%s3475] sm:$0xf]
      %v3926 = vsel %vm515, %v3611, %v3925
      %3927 = vst [vmem:[%s3475] sm:$0xf] %v3926
      %3928 = vst [vmem:[%s3475 + $0x4] sm:$0xf] %v3620
      %v3929 = vld [vmem:[%s3475 + $0x8] sm:$0x1]
      %v3930 = vsel %vm61, %v3621, %v3929
      %3931 = vst [vmem:[%s3475 + $0x8] sm:$0x1] %v3930
      %v3932 = vld [vmem:[%s3475 + $0xc] sm:$0xf]
      %v3933 = vsel %vm515, %v3628, %v3932
      %3934 = vst [vmem:[%s3475 + $0xc] sm:$0xf] %v3933
      %3935 = vst [vmem:[%s3475 + $0x10] sm:$0xf] %v3637
      %v3936 = vld [vmem:[%s3475 + $0x14] sm:$0x1]
      %v3937 = vsel %vm61, %v3638, %v3936
      %3938 = vst [vmem:[%s3475 + $0x14] sm:$0x1] %v3937
      %v3939 = vld [vmem:[%s3475 + $0x18] sm:$0xf]
      %v3940 = vsel %vm515, %v3645, %v3939
      %3941 = vst [vmem:[%s3475 + $0x18] sm:$0xf] %v3940
      %3942 = vst [vmem:[%s3475 + $0x1c] sm:$0xf] %v3654
      %v3943 = vld [vmem:[%s3475 + $0x20] sm:$0x1]
      %v3944 = vsel %vm61, %v3655, %v3943
      %3945 = vst [vmem:[%s3475 + $0x20] sm:$0x1] %v3944
      %v3946 = vld [vmem:[%s3475 + $0x24] sm:$0xf]
      %v3947 = vsel %vm515, %v3662, %v3946
      %3948 = vst [vmem:[%s3475 + $0x24] sm:$0xf] %v3947
      %3949 = vst [vmem:[%s3475 + $0x28] sm:$0xf] %v3671
      %v3950 = vld [vmem:[%s3475 + $0x2c] sm:$0x1]
      %v3951 = vsel %vm61, %v3672, %v3950
      %3952 = vst [vmem:[%s3475 + $0x2c] sm:$0x1] %v3951
      %v3953 = vld [vmem:[%s3475 + $0x30] sm:$0xf]
      %v3954 = vsel %vm515, %v3679, %v3953
      %3955 = vst [vmem:[%s3475 + $0x30] sm:$0xf] %v3954
      %3956 = vst [vmem:[%s3475 + $0x34] sm:$0xf] %v3688
      %v3957 = vld [vmem:[%s3475 + $0x38] sm:$0x1]
      %v3958 = vsel %vm61, %v3689, %v3957
      %3959 = vst [vmem:[%s3475 + $0x38] sm:$0x1] %v3958
      %v3960 = vld [vmem:[%s3475 + $0x3c] sm:$0xf]
      %v3961 = vsel %vm515, %v3696, %v3960
      %3962 = vst [vmem:[%s3475 + $0x3c] sm:$0xf] %v3961
      %3963 = vst [vmem:[%s3475 + $0x40] sm:$0xf] %v3705
      %v3964 = vld [vmem:[%s3475 + $0x44] sm:$0x1]
      %v3965 = vsel %vm61, %v3706, %v3964
      %3966 = vst [vmem:[%s3475 + $0x44] sm:$0x1] %v3965
      %v3967 = vld [vmem:[%s3475 + $0x48] sm:$0xf]
      %v3968 = vsel %vm515, %v3713, %v3967
      %3969 = vst [vmem:[%s3475 + $0x48] sm:$0xf] %v3968
      %3970 = vst [vmem:[%s3475 + $0x4c] sm:$0xf] %v3722
      %v3971 = vld [vmem:[%s3475 + $0x50] sm:$0x1]
      %v3972 = vsel %vm61, %v3723, %v3971
      %3973 = vst [vmem:[%s3475 + $0x50] sm:$0x1] %v3972
      %v3974 = vld [vmem:[%s3475 + $0x54] sm:$0xf]
      %v3975 = vsel %vm515, %v3730, %v3974
      %3976 = vst [vmem:[%s3475 + $0x54] sm:$0xf] %v3975
      %3977 = vst [vmem:[%s3475 + $0x58] sm:$0xf] %v3739
      %v3978 = vld [vmem:[%s3475 + $0x5c] sm:$0x1]
      %v3979 = vsel %vm61, %v3740, %v3978
      %3980 = vst [vmem:[%s3475 + $0x5c] sm:$0x1] %v3979
      %v3981 = vld [vmem:[%s3475 + $0x60] sm:$0xf]
      %v3982 = vsel %vm515, %v3747, %v3981
      %3983 = vst [vmem:[%s3475 + $0x60] sm:$0xf] %v3982
      %3984 = vst [vmem:[%s3475 + $0x64] sm:$0xf] %v3756
      %v3985 = vld [vmem:[%s3475 + $0x68] sm:$0x1]
      %v3986 = vsel %vm61, %v3757, %v3985
      %3987 = vst [vmem:[%s3475 + $0x68] sm:$0x1] %v3986
      %v3988 = vld [vmem:[%s3475 + $0x6c] sm:$0xf]
      %v3989 = vsel %vm515, %v3764, %v3988
      %3990 = vst [vmem:[%s3475 + $0x6c] sm:$0xf] %v3989
      %3991 = vst [vmem:[%s3475 + $0x70] sm:$0xf] %v3773
      %v3992 = vld [vmem:[%s3475 + $0x74] sm:$0x1]
      %v3993 = vsel %vm61, %v3774, %v3992
      %3994 = vst [vmem:[%s3475 + $0x74] sm:$0x1] %v3993
      %v3995 = vld [vmem:[%s3475 + $0x78] sm:$0xf]
      %v3996 = vsel %vm515, %v3781, %v3995
      %3997 = vst [vmem:[%s3475 + $0x78] sm:$0xf] %v3996
      %3998 = vst [vmem:[%s3475 + $0x7c] sm:$0xf] %v3790
      %v3999 = vld [vmem:[%s3475 + $0x80] sm:$0x1]
      %v4000 = vsel %vm61, %v3791, %v3999
      %4001 = vst [vmem:[%s3475 + $0x80] sm:$0x1] %v4000
      %v4002 = vld [vmem:[%s3475 + $0x84] sm:$0xf]
      %v4003 = vsel %vm515, %v3798, %v4002
      %4004 = vst [vmem:[%s3475 + $0x84] sm:$0xf] %v4003
      %4005 = vst [vmem:[%s3475 + $0x88] sm:$0xf] %v3807
      %v4006 = vld [vmem:[%s3475 + $0x8c] sm:$0x1]
      %v4007 = vsel %vm61, %v3808, %v4006
      %4008 = vst [vmem:[%s3475 + $0x8c] sm:$0x1] %v4007
      %v4009 = vld [vmem:[%s3475 + $0x90] sm:$0xf]
      %v4010 = vsel %vm515, %v3815, %v4009
      %4011 = vst [vmem:[%s3475 + $0x90] sm:$0xf] %v4010
      %4012 = vst [vmem:[%s3475 + $0x94] sm:$0xf] %v3824
      %v4013 = vld [vmem:[%s3475 + $0x98] sm:$0x1]
      %v4014 = vsel %vm61, %v3825, %v4013
      %4015 = vst [vmem:[%s3475 + $0x98] sm:$0x1] %v4014
      %v4016 = vld [vmem:[%s3475 + $0x9c] sm:$0xf]
      %v4017 = vsel %vm515, %v3832, %v4016
      %4018 = vst [vmem:[%s3475 + $0x9c] sm:$0xf] %v4017
      %4019 = vst [vmem:[%s3475 + $0xa0] sm:$0xf] %v3841
      %v4020 = vld [vmem:[%s3475 + $0xa4] sm:$0x1]
      %v4021 = vsel %vm61, %v3842, %v4020
      %4022 = vst [vmem:[%s3475 + $0xa4] sm:$0x1] %v4021
      %v4023 = vld [vmem:[%s3475 + $0xa8] sm:$0xf]
      %v4024 = vsel %vm515, %v3849, %v4023
      %4025 = vst [vmem:[%s3475 + $0xa8] sm:$0xf] %v4024
      %4026 = vst [vmem:[%s3475 + $0xac] sm:$0xf] %v3858
      %v4027 = vld [vmem:[%s3475 + $0xb0] sm:$0x1]
      %v4028 = vsel %vm61, %v3859, %v4027
      %4029 = vst [vmem:[%s3475 + $0xb0] sm:$0x1] %v4028
      %v4030 = vld [vmem:[%s3475 + $0xb4] sm:$0xf]
      %v4031 = vsel %vm515, %v3866, %v4030
      %4032 = vst [vmem:[%s3475 + $0xb4] sm:$0xf] %v4031
      %4033 = vst [vmem:[%s3475 + $0xb8] sm:$0xf] %v3875
      %v4034 = vld [vmem:[%s3475 + $0xbc] sm:$0x1]
      %v4035 = vsel %vm61, %v3876, %v4034
      %4036 = vst [vmem:[%s3475 + $0xbc] sm:$0x1] %v4035
      %v4037 = vld [vmem:[%s3467] sm:$0xf]
      %v4038 = vld [vmem:[%s3467 + $0x4] sm:$0xf]
      %v4039 = vld [vmem:[%s3467 + $0xc] sm:$0xf]
      %v4040 = vld [vmem:[%s3467 + $0x10] sm:$0xf]
      %v4041 = vld [vmem:[%s3467 + $0x18] sm:$0xf]
      %v4042 = vld [vmem:[%s3467 + $0x1c] sm:$0xf]
      %v4043 = vld [vmem:[%s3467 + $0x24] sm:$0xf]
      %v4044 = vld [vmem:[%s3467 + $0x28] sm:$0xf]
      %v4045 = vld [vmem:[%s3467 + $0x30] sm:$0xf]
      %v4046 = vld [vmem:[%s3467 + $0x34] sm:$0xf]
      %v4047 = vld [vmem:[%s3467 + $0x3c] sm:$0xf]
      %v4048 = vld [vmem:[%s3467 + $0x40] sm:$0xf]
      %v4049 = vld [vmem:[%s3467 + $0x48] sm:$0xf]
      %v4050 = vld [vmem:[%s3467 + $0x4c] sm:$0xf]
      %v4051 = vld [vmem:[%s3467 + $0x54] sm:$0xf]
      %v4052 = vld [vmem:[%s3467 + $0x58] sm:$0xf]
      %v4053 = vld [vmem:[%s3467 + $0x60] sm:$0xf]
      %v4054 = vld [vmem:[%s3467 + $0x64] sm:$0xf]
      %v4055 = vld [vmem:[%s3467 + $0x6c] sm:$0xf]
      %v4056 = vld [vmem:[%s3467 + $0x70] sm:$0xf]
      %v4057 = vld [vmem:[%s3467 + $0x78] sm:$0xf]
      %v4058 = vld [vmem:[%s3467 + $0x7c] sm:$0xf]
      %v4059 = vld [vmem:[%s3467 + $0x84] sm:$0xf]
      %v4060 = vld [vmem:[%s3467 + $0x88] sm:$0xf]
      %v4061 = vld [vmem:[%s3467 + $0x90] sm:$0xf]
      %v4062 = vld [vmem:[%s3467 + $0x94] sm:$0xf]
      %v4063 = vld [vmem:[%s3467 + $0x9c] sm:$0xf]
      %v4064 = vld [vmem:[%s3467 + $0xa0] sm:$0xf]
      %v4065 = vld [vmem:[%s3467 + $0xa8] sm:$0xf]
      %v4066 = vld [vmem:[%s3467 + $0xac] sm:$0xf]
      %v4067 = vld [vmem:[%s3467 + $0xb4] sm:$0xf]
      %v4068 = vld [vmem:[%s3467 + $0xb8] sm:$0xf]
      %v4101 = vunpack.c.l.b16 %v4037
      %v4102 = vunpack.c.l.b16 %v4038
      %v4103 = vunpack.c.l.b16 %v4039
      %v4104 = vunpack.c.l.b16 %v4040
      %v4105 = vunpack.c.l.b16 %v4041
      %v4106 = vunpack.c.l.b16 %v4042
      %v4107 = vunpack.c.l.b16 %v4043
      %v4108 = vunpack.c.l.b16 %v4044
      %v4109 = vunpack.c.l.b16 %v4045
      %v4110 = vunpack.c.l.b16 %v4046
      %v4111 = vunpack.c.l.b16 %v4047
      %v4112 = vunpack.c.l.b16 %v4048
      %v4113 = vunpack.c.l.b16 %v4049
      %v4114 = vunpack.c.l.b16 %v4050
      %v4115 = vunpack.c.l.b16 %v4051
      %v4116 = vunpack.c.l.b16 %v4052
      %v4117 = vunpack.c.l.b16 %v4053
      %v4118 = vunpack.c.l.b16 %v4054
      %v4119 = vunpack.c.l.b16 %v4055
      %v4120 = vunpack.c.l.b16 %v4056
      %v4121 = vunpack.c.l.b16 %v4057
      %v4122 = vunpack.c.l.b16 %v4058
      %v4123 = vunpack.c.l.b16 %v4059
      %v4124 = vunpack.c.l.b16 %v4060
      %v4125 = vunpack.c.l.b16 %v4061
      %v4126 = vunpack.c.l.b16 %v4062
      %v4127 = vunpack.c.l.b16 %v4063
      %v4128 = vunpack.c.l.b16 %v4064
      %v4129 = vunpack.c.l.b16 %v4065
      %v4130 = vunpack.c.l.b16 %v4066
      %v4131 = vunpack.c.l.b16 %v4067
      %v4132 = vunpack.c.l.b16 %v4068
      %v4133 = vpack.c.b16 %v4102, %v4101
      %v4134 = vpack.c.b16 %v4104, %v4103
      %v4135 = vpack.c.b16 %v4106, %v4105
      %v4136 = vpack.c.b16 %v4108, %v4107
      %v4137 = vpack.c.b16 %v4110, %v4109
      %v4138 = vpack.c.b16 %v4112, %v4111
      %v4139 = vpack.c.b16 %v4114, %v4113
      %v4140 = vpack.c.b16 %v4116, %v4115
      %v4141 = vpack.c.b16 %v4118, %v4117
      %v4142 = vpack.c.b16 %v4120, %v4119
      %v4143 = vpack.c.b16 %v4122, %v4121
      %v4144 = vpack.c.b16 %v4124, %v4123
      %v4145 = vpack.c.b16 %v4126, %v4125
      %v4146 = vpack.c.b16 %v4128, %v4127
      %v4147 = vpack.c.b16 %v4130, %v4129
      %v4148 = vpack.c.b16 %v4132, %v4131
      %4165 = vst [vmem:[#allocation3 + $0x480] sm:$0xff] %v4133
      %4166 = vst [vmem:[#allocation3 + $0x4c8] sm:$0xff] %v4134
      %4167 = vst [vmem:[#allocation3 + $0x510] sm:$0xff] %v4135
      %4168 = vst [vmem:[#allocation3 + $0x558] sm:$0xff] %v4136
      %4169 = vst [vmem:[#allocation3 + $0x5a0] sm:$0xff] %v4137
      %4170 = vst [vmem:[#allocation3 + $0x5e8] sm:$0xff] %v4138
      %4171 = vst [vmem:[#allocation3 + $0x630] sm:$0xff] %v4139
      %4172 = vst [vmem:[#allocation3 + $0x678] sm:$0xff] %v4140
      %4173 = vst [vmem:[#allocation3 + $0x6c0] sm:$0xff] %v4141
      %4174 = vst [vmem:[#allocation3 + $0x708] sm:$0xff] %v4142
      %4175 = vst [vmem:[#allocation3 + $0x750] sm:$0xff] %v4143
      %4176 = vst [vmem:[#allocation3 + $0x798] sm:$0xff] %v4144
      %4177 = vst [vmem:[#allocation3 + $0x7e0] sm:$0xff] %v4145
      %4178 = vst [vmem:[#allocation3 + $0x828] sm:$0xff] %v4146
      %4179 = vst [vmem:[#allocation3 + $0x870] sm:$0xff] %v4147
      %4180 = vst [vmem:[#allocation3 + $0x8b8] sm:$0xff] %v4148
      %v4181 = vld [vmem:[%s3467] sm:$0xf]
      %v4182 = vld [vmem:[%s3467 + $0x4] sm:$0xf]
      %v4183 = vld [vmem:[%s3467 + $0x8] sm:$0x1]
      %v4184 = vld [vmem:[%s3467 + $0xc] sm:$0xf]
      %v4185 = vld [vmem:[%s3467 + $0x10] sm:$0xf]
      %v4186 = vld [vmem:[%s3467 + $0x14] sm:$0x1]
      %v4187 = vld [vmem:[%s3467 + $0x18] sm:$0xf]
      %v4188 = vld [vmem:[%s3467 + $0x1c] sm:$0xf]
      %v4189 = vld [vmem:[%s3467 + $0x20] sm:$0x1]
      %v4190 = vld [vmem:[%s3467 + $0x24] sm:$0xf]
      %v4191 = vld [vmem:[%s3467 + $0x28] sm:$0xf]
      %v4192 = vld [vmem:[%s3467 + $0x2c] sm:$0x1]
      %v4193 = vld [vmem:[%s3467 + $0x30] sm:$0xf]
      %v4194 = vld [vmem:[%s3467 + $0x34] sm:$0xf]
      %v4195 = vld [vmem:[%s3467 + $0x38] sm:$0x1]
      %v4196 = vld [vmem:[%s3467 + $0x3c] sm:$0xf]
      %v4197 = vld [vmem:[%s3467 + $0x40] sm:$0xf]
      %v4198 = vld [vmem:[%s3467 + $0x44] sm:$0x1]
      %v4199 = vld [vmem:[%s3467 + $0x48] sm:$0xf]
      %v4200 = vld [vmem:[%s3467 + $0x4c] sm:$0xf]
      %v4201 = vld [vmem:[%s3467 + $0x50] sm:$0x1]
      %v4202 = vld [vmem:[%s3467 + $0x54] sm:$0xf]
      %v4203 = vld [vmem:[%s3467 + $0x58] sm:$0xf]
      %v4204 = vld [vmem:[%s3467 + $0x5c] sm:$0x1]
      %v4205 = vld [vmem:[%s3467 + $0x60] sm:$0xf]
      %v4206 = vld [vmem:[%s3467 + $0x64] sm:$0xf]
      %v4207 = vld [vmem:[%s3467 + $0x68] sm:$0x1]
      %v4208 = vld [vmem:[%s3467 + $0x6c] sm:$0xf]
      %v4209 = vld [vmem:[%s3467 + $0x70] sm:$0xf]
      %v4210 = vld [vmem:[%s3467 + $0x74] sm:$0x1]
      %v4211 = vld [vmem:[%s3467 + $0x78] sm:$0xf]
      %v4212 = vld [vmem:[%s3467 + $0x7c] sm:$0xf]
      %v4213 = vld [vmem:[%s3467 + $0x80] sm:$0x1]
      %v4214 = vld [vmem:[%s3467 + $0x84] sm:$0xf]
      %v4215 = vld [vmem:[%s3467 + $0x88] sm:$0xf]
      %v4216 = vld [vmem:[%s3467 + $0x8c] sm:$0x1]
      %v4217 = vld [vmem:[%s3467 + $0x90] sm:$0xf]
      %v4218 = vld [vmem:[%s3467 + $0x94] sm:$0xf]
      %v4219 = vld [vmem:[%s3467 + $0x98] sm:$0x1]
      %v4220 = vld [vmem:[%s3467 + $0x9c] sm:$0xf]
      %v4221 = vld [vmem:[%s3467 + $0xa0] sm:$0xf]
      %v4222 = vld [vmem:[%s3467 + $0xa4] sm:$0x1]
      %v4223 = vld [vmem:[%s3467 + $0xa8] sm:$0xf]
      %v4224 = vld [vmem:[%s3467 + $0xac] sm:$0xf]
      %v4225 = vld [vmem:[%s3467 + $0xb0] sm:$0x1]
      %v4226 = vld [vmem:[%s3467 + $0xb4] sm:$0xf]
      %v4227 = vld [vmem:[%s3467 + $0xb8] sm:$0xf]
      %v4228 = vld [vmem:[%s3467 + $0xbc] sm:$0x1]
      %v4230 = vshrl.u32 %v4181, 16
      %v4232 = vrot.slane %v4230, 4
      %v4233 = vshll.u32 %v4181, 16
      %v4235 = vrot.slane %v4233, 5
      %v4236 = vor.u32 %v4232, %v4235
      %v4237 = vrot.slane %v4236, 4
      %v4239 = vshll.u32 %v4182, 16
      %v4241 = vrot.slane %v4239, 5
      %v4242 = vsel %vm822, %v4237, %v4241
      %v4243 = vshrl.u32 %v4182, 16
      %v4245 = vrot.slane %v4243, 4
      %v4246 = vor.u32 %v4245, %v4241
      %v4247 = vrot.slane %v4246, 4
      %v4249 = vshll.u32 %v4183, 16
      %v4251 = vrot.slane %v4249, 5
      %v4252 = vsel %vm822, %v4247, %v4251
      %v4254 = vshrl.u32 %v4184, 16
      %v4256 = vrot.slane %v4254, 4
      %v4257 = vshll.u32 %v4184, 16
      %v4259 = vrot.slane %v4257, 5
      %v4260 = vor.u32 %v4256, %v4259
      %v4261 = vrot.slane %v4260, 4
      %v4263 = vshll.u32 %v4185, 16
      %v4265 = vrot.slane %v4263, 5
      %v4266 = vsel %vm822, %v4261, %v4265
      %v4267 = vshrl.u32 %v4185, 16
      %v4269 = vrot.slane %v4267, 4
      %v4270 = vor.u32 %v4269, %v4265
      %v4271 = vrot.slane %v4270, 4
      %v4273 = vshll.u32 %v4186, 16
      %v4275 = vrot.slane %v4273, 5
      %v4276 = vsel %vm822, %v4271, %v4275
      %v4278 = vshrl.u32 %v4187, 16
      %v4280 = vrot.slane %v4278, 4
      %v4281 = vshll.u32 %v4187, 16
      %v4283 = vrot.slane %v4281, 5
      %v4284 = vor.u32 %v4280, %v4283
      %v4285 = vrot.slane %v4284, 4
      %v4287 = vshll.u32 %v4188, 16
      %v4289 = vrot.slane %v4287, 5
      %v4290 = vsel %vm822, %v4285, %v4289
      %v4291 = vshrl.u32 %v4188, 16
      %v4293 = vrot.slane %v4291, 4
      %v4294 = vor.u32 %v4293, %v4289
      %v4295 = vrot.slane %v4294, 4
      %v4297 = vshll.u32 %v4189, 16
      %v4299 = vrot.slane %v4297, 5
      %v4300 = vsel %vm822, %v4295, %v4299
      %v4302 = vshrl.u32 %v4190, 16
      %v4304 = vrot.slane %v4302, 4
      %v4305 = vshll.u32 %v4190, 16
      %v4307 = vrot.slane %v4305, 5
      %v4308 = vor.u32 %v4304, %v4307
      %v4309 = vrot.slane %v4308, 4
      %v4311 = vshll.u32 %v4191, 16
      %v4313 = vrot.slane %v4311, 5
      %v4314 = vsel %vm822, %v4309, %v4313
      %v4315 = vshrl.u32 %v4191, 16
      %v4317 = vrot.slane %v4315, 4
      %v4318 = vor.u32 %v4317, %v4313
      %v4319 = vrot.slane %v4318, 4
      %v4321 = vshll.u32 %v4192, 16
      %v4323 = vrot.slane %v4321, 5
      %v4324 = vsel %vm822, %v4319, %v4323
      %v4326 = vshrl.u32 %v4193, 16
      %v4328 = vrot.slane %v4326, 4
      %v4329 = vshll.u32 %v4193, 16
      %v4331 = vrot.slane %v4329, 5
      %v4332 = vor.u32 %v4328, %v4331
      %v4333 = vrot.slane %v4332, 4
      %v4335 = vshll.u32 %v4194, 16
      %v4337 = vrot.slane %v4335, 5
      %v4338 = vsel %vm822, %v4333, %v4337
      %v4339 = vshrl.u32 %v4194, 16
      %v4341 = vrot.slane %v4339, 4
      %v4342 = vor.u32 %v4341, %v4337
      %v4343 = vrot.slane %v4342, 4
      %v4345 = vshll.u32 %v4195, 16
      %v4347 = vrot.slane %v4345, 5
      %v4348 = vsel %vm822, %v4343, %v4347
      %v4350 = vshrl.u32 %v4196, 16
      %v4352 = vrot.slane %v4350, 4
      %v4353 = vshll.u32 %v4196, 16
      %v4355 = vrot.slane %v4353, 5
      %v4356 = vor.u32 %v4352, %v4355
      %v4357 = vrot.slane %v4356, 4
      %v4359 = vshll.u32 %v4197, 16
      %v4361 = vrot.slane %v4359, 5
      %v4362 = vsel %vm822, %v4357, %v4361
      %v4363 = vshrl.u32 %v4197, 16
      %v4365 = vrot.slane %v4363, 4
      %v4366 = vor.u32 %v4365, %v4361
      %v4367 = vrot.slane %v4366, 4
      %v4369 = vshll.u32 %v4198, 16
      %v4371 = vrot.slane %v4369, 5
      %v4372 = vsel %vm822, %v4367, %v4371
      %v4374 = vshrl.u32 %v4199, 16
      %v4376 = vrot.slane %v4374, 4
      %v4377 = vshll.u32 %v4199, 16
      %v4379 = vrot.slane %v4377, 5
      %v4380 = vor.u32 %v4376, %v4379
      %v4381 = vrot.slane %v4380, 4
      %v4383 = vshll.u32 %v4200, 16
      %v4385 = vrot.slane %v4383, 5
      %v4386 = vsel %vm822, %v4381, %v4385
      %v4387 = vshrl.u32 %v4200, 16
      %v4389 = vrot.slane %v4387, 4
      %v4390 = vor.u32 %v4389, %v4385
      %v4391 = vrot.slane %v4390, 4
      %v4393 = vshll.u32 %v4201, 16
      %v4395 = vrot.slane %v4393, 5
      %v4396 = vsel %vm822, %v4391, %v4395
      %v4398 = vshrl.u32 %v4202, 16
      %v4400 = vrot.slane %v4398, 4
      %v4401 = vshll.u32 %v4202, 16
      %v4403 = vrot.slane %v4401, 5
      %v4404 = vor.u32 %v4400, %v4403
      %v4405 = vrot.slane %v4404, 4
      %v4407 = vshll.u32 %v4203, 16
      %v4409 = vrot.slane %v4407, 5
      %v4410 = vsel %vm822, %v4405, %v4409
      %v4411 = vshrl.u32 %v4203, 16
      %v4413 = vrot.slane %v4411, 4
      %v4414 = vor.u32 %v4413, %v4409
      %v4415 = vrot.slane %v4414, 4
      %v4417 = vshll.u32 %v4204, 16
      %v4419 = vrot.slane %v4417, 5
      %v4420 = vsel %vm822, %v4415, %v4419
      %v4422 = vshrl.u32 %v4205, 16
      %v4424 = vrot.slane %v4422, 4
      %v4425 = vshll.u32 %v4205, 16
      %v4427 = vrot.slane %v4425, 5
      %v4428 = vor.u32 %v4424, %v4427
      %v4429 = vrot.slane %v4428, 4
      %v4431 = vshll.u32 %v4206, 16
      %v4433 = vrot.slane %v4431, 5
      %v4434 = vsel %vm822, %v4429, %v4433
      %v4435 = vshrl.u32 %v4206, 16
      %v4437 = vrot.slane %v4435, 4
      %v4438 = vor.u32 %v4437, %v4433
      %v4439 = vrot.slane %v4438, 4
      %v4441 = vshll.u32 %v4207, 16
      %v4443 = vrot.slane %v4441, 5
      %v4444 = vsel %vm822, %v4439, %v4443
      %v4446 = vshrl.u32 %v4208, 16
      %v4448 = vrot.slane %v4446, 4
      %v4449 = vshll.u32 %v4208, 16
      %v4451 = vrot.slane %v4449, 5
      %v4452 = vor.u32 %v4448, %v4451
      %v4453 = vrot.slane %v4452, 4
      %v4455 = vshll.u32 %v4209, 16
      %v4457 = vrot.slane %v4455, 5
      %v4458 = vsel %vm822, %v4453, %v4457
      %v4459 = vshrl.u32 %v4209, 16
      %v4461 = vrot.slane %v4459, 4
      %v4462 = vor.u32 %v4461, %v4457
      %v4463 = vrot.slane %v4462, 4
      %v4465 = vshll.u32 %v4210, 16
      %v4467 = vrot.slane %v4465, 5
      %v4468 = vsel %vm822, %v4463, %v4467
      %v4470 = vshrl.u32 %v4211, 16
      %v4472 = vrot.slane %v4470, 4
      %v4473 = vshll.u32 %v4211, 16
      %v4475 = vrot.slane %v4473, 5
      %v4476 = vor.u32 %v4472, %v4475
      %v4477 = vrot.slane %v4476, 4
      %v4479 = vshll.u32 %v4212, 16
      %v4481 = vrot.slane %v4479, 5
      %v4482 = vsel %vm822, %v4477, %v4481
      %v4483 = vshrl.u32 %v4212, 16
      %v4485 = vrot.slane %v4483, 4
      %v4486 = vor.u32 %v4485, %v4481
      %v4487 = vrot.slane %v4486, 4
      %v4489 = vshll.u32 %v4213, 16
      %v4491 = vrot.slane %v4489, 5
      %v4492 = vsel %vm822, %v4487, %v4491
      %v4494 = vshrl.u32 %v4214, 16
      %v4496 = vrot.slane %v4494, 4
      %v4497 = vshll.u32 %v4214, 16
      %v4499 = vrot.slane %v4497, 5
      %v4500 = vor.u32 %v4496, %v4499
      %v4501 = vrot.slane %v4500, 4
      %v4503 = vshll.u32 %v4215, 16
      %v4505 = vrot.slane %v4503, 5
      %v4506 = vsel %vm822, %v4501, %v4505
      %v4507 = vshrl.u32 %v4215, 16
      %v4509 = vrot.slane %v4507, 4
      %v4510 = vor.u32 %v4509, %v4505
      %v4511 = vrot.slane %v4510, 4
      %v4513 = vshll.u32 %v4216, 16
      %v4515 = vrot.slane %v4513, 5
      %v4516 = vsel %vm822, %v4511, %v4515
      %v4518 = vshrl.u32 %v4217, 16
      %v4520 = vrot.slane %v4518, 4
      %v4521 = vshll.u32 %v4217, 16
      %v4523 = vrot.slane %v4521, 5
      %v4524 = vor.u32 %v4520, %v4523
      %v4525 = vrot.slane %v4524, 4
      %v4527 = vshll.u32 %v4218, 16
      %v4529 = vrot.slane %v4527, 5
      %v4530 = vsel %vm822, %v4525, %v4529
      %v4531 = vshrl.u32 %v4218, 16
      %v4533 = vrot.slane %v4531, 4
      %v4534 = vor.u32 %v4533, %v4529
      %v4535 = vrot.slane %v4534, 4
      %v4537 = vshll.u32 %v4219, 16
      %v4539 = vrot.slane %v4537, 5
      %v4540 = vsel %vm822, %v4535, %v4539
      %v4542 = vshrl.u32 %v4220, 16
      %v4544 = vrot.slane %v4542, 4
      %v4545 = vshll.u32 %v4220, 16
      %v4547 = vrot.slane %v4545, 5
      %v4548 = vor.u32 %v4544, %v4547
      %v4549 = vrot.slane %v4548, 4
      %v4551 = vshll.u32 %v4221, 16
      %v4553 = vrot.slane %v4551, 5
      %v4554 = vsel %vm822, %v4549, %v4553
      %v4555 = vshrl.u32 %v4221, 16
      %v4557 = vrot.slane %v4555, 4
      %v4558 = vor.u32 %v4557, %v4553
      %v4559 = vrot.slane %v4558, 4
      %v4561 = vshll.u32 %v4222, 16
      %v4563 = vrot.slane %v4561, 5
      %v4564 = vsel %vm822, %v4559, %v4563
      %v4566 = vshrl.u32 %v4223, 16
      %v4568 = vrot.slane %v4566, 4
      %v4569 = vshll.u32 %v4223, 16
      %v4571 = vrot.slane %v4569, 5
      %v4572 = vor.u32 %v4568, %v4571
      %v4573 = vrot.slane %v4572, 4
      %v4575 = vshll.u32 %v4224, 16
      %v4577 = vrot.slane %v4575, 5
      %v4578 = vsel %vm822, %v4573, %v4577
      %v4579 = vshrl.u32 %v4224, 16
      %v4581 = vrot.slane %v4579, 4
      %v4582 = vor.u32 %v4581, %v4577
      %v4583 = vrot.slane %v4582, 4
      %v4585 = vshll.u32 %v4225, 16
      %v4587 = vrot.slane %v4585, 5
      %v4588 = vsel %vm822, %v4583, %v4587
      %v4590 = vshrl.u32 %v4226, 16
      %v4592 = vrot.slane %v4590, 4
      %v4593 = vshll.u32 %v4226, 16
      %v4595 = vrot.slane %v4593, 5
      %v4596 = vor.u32 %v4592, %v4595
      %v4597 = vrot.slane %v4596, 4
      %v4599 = vshll.u32 %v4227, 16
      %v4601 = vrot.slane %v4599, 5
      %v4602 = vsel %vm822, %v4597, %v4601
      %v4603 = vshrl.u32 %v4227, 16
      %v4605 = vrot.slane %v4603, 4
      %v4606 = vor.u32 %v4605, %v4601
      %v4607 = vrot.slane %v4606, 4
      %v4609 = vshll.u32 %v4228, 16
      %v4611 = vrot.slane %v4609, 5
      %v4612 = vsel %vm822, %v4607, %v4611
      %v4613 = vunpack.c.l.b16 %v4242
      %v4614 = vunpack.c.l.b16 %v4252
      %v4615 = vunpack.c.l.b16 %v4266
      %v4616 = vunpack.c.l.b16 %v4276
      %v4617 = vunpack.c.l.b16 %v4290
      %v4618 = vunpack.c.l.b16 %v4300
      %v4619 = vunpack.c.l.b16 %v4314
      %v4620 = vunpack.c.l.b16 %v4324
      %v4621 = vunpack.c.l.b16 %v4338
      %v4622 = vunpack.c.l.b16 %v4348
      %v4623 = vunpack.c.l.b16 %v4362
      %v4624 = vunpack.c.l.b16 %v4372
      %v4625 = vunpack.c.l.b16 %v4386
      %v4626 = vunpack.c.l.b16 %v4396
      %v4627 = vunpack.c.l.b16 %v4410
      %v4628 = vunpack.c.l.b16 %v4420
      %v4629 = vunpack.c.l.b16 %v4434
      %v4630 = vunpack.c.l.b16 %v4444
      %v4631 = vunpack.c.l.b16 %v4458
      %v4632 = vunpack.c.l.b16 %v4468
      %v4633 = vunpack.c.l.b16 %v4482
      %v4634 = vunpack.c.l.b16 %v4492
      %v4635 = vunpack.c.l.b16 %v4506
      %v4636 = vunpack.c.l.b16 %v4516
      %v4637 = vunpack.c.l.b16 %v4530
      %v4638 = vunpack.c.l.b16 %v4540
      %v4639 = vunpack.c.l.b16 %v4554
      %v4640 = vunpack.c.l.b16 %v4564
      %v4641 = vunpack.c.l.b16 %v4578
      %v4642 = vunpack.c.l.b16 %v4588
      %v4643 = vunpack.c.l.b16 %v4602
      %v4644 = vunpack.c.l.b16 %v4612
      %v4645 = vpack.c.b16 %v4614, %v4613
      %v4646 = vpack.c.b16 %v4616, %v4615
      %v4647 = vpack.c.b16 %v4618, %v4617
      %v4648 = vpack.c.b16 %v4620, %v4619
      %v4649 = vpack.c.b16 %v4622, %v4621
      %v4650 = vpack.c.b16 %v4624, %v4623
      %v4651 = vpack.c.b16 %v4626, %v4625
      %v4652 = vpack.c.b16 %v4628, %v4627
      %v4653 = vpack.c.b16 %v4630, %v4629
      %v4654 = vpack.c.b16 %v4632, %v4631
      %v4655 = vpack.c.b16 %v4634, %v4633
      %v4656 = vpack.c.b16 %v4636, %v4635
      %v4657 = vpack.c.b16 %v4638, %v4637
      %v4658 = vpack.c.b16 %v4640, %v4639
      %v4659 = vpack.c.b16 %v4642, %v4641
      %v4660 = vpack.c.b16 %v4644, %v4643
      %4677 = vst [vmem:[#allocation3 + $0x488] sm:$0xff] %v4645
      %4678 = vst [vmem:[#allocation3 + $0x4d0] sm:$0xff] %v4646
      %4679 = vst [vmem:[#allocation3 + $0x518] sm:$0xff] %v4647
      %4680 = vst [vmem:[#allocation3 + $0x560] sm:$0xff] %v4648
      %4681 = vst [vmem:[#allocation3 + $0x5a8] sm:$0xff] %v4649
      %4682 = vst [vmem:[#allocation3 + $0x5f0] sm:$0xff] %v4650
      %4683 = vst [vmem:[#allocation3 + $0x638] sm:$0xff] %v4651
      %4684 = vst [vmem:[#allocation3 + $0x680] sm:$0xff] %v4652
      %4685 = vst [vmem:[#allocation3 + $0x6c8] sm:$0xff] %v4653
      %4686 = vst [vmem:[#allocation3 + $0x710] sm:$0xff] %v4654
      %4687 = vst [vmem:[#allocation3 + $0x758] sm:$0xff] %v4655
      %4688 = vst [vmem:[#allocation3 + $0x7a0] sm:$0xff] %v4656
      %4689 = vst [vmem:[#allocation3 + $0x7e8] sm:$0xff] %v4657
      %4690 = vst [vmem:[#allocation3 + $0x830] sm:$0xff] %v4658
      %4691 = vst [vmem:[#allocation3 + $0x878] sm:$0xff] %v4659
      %4692 = vst [vmem:[#allocation3 + $0x8c0] sm:$0xff] %v4660
      %v4693 = vld [vmem:[%s3467] sm:$0xe]
      %v4694 = vld [vmem:[%s3467 + $0x4] sm:$0xf]
      %v4695 = vld [vmem:[%s3467 + $0x8] sm:$0x1]
      %v4696 = vld [vmem:[%s3467 + $0xc] sm:$0xe]
      %v4697 = vld [vmem:[%s3467 + $0x10] sm:$0xf]
      %v4698 = vld [vmem:[%s3467 + $0x14] sm:$0x1]
      %v4699 = vld [vmem:[%s3467 + $0x18] sm:$0xe]
      %v4700 = vld [vmem:[%s3467 + $0x1c] sm:$0xf]
      %v4701 = vld [vmem:[%s3467 + $0x20] sm:$0x1]
      %v4702 = vld [vmem:[%s3467 + $0x24] sm:$0xe]
      %v4703 = vld [vmem:[%s3467 + $0x28] sm:$0xf]
      %v4704 = vld [vmem:[%s3467 + $0x2c] sm:$0x1]
      %v4705 = vld [vmem:[%s3467 + $0x30] sm:$0xe]
      %v4706 = vld [vmem:[%s3467 + $0x34] sm:$0xf]
      %v4707 = vld [vmem:[%s3467 + $0x38] sm:$0x1]
      %v4708 = vld [vmem:[%s3467 + $0x3c] sm:$0xe]
      %v4709 = vld [vmem:[%s3467 + $0x40] sm:$0xf]
      %v4710 = vld [vmem:[%s3467 + $0x44] sm:$0x1]
      %v4711 = vld [vmem:[%s3467 + $0x48] sm:$0xe]
      %v4712 = vld [vmem:[%s3467 + $0x4c] sm:$0xf]
      %v4713 = vld [vmem:[%s3467 + $0x50] sm:$0x1]
      %v4714 = vld [vmem:[%s3467 + $0x54] sm:$0xe]
      %v4715 = vld [vmem:[%s3467 + $0x58] sm:$0xf]
      %v4716 = vld [vmem:[%s3467 + $0x5c] sm:$0x1]
      %v4717 = vld [vmem:[%s3467 + $0x60] sm:$0xe]
      %v4718 = vld [vmem:[%s3467 + $0x64] sm:$0xf]
      %v4719 = vld [vmem:[%s3467 + $0x68] sm:$0x1]
      %v4720 = vld [vmem:[%s3467 + $0x6c] sm:$0xe]
      %v4721 = vld [vmem:[%s3467 + $0x70] sm:$0xf]
      %v4722 = vld [vmem:[%s3467 + $0x74] sm:$0x1]
      %v4723 = vld [vmem:[%s3467 + $0x78] sm:$0xe]
      %v4724 = vld [vmem:[%s3467 + $0x7c] sm:$0xf]
      %v4725 = vld [vmem:[%s3467 + $0x80] sm:$0x1]
      %v4726 = vld [vmem:[%s3467 + $0x84] sm:$0xe]
      %v4727 = vld [vmem:[%s3467 + $0x88] sm:$0xf]
      %v4728 = vld [vmem:[%s3467 + $0x8c] sm:$0x1]
      %v4729 = vld [vmem:[%s3467 + $0x90] sm:$0xe]
      %v4730 = vld [vmem:[%s3467 + $0x94] sm:$0xf]
      %v4731 = vld [vmem:[%s3467 + $0x98] sm:$0x1]
      %v4732 = vld [vmem:[%s3467 + $0x9c] sm:$0xe]
      %v4733 = vld [vmem:[%s3467 + $0xa0] sm:$0xf]
      %v4734 = vld [vmem:[%s3467 + $0xa4] sm:$0x1]
      %v4735 = vld [vmem:[%s3467 + $0xa8] sm:$0xe]
      %v4736 = vld [vmem:[%s3467 + $0xac] sm:$0xf]
      %v4737 = vld [vmem:[%s3467 + $0xb0] sm:$0x1]
      %v4738 = vld [vmem:[%s3467 + $0xb4] sm:$0xe]
      %v4739 = vld [vmem:[%s3467 + $0xb8] sm:$0xf]
      %v4740 = vld [vmem:[%s3467 + $0xbc] sm:$0x1]
      %v4789 = vrot.slane %v4693, 5
      %v4790 = vrot.slane %v4789, 4
      %v4791 = vrot.slane %v4694, 5
      %v4792 = vsel %vm1385, %v4790, %v4791
      %v4793 = vrot.slane %v4791, 4
      %v4794 = vrot.slane %v4695, 5
      %v4795 = vsel %vm1385, %v4793, %v4794
      %v4796 = vrot.slane %v4696, 5
      %v4797 = vrot.slane %v4796, 4
      %v4798 = vrot.slane %v4697, 5
      %v4799 = vsel %vm1385, %v4797, %v4798
      %v4800 = vrot.slane %v4798, 4
      %v4801 = vrot.slane %v4698, 5
      %v4802 = vsel %vm1385, %v4800, %v4801
      %v4803 = vrot.slane %v4699, 5
      %v4804 = vrot.slane %v4803, 4
      %v4805 = vrot.slane %v4700, 5
      %v4806 = vsel %vm1385, %v4804, %v4805
      %v4807 = vrot.slane %v4805, 4
      %v4808 = vrot.slane %v4701, 5
      %v4809 = vsel %vm1385, %v4807, %v4808
      %v4810 = vrot.slane %v4702, 5
      %v4811 = vrot.slane %v4810, 4
      %v4812 = vrot.slane %v4703, 5
      %v4813 = vsel %vm1385, %v4811, %v4812
      %v4814 = vrot.slane %v4812, 4
      %v4815 = vrot.slane %v4704, 5
      %v4816 = vsel %vm1385, %v4814, %v4815
      %v4817 = vrot.slane %v4705, 5
      %v4818 = vrot.slane %v4817, 4
      %v4819 = vrot.slane %v4706, 5
      %v4820 = vsel %vm1385, %v4818, %v4819
      %v4821 = vrot.slane %v4819, 4
      %v4822 = vrot.slane %v4707, 5
      %v4823 = vsel %vm1385, %v4821, %v4822
      %v4824 = vrot.slane %v4708, 5
      %v4825 = vrot.slane %v4824, 4
      %v4826 = vrot.slane %v4709, 5
      %v4827 = vsel %vm1385, %v4825, %v4826
      %v4828 = vrot.slane %v4826, 4
      %v4829 = vrot.slane %v4710, 5
      %v4830 = vsel %vm1385, %v4828, %v4829
      %v4831 = vrot.slane %v4711, 5
      %v4832 = vrot.slane %v4831, 4
      %v4833 = vrot.slane %v4712, 5
      %v4834 = vsel %vm1385, %v4832, %v4833
      %v4835 = vrot.slane %v4833, 4
      %v4836 = vrot.slane %v4713, 5
      %v4837 = vsel %vm1385, %v4835, %v4836
      %v4838 = vrot.slane %v4714, 5
      %v4839 = vrot.slane %v4838, 4
      %v4840 = vrot.slane %v4715, 5
      %v4841 = vsel %vm1385, %v4839, %v4840
      %v4842 = vrot.slane %v4840, 4
      %v4843 = vrot.slane %v4716, 5
      %v4844 = vsel %vm1385, %v4842, %v4843
      %v4845 = vrot.slane %v4717, 5
      %v4846 = vrot.slane %v4845, 4
      %v4847 = vrot.slane %v4718, 5
      %v4848 = vsel %vm1385, %v4846, %v4847
      %v4849 = vrot.slane %v4847, 4
      %v4850 = vrot.slane %v4719, 5
      %v4851 = vsel %vm1385, %v4849, %v4850
      %v4852 = vrot.slane %v4720, 5
      %v4853 = vrot.slane %v4852, 4
      %v4854 = vrot.slane %v4721, 5
      %v4855 = vsel %vm1385, %v4853, %v4854
      %v4856 = vrot.slane %v4854, 4
      %v4857 = vrot.slane %v4722, 5
      %v4858 = vsel %vm1385, %v4856, %v4857
      %v4859 = vrot.slane %v4723, 5
      %v4860 = vrot.slane %v4859, 4
      %v4861 = vrot.slane %v4724, 5
      %v4862 = vsel %vm1385, %v4860, %v4861
      %v4863 = vrot.slane %v4861, 4
      %v4864 = vrot.slane %v4725, 5
      %v4865 = vsel %vm1385, %v4863, %v4864
      %v4866 = vrot.slane %v4726, 5
      %v4867 = vrot.slane %v4866, 4
      %v4868 = vrot.slane %v4727, 5
      %v4869 = vsel %vm1385, %v4867, %v4868
      %v4870 = vrot.slane %v4868, 4
      %v4871 = vrot.slane %v4728, 5
      %v4872 = vsel %vm1385, %v4870, %v4871
      %v4873 = vrot.slane %v4729, 5
      %v4874 = vrot.slane %v4873, 4
      %v4875 = vrot.slane %v4730, 5
      %v4876 = vsel %vm1385, %v4874, %v4875
      %v4877 = vrot.slane %v4875, 4
      %v4878 = vrot.slane %v4731, 5
      %v4879 = vsel %vm1385, %v4877, %v4878
      %v4880 = vrot.slane %v4732, 5
      %v4881 = vrot.slane %v4880, 4
      %v4882 = vrot.slane %v4733, 5
      %v4883 = vsel %vm1385, %v4881, %v4882
      %v4884 = vrot.slane %v4882, 4
      %v4885 = vrot.slane %v4734, 5
      %v4886 = vsel %vm1385, %v4884, %v4885
      %v4887 = vrot.slane %v4735, 5
      %v4888 = vrot.slane %v4887, 4
      %v4889 = vrot.slane %v4736, 5
      %v4890 = vsel %vm1385, %v4888, %v4889
      %v4891 = vrot.slane %v4889, 4
      %v4892 = vrot.slane %v4737, 5
      %v4893 = vsel %vm1385, %v4891, %v4892
      %v4894 = vrot.slane %v4738, 5
      %v4895 = vrot.slane %v4894, 4
      %v4896 = vrot.slane %v4739, 5
      %v4897 = vsel %vm1385, %v4895, %v4896
      %v4898 = vrot.slane %v4896, 4
      %v4899 = vrot.slane %v4740, 5
      %v4900 = vsel %vm1385, %v4898, %v4899
      %v4901 = vunpack.c.l.b16 %v4792
      %v4902 = vunpack.c.l.b16 %v4795
      %v4903 = vunpack.c.l.b16 %v4799
      %v4904 = vunpack.c.l.b16 %v4802
      %v4905 = vunpack.c.l.b16 %v4806
      %v4906 = vunpack.c.l.b16 %v4809
      %v4907 = vunpack.c.l.b16 %v4813
      %v4908 = vunpack.c.l.b16 %v4816
      %v4909 = vunpack.c.l.b16 %v4820
      %v4910 = vunpack.c.l.b16 %v4823
      %v4911 = vunpack.c.l.b16 %v4827
      %v4912 = vunpack.c.l.b16 %v4830
      %v4913 = vunpack.c.l.b16 %v4834
      %v4914 = vunpack.c.l.b16 %v4837
      %v4915 = vunpack.c.l.b16 %v4841
      %v4916 = vunpack.c.l.b16 %v4844
      %v4917 = vunpack.c.l.b16 %v4848
      %v4918 = vunpack.c.l.b16 %v4851
      %v4919 = vunpack.c.l.b16 %v4855
      %v4920 = vunpack.c.l.b16 %v4858
      %v4921 = vunpack.c.l.b16 %v4862
      %v4922 = vunpack.c.l.b16 %v4865
      %v4923 = vunpack.c.l.b16 %v4869
      %v4924 = vunpack.c.l.b16 %v4872
      %v4925 = vunpack.c.l.b16 %v4876
      %v4926 = vunpack.c.l.b16 %v4879
      %v4927 = vunpack.c.l.b16 %v4883
      %v4928 = vunpack.c.l.b16 %v4886
      %v4929 = vunpack.c.l.b16 %v4890
      %v4930 = vunpack.c.l.b16 %v4893
      %v4931 = vunpack.c.l.b16 %v4897
      %v4932 = vunpack.c.l.b16 %v4900
      %v4933 = vpack.c.b16 %v4902, %v4901
      %v4934 = vpack.c.b16 %v4904, %v4903
      %v4935 = vpack.c.b16 %v4906, %v4905
      %v4936 = vpack.c.b16 %v4908, %v4907
      %v4937 = vpack.c.b16 %v4910, %v4909
      %v4938 = vpack.c.b16 %v4912, %v4911
      %v4939 = vpack.c.b16 %v4914, %v4913
      %v4940 = vpack.c.b16 %v4916, %v4915
      %v4941 = vpack.c.b16 %v4918, %v4917
      %v4942 = vpack.c.b16 %v4920, %v4919
      %v4943 = vpack.c.b16 %v4922, %v4921
      %v4944 = vpack.c.b16 %v4924, %v4923
      %v4945 = vpack.c.b16 %v4926, %v4925
      %v4946 = vpack.c.b16 %v4928, %v4927
      %v4947 = vpack.c.b16 %v4930, %v4929
      %v4948 = vpack.c.b16 %v4932, %v4931
      %4965 = vst [vmem:[#allocation3 + $0x490] sm:$0xff] %v4933
      %4966 = vst [vmem:[#allocation3 + $0x4d8] sm:$0xff] %v4934
      %4967 = vst [vmem:[#allocation3 + $0x520] sm:$0xff] %v4935
      %4968 = vst [vmem:[#allocation3 + $0x568] sm:$0xff] %v4936
      %4969 = vst [vmem:[#allocation3 + $0x5b0] sm:$0xff] %v4937
      %4970 = vst [vmem:[#allocation3 + $0x5f8] sm:$0xff] %v4938
      %4971 = vst [vmem:[#allocation3 + $0x640] sm:$0xff] %v4939
      %4972 = vst [vmem:[#allocation3 + $0x688] sm:$0xff] %v4940
      %4973 = vst [vmem:[#allocation3 + $0x6d0] sm:$0xff] %v4941
      %4974 = vst [vmem:[#allocation3 + $0x718] sm:$0xff] %v4942
      %4975 = vst [vmem:[#allocation3 + $0x760] sm:$0xff] %v4943
      %4976 = vst [vmem:[#allocation3 + $0x7a8] sm:$0xff] %v4944
      %4977 = vst [vmem:[#allocation3 + $0x7f0] sm:$0xff] %v4945
      %4978 = vst [vmem:[#allocation3 + $0x838] sm:$0xff] %v4946
      %4979 = vst [vmem:[#allocation3 + $0x880] sm:$0xff] %v4947
      %4980 = vst [vmem:[#allocation3 + $0x8c8] sm:$0xff] %v4948
      %v4981 = vld [vmem:[%s3475] sm:$0xf]
      %v4982 = vld [vmem:[%s3475 + $0x4] sm:$0xf]
      %v4983 = vld [vmem:[%s3475 + $0xc] sm:$0xf]
      %v4984 = vld [vmem:[%s3475 + $0x10] sm:$0xf]
      %v4985 = vld [vmem:[%s3475 + $0x18] sm:$0xf]
      %v4986 = vld [vmem:[%s3475 + $0x1c] sm:$0xf]
      %v4987 = vld [vmem:[%s3475 + $0x24] sm:$0xf]
      %v4988 = vld [vmem:[%s3475 + $0x28] sm:$0xf]
      %v4989 = vld [vmem:[%s3475 + $0x30] sm:$0xf]
      %v4990 = vld [vmem:[%s3475 + $0x34] sm:$0xf]
      %v4991 = vld [vmem:[%s3475 + $0x3c] sm:$0xf]
      %v4992 = vld [vmem:[%s3475 + $0x40] sm:$0xf]
      %v4993 = vld [vmem:[%s3475 + $0x48] sm:$0xf]
      %v4994 = vld [vmem:[%s3475 + $0x4c] sm:$0xf]
      %v4995 = vld [vmem:[%s3475 + $0x54] sm:$0xf]
      %v4996 = vld [vmem:[%s3475 + $0x58] sm:$0xf]
      %v4997 = vld [vmem:[%s3475 + $0x60] sm:$0xf]
      %v4998 = vld [vmem:[%s3475 + $0x64] sm:$0xf]
      %v4999 = vld [vmem:[%s3475 + $0x6c] sm:$0xf]
      %v5000 = vld [vmem:[%s3475 + $0x70] sm:$0xf]
      %v5001 = vld [vmem:[%s3475 + $0x78] sm:$0xf]
      %v5002 = vld [vmem:[%s3475 + $0x7c] sm:$0xf]
      %v5003 = vld [vmem:[%s3475 + $0x84] sm:$0xf]
      %v5004 = vld [vmem:[%s3475 + $0x88] sm:$0xf]
      %v5005 = vld [vmem:[%s3475 + $0x90] sm:$0xf]
      %v5006 = vld [vmem:[%s3475 + $0x94] sm:$0xf]
      %v5007 = vld [vmem:[%s3475 + $0x9c] sm:$0xf]
      %v5008 = vld [vmem:[%s3475 + $0xa0] sm:$0xf]
      %v5009 = vld [vmem:[%s3475 + $0xa8] sm:$0xf]
      %v5010 = vld [vmem:[%s3475 + $0xac] sm:$0xf]
      %v5011 = vld [vmem:[%s3475 + $0xb4] sm:$0xf]
      %v5012 = vld [vmem:[%s3475 + $0xb8] sm:$0xf]
      %v5045 = vunpack.c.l.b16 %v4981
      %v5046 = vunpack.c.l.b16 %v4982
      %v5047 = vunpack.c.l.b16 %v4983
      %v5048 = vunpack.c.l.b16 %v4984
      %v5049 = vunpack.c.l.b16 %v4985
      %v5050 = vunpack.c.l.b16 %v4986
      %v5051 = vunpack.c.l.b16 %v4987
      %v5052 = vunpack.c.l.b16 %v4988
      %v5053 = vunpack.c.l.b16 %v4989
      %v5054 = vunpack.c.l.b16 %v4990
      %v5055 = vunpack.c.l.b16 %v4991
      %v5056 = vunpack.c.l.b16 %v4992
      %v5057 = vunpack.c.l.b16 %v4993
      %v5058 = vunpack.c.l.b16 %v4994
      %v5059 = vunpack.c.l.b16 %v4995
      %v5060 = vunpack.c.l.b16 %v4996
      %v5061 = vunpack.c.l.b16 %v4997
      %v5062 = vunpack.c.l.b16 %v4998
      %v5063 = vunpack.c.l.b16 %v4999
      %v5064 = vunpack.c.l.b16 %v5000
      %v5065 = vunpack.c.l.b16 %v5001
      %v5066 = vunpack.c.l.b16 %v5002
      %v5067 = vunpack.c.l.b16 %v5003
      %v5068 = vunpack.c.l.b16 %v5004
      %v5069 = vunpack.c.l.b16 %v5005
      %v5070 = vunpack.c.l.b16 %v5006
      %v5071 = vunpack.c.l.b16 %v5007
      %v5072 = vunpack.c.l.b16 %v5008
      %v5073 = vunpack.c.l.b16 %v5009
      %v5074 = vunpack.c.l.b16 %v5010
      %v5075 = vunpack.c.l.b16 %v5011
      %v5076 = vunpack.c.l.b16 %v5012
      %v5077 = vpack.c.b16 %v5046, %v5045
      %v5078 = vpack.c.b16 %v5048, %v5047
      %v5079 = vpack.c.b16 %v5050, %v5049
      %v5080 = vpack.c.b16 %v5052, %v5051
      %v5081 = vpack.c.b16 %v5054, %v5053
      %v5082 = vpack.c.b16 %v5056, %v5055
      %v5083 = vpack.c.b16 %v5058, %v5057
      %v5084 = vpack.c.b16 %v5060, %v5059
      %v5085 = vpack.c.b16 %v5062, %v5061
      %v5086 = vpack.c.b16 %v5064, %v5063
      %v5087 = vpack.c.b16 %v5066, %v5065
      %v5088 = vpack.c.b16 %v5068, %v5067
      %v5089 = vpack.c.b16 %v5070, %v5069
      %v5090 = vpack.c.b16 %v5072, %v5071
      %v5091 = vpack.c.b16 %v5074, %v5073
      %v5092 = vpack.c.b16 %v5076, %v5075
      %5109 = vst [vmem:[#allocation3 + $0x498] sm:$0xff] %v5077
      %5110 = vst [vmem:[#allocation3 + $0x4e0] sm:$0xff] %v5078
      %5111 = vst [vmem:[#allocation3 + $0x528] sm:$0xff] %v5079
      %5112 = vst [vmem:[#allocation3 + $0x570] sm:$0xff] %v5080
      %5113 = vst [vmem:[#allocation3 + $0x5b8] sm:$0xff] %v5081
      %5114 = vst [vmem:[#allocation3 + $0x600] sm:$0xff] %v5082
      %5115 = vst [vmem:[#allocation3 + $0x648] sm:$0xff] %v5083
      %5116 = vst [vmem:[#allocation3 + $0x690] sm:$0xff] %v5084
      %5117 = vst [vmem:[#allocation3 + $0x6d8] sm:$0xff] %v5085
      %5118 = vst [vmem:[#allocation3 + $0x720] sm:$0xff] %v5086
      %5119 = vst [vmem:[#allocation3 + $0x768] sm:$0xff] %v5087
      %5120 = vst [vmem:[#allocation3 + $0x7b0] sm:$0xff] %v5088
      %5121 = vst [vmem:[#allocation3 + $0x7f8] sm:$0xff] %v5089
      %5122 = vst [vmem:[#allocation3 + $0x840] sm:$0xff] %v5090
      %5123 = vst [vmem:[#allocation3 + $0x888] sm:$0xff] %v5091
      %5124 = vst [vmem:[#allocation3 + $0x8d0] sm:$0xff] %v5092
      %v5125 = vld [vmem:[%s3475] sm:$0xf]
      %v5126 = vld [vmem:[%s3475 + $0x4] sm:$0xf]
      %v5127 = vld [vmem:[%s3475 + $0x8] sm:$0x1]
      %v5128 = vld [vmem:[%s3475 + $0xc] sm:$0xf]
      %v5129 = vld [vmem:[%s3475 + $0x10] sm:$0xf]
      %v5130 = vld [vmem:[%s3475 + $0x14] sm:$0x1]
      %v5131 = vld [vmem:[%s3475 + $0x18] sm:$0xf]
      %v5132 = vld [vmem:[%s3475 + $0x1c] sm:$0xf]
      %v5133 = vld [vmem:[%s3475 + $0x20] sm:$0x1]
      %v5134 = vld [vmem:[%s3475 + $0x24] sm:$0xf]
      %v5135 = vld [vmem:[%s3475 + $0x28] sm:$0xf]
      %v5136 = vld [vmem:[%s3475 + $0x2c] sm:$0x1]
      %v5137 = vld [vmem:[%s3475 + $0x30] sm:$0xf]
      %v5138 = vld [vmem:[%s3475 + $0x34] sm:$0xf]
      %v5139 = vld [vmem:[%s3475 + $0x38] sm:$0x1]
      %v5140 = vld [vmem:[%s3475 + $0x3c] sm:$0xf]
      %v5141 = vld [vmem:[%s3475 + $0x40] sm:$0xf]
      %v5142 = vld [vmem:[%s3475 + $0x44] sm:$0x1]
      %v5143 = vld [vmem:[%s3475 + $0x48] sm:$0xf]
      %v5144 = vld [vmem:[%s3475 + $0x4c] sm:$0xf]
      %v5145 = vld [vmem:[%s3475 + $0x50] sm:$0x1]
      %v5146 = vld [vmem:[%s3475 + $0x54] sm:$0xf]
      %v5147 = vld [vmem:[%s3475 + $0x58] sm:$0xf]
      %v5148 = vld [vmem:[%s3475 + $0x5c] sm:$0x1]
      %v5149 = vld [vmem:[%s3475 + $0x60] sm:$0xf]
      %v5150 = vld [vmem:[%s3475 + $0x64] sm:$0xf]
      %v5151 = vld [vmem:[%s3475 + $0x68] sm:$0x1]
      %v5152 = vld [vmem:[%s3475 + $0x6c] sm:$0xf]
      %v5153 = vld [vmem:[%s3475 + $0x70] sm:$0xf]
      %v5154 = vld [vmem:[%s3475 + $0x74] sm:$0x1]
      %v5155 = vld [vmem:[%s3475 + $0x78] sm:$0xf]
      %v5156 = vld [vmem:[%s3475 + $0x7c] sm:$0xf]
      %v5157 = vld [vmem:[%s3475 + $0x80] sm:$0x1]
      %v5158 = vld [vmem:[%s3475 + $0x84] sm:$0xf]
      %v5159 = vld [vmem:[%s3475 + $0x88] sm:$0xf]
      %v5160 = vld [vmem:[%s3475 + $0x8c] sm:$0x1]
      %v5161 = vld [vmem:[%s3475 + $0x90] sm:$0xf]
      %v5162 = vld [vmem:[%s3475 + $0x94] sm:$0xf]
      %v5163 = vld [vmem:[%s3475 + $0x98] sm:$0x1]
      %v5164 = vld [vmem:[%s3475 + $0x9c] sm:$0xf]
      %v5165 = vld [vmem:[%s3475 + $0xa0] sm:$0xf]
      %v5166 = vld [vmem:[%s3475 + $0xa4] sm:$0x1]
      %v5167 = vld [vmem:[%s3475 + $0xa8] sm:$0xf]
      %v5168 = vld [vmem:[%s3475 + $0xac] sm:$0xf]
      %v5169 = vld [vmem:[%s3475 + $0xb0] sm:$0x1]
      %v5170 = vld [vmem:[%s3475 + $0xb4] sm:$0xf]
      %v5171 = vld [vmem:[%s3475 + $0xb8] sm:$0xf]
      %v5172 = vld [vmem:[%s3475 + $0xbc] sm:$0x1]
      %v5174 = vshrl.u32 %v5125, 16
      %v5176 = vrot.slane %v5174, 4
      %v5177 = vshll.u32 %v5125, 16
      %v5179 = vrot.slane %v5177, 5
      %v5180 = vor.u32 %v5176, %v5179
      %v5181 = vrot.slane %v5180, 4
      %v5183 = vshll.u32 %v5126, 16
      %v5185 = vrot.slane %v5183, 5
      %v5186 = vsel %vm822, %v5181, %v5185
      %v5187 = vshrl.u32 %v5126, 16
      %v5189 = vrot.slane %v5187, 4
      %v5190 = vor.u32 %v5189, %v5185
      %v5191 = vrot.slane %v5190, 4
      %v5193 = vshll.u32 %v5127, 16
      %v5195 = vrot.slane %v5193, 5
      %v5196 = vsel %vm822, %v5191, %v5195
      %v5198 = vshrl.u32 %v5128, 16
      %v5200 = vrot.slane %v5198, 4
      %v5201 = vshll.u32 %v5128, 16
      %v5203 = vrot.slane %v5201, 5
      %v5204 = vor.u32 %v5200, %v5203
      %v5205 = vrot.slane %v5204, 4
      %v5207 = vshll.u32 %v5129, 16
      %v5209 = vrot.slane %v5207, 5
      %v5210 = vsel %vm822, %v5205, %v5209
      %v5211 = vshrl.u32 %v5129, 16
      %v5213 = vrot.slane %v5211, 4
      %v5214 = vor.u32 %v5213, %v5209
      %v5215 = vrot.slane %v5214, 4
      %v5217 = vshll.u32 %v5130, 16
      %v5219 = vrot.slane %v5217, 5
      %v5220 = vsel %vm822, %v5215, %v5219
      %v5222 = vshrl.u32 %v5131, 16
      %v5224 = vrot.slane %v5222, 4
      %v5225 = vshll.u32 %v5131, 16
      %v5227 = vrot.slane %v5225, 5
      %v5228 = vor.u32 %v5224, %v5227
      %v5229 = vrot.slane %v5228, 4
      %v5231 = vshll.u32 %v5132, 16
      %v5233 = vrot.slane %v5231, 5
      %v5234 = vsel %vm822, %v5229, %v5233
      %v5235 = vshrl.u32 %v5132, 16
      %v5237 = vrot.slane %v5235, 4
      %v5238 = vor.u32 %v5237, %v5233
      %v5239 = vrot.slane %v5238, 4
      %v5241 = vshll.u32 %v5133, 16
      %v5243 = vrot.slane %v5241, 5
      %v5244 = vsel %vm822, %v5239, %v5243
      %v5246 = vshrl.u32 %v5134, 16
      %v5248 = vrot.slane %v5246, 4
      %v5249 = vshll.u32 %v5134, 16
      %v5251 = vrot.slane %v5249, 5
      %v5252 = vor.u32 %v5248, %v5251
      %v5253 = vrot.slane %v5252, 4
      %v5255 = vshll.u32 %v5135, 16
      %v5257 = vrot.slane %v5255, 5
      %v5258 = vsel %vm822, %v5253, %v5257
      %v5259 = vshrl.u32 %v5135, 16
      %v5261 = vrot.slane %v5259, 4
      %v5262 = vor.u32 %v5261, %v5257
      %v5263 = vrot.slane %v5262, 4
      %v5265 = vshll.u32 %v5136, 16
      %v5267 = vrot.slane %v5265, 5
      %v5268 = vsel %vm822, %v5263, %v5267
      %v5270 = vshrl.u32 %v5137, 16
      %v5272 = vrot.slane %v5270, 4
      %v5273 = vshll.u32 %v5137, 16
      %v5275 = vrot.slane %v5273, 5
      %v5276 = vor.u32 %v5272, %v5275
      %v5277 = vrot.slane %v5276, 4
      %v5279 = vshll.u32 %v5138, 16
      %v5281 = vrot.slane %v5279, 5
      %v5282 = vsel %vm822, %v5277, %v5281
      %v5283 = vshrl.u32 %v5138, 16
      %v5285 = vrot.slane %v5283, 4
      %v5286 = vor.u32 %v5285, %v5281
      %v5287 = vrot.slane %v5286, 4
      %v5289 = vshll.u32 %v5139, 16
      %v5291 = vrot.slane %v5289, 5
      %v5292 = vsel %vm822, %v5287, %v5291
      %v5294 = vshrl.u32 %v5140, 16
      %v5296 = vrot.slane %v5294, 4
      %v5297 = vshll.u32 %v5140, 16
      %v5299 = vrot.slane %v5297, 5
      %v5300 = vor.u32 %v5296, %v5299
      %v5301 = vrot.slane %v5300, 4
      %v5303 = vshll.u32 %v5141, 16
      %v5305 = vrot.slane %v5303, 5
      %v5306 = vsel %vm822, %v5301, %v5305
      %v5307 = vshrl.u32 %v5141, 16
      %v5309 = vrot.slane %v5307, 4
      %v5310 = vor.u32 %v5309, %v5305
      %v5311 = vrot.slane %v5310, 4
      %v5313 = vshll.u32 %v5142, 16
      %v5315 = vrot.slane %v5313, 5
      %v5316 = vsel %vm822, %v5311, %v5315
      %v5318 = vshrl.u32 %v5143, 16
      %v5320 = vrot.slane %v5318, 4
      %v5321 = vshll.u32 %v5143, 16
      %v5323 = vrot.slane %v5321, 5
      %v5324 = vor.u32 %v5320, %v5323
      %v5325 = vrot.slane %v5324, 4
      %v5327 = vshll.u32 %v5144, 16
      %v5329 = vrot.slane %v5327, 5
      %v5330 = vsel %vm822, %v5325, %v5329
      %v5331 = vshrl.u32 %v5144, 16
      %v5333 = vrot.slane %v5331, 4
      %v5334 = vor.u32 %v5333, %v5329
      %v5335 = vrot.slane %v5334, 4
      %v5337 = vshll.u32 %v5145, 16
      %v5339 = vrot.slane %v5337, 5
      %v5340 = vsel %vm822, %v5335, %v5339
      %v5342 = vshrl.u32 %v5146, 16
      %v5344 = vrot.slane %v5342, 4
      %v5345 = vshll.u32 %v5146, 16
      %v5347 = vrot.slane %v5345, 5
      %v5348 = vor.u32 %v5344, %v5347
      %v5349 = vrot.slane %v5348, 4
      %v5351 = vshll.u32 %v5147, 16
      %v5353 = vrot.slane %v5351, 5
      %v5354 = vsel %vm822, %v5349, %v5353
      %v5355 = vshrl.u32 %v5147, 16
      %v5357 = vrot.slane %v5355, 4
      %v5358 = vor.u32 %v5357, %v5353
      %v5359 = vrot.slane %v5358, 4
      %v5361 = vshll.u32 %v5148, 16
      %v5363 = vrot.slane %v5361, 5
      %v5364 = vsel %vm822, %v5359, %v5363
      %v5366 = vshrl.u32 %v5149, 16
      %v5368 = vrot.slane %v5366, 4
      %v5369 = vshll.u32 %v5149, 16
      %v5371 = vrot.slane %v5369, 5
      %v5372 = vor.u32 %v5368, %v5371
      %v5373 = vrot.slane %v5372, 4
      %v5375 = vshll.u32 %v5150, 16
      %v5377 = vrot.slane %v5375, 5
      %v5378 = vsel %vm822, %v5373, %v5377
      %v5379 = vshrl.u32 %v5150, 16
      %v5381 = vrot.slane %v5379, 4
      %v5382 = vor.u32 %v5381, %v5377
      %v5383 = vrot.slane %v5382, 4
      %v5385 = vshll.u32 %v5151, 16
      %v5387 = vrot.slane %v5385, 5
      %v5388 = vsel %vm822, %v5383, %v5387
      %v5390 = vshrl.u32 %v5152, 16
      %v5392 = vrot.slane %v5390, 4
      %v5393 = vshll.u32 %v5152, 16
      %v5395 = vrot.slane %v5393, 5
      %v5396 = vor.u32 %v5392, %v5395
      %v5397 = vrot.slane %v5396, 4
      %v5399 = vshll.u32 %v5153, 16
      %v5401 = vrot.slane %v5399, 5
      %v5402 = vsel %vm822, %v5397, %v5401
      %v5403 = vshrl.u32 %v5153, 16
      %v5405 = vrot.slane %v5403, 4
      %v5406 = vor.u32 %v5405, %v5401
      %v5407 = vrot.slane %v5406, 4
      %v5409 = vshll.u32 %v5154, 16
      %v5411 = vrot.slane %v5409, 5
      %v5412 = vsel %vm822, %v5407, %v5411
      %v5414 = vshrl.u32 %v5155, 16
      %v5416 = vrot.slane %v5414, 4
      %v5417 = vshll.u32 %v5155, 16
      %v5419 = vrot.slane %v5417, 5
      %v5420 = vor.u32 %v5416, %v5419
      %v5421 = vrot.slane %v5420, 4
      %v5423 = vshll.u32 %v5156, 16
      %v5425 = vrot.slane %v5423, 5
      %v5426 = vsel %vm822, %v5421, %v5425
      %v5427 = vshrl.u32 %v5156, 16
      %v5429 = vrot.slane %v5427, 4
      %v5430 = vor.u32 %v5429, %v5425
      %v5431 = vrot.slane %v5430, 4
      %v5433 = vshll.u32 %v5157, 16
      %v5435 = vrot.slane %v5433, 5
      %v5436 = vsel %vm822, %v5431, %v5435
      %v5438 = vshrl.u32 %v5158, 16
      %v5440 = vrot.slane %v5438, 4
      %v5441 = vshll.u32 %v5158, 16
      %v5443 = vrot.slane %v5441, 5
      %v5444 = vor.u32 %v5440, %v5443
      %v5445 = vrot.slane %v5444, 4
      %v5447 = vshll.u32 %v5159, 16
      %v5449 = vrot.slane %v5447, 5
      %v5450 = vsel %vm822, %v5445, %v5449
      %v5451 = vshrl.u32 %v5159, 16
      %v5453 = vrot.slane %v5451, 4
      %v5454 = vor.u32 %v5453, %v5449
      %v5455 = vrot.slane %v5454, 4
      %v5457 = vshll.u32 %v5160, 16
      %v5459 = vrot.slane %v5457, 5
      %v5460 = vsel %vm822, %v5455, %v5459
      %v5462 = vshrl.u32 %v5161, 16
      %v5464 = vrot.slane %v5462, 4
      %v5465 = vshll.u32 %v5161, 16
      %v5467 = vrot.slane %v5465, 5
      %v5468 = vor.u32 %v5464, %v5467
      %v5469 = vrot.slane %v5468, 4
      %v5471 = vshll.u32 %v5162, 16
      %v5473 = vrot.slane %v5471, 5
      %v5474 = vsel %vm822, %v5469, %v5473
      %v5475 = vshrl.u32 %v5162, 16
      %v5477 = vrot.slane %v5475, 4
      %v5478 = vor.u32 %v5477, %v5473
      %v5479 = vrot.slane %v5478, 4
      %v5481 = vshll.u32 %v5163, 16
      %v5483 = vrot.slane %v5481, 5
      %v5484 = vsel %vm822, %v5479, %v5483
      %v5486 = vshrl.u32 %v5164, 16
      %v5488 = vrot.slane %v5486, 4
      %v5489 = vshll.u32 %v5164, 16
      %v5491 = vrot.slane %v5489, 5
      %v5492 = vor.u32 %v5488, %v5491
      %v5493 = vrot.slane %v5492, 4
      %v5495 = vshll.u32 %v5165, 16
      %v5497 = vrot.slane %v5495, 5
      %v5498 = vsel %vm822, %v5493, %v5497
      %v5499 = vshrl.u32 %v5165, 16
      %v5501 = vrot.slane %v5499, 4
      %v5502 = vor.u32 %v5501, %v5497
      %v5503 = vrot.slane %v5502, 4
      %v5505 = vshll.u32 %v5166, 16
      %v5507 = vrot.slane %v5505, 5
      %v5508 = vsel %vm822, %v5503, %v5507
      %v5510 = vshrl.u32 %v5167, 16
      %v5512 = vrot.slane %v5510, 4
      %v5513 = vshll.u32 %v5167, 16
      %v5515 = vrot.slane %v5513, 5
      %v5516 = vor.u32 %v5512, %v5515
      %v5517 = vrot.slane %v5516, 4
      %v5519 = vshll.u32 %v5168, 16
      %v5521 = vrot.slane %v5519, 5
      %v5522 = vsel %vm822, %v5517, %v5521
      %v5523 = vshrl.u32 %v5168, 16
      %v5525 = vrot.slane %v5523, 4
      %v5526 = vor.u32 %v5525, %v5521
      %v5527 = vrot.slane %v5526, 4
      %v5529 = vshll.u32 %v5169, 16
      %v5531 = vrot.slane %v5529, 5
      %v5532 = vsel %vm822, %v5527, %v5531
      %v5534 = vshrl.u32 %v5170, 16
      %v5536 = vrot.slane %v5534, 4
      %v5537 = vshll.u32 %v5170, 16
      %v5539 = vrot.slane %v5537, 5
      %v5540 = vor.u32 %v5536, %v5539
      %v5541 = vrot.slane %v5540, 4
      %v5543 = vshll.u32 %v5171, 16
      %v5545 = vrot.slane %v5543, 5
      %v5546 = vsel %vm822, %v5541, %v5545
      %v5547 = vshrl.u32 %v5171, 16
      %v5549 = vrot.slane %v5547, 4
      %v5550 = vor.u32 %v5549, %v5545
      %v5551 = vrot.slane %v5550, 4
      %v5553 = vshll.u32 %v5172, 16
      %v5555 = vrot.slane %v5553, 5
      %v5556 = vsel %vm822, %v5551, %v5555
      %v5557 = vunpack.c.l.b16 %v5186
      %v5558 = vunpack.c.l.b16 %v5196
      %v5559 = vunpack.c.l.b16 %v5210
      %v5560 = vunpack.c.l.b16 %v5220
      %v5561 = vunpack.c.l.b16 %v5234
      %v5562 = vunpack.c.l.b16 %v5244
      %v5563 = vunpack.c.l.b16 %v5258
      %v5564 = vunpack.c.l.b16 %v5268
      %v5565 = vunpack.c.l.b16 %v5282
      %v5566 = vunpack.c.l.b16 %v5292
      %v5567 = vunpack.c.l.b16 %v5306
      %v5568 = vunpack.c.l.b16 %v5316
      %v5569 = vunpack.c.l.b16 %v5330
      %v5570 = vunpack.c.l.b16 %v5340
      %v5571 = vunpack.c.l.b16 %v5354
      %v5572 = vunpack.c.l.b16 %v5364
      %v5573 = vunpack.c.l.b16 %v5378
      %v5574 = vunpack.c.l.b16 %v5388
      %v5575 = vunpack.c.l.b16 %v5402
      %v5576 = vunpack.c.l.b16 %v5412
      %v5577 = vunpack.c.l.b16 %v5426
      %v5578 = vunpack.c.l.b16 %v5436
      %v5579 = vunpack.c.l.b16 %v5450
      %v5580 = vunpack.c.l.b16 %v5460
      %v5581 = vunpack.c.l.b16 %v5474
      %v5582 = vunpack.c.l.b16 %v5484
      %v5583 = vunpack.c.l.b16 %v5498
      %v5584 = vunpack.c.l.b16 %v5508
      %v5585 = vunpack.c.l.b16 %v5522
      %v5586 = vunpack.c.l.b16 %v5532
      %v5587 = vunpack.c.l.b16 %v5546
      %v5588 = vunpack.c.l.b16 %v5556
      %v5589 = vpack.c.b16 %v5558, %v5557
      %v5590 = vpack.c.b16 %v5560, %v5559
      %v5591 = vpack.c.b16 %v5562, %v5561
      %v5592 = vpack.c.b16 %v5564, %v5563
      %v5593 = vpack.c.b16 %v5566, %v5565
      %v5594 = vpack.c.b16 %v5568, %v5567
      %v5595 = vpack.c.b16 %v5570, %v5569
      %v5596 = vpack.c.b16 %v5572, %v5571
      %v5597 = vpack.c.b16 %v5574, %v5573
      %v5598 = vpack.c.b16 %v5576, %v5575
      %v5599 = vpack.c.b16 %v5578, %v5577
      %v5600 = vpack.c.b16 %v5580, %v5579
      %v5601 = vpack.c.b16 %v5582, %v5581
      %v5602 = vpack.c.b16 %v5584, %v5583
      %v5603 = vpack.c.b16 %v5586, %v5585
      %v5604 = vpack.c.b16 %v5588, %v5587
      %5621 = vst [vmem:[#allocation3 + $0x4a0] sm:$0xff] %v5589
      %5622 = vst [vmem:[#allocation3 + $0x4e8] sm:$0xff] %v5590
      %5623 = vst [vmem:[#allocation3 + $0x530] sm:$0xff] %v5591
      %5624 = vst [vmem:[#allocation3 + $0x578] sm:$0xff] %v5592
      %5625 = vst [vmem:[#allocation3 + $0x5c0] sm:$0xff] %v5593
      %5626 = vst [vmem:[#allocation3 + $0x608] sm:$0xff] %v5594
      %5627 = vst [vmem:[#allocation3 + $0x650] sm:$0xff] %v5595
      %5628 = vst [vmem:[#allocation3 + $0x698] sm:$0xff] %v5596
      %5629 = vst [vmem:[#allocation3 + $0x6e0] sm:$0xff] %v5597
      %5630 = vst [vmem:[#allocation3 + $0x728] sm:$0xff] %v5598
      %5631 = vst [vmem:[#allocation3 + $0x770] sm:$0xff] %v5599
      %5632 = vst [vmem:[#allocation3 + $0x7b8] sm:$0xff] %v5600
      %5633 = vst [vmem:[#allocation3 + $0x800] sm:$0xff] %v5601
      %5634 = vst [vmem:[#allocation3 + $0x848] sm:$0xff] %v5602
      %5635 = vst [vmem:[#allocation3 + $0x890] sm:$0xff] %v5603
      %5636 = vst [vmem:[#allocation3 + $0x8d8] sm:$0xff] %v5604
      %v5637 = vld [vmem:[%s3475] sm:$0xe]
      %v5638 = vld [vmem:[%s3475 + $0x4] sm:$0xf]
      %v5639 = vld [vmem:[%s3475 + $0x8] sm:$0x1]
      %v5640 = vld [vmem:[%s3475 + $0xc] sm:$0xe]
      %v5641 = vld [vmem:[%s3475 + $0x10] sm:$0xf]
      %v5642 = vld [vmem:[%s3475 + $0x14] sm:$0x1]
      %v5643 = vld [vmem:[%s3475 + $0x18] sm:$0xe]
      %v5644 = vld [vmem:[%s3475 + $0x1c] sm:$0xf]
      %v5645 = vld [vmem:[%s3475 + $0x20] sm:$0x1]
      %v5646 = vld [vmem:[%s3475 + $0x24] sm:$0xe]
      %v5647 = vld [vmem:[%s3475 + $0x28] sm:$0xf]
      %v5648 = vld [vmem:[%s3475 + $0x2c] sm:$0x1]
      %v5649 = vld [vmem:[%s3475 + $0x30] sm:$0xe]
      %v5650 = vld [vmem:[%s3475 + $0x34] sm:$0xf]
      %v5651 = vld [vmem:[%s3475 + $0x38] sm:$0x1]
      %v5652 = vld [vmem:[%s3475 + $0x3c] sm:$0xe]
      %v5653 = vld [vmem:[%s3475 + $0x40] sm:$0xf]
      %v5654 = vld [vmem:[%s3475 + $0x44] sm:$0x1]
      %v5655 = vld [vmem:[%s3475 + $0x48] sm:$0xe]
      %v5656 = vld [vmem:[%s3475 + $0x4c] sm:$0xf]
      %v5657 = vld [vmem:[%s3475 + $0x50] sm:$0x1]
      %v5658 = vld [vmem:[%s3475 + $0x54] sm:$0xe]
      %v5659 = vld [vmem:[%s3475 + $0x58] sm:$0xf]
      %v5660 = vld [vmem:[%s3475 + $0x5c] sm:$0x1]
      %v5661 = vld [vmem:[%s3475 + $0x60] sm:$0xe]
      %v5662 = vld [vmem:[%s3475 + $0x64] sm:$0xf]
      %v5663 = vld [vmem:[%s3475 + $0x68] sm:$0x1]
      %v5664 = vld [vmem:[%s3475 + $0x6c] sm:$0xe]
      %v5665 = vld [vmem:[%s3475 + $0x70] sm:$0xf]
      %v5666 = vld [vmem:[%s3475 + $0x74] sm:$0x1]
      %v5667 = vld [vmem:[%s3475 + $0x78] sm:$0xe]
      %v5668 = vld [vmem:[%s3475 + $0x7c] sm:$0xf]
      %v5669 = vld [vmem:[%s3475 + $0x80] sm:$0x1]
      %v5670 = vld [vmem:[%s3475 + $0x84] sm:$0xe]
      %v5671 = vld [vmem:[%s3475 + $0x88] sm:$0xf]
      %v5672 = vld [vmem:[%s3475 + $0x8c] sm:$0x1]
      %v5673 = vld [vmem:[%s3475 + $0x90] sm:$0xe]
      %v5674 = vld [vmem:[%s3475 + $0x94] sm:$0xf]
      %v5675 = vld [vmem:[%s3475 + $0x98] sm:$0x1]
      %v5676 = vld [vmem:[%s3475 + $0x9c] sm:$0xe]
      %v5677 = vld [vmem:[%s3475 + $0xa0] sm:$0xf]
      %v5678 = vld [vmem:[%s3475 + $0xa4] sm:$0x1]
      %v5679 = vld [vmem:[%s3475 + $0xa8] sm:$0xe]
      %v5680 = vld [vmem:[%s3475 + $0xac] sm:$0xf]
      %v5681 = vld [vmem:[%s3475 + $0xb0] sm:$0x1]
      %v5682 = vld [vmem:[%s3475 + $0xb4] sm:$0xe]
      %v5683 = vld [vmem:[%s3475 + $0xb8] sm:$0xf]
      %v5684 = vld [vmem:[%s3475 + $0xbc] sm:$0x1]
      %v5733 = vrot.slane %v5637, 5
      %v5734 = vrot.slane %v5733, 4
      %v5735 = vrot.slane %v5638, 5
      %v5736 = vsel %vm1385, %v5734, %v5735
      %v5737 = vrot.slane %v5735, 4
      %v5738 = vrot.slane %v5639, 5
      %v5739 = vsel %vm1385, %v5737, %v5738
      %v5740 = vrot.slane %v5640, 5
      %v5741 = vrot.slane %v5740, 4
      %v5742 = vrot.slane %v5641, 5
      %v5743 = vsel %vm1385, %v5741, %v5742
      %v5744 = vrot.slane %v5742, 4
      %v5745 = vrot.slane %v5642, 5
      %v5746 = vsel %vm1385, %v5744, %v5745
      %v5747 = vrot.slane %v5643, 5
      %v5748 = vrot.slane %v5747, 4
      %v5749 = vrot.slane %v5644, 5
      %v5750 = vsel %vm1385, %v5748, %v5749
      %v5751 = vrot.slane %v5749, 4
      %v5752 = vrot.slane %v5645, 5
      %v5753 = vsel %vm1385, %v5751, %v5752
      %v5754 = vrot.slane %v5646, 5
      %v5755 = vrot.slane %v5754, 4
      %v5756 = vrot.slane %v5647, 5
      %v5757 = vsel %vm1385, %v5755, %v5756
      %v5758 = vrot.slane %v5756, 4
      %v5759 = vrot.slane %v5648, 5
      %v5760 = vsel %vm1385, %v5758, %v5759
      %v5761 = vrot.slane %v5649, 5
      %v5762 = vrot.slane %v5761, 4
      %v5763 = vrot.slane %v5650, 5
      %v5764 = vsel %vm1385, %v5762, %v5763
      %v5765 = vrot.slane %v5763, 4
      %v5766 = vrot.slane %v5651, 5
      %v5767 = vsel %vm1385, %v5765, %v5766
      %v5768 = vrot.slane %v5652, 5
      %v5769 = vrot.slane %v5768, 4
      %v5770 = vrot.slane %v5653, 5
      %v5771 = vsel %vm1385, %v5769, %v5770
      %v5772 = vrot.slane %v5770, 4
      %v5773 = vrot.slane %v5654, 5
      %v5774 = vsel %vm1385, %v5772, %v5773
      %v5775 = vrot.slane %v5655, 5
      %v5776 = vrot.slane %v5775, 4
      %v5777 = vrot.slane %v5656, 5
      %v5778 = vsel %vm1385, %v5776, %v5777
      %v5779 = vrot.slane %v5777, 4
      %v5780 = vrot.slane %v5657, 5
      %v5781 = vsel %vm1385, %v5779, %v5780
      %v5782 = vrot.slane %v5658, 5
      %v5783 = vrot.slane %v5782, 4
      %v5784 = vrot.slane %v5659, 5
      %v5785 = vsel %vm1385, %v5783, %v5784
      %v5786 = vrot.slane %v5784, 4
      %v5787 = vrot.slane %v5660, 5
      %v5788 = vsel %vm1385, %v5786, %v5787
      %v5789 = vrot.slane %v5661, 5
      %v5790 = vrot.slane %v5789, 4
      %v5791 = vrot.slane %v5662, 5
      %v5792 = vsel %vm1385, %v5790, %v5791
      %v5793 = vrot.slane %v5791, 4
      %v5794 = vrot.slane %v5663, 5
      %v5795 = vsel %vm1385, %v5793, %v5794
      %v5796 = vrot.slane %v5664, 5
      %v5797 = vrot.slane %v5796, 4
      %v5798 = vrot.slane %v5665, 5
      %v5799 = vsel %vm1385, %v5797, %v5798
      %v5800 = vrot.slane %v5798, 4
      %v5801 = vrot.slane %v5666, 5
      %v5802 = vsel %vm1385, %v5800, %v5801
      %v5803 = vrot.slane %v5667, 5
      %v5804 = vrot.slane %v5803, 4
      %v5805 = vrot.slane %v5668, 5
      %v5806 = vsel %vm1385, %v5804, %v5805
      %v5807 = vrot.slane %v5805, 4
      %v5808 = vrot.slane %v5669, 5
      %v5809 = vsel %vm1385, %v5807, %v5808
      %v5810 = vrot.slane %v5670, 5
      %v5811 = vrot.slane %v5810, 4
      %v5812 = vrot.slane %v5671, 5
      %v5813 = vsel %vm1385, %v5811, %v5812
      %v5814 = vrot.slane %v5812, 4
      %v5815 = vrot.slane %v5672, 5
      %v5816 = vsel %vm1385, %v5814, %v5815
      %v5817 = vrot.slane %v5673, 5
      %v5818 = vrot.slane %v5817, 4
      %v5819 = vrot.slane %v5674, 5
      %v5820 = vsel %vm1385, %v5818, %v5819
      %v5821 = vrot.slane %v5819, 4
      %v5822 = vrot.slane %v5675, 5
      %v5823 = vsel %vm1385, %v5821, %v5822
      %v5824 = vrot.slane %v5676, 5
      %v5825 = vrot.slane %v5824, 4
      %v5826 = vrot.slane %v5677, 5
      %v5827 = vsel %vm1385, %v5825, %v5826
      %v5828 = vrot.slane %v5826, 4
      %v5829 = vrot.slane %v5678, 5
      %v5830 = vsel %vm1385, %v5828, %v5829
      %v5831 = vrot.slane %v5679, 5
      %v5832 = vrot.slane %v5831, 4
      %v5833 = vrot.slane %v5680, 5
      %v5834 = vsel %vm1385, %v5832, %v5833
      %v5835 = vrot.slane %v5833, 4
      %v5836 = vrot.slane %v5681, 5
      %v5837 = vsel %vm1385, %v5835, %v5836
      %v5838 = vrot.slane %v5682, 5
      %v5839 = vrot.slane %v5838, 4
      %v5840 = vrot.slane %v5683, 5
      %v5841 = vsel %vm1385, %v5839, %v5840
      %v5842 = vrot.slane %v5840, 4
      %v5843 = vrot.slane %v5684, 5
      %v5844 = vsel %vm1385, %v5842, %v5843
      %v5845 = vunpack.c.l.b16 %v5736
      %v5846 = vunpack.c.l.b16 %v5739
      %v5847 = vunpack.c.l.b16 %v5743
      %v5848 = vunpack.c.l.b16 %v5746
      %v5849 = vunpack.c.l.b16 %v5750
      %v5850 = vunpack.c.l.b16 %v5753
      %v5851 = vunpack.c.l.b16 %v5757
      %v5852 = vunpack.c.l.b16 %v5760
      %v5853 = vunpack.c.l.b16 %v5764
      %v5854 = vunpack.c.l.b16 %v5767
      %v5855 = vunpack.c.l.b16 %v5771
      %v5856 = vunpack.c.l.b16 %v5774
      %v5857 = vunpack.c.l.b16 %v5778
      %v5858 = vunpack.c.l.b16 %v5781
      %v5859 = vunpack.c.l.b16 %v5785
      %v5860 = vunpack.c.l.b16 %v5788
      %v5861 = vunpack.c.l.b16 %v5792
      %v5862 = vunpack.c.l.b16 %v5795
      %v5863 = vunpack.c.l.b16 %v5799
      %v5864 = vunpack.c.l.b16 %v5802
      %v5865 = vunpack.c.l.b16 %v5806
      %v5866 = vunpack.c.l.b16 %v5809
      %v5867 = vunpack.c.l.b16 %v5813
      %v5868 = vunpack.c.l.b16 %v5816
      %v5869 = vunpack.c.l.b16 %v5820
      %v5870 = vunpack.c.l.b16 %v5823
      %v5871 = vunpack.c.l.b16 %v5827
      %v5872 = vunpack.c.l.b16 %v5830
      %v5873 = vunpack.c.l.b16 %v5834
      %v5874 = vunpack.c.l.b16 %v5837
      %v5875 = vunpack.c.l.b16 %v5841
      %v5876 = vunpack.c.l.b16 %v5844
      %v5877 = vpack.c.b16 %v5846, %v5845
      %v5878 = vpack.c.b16 %v5848, %v5847
      %v5879 = vpack.c.b16 %v5850, %v5849
      %v5880 = vpack.c.b16 %v5852, %v5851
      %v5881 = vpack.c.b16 %v5854, %v5853
      %v5882 = vpack.c.b16 %v5856, %v5855
      %v5883 = vpack.c.b16 %v5858, %v5857
      %v5884 = vpack.c.b16 %v5860, %v5859
      %v5885 = vpack.c.b16 %v5862, %v5861
      %v5886 = vpack.c.b16 %v5864, %v5863
      %v5887 = vpack.c.b16 %v5866, %v5865
      %v5888 = vpack.c.b16 %v5868, %v5867
      %v5889 = vpack.c.b16 %v5870, %v5869
      %v5890 = vpack.c.b16 %v5872, %v5871
      %v5891 = vpack.c.b16 %v5874, %v5873
      %v5892 = vpack.c.b16 %v5876, %v5875
      %5909 = vst [vmem:[#allocation3 + $0x4a8] sm:$0xff] %v5877
      %5910 = vst [vmem:[#allocation3 + $0x4f0] sm:$0xff] %v5878
      %5911 = vst [vmem:[#allocation3 + $0x538] sm:$0xff] %v5879
      %5912 = vst [vmem:[#allocation3 + $0x580] sm:$0xff] %v5880
      %5913 = vst [vmem:[#allocation3 + $0x5c8] sm:$0xff] %v5881
      %5914 = vst [vmem:[#allocation3 + $0x610] sm:$0xff] %v5882
      %5915 = vst [vmem:[#allocation3 + $0x658] sm:$0xff] %v5883
      %5916 = vst [vmem:[#allocation3 + $0x6a0] sm:$0xff] %v5884
      %5917 = vst [vmem:[#allocation3 + $0x6e8] sm:$0xff] %v5885
      %5918 = vst [vmem:[#allocation3 + $0x730] sm:$0xff] %v5886
      %5919 = vst [vmem:[#allocation3 + $0x778] sm:$0xff] %v5887
      %5920 = vst [vmem:[#allocation3 + $0x7c0] sm:$0xff] %v5888
      %5921 = vst [vmem:[#allocation3 + $0x808] sm:$0xff] %v5889
      %5922 = vst [vmem:[#allocation3 + $0x850] sm:$0xff] %v5890
      %5923 = vst [vmem:[#allocation3 + $0x898] sm:$0xff] %v5891
      %5924 = vst [vmem:[#allocation3 + $0x8e0] sm:$0xff] %v5892
      %s5925 = scalar_lea.vmem [#allocation2], 240
      %v5926 = vld [vmem:[%s5925] sm:$0xf]
      %v5927 = vld [vmem:[%s5925 + $0x4] sm:$0xf]
      %v5928 = vld [vmem:[%s5925 + $0xc] sm:$0xf]
      %v5929 = vld [vmem:[%s5925 + $0x10] sm:$0xf]
      %v5930 = vld [vmem:[%s5925 + $0x18] sm:$0xf]
      %v5931 = vld [vmem:[%s5925 + $0x1c] sm:$0xf]
      %v5932 = vld [vmem:[%s5925 + $0x24] sm:$0xf]
      %v5933 = vld [vmem:[%s5925 + $0x28] sm:$0xf]
      %v5934 = vld [vmem:[%s5925 + $0x30] sm:$0xf]
      %v5935 = vld [vmem:[%s5925 + $0x34] sm:$0xf]
      %v5936 = vld [vmem:[%s5925 + $0x3c] sm:$0xf]
      %v5937 = vld [vmem:[%s5925 + $0x40] sm:$0xf]
      %v5938 = vld [vmem:[%s5925 + $0x48] sm:$0xf]
      %v5939 = vld [vmem:[%s5925 + $0x4c] sm:$0xf]
      %v5940 = vld [vmem:[%s5925 + $0x54] sm:$0xf]
      %v5941 = vld [vmem:[%s5925 + $0x58] sm:$0xf]
      %v5942 = vld [vmem:[%s5925 + $0x60] sm:$0xf]
      %v5943 = vld [vmem:[%s5925 + $0x64] sm:$0xf]
      %v5944 = vld [vmem:[%s5925 + $0x6c] sm:$0xf]
      %v5945 = vld [vmem:[%s5925 + $0x70] sm:$0xf]
      %v5946 = vld [vmem:[%s5925 + $0x78] sm:$0xf]
      %v5947 = vld [vmem:[%s5925 + $0x7c] sm:$0xf]
      %v5948 = vld [vmem:[%s5925 + $0x84] sm:$0xf]
      %v5949 = vld [vmem:[%s5925 + $0x88] sm:$0xf]
      %v5950 = vld [vmem:[%s5925 + $0x90] sm:$0xf]
      %v5951 = vld [vmem:[%s5925 + $0x94] sm:$0xf]
      %v5952 = vld [vmem:[%s5925 + $0x9c] sm:$0xf]
      %v5953 = vld [vmem:[%s5925 + $0xa0] sm:$0xf]
      %v5954 = vld [vmem:[%s5925 + $0xa8] sm:$0xf]
      %v5955 = vld [vmem:[%s5925 + $0xac] sm:$0xf]
      %v5956 = vld [vmem:[%s5925 + $0xb4] sm:$0xf]
      %v5957 = vld [vmem:[%s5925 + $0xb8] sm:$0xf]
      %v5990 = vunpack.c.l.b16 %v5926
      %v5991 = vunpack.c.l.b16 %v5927
      %v5992 = vunpack.c.l.b16 %v5928
      %v5993 = vunpack.c.l.b16 %v5929
      %v5994 = vunpack.c.l.b16 %v5930
      %v5995 = vunpack.c.l.b16 %v5931
      %v5996 = vunpack.c.l.b16 %v5932
      %v5997 = vunpack.c.l.b16 %v5933
      %v5998 = vunpack.c.l.b16 %v5934
      %v5999 = vunpack.c.l.b16 %v5935
      %v6000 = vunpack.c.l.b16 %v5936
      %v6001 = vunpack.c.l.b16 %v5937
      %v6002 = vunpack.c.l.b16 %v5938
      %v6003 = vunpack.c.l.b16 %v5939
      %v6004 = vunpack.c.l.b16 %v5940
      %v6005 = vunpack.c.l.b16 %v5941
      %v6006 = vunpack.c.l.b16 %v5942
      %v6007 = vunpack.c.l.b16 %v5943
      %v6008 = vunpack.c.l.b16 %v5944
      %v6009 = vunpack.c.l.b16 %v5945
      %v6010 = vunpack.c.l.b16 %v5946
      %v6011 = vunpack.c.l.b16 %v5947
      %v6012 = vunpack.c.l.b16 %v5948
      %v6013 = vunpack.c.l.b16 %v5949
      %v6014 = vunpack.c.l.b16 %v5950
      %v6015 = vunpack.c.l.b16 %v5951
      %v6016 = vunpack.c.l.b16 %v5952
      %v6017 = vunpack.c.l.b16 %v5953
      %v6018 = vunpack.c.l.b16 %v5954
      %v6019 = vunpack.c.l.b16 %v5955
      %v6020 = vunpack.c.l.b16 %v5956
      %v6021 = vunpack.c.l.b16 %v5957
      %v6022 = vpack.c.b16 %v5991, %v5990
      %v6023 = vpack.c.b16 %v5993, %v5992
      %v6024 = vpack.c.b16 %v5995, %v5994
      %v6025 = vpack.c.b16 %v5997, %v5996
      %v6026 = vpack.c.b16 %v5999, %v5998
      %v6027 = vpack.c.b16 %v6001, %v6000
      %v6028 = vpack.c.b16 %v6003, %v6002
      %v6029 = vpack.c.b16 %v6005, %v6004
      %v6030 = vpack.c.b16 %v6007, %v6006
      %v6031 = vpack.c.b16 %v6009, %v6008
      %v6032 = vpack.c.b16 %v6011, %v6010
      %v6033 = vpack.c.b16 %v6013, %v6012
      %v6034 = vpack.c.b16 %v6015, %v6014
      %v6035 = vpack.c.b16 %v6017, %v6016
      %v6036 = vpack.c.b16 %v6019, %v6018
      %v6037 = vpack.c.b16 %v6021, %v6020
      %6054 = vst [vmem:[#allocation3 + $0x4b0] sm:$0xff] %v6022
      %6055 = vst [vmem:[#allocation3 + $0x4f8] sm:$0xff] %v6023
      %6056 = vst [vmem:[#allocation3 + $0x540] sm:$0xff] %v6024
      %6057 = vst [vmem:[#allocation3 + $0x588] sm:$0xff] %v6025
      %6058 = vst [vmem:[#allocation3 + $0x5d0] sm:$0xff] %v6026
      %6059 = vst [vmem:[#allocation3 + $0x618] sm:$0xff] %v6027
      %6060 = vst [vmem:[#allocation3 + $0x660] sm:$0xff] %v6028
      %6061 = vst [vmem:[#allocation3 + $0x6a8] sm:$0xff] %v6029
      %6062 = vst [vmem:[#allocation3 + $0x6f0] sm:$0xff] %v6030
      %6063 = vst [vmem:[#allocation3 + $0x738] sm:$0xff] %v6031
      %6064 = vst [vmem:[#allocation3 + $0x780] sm:$0xff] %v6032
      %6065 = vst [vmem:[#allocation3 + $0x7c8] sm:$0xff] %v6033
      %6066 = vst [vmem:[#allocation3 + $0x810] sm:$0xff] %v6034
      %6067 = vst [vmem:[#allocation3 + $0x858] sm:$0xff] %v6035
      %6068 = vst [vmem:[#allocation3 + $0x8a0] sm:$0xff] %v6036
      %6069 = vst [vmem:[#allocation3 + $0x8e8] sm:$0xff] %v6037
      %v6070 = vld [vmem:[%s5925] sm:$0xf]
      %v6071 = vld [vmem:[%s5925 + $0x4] sm:$0xf]
      %v6072 = vld [vmem:[%s5925 + $0x8] sm:$0x1]
      %v6073 = vld [vmem:[%s5925 + $0xc] sm:$0xf]
      %v6074 = vld [vmem:[%s5925 + $0x10] sm:$0xf]
      %v6075 = vld [vmem:[%s5925 + $0x14] sm:$0x1]
      %v6076 = vld [vmem:[%s5925 + $0x18] sm:$0xf]
      %v6077 = vld [vmem:[%s5925 + $0x1c] sm:$0xf]
      %v6078 = vld [vmem:[%s5925 + $0x20] sm:$0x1]
      %v6079 = vld [vmem:[%s5925 + $0x24] sm:$0xf]
      %v6080 = vld [vmem:[%s5925 + $0x28] sm:$0xf]
      %v6081 = vld [vmem:[%s5925 + $0x2c] sm:$0x1]
      %v6082 = vld [vmem:[%s5925 + $0x30] sm:$0xf]
      %v6083 = vld [vmem:[%s5925 + $0x34] sm:$0xf]
      %v6084 = vld [vmem:[%s5925 + $0x38] sm:$0x1]
      %v6085 = vld [vmem:[%s5925 + $0x3c] sm:$0xf]
      %v6086 = vld [vmem:[%s5925 + $0x40] sm:$0xf]
      %v6087 = vld [vmem:[%s5925 + $0x44] sm:$0x1]
      %v6088 = vld [vmem:[%s5925 + $0x48] sm:$0xf]
      %v6089 = vld [vmem:[%s5925 + $0x4c] sm:$0xf]
      %v6090 = vld [vmem:[%s5925 + $0x50] sm:$0x1]
      %v6091 = vld [vmem:[%s5925 + $0x54] sm:$0xf]
      %v6092 = vld [vmem:[%s5925 + $0x58] sm:$0xf]
      %v6093 = vld [vmem:[%s5925 + $0x5c] sm:$0x1]
      %v6094 = vld [vmem:[%s5925 + $0x60] sm:$0xf]
      %v6095 = vld [vmem:[%s5925 + $0x64] sm:$0xf]
      %v6096 = vld [vmem:[%s5925 + $0x68] sm:$0x1]
      %v6097 = vld [vmem:[%s5925 + $0x6c] sm:$0xf]
      %v6098 = vld [vmem:[%s5925 + $0x70] sm:$0xf]
      %v6099 = vld [vmem:[%s5925 + $0x74] sm:$0x1]
      %v6100 = vld [vmem:[%s5925 + $0x78] sm:$0xf]
      %v6101 = vld [vmem:[%s5925 + $0x7c] sm:$0xf]
      %v6102 = vld [vmem:[%s5925 + $0x80] sm:$0x1]
      %v6103 = vld [vmem:[%s5925 + $0x84] sm:$0xf]
      %v6104 = vld [vmem:[%s5925 + $0x88] sm:$0xf]
      %v6105 = vld [vmem:[%s5925 + $0x8c] sm:$0x1]
      %v6106 = vld [vmem:[%s5925 + $0x90] sm:$0xf]
      %v6107 = vld [vmem:[%s5925 + $0x94] sm:$0xf]
      %v6108 = vld [vmem:[%s5925 + $0x98] sm:$0x1]
      %v6109 = vld [vmem:[%s5925 + $0x9c] sm:$0xf]
      %v6110 = vld [vmem:[%s5925 + $0xa0] sm:$0xf]
      %v6111 = vld [vmem:[%s5925 + $0xa4] sm:$0x1]
      %v6112 = vld [vmem:[%s5925 + $0xa8] sm:$0xf]
      %v6113 = vld [vmem:[%s5925 + $0xac] sm:$0xf]
      %v6114 = vld [vmem:[%s5925 + $0xb0] sm:$0x1]
      %v6115 = vld [vmem:[%s5925 + $0xb4] sm:$0xf]
      %v6116 = vld [vmem:[%s5925 + $0xb8] sm:$0xf]
      %v6117 = vld [vmem:[%s5925 + $0xbc] sm:$0x1]
      %v6119 = vshrl.u32 %v6070, 16
      %v6121 = vrot.slane %v6119, 4
      %v6122 = vshll.u32 %v6070, 16
      %v6124 = vrot.slane %v6122, 5
      %v6125 = vor.u32 %v6121, %v6124
      %v6126 = vrot.slane %v6125, 4
      %v6128 = vshll.u32 %v6071, 16
      %v6130 = vrot.slane %v6128, 5
      %v6131 = vsel %vm822, %v6126, %v6130
      %v6132 = vshrl.u32 %v6071, 16
      %v6134 = vrot.slane %v6132, 4
      %v6135 = vor.u32 %v6134, %v6130
      %v6136 = vrot.slane %v6135, 4
      %v6138 = vshll.u32 %v6072, 16
      %v6140 = vrot.slane %v6138, 5
      %v6141 = vsel %vm822, %v6136, %v6140
      %v6143 = vshrl.u32 %v6073, 16
      %v6145 = vrot.slane %v6143, 4
      %v6146 = vshll.u32 %v6073, 16
      %v6148 = vrot.slane %v6146, 5
      %v6149 = vor.u32 %v6145, %v6148
      %v6150 = vrot.slane %v6149, 4
      %v6152 = vshll.u32 %v6074, 16
      %v6154 = vrot.slane %v6152, 5
      %v6155 = vsel %vm822, %v6150, %v6154
      %v6156 = vshrl.u32 %v6074, 16
      %v6158 = vrot.slane %v6156, 4
      %v6159 = vor.u32 %v6158, %v6154
      %v6160 = vrot.slane %v6159, 4
      %v6162 = vshll.u32 %v6075, 16
      %v6164 = vrot.slane %v6162, 5
      %v6165 = vsel %vm822, %v6160, %v6164
      %v6167 = vshrl.u32 %v6076, 16
      %v6169 = vrot.slane %v6167, 4
      %v6170 = vshll.u32 %v6076, 16
      %v6172 = vrot.slane %v6170, 5
      %v6173 = vor.u32 %v6169, %v6172
      %v6174 = vrot.slane %v6173, 4
      %v6176 = vshll.u32 %v6077, 16
      %v6178 = vrot.slane %v6176, 5
      %v6179 = vsel %vm822, %v6174, %v6178
      %v6180 = vshrl.u32 %v6077, 16
      %v6182 = vrot.slane %v6180, 4
      %v6183 = vor.u32 %v6182, %v6178
      %v6184 = vrot.slane %v6183, 4
      %v6186 = vshll.u32 %v6078, 16
      %v6188 = vrot.slane %v6186, 5
      %v6189 = vsel %vm822, %v6184, %v6188
      %v6191 = vshrl.u32 %v6079, 16
      %v6193 = vrot.slane %v6191, 4
      %v6194 = vshll.u32 %v6079, 16
      %v6196 = vrot.slane %v6194, 5
      %v6197 = vor.u32 %v6193, %v6196
      %v6198 = vrot.slane %v6197, 4
      %v6200 = vshll.u32 %v6080, 16
      %v6202 = vrot.slane %v6200, 5
      %v6203 = vsel %vm822, %v6198, %v6202
      %v6204 = vshrl.u32 %v6080, 16
      %v6206 = vrot.slane %v6204, 4
      %v6207 = vor.u32 %v6206, %v6202
      %v6208 = vrot.slane %v6207, 4
      %v6210 = vshll.u32 %v6081, 16
      %v6212 = vrot.slane %v6210, 5
      %v6213 = vsel %vm822, %v6208, %v6212
      %v6215 = vshrl.u32 %v6082, 16
      %v6217 = vrot.slane %v6215, 4
      %v6218 = vshll.u32 %v6082, 16
      %v6220 = vrot.slane %v6218, 5
      %v6221 = vor.u32 %v6217, %v6220
      %v6222 = vrot.slane %v6221, 4
      %v6224 = vshll.u32 %v6083, 16
      %v6226 = vrot.slane %v6224, 5
      %v6227 = vsel %vm822, %v6222, %v6226
      %v6228 = vshrl.u32 %v6083, 16
      %v6230 = vrot.slane %v6228, 4
      %v6231 = vor.u32 %v6230, %v6226
      %v6232 = vrot.slane %v6231, 4
      %v6234 = vshll.u32 %v6084, 16
      %v6236 = vrot.slane %v6234, 5
      %v6237 = vsel %vm822, %v6232, %v6236
      %v6239 = vshrl.u32 %v6085, 16
      %v6241 = vrot.slane %v6239, 4
      %v6242 = vshll.u32 %v6085, 16
      %v6244 = vrot.slane %v6242, 5
      %v6245 = vor.u32 %v6241, %v6244
      %v6246 = vrot.slane %v6245, 4
      %v6248 = vshll.u32 %v6086, 16
      %v6250 = vrot.slane %v6248, 5
      %v6251 = vsel %vm822, %v6246, %v6250
      %v6252 = vshrl.u32 %v6086, 16
      %v6254 = vrot.slane %v6252, 4
      %v6255 = vor.u32 %v6254, %v6250
      %v6256 = vrot.slane %v6255, 4
      %v6258 = vshll.u32 %v6087, 16
      %v6260 = vrot.slane %v6258, 5
      %v6261 = vsel %vm822, %v6256, %v6260
      %v6263 = vshrl.u32 %v6088, 16
      %v6265 = vrot.slane %v6263, 4
      %v6266 = vshll.u32 %v6088, 16
      %v6268 = vrot.slane %v6266, 5
      %v6269 = vor.u32 %v6265, %v6268
      %v6270 = vrot.slane %v6269, 4
      %v6272 = vshll.u32 %v6089, 16
      %v6274 = vrot.slane %v6272, 5
      %v6275 = vsel %vm822, %v6270, %v6274
      %v6276 = vshrl.u32 %v6089, 16
      %v6278 = vrot.slane %v6276, 4
      %v6279 = vor.u32 %v6278, %v6274
      %v6280 = vrot.slane %v6279, 4
      %v6282 = vshll.u32 %v6090, 16
      %v6284 = vrot.slane %v6282, 5
      %v6285 = vsel %vm822, %v6280, %v6284
      %v6287 = vshrl.u32 %v6091, 16
      %v6289 = vrot.slane %v6287, 4
      %v6290 = vshll.u32 %v6091, 16
      %v6292 = vrot.slane %v6290, 5
      %v6293 = vor.u32 %v6289, %v6292
      %v6294 = vrot.slane %v6293, 4
      %v6296 = vshll.u32 %v6092, 16
      %v6298 = vrot.slane %v6296, 5
      %v6299 = vsel %vm822, %v6294, %v6298
      %v6300 = vshrl.u32 %v6092, 16
      %v6302 = vrot.slane %v6300, 4
      %v6303 = vor.u32 %v6302, %v6298
      %v6304 = vrot.slane %v6303, 4
      %v6306 = vshll.u32 %v6093, 16
      %v6308 = vrot.slane %v6306, 5
      %v6309 = vsel %vm822, %v6304, %v6308
      %v6311 = vshrl.u32 %v6094, 16
      %v6313 = vrot.slane %v6311, 4
      %v6314 = vshll.u32 %v6094, 16
      %v6316 = vrot.slane %v6314, 5
      %v6317 = vor.u32 %v6313, %v6316
      %v6318 = vrot.slane %v6317, 4
      %v6320 = vshll.u32 %v6095, 16
      %v6322 = vrot.slane %v6320, 5
      %v6323 = vsel %vm822, %v6318, %v6322
      %v6324 = vshrl.u32 %v6095, 16
      %v6326 = vrot.slane %v6324, 4
      %v6327 = vor.u32 %v6326, %v6322
      %v6328 = vrot.slane %v6327, 4
      %v6330 = vshll.u32 %v6096, 16
      %v6332 = vrot.slane %v6330, 5
      %v6333 = vsel %vm822, %v6328, %v6332
      %v6335 = vshrl.u32 %v6097, 16
      %v6337 = vrot.slane %v6335, 4
      %v6338 = vshll.u32 %v6097, 16
      %v6340 = vrot.slane %v6338, 5
      %v6341 = vor.u32 %v6337, %v6340
      %v6342 = vrot.slane %v6341, 4
      %v6344 = vshll.u32 %v6098, 16
      %v6346 = vrot.slane %v6344, 5
      %v6347 = vsel %vm822, %v6342, %v6346
      %v6348 = vshrl.u32 %v6098, 16
      %v6350 = vrot.slane %v6348, 4
      %v6351 = vor.u32 %v6350, %v6346
      %v6352 = vrot.slane %v6351, 4
      %v6354 = vshll.u32 %v6099, 16
      %v6356 = vrot.slane %v6354, 5
      %v6357 = vsel %vm822, %v6352, %v6356
      %v6359 = vshrl.u32 %v6100, 16
      %v6361 = vrot.slane %v6359, 4
      %v6362 = vshll.u32 %v6100, 16
      %v6364 = vrot.slane %v6362, 5
      %v6365 = vor.u32 %v6361, %v6364
      %v6366 = vrot.slane %v6365, 4
      %v6368 = vshll.u32 %v6101, 16
      %v6370 = vrot.slane %v6368, 5
      %v6371 = vsel %vm822, %v6366, %v6370
      %v6372 = vshrl.u32 %v6101, 16
      %v6374 = vrot.slane %v6372, 4
      %v6375 = vor.u32 %v6374, %v6370
      %v6376 = vrot.slane %v6375, 4
      %v6378 = vshll.u32 %v6102, 16
      %v6380 = vrot.slane %v6378, 5
      %v6381 = vsel %vm822, %v6376, %v6380
      %v6383 = vshrl.u32 %v6103, 16
      %v6385 = vrot.slane %v6383, 4
      %v6386 = vshll.u32 %v6103, 16
      %v6388 = vrot.slane %v6386, 5
      %v6389 = vor.u32 %v6385, %v6388
      %v6390 = vrot.slane %v6389, 4
      %v6392 = vshll.u32 %v6104, 16
      %v6394 = vrot.slane %v6392, 5
      %v6395 = vsel %vm822, %v6390, %v6394
      %v6396 = vshrl.u32 %v6104, 16
      %v6398 = vrot.slane %v6396, 4
      %v6399 = vor.u32 %v6398, %v6394
      %v6400 = vrot.slane %v6399, 4
      %v6402 = vshll.u32 %v6105, 16
      %v6404 = vrot.slane %v6402, 5
      %v6405 = vsel %vm822, %v6400, %v6404
      %v6407 = vshrl.u32 %v6106, 16
      %v6409 = vrot.slane %v6407, 4
      %v6410 = vshll.u32 %v6106, 16
      %v6412 = vrot.slane %v6410, 5
      %v6413 = vor.u32 %v6409, %v6412
      %v6414 = vrot.slane %v6413, 4
      %v6416 = vshll.u32 %v6107, 16
      %v6418 = vrot.slane %v6416, 5
      %v6419 = vsel %vm822, %v6414, %v6418
      %v6420 = vshrl.u32 %v6107, 16
      %v6422 = vrot.slane %v6420, 4
      %v6423 = vor.u32 %v6422, %v6418
      %v6424 = vrot.slane %v6423, 4
      %v6426 = vshll.u32 %v6108, 16
      %v6428 = vrot.slane %v6426, 5
      %v6429 = vsel %vm822, %v6424, %v6428
      %v6431 = vshrl.u32 %v6109, 16
      %v6433 = vrot.slane %v6431, 4
      %v6434 = vshll.u32 %v6109, 16
      %v6436 = vrot.slane %v6434, 5
      %v6437 = vor.u32 %v6433, %v6436
      %v6438 = vrot.slane %v6437, 4
      %v6440 = vshll.u32 %v6110, 16
      %v6442 = vrot.slane %v6440, 5
      %v6443 = vsel %vm822, %v6438, %v6442
      %v6444 = vshrl.u32 %v6110, 16
      %v6446 = vrot.slane %v6444, 4
      %v6447 = vor.u32 %v6446, %v6442
      %v6448 = vrot.slane %v6447, 4
      %v6450 = vshll.u32 %v6111, 16
      %v6452 = vrot.slane %v6450, 5
      %v6453 = vsel %vm822, %v6448, %v6452
      %v6455 = vshrl.u32 %v6112, 16
      %v6457 = vrot.slane %v6455, 4
      %v6458 = vshll.u32 %v6112, 16
      %v6460 = vrot.slane %v6458, 5
      %v6461 = vor.u32 %v6457, %v6460
      %v6462 = vrot.slane %v6461, 4
      %v6464 = vshll.u32 %v6113, 16
      %v6466 = vrot.slane %v6464, 5
      %v6467 = vsel %vm822, %v6462, %v6466
      %v6468 = vshrl.u32 %v6113, 16
      %v6470 = vrot.slane %v6468, 4
      %v6471 = vor.u32 %v6470, %v6466
      %v6472 = vrot.slane %v6471, 4
      %v6474 = vshll.u32 %v6114, 16
      %v6476 = vrot.slane %v6474, 5
      %v6477 = vsel %vm822, %v6472, %v6476
      %v6479 = vshrl.u32 %v6115, 16
      %v6481 = vrot.slane %v6479, 4
      %v6482 = vshll.u32 %v6115, 16
      %v6484 = vrot.slane %v6482, 5
      %v6485 = vor.u32 %v6481, %v6484
      %v6486 = vrot.slane %v6485, 4
      %v6488 = vshll.u32 %v6116, 16
      %v6490 = vrot.slane %v6488, 5
      %v6491 = vsel %vm822, %v6486, %v6490
      %v6492 = vshrl.u32 %v6116, 16
      %v6494 = vrot.slane %v6492, 4
      %v6495 = vor.u32 %v6494, %v6490
      %v6496 = vrot.slane %v6495, 4
      %v6498 = vshll.u32 %v6117, 16
      %v6500 = vrot.slane %v6498, 5
      %v6501 = vsel %vm822, %v6496, %v6500
      %v6502 = vunpack.c.l.b16 %v6131
      %v6503 = vunpack.c.l.b16 %v6141
      %v6504 = vunpack.c.l.b16 %v6155
      %v6505 = vunpack.c.l.b16 %v6165
      %v6506 = vunpack.c.l.b16 %v6179
      %v6507 = vunpack.c.l.b16 %v6189
      %v6508 = vunpack.c.l.b16 %v6203
      %v6509 = vunpack.c.l.b16 %v6213
      %v6510 = vunpack.c.l.b16 %v6227
      %v6511 = vunpack.c.l.b16 %v6237
      %v6512 = vunpack.c.l.b16 %v6251
      %v6513 = vunpack.c.l.b16 %v6261
      %v6514 = vunpack.c.l.b16 %v6275
      %v6515 = vunpack.c.l.b16 %v6285
      %v6516 = vunpack.c.l.b16 %v6299
      %v6517 = vunpack.c.l.b16 %v6309
      %v6518 = vunpack.c.l.b16 %v6323
      %v6519 = vunpack.c.l.b16 %v6333
      %v6520 = vunpack.c.l.b16 %v6347
      %v6521 = vunpack.c.l.b16 %v6357
      %v6522 = vunpack.c.l.b16 %v6371
      %v6523 = vunpack.c.l.b16 %v6381
      %v6524 = vunpack.c.l.b16 %v6395
      %v6525 = vunpack.c.l.b16 %v6405
      %v6526 = vunpack.c.l.b16 %v6419
      %v6527 = vunpack.c.l.b16 %v6429
      %v6528 = vunpack.c.l.b16 %v6443
      %v6529 = vunpack.c.l.b16 %v6453
      %v6530 = vunpack.c.l.b16 %v6467
      %v6531 = vunpack.c.l.b16 %v6477
      %v6532 = vunpack.c.l.b16 %v6491
      %v6533 = vunpack.c.l.b16 %v6501
      %v6534 = vpack.c.b16 %v6503, %v6502
      %v6535 = vpack.c.b16 %v6505, %v6504
      %v6536 = vpack.c.b16 %v6507, %v6506
      %v6537 = vpack.c.b16 %v6509, %v6508
      %v6538 = vpack.c.b16 %v6511, %v6510
      %v6539 = vpack.c.b16 %v6513, %v6512
      %v6540 = vpack.c.b16 %v6515, %v6514
      %v6541 = vpack.c.b16 %v6517, %v6516
      %v6542 = vpack.c.b16 %v6519, %v6518
      %v6543 = vpack.c.b16 %v6521, %v6520
      %v6544 = vpack.c.b16 %v6523, %v6522
      %v6545 = vpack.c.b16 %v6525, %v6524
      %v6546 = vpack.c.b16 %v6527, %v6526
      %v6547 = vpack.c.b16 %v6529, %v6528
      %v6548 = vpack.c.b16 %v6531, %v6530
      %v6549 = vpack.c.b16 %v6533, %v6532
      %6566 = vst [vmem:[#allocation3 + $0x4b8] sm:$0xff] %v6534
      %6567 = vst [vmem:[#allocation3 + $0x500] sm:$0xff] %v6535
      %6568 = vst [vmem:[#allocation3 + $0x548] sm:$0xff] %v6536
      %6569 = vst [vmem:[#allocation3 + $0x590] sm:$0xff] %v6537
      %6570 = vst [vmem:[#allocation3 + $0x5d8] sm:$0xff] %v6538
      %6571 = vst [vmem:[#allocation3 + $0x620] sm:$0xff] %v6539
      %6572 = vst [vmem:[#allocation3 + $0x668] sm:$0xff] %v6540
      %6573 = vst [vmem:[#allocation3 + $0x6b0] sm:$0xff] %v6541
      %6574 = vst [vmem:[#allocation3 + $0x6f8] sm:$0xff] %v6542
      %6575 = vst [vmem:[#allocation3 + $0x740] sm:$0xff] %v6543
      %6576 = vst [vmem:[#allocation3 + $0x788] sm:$0xff] %v6544
      %6577 = vst [vmem:[#allocation3 + $0x7d0] sm:$0xff] %v6545
      %6578 = vst [vmem:[#allocation3 + $0x818] sm:$0xff] %v6546
      %6579 = vst [vmem:[#allocation3 + $0x860] sm:$0xff] %v6547
      %6580 = vst [vmem:[#allocation3 + $0x8a8] sm:$0xff] %v6548
      %6581 = vst [vmem:[#allocation3 + $0x8f0] sm:$0xff] %v6549
      %v6582 = vld [vmem:[%s5925] sm:$0xe]
      %v6583 = vld [vmem:[%s5925 + $0x4] sm:$0xf]
      %v6584 = vld [vmem:[%s5925 + $0x8] sm:$0x1]
      %v6585 = vld [vmem:[%s5925 + $0xc] sm:$0xe]
      %v6586 = vld [vmem:[%s5925 + $0x10] sm:$0xf]
      %v6587 = vld [vmem:[%s5925 + $0x14] sm:$0x1]
      %v6588 = vld [vmem:[%s5925 + $0x18] sm:$0xe]
      %v6589 = vld [vmem:[%s5925 + $0x1c] sm:$0xf]
      %v6590 = vld [vmem:[%s5925 + $0x20] sm:$0x1]
      %v6591 = vld [vmem:[%s5925 + $0x24] sm:$0xe]
      %v6592 = vld [vmem:[%s5925 + $0x28] sm:$0xf]
      %v6593 = vld [vmem:[%s5925 + $0x2c] sm:$0x1]
      %v6594 = vld [vmem:[%s5925 + $0x30] sm:$0xe]
      %v6595 = vld [vmem:[%s5925 + $0x34] sm:$0xf]
      %v6596 = vld [vmem:[%s5925 + $0x38] sm:$0x1]
      %v6597 = vld [vmem:[%s5925 + $0x3c] sm:$0xe]
      %v6598 = vld [vmem:[%s5925 + $0x40] sm:$0xf]
      %v6599 = vld [vmem:[%s5925 + $0x44] sm:$0x1]
      %v6600 = vld [vmem:[%s5925 + $0x48] sm:$0xe]
      %v6601 = vld [vmem:[%s5925 + $0x4c] sm:$0xf]
      %v6602 = vld [vmem:[%s5925 + $0x50] sm:$0x1]
      %v6603 = vld [vmem:[%s5925 + $0x54] sm:$0xe]
      %v6604 = vld [vmem:[%s5925 + $0x58] sm:$0xf]
      %v6605 = vld [vmem:[%s5925 + $0x5c] sm:$0x1]
      %v6606 = vld [vmem:[%s5925 + $0x60] sm:$0xe]
      %v6607 = vld [vmem:[%s5925 + $0x64] sm:$0xf]
      %v6608 = vld [vmem:[%s5925 + $0x68] sm:$0x1]
      %v6609 = vld [vmem:[%s5925 + $0x6c] sm:$0xe]
      %v6610 = vld [vmem:[%s5925 + $0x70] sm:$0xf]
      %v6611 = vld [vmem:[%s5925 + $0x74] sm:$0x1]
      %v6612 = vld [vmem:[%s5925 + $0x78] sm:$0xe]
      %v6613 = vld [vmem:[%s5925 + $0x7c] sm:$0xf]
      %v6614 = vld [vmem:[%s5925 + $0x80] sm:$0x1]
      %v6615 = vld [vmem:[%s5925 + $0x84] sm:$0xe]
      %v6616 = vld [vmem:[%s5925 + $0x88] sm:$0xf]
      %v6617 = vld [vmem:[%s5925 + $0x8c] sm:$0x1]
      %v6618 = vld [vmem:[%s5925 + $0x90] sm:$0xe]
      %v6619 = vld [vmem:[%s5925 + $0x94] sm:$0xf]
      %v6620 = vld [vmem:[%s5925 + $0x98] sm:$0x1]
      %v6621 = vld [vmem:[%s5925 + $0x9c] sm:$0xe]
      %v6622 = vld [vmem:[%s5925 + $0xa0] sm:$0xf]
      %v6623 = vld [vmem:[%s5925 + $0xa4] sm:$0x1]
      %v6624 = vld [vmem:[%s5925 + $0xa8] sm:$0xe]
      %v6625 = vld [vmem:[%s5925 + $0xac] sm:$0xf]
      %v6626 = vld [vmem:[%s5925 + $0xb0] sm:$0x1]
      %v6627 = vld [vmem:[%s5925 + $0xb4] sm:$0xe]
      %v6628 = vld [vmem:[%s5925 + $0xb8] sm:$0xf]
      %v6629 = vld [vmem:[%s5925 + $0xbc] sm:$0x1]
      %v6678 = vrot.slane %v6582, 5
      %v6679 = vrot.slane %v6678, 4
      %v6680 = vrot.slane %v6583, 5
      %v6681 = vsel %vm1385, %v6679, %v6680
      %v6682 = vrot.slane %v6680, 4
      %v6683 = vrot.slane %v6584, 5
      %v6684 = vsel %vm1385, %v6682, %v6683
      %v6685 = vrot.slane %v6585, 5
      %v6686 = vrot.slane %v6685, 4
      %v6687 = vrot.slane %v6586, 5
      %v6688 = vsel %vm1385, %v6686, %v6687
      %v6689 = vrot.slane %v6687, 4
      %v6690 = vrot.slane %v6587, 5
      %v6691 = vsel %vm1385, %v6689, %v6690
      %v6692 = vrot.slane %v6588, 5
      %v6693 = vrot.slane %v6692, 4
      %v6694 = vrot.slane %v6589, 5
      %v6695 = vsel %vm1385, %v6693, %v6694
      %v6696 = vrot.slane %v6694, 4
      %v6697 = vrot.slane %v6590, 5
      %v6698 = vsel %vm1385, %v6696, %v6697
      %v6699 = vrot.slane %v6591, 5
      %v6700 = vrot.slane %v6699, 4
      %v6701 = vrot.slane %v6592, 5
      %v6702 = vsel %vm1385, %v6700, %v6701
      %v6703 = vrot.slane %v6701, 4
      %v6704 = vrot.slane %v6593, 5
      %v6705 = vsel %vm1385, %v6703, %v6704
      %v6706 = vrot.slane %v6594, 5
      %v6707 = vrot.slane %v6706, 4
      %v6708 = vrot.slane %v6595, 5
      %v6709 = vsel %vm1385, %v6707, %v6708
      %v6710 = vrot.slane %v6708, 4
      %v6711 = vrot.slane %v6596, 5
      %v6712 = vsel %vm1385, %v6710, %v6711
      %v6713 = vrot.slane %v6597, 5
      %v6714 = vrot.slane %v6713, 4
      %v6715 = vrot.slane %v6598, 5
      %v6716 = vsel %vm1385, %v6714, %v6715
      %v6717 = vrot.slane %v6715, 4
      %v6718 = vrot.slane %v6599, 5
      %v6719 = vsel %vm1385, %v6717, %v6718
      %v6720 = vrot.slane %v6600, 5
      %v6721 = vrot.slane %v6720, 4
      %v6722 = vrot.slane %v6601, 5
      %v6723 = vsel %vm1385, %v6721, %v6722
      %v6724 = vrot.slane %v6722, 4
      %v6725 = vrot.slane %v6602, 5
      %v6726 = vsel %vm1385, %v6724, %v6725
      %v6727 = vrot.slane %v6603, 5
      %v6728 = vrot.slane %v6727, 4
      %v6729 = vrot.slane %v6604, 5
      %v6730 = vsel %vm1385, %v6728, %v6729
      %v6731 = vrot.slane %v6729, 4
      %v6732 = vrot.slane %v6605, 5
      %v6733 = vsel %vm1385, %v6731, %v6732
      %v6734 = vrot.slane %v6606, 5
      %v6735 = vrot.slane %v6734, 4
      %v6736 = vrot.slane %v6607, 5
      %v6737 = vsel %vm1385, %v6735, %v6736
      %v6738 = vrot.slane %v6736, 4
      %v6739 = vrot.slane %v6608, 5
      %v6740 = vsel %vm1385, %v6738, %v6739
      %v6741 = vrot.slane %v6609, 5
      %v6742 = vrot.slane %v6741, 4
      %v6743 = vrot.slane %v6610, 5
      %v6744 = vsel %vm1385, %v6742, %v6743
      %v6745 = vrot.slane %v6743, 4
      %v6746 = vrot.slane %v6611, 5
      %v6747 = vsel %vm1385, %v6745, %v6746
      %v6748 = vrot.slane %v6612, 5
      %v6749 = vrot.slane %v6748, 4
      %v6750 = vrot.slane %v6613, 5
      %v6751 = vsel %vm1385, %v6749, %v6750
      %v6752 = vrot.slane %v6750, 4
      %v6753 = vrot.slane %v6614, 5
      %v6754 = vsel %vm1385, %v6752, %v6753
      %v6755 = vrot.slane %v6615, 5
      %v6756 = vrot.slane %v6755, 4
      %v6757 = vrot.slane %v6616, 5
      %v6758 = vsel %vm1385, %v6756, %v6757
      %v6759 = vrot.slane %v6757, 4
      %v6760 = vrot.slane %v6617, 5
      %v6761 = vsel %vm1385, %v6759, %v6760
      %v6762 = vrot.slane %v6618, 5
      %v6763 = vrot.slane %v6762, 4
      %v6764 = vrot.slane %v6619, 5
      %v6765 = vsel %vm1385, %v6763, %v6764
      %v6766 = vrot.slane %v6764, 4
      %v6767 = vrot.slane %v6620, 5
      %v6768 = vsel %vm1385, %v6766, %v6767
      %v6769 = vrot.slane %v6621, 5
      %v6770 = vrot.slane %v6769, 4
      %v6771 = vrot.slane %v6622, 5
      %v6772 = vsel %vm1385, %v6770, %v6771
      %v6773 = vrot.slane %v6771, 4
      %v6774 = vrot.slane %v6623, 5
      %v6775 = vsel %vm1385, %v6773, %v6774
      %v6776 = vrot.slane %v6624, 5
      %v6777 = vrot.slane %v6776, 4
      %v6778 = vrot.slane %v6625, 5
      %v6779 = vsel %vm1385, %v6777, %v6778
      %v6780 = vrot.slane %v6778, 4
      %v6781 = vrot.slane %v6626, 5
      %v6782 = vsel %vm1385, %v6780, %v6781
      %v6783 = vrot.slane %v6627, 5
      %v6784 = vrot.slane %v6783, 4
      %v6785 = vrot.slane %v6628, 5
      %v6786 = vsel %vm1385, %v6784, %v6785
      %v6787 = vrot.slane %v6785, 4
      %v6788 = vrot.slane %v6629, 5
      %v6789 = vsel %vm1385, %v6787, %v6788
      %v6790 = vunpack.c.l.b16 %v6681
      %v6791 = vunpack.c.l.b16 %v6684
      %v6792 = vunpack.c.l.b16 %v6688
      %v6793 = vunpack.c.l.b16 %v6691
      %v6794 = vunpack.c.l.b16 %v6695
      %v6795 = vunpack.c.l.b16 %v6698
      %v6796 = vunpack.c.l.b16 %v6702
      %v6797 = vunpack.c.l.b16 %v6705
      %v6798 = vunpack.c.l.b16 %v6709
      %v6799 = vunpack.c.l.b16 %v6712
      %v6800 = vunpack.c.l.b16 %v6716
      %v6801 = vunpack.c.l.b16 %v6719
      %v6802 = vunpack.c.l.b16 %v6723
      %v6803 = vunpack.c.l.b16 %v6726
      %v6804 = vunpack.c.l.b16 %v6730
      %v6805 = vunpack.c.l.b16 %v6733
      %v6806 = vunpack.c.l.b16 %v6737
      %v6807 = vunpack.c.l.b16 %v6740
      %v6808 = vunpack.c.l.b16 %v6744
      %v6809 = vunpack.c.l.b16 %v6747
      %v6810 = vunpack.c.l.b16 %v6751
      %v6811 = vunpack.c.l.b16 %v6754
      %v6812 = vunpack.c.l.b16 %v6758
      %v6813 = vunpack.c.l.b16 %v6761
      %v6814 = vunpack.c.l.b16 %v6765
      %v6815 = vunpack.c.l.b16 %v6768
      %v6816 = vunpack.c.l.b16 %v6772
      %v6817 = vunpack.c.l.b16 %v6775
      %v6818 = vunpack.c.l.b16 %v6779
      %v6819 = vunpack.c.l.b16 %v6782
      %v6820 = vunpack.c.l.b16 %v6786
      %v6821 = vunpack.c.l.b16 %v6789
      %v6822 = vpack.c.b16 %v6791, %v6790
      %v6823 = vpack.c.b16 %v6793, %v6792
      %v6824 = vpack.c.b16 %v6795, %v6794
      %v6825 = vpack.c.b16 %v6797, %v6796
      %v6826 = vpack.c.b16 %v6799, %v6798
      %v6827 = vpack.c.b16 %v6801, %v6800
      %v6828 = vpack.c.b16 %v6803, %v6802
      %v6829 = vpack.c.b16 %v6805, %v6804
      %v6830 = vpack.c.b16 %v6807, %v6806
      %v6831 = vpack.c.b16 %v6809, %v6808
      %v6832 = vpack.c.b16 %v6811, %v6810
      %v6833 = vpack.c.b16 %v6813, %v6812
      %v6834 = vpack.c.b16 %v6815, %v6814
      %v6835 = vpack.c.b16 %v6817, %v6816
      %v6836 = vpack.c.b16 %v6819, %v6818
      %v6837 = vpack.c.b16 %v6821, %v6820
      %6854 = vst [vmem:[#allocation3 + $0x4c0] sm:$0xff] %v6822
      %6855 = vst [vmem:[#allocation3 + $0x508] sm:$0xff] %v6823
      %6856 = vst [vmem:[#allocation3 + $0x550] sm:$0xff] %v6824
      %6857 = vst [vmem:[#allocation3 + $0x598] sm:$0xff] %v6825
      %6858 = vst [vmem:[#allocation3 + $0x5e0] sm:$0xff] %v6826
      %6859 = vst [vmem:[#allocation3 + $0x628] sm:$0xff] %v6827
      %6860 = vst [vmem:[#allocation3 + $0x670] sm:$0xff] %v6828
      %6861 = vst [vmem:[#allocation3 + $0x6b8] sm:$0xff] %v6829
      %6862 = vst [vmem:[#allocation3 + $0x700] sm:$0xff] %v6830
      %6863 = vst [vmem:[#allocation3 + $0x748] sm:$0xff] %v6831
      %6864 = vst [vmem:[#allocation3 + $0x790] sm:$0xff] %v6832
      %6865 = vst [vmem:[#allocation3 + $0x7d8] sm:$0xff] %v6833
      %6866 = vst [vmem:[#allocation3 + $0x820] sm:$0xff] %v6834
      %6867 = vst [vmem:[#allocation3 + $0x868] sm:$0xff] %v6835
      %6868 = vst [vmem:[#allocation3 + $0x8b0] sm:$0xff] %v6836
      %6869 = vst [vmem:[#allocation3 + $0x8f8] sm:$0xff] %v6837
    $region29: #{tpu_custom_call.1} parent=1 // pred_fallthru
      _
    %v6870 = vld [vmem:[#allocation3] sm:$0xff]
    %v6871 = vld [vmem:[#allocation3 + $0x8] sm:$0xff]
    %v6872 = vld [vmem:[#allocation3 + $0x10] sm:$0xff]
    %v6873 = vld [vmem:[#allocation3 + $0x18] sm:$0xff]
    %v6874 = vld [vmem:[#allocation3 + $0x20] sm:$0xff]
    %v6875 = vld [vmem:[#allocation3 + $0x28] sm:$0xff]
    %v6876 = vld [vmem:[#allocation3 + $0x30] sm:$0xff]
    %v6877 = vld [vmem:[#allocation3 + $0x38] sm:$0xff]
    %v6878 = vld [vmem:[#allocation3 + $0x40] sm:$0xff]
    %v6879 = vld [vmem:[#allocation3 + $0x48] sm:$0xff]
    %v6880 = vld [vmem:[#allocation3 + $0x50] sm:$0xff]
    %v6881 = vld [vmem:[#allocation3 + $0x58] sm:$0xff]
    %v6882 = vld [vmem:[#allocation3 + $0x60] sm:$0xff]
    %v6883 = vld [vmem:[#allocation3 + $0x68] sm:$0xff]
    %v6884 = vld [vmem:[#allocation3 + $0x70] sm:$0xff]
    %v6885 = vld [vmem:[#allocation3 + $0x78] sm:$0xff]
    %v6886 = vld [vmem:[#allocation3 + $0x80] sm:$0xff]
    %v6887 = vld [vmem:[#allocation3 + $0x88] sm:$0xff]
    %v6888 = vld [vmem:[#allocation3 + $0x90] sm:$0xff]
    %v6889 = vld [vmem:[#allocation3 + $0x98] sm:$0xff]
    %v6890 = vld [vmem:[#allocation3 + $0xa0] sm:$0xff]
    %v6891 = vld [vmem:[#allocation3 + $0xa8] sm:$0xff]
    %v6892 = vld [vmem:[#allocation3 + $0xb0] sm:$0xff]
    %v6893 = vld [vmem:[#allocation3 + $0xb8] sm:$0xff]
    %v6894 = vld [vmem:[#allocation3 + $0xc0] sm:$0xff]
    %v6895 = vld [vmem:[#allocation3 + $0xc8] sm:$0xff]
    %v6896 = vld [vmem:[#allocation3 + $0xd0] sm:$0xff]
    %v6897 = vld [vmem:[#allocation3 + $0xd8] sm:$0xff]
    %v6898 = vld [vmem:[#allocation3 + $0xe0] sm:$0xff]
    %v6899 = vld [vmem:[#allocation3 + $0xe8] sm:$0xff]
    %v6900 = vld [vmem:[#allocation3 + $0xf0] sm:$0xff]
    %v6901 = vld [vmem:[#allocation3 + $0xf8] sm:$0xff]
    %v6902 = vld [vmem:[#allocation3 + $0x100] sm:$0xff]
    %v6903 = vld [vmem:[#allocation3 + $0x108] sm:$0xff]
    %v6904 = vld [vmem:[#allocation3 + $0x110] sm:$0xff]
    %v6905 = vld [vmem:[#allocation3 + $0x118] sm:$0xff]
    %v6906 = vld [vmem:[#allocation3 + $0x120] sm:$0xff]
    %v6907 = vld [vmem:[#allocation3 + $0x128] sm:$0xff]
    %v6908 = vld [vmem:[#allocation3 + $0x130] sm:$0xff]
    %v6909 = vld [vmem:[#allocation3 + $0x138] sm:$0xff]
    %v6910 = vld [vmem:[#allocation3 + $0x140] sm:$0xff]
    %v6911 = vld [vmem:[#allocation3 + $0x148] sm:$0xff]
    %v6912 = vld [vmem:[#allocation3 + $0x150] sm:$0xff]
    %v6913 = vld [vmem:[#allocation3 + $0x158] sm:$0xff]
    %v6914 = vld [vmem:[#allocation3 + $0x160] sm:$0xff]
    %v6915 = vld [vmem:[#allocation3 + $0x168] sm:$0xff]
    %v6916 = vld [vmem:[#allocation3 + $0x170] sm:$0xff]
    %v6917 = vld [vmem:[#allocation3 + $0x178] sm:$0xff]
    %v6918 = vld [vmem:[#allocation3 + $0x180] sm:$0xff]
    %v6919 = vld [vmem:[#allocation3 + $0x188] sm:$0xff]
    %v6920 = vld [vmem:[#allocation3 + $0x190] sm:$0xff]
    %v6921 = vld [vmem:[#allocation3 + $0x198] sm:$0xff]
    %v6922 = vld [vmem:[#allocation3 + $0x1a0] sm:$0xff]
    %v6923 = vld [vmem:[#allocation3 + $0x1a8] sm:$0xff]
    %v6924 = vld [vmem:[#allocation3 + $0x1b0] sm:$0xff]
    %v6925 = vld [vmem:[#allocation3 + $0x1b8] sm:$0xff]
    %v6926 = vld [vmem:[#allocation3 + $0x1c0] sm:$0xff]
    %v6927 = vld [vmem:[#allocation3 + $0x1c8] sm:$0xff]
    %v6928 = vld [vmem:[#allocation3 + $0x1d0] sm:$0xff]
    %v6929 = vld [vmem:[#allocation3 + $0x1d8] sm:$0xff]
    %v6930 = vld [vmem:[#allocation3 + $0x1e0] sm:$0xff]
    %v6931 = vld [vmem:[#allocation3 + $0x1e8] sm:$0xff]
    %v6932 = vld [vmem:[#allocation3 + $0x1f0] sm:$0xff]
    %v6933 = vld [vmem:[#allocation3 + $0x1f8] sm:$0xff]
    %v6934 = vld [vmem:[#allocation3 + $0x200] sm:$0xff]
    %v6935 = vld [vmem:[#allocation3 + $0x208] sm:$0xff]
    %v6936 = vld [vmem:[#allocation3 + $0x210] sm:$0xff]
    %v6937 = vld [vmem:[#allocation3 + $0x218] sm:$0xff]
    %v6938 = vld [vmem:[#allocation3 + $0x220] sm:$0xff]
    %v6939 = vld [vmem:[#allocation3 + $0x228] sm:$0xff]
    %v6940 = vld [vmem:[#allocation3 + $0x230] sm:$0xff]
    %v6941 = vld [vmem:[#allocation3 + $0x238] sm:$0xff]
    %v6942 = vld [vmem:[#allocation3 + $0x240] sm:$0xff]
    %v6943 = vld [vmem:[#allocation3 + $0x248] sm:$0xff]
    %v6944 = vld [vmem:[#allocation3 + $0x250] sm:$0xff]
    %v6945 = vld [vmem:[#allocation3 + $0x258] sm:$0xff]
    %v6946 = vld [vmem:[#allocation3 + $0x260] sm:$0xff]
    %v6947 = vld [vmem:[#allocation3 + $0x268] sm:$0xff]
    %v6948 = vld [vmem:[#allocation3 + $0x270] sm:$0xff]
    %v6949 = vld [vmem:[#allocation3 + $0x278] sm:$0xff]
    %v6950 = vld [vmem:[#allocation3 + $0x280] sm:$0xff]
    %v6951 = vld [vmem:[#allocation3 + $0x288] sm:$0xff]
    %v6952 = vld [vmem:[#allocation3 + $0x290] sm:$0xff]
    %v6953 = vld [vmem:[#allocation3 + $0x298] sm:$0xff]
    %v6954 = vld [vmem:[#allocation3 + $0x2a0] sm:$0xff]
    %v6955 = vld [vmem:[#allocation3 + $0x2a8] sm:$0xff]
    %v6956 = vld [vmem:[#allocation3 + $0x2b0] sm:$0xff]
    %v6957 = vld [vmem:[#allocation3 + $0x2b8] sm:$0xff]
    %v6958 = vld [vmem:[#allocation3 + $0x2c0] sm:$0xff]
    %v6959 = vld [vmem:[#allocation3 + $0x2c8] sm:$0xff]
    %v6960 = vld [vmem:[#allocation3 + $0x2d0] sm:$0xff]
    %v6961 = vld [vmem:[#allocation3 + $0x2d8] sm:$0xff]
    %v6962 = vld [vmem:[#allocation3 + $0x2e0] sm:$0xff]
    %v6963 = vld [vmem:[#allocation3 + $0x2e8] sm:$0xff]
    %v6964 = vld [vmem:[#allocation3 + $0x2f0] sm:$0xff]
    %v6965 = vld [vmem:[#allocation3 + $0x2f8] sm:$0xff]
    %v6966 = vld [vmem:[#allocation3 + $0x300] sm:$0xff]
    %v6967 = vld [vmem:[#allocation3 + $0x308] sm:$0xff]
    %v6968 = vld [vmem:[#allocation3 + $0x310] sm:$0xff]
    %v6969 = vld [vmem:[#allocation3 + $0x318] sm:$0xff]
    %v6970 = vld [vmem:[#allocation3 + $0x320] sm:$0xff]
    %v6971 = vld [vmem:[#allocation3 + $0x328] sm:$0xff]
    %v6972 = vld [vmem:[#allocation3 + $0x330] sm:$0xff]
    %v6973 = vld [vmem:[#allocation3 + $0x338] sm:$0xff]
    %v6974 = vld [vmem:[#allocation3 + $0x340] sm:$0xff]
    %v6975 = vld [vmem:[#allocation3 + $0x348] sm:$0xff]
    %v6976 = vld [vmem:[#allocation3 + $0x350] sm:$0xff]
    %v6977 = vld [vmem:[#allocation3 + $0x358] sm:$0xff]
    %v6978 = vld [vmem:[#allocation3 + $0x360] sm:$0xff]
    %v6979 = vld [vmem:[#allocation3 + $0x368] sm:$0xff]
    %v6980 = vld [vmem:[#allocation3 + $0x370] sm:$0xff]
    %v6981 = vld [vmem:[#allocation3 + $0x378] sm:$0xff]
    %v6982 = vld [vmem:[#allocation3 + $0x380] sm:$0xff]
    %v6983 = vld [vmem:[#allocation3 + $0x388] sm:$0xff]
    %v6984 = vld [vmem:[#allocation3 + $0x390] sm:$0xff]
    %v6985 = vld [vmem:[#allocation3 + $0x398] sm:$0xff]
    %v6986 = vld [vmem:[#allocation3 + $0x3a0] sm:$0xff]
    %v6987 = vld [vmem:[#allocation3 + $0x3a8] sm:$0xff]
    %v6988 = vld [vmem:[#allocation3 + $0x3b0] sm:$0xff]
    %v6989 = vld [vmem:[#allocation3 + $0x3b8] sm:$0xff]
    %v6990 = vld [vmem:[#allocation3 + $0x3c0] sm:$0xff]
    %v6991 = vld [vmem:[#allocation3 + $0x3c8] sm:$0xff]
    %v6992 = vld [vmem:[#allocation3 + $0x3d0] sm:$0xff]
    %v6993 = vld [vmem:[#allocation3 + $0x3d8] sm:$0xff]
    %v6994 = vld [vmem:[#allocation3 + $0x3e0] sm:$0xff]
    %v6995 = vld [vmem:[#allocation3 + $0x3e8] sm:$0xff]
    %v6996 = vld [vmem:[#allocation3 + $0x3f0] sm:$0xff]
    %v6997 = vld [vmem:[#allocation3 + $0x3f8] sm:$0xff]
    %v6998 = vld [vmem:[#allocation3 + $0x400] sm:$0xff]
    %v6999 = vld [vmem:[#allocation3 + $0x408] sm:$0xff]
    %v7000 = vld [vmem:[#allocation3 + $0x410] sm:$0xff]
    %v7001 = vld [vmem:[#allocation3 + $0x418] sm:$0xff]
    %v7002 = vld [vmem:[#allocation3 + $0x420] sm:$0xff]
    %v7003 = vld [vmem:[#allocation3 + $0x428] sm:$0xff]
    %v7004 = vld [vmem:[#allocation3 + $0x430] sm:$0xff]
    %v7005 = vld [vmem:[#allocation3 + $0x438] sm:$0xff]
    %v7006 = vld [vmem:[#allocation3 + $0x440] sm:$0xff]
    %v7007 = vld [vmem:[#allocation3 + $0x448] sm:$0xff]
    %v7008 = vld [vmem:[#allocation3 + $0x450] sm:$0xff]
    %v7009 = vld [vmem:[#allocation3 + $0x458] sm:$0xff]
    %v7010 = vld [vmem:[#allocation3 + $0x460] sm:$0xff]
    %v7011 = vld [vmem:[#allocation3 + $0x468] sm:$0xff]
    %v7012 = vld [vmem:[#allocation3 + $0x470] sm:$0xff]
    %v7013 = vld [vmem:[#allocation3 + $0x478] sm:$0xff]
    %v7014 = vld [vmem:[#allocation3 + $0x480] sm:$0xff]
    %v7015 = vld [vmem:[#allocation3 + $0x488] sm:$0xff]
    %v7016 = vld [vmem:[#allocation3 + $0x490] sm:$0xff]
    %v7017 = vld [vmem:[#allocation3 + $0x498] sm:$0xff]
    %v7018 = vld [vmem:[#allocation3 + $0x4a0] sm:$0xff]
    %v7019 = vld [vmem:[#allocation3 + $0x4a8] sm:$0xff]
    %v7020 = vld [vmem:[#allocation3 + $0x4b0] sm:$0xff]
    %v7021 = vld [vmem:[#allocation3 + $0x4b8] sm:$0xff]
    %v7022 = vld [vmem:[#allocation3 + $0x4c0] sm:$0xff]
    %v7023 = vld [vmem:[#allocation3 + $0x4c8] sm:$0xff]
    %v7024 = vld [vmem:[#allocation3 + $0x4d0] sm:$0xff]
    %v7025 = vld [vmem:[#allocation3 + $0x4d8] sm:$0xff]
    %v7026 = vld [vmem:[#allocation3 + $0x4e0] sm:$0xff]
    %v7027 = vld [vmem:[#allocation3 + $0x4e8] sm:$0xff]
    %v7028 = vld [vmem:[#allocation3 + $0x4f0] sm:$0xff]
    %v7029 = vld [vmem:[#allocation3 + $0x4f8] sm:$0xff]
    %v7030 = vld [vmem:[#allocation3 + $0x500] sm:$0xff]
    %v7031 = vld [vmem:[#allocation3 + $0x508] sm:$0xff]
    %v7032 = vld [vmem:[#allocation3 + $0x510] sm:$0xff]
    %v7033 = vld [vmem:[#allocation3 + $0x518] sm:$0xff]
    %v7034 = vld [vmem:[#allocation3 + $0x520] sm:$0xff]
    %v7035 = vld [vmem:[#allocation3 + $0x528] sm:$0xff]
    %v7036 = vld [vmem:[#allocation3 + $0x530] sm:$0xff]
    %v7037 = vld [vmem:[#allocation3 + $0x538] sm:$0xff]
    %v7038 = vld [vmem:[#allocation3 + $0x540] sm:$0xff]
    %v7039 = vld [vmem:[#allocation3 + $0x548] sm:$0xff]
    %v7040 = vld [vmem:[#allocation3 + $0x550] sm:$0xff]
    %v7041 = vld [vmem:[#allocation3 + $0x558] sm:$0xff]
    %v7042 = vld [vmem:[#allocation3 + $0x560] sm:$0xff]
    %v7043 = vld [vmem:[#allocation3 + $0x568] sm:$0xff]
    %v7044 = vld [vmem:[#allocation3 + $0x570] sm:$0xff]
    %v7045 = vld [vmem:[#allocation3 + $0x578] sm:$0xff]
    %v7046 = vld [vmem:[#allocation3 + $0x580] sm:$0xff]
    %v7047 = vld [vmem:[#allocation3 + $0x588] sm:$0xff]
    %v7048 = vld [vmem:[#allocation3 + $0x590] sm:$0xff]
    %v7049 = vld [vmem:[#allocation3 + $0x598] sm:$0xff]
    %v7050 = vld [vmem:[#allocation3 + $0x5a0] sm:$0xff]
    %v7051 = vld [vmem:[#allocation3 + $0x5a8] sm:$0xff]
    %v7052 = vld [vmem:[#allocation3 + $0x5b0] sm:$0xff]
    %v7053 = vld [vmem:[#allocation3 + $0x5b8] sm:$0xff]
    %v7054 = vld [vmem:[#allocation3 + $0x5c0] sm:$0xff]
    %v7055 = vld [vmem:[#allocation3 + $0x5c8] sm:$0xff]
    %v7056 = vld [vmem:[#allocation3 + $0x5d0] sm:$0xff]
    %v7057 = vld [vmem:[#allocation3 + $0x5d8] sm:$0xff]
    %v7058 = vld [vmem:[#allocation3 + $0x5e0] sm:$0xff]
    %v7059 = vld [vmem:[#allocation3 + $0x5e8] sm:$0xff]
    %v7060 = vld [vmem:[#allocation3 + $0x5f0] sm:$0xff]
    %v7061 = vld [vmem:[#allocation3 + $0x5f8] sm:$0xff]
    %v7062 = vld [vmem:[#allocation3 + $0x600] sm:$0xff]
    %v7063 = vld [vmem:[#allocation3 + $0x608] sm:$0xff]
    %v7064 = vld [vmem:[#allocation3 + $0x610] sm:$0xff]
    %v7065 = vld [vmem:[#allocation3 + $0x618] sm:$0xff]
    %v7066 = vld [vmem:[#allocation3 + $0x620] sm:$0xff]
    %v7067 = vld [vmem:[#allocation3 + $0x628] sm:$0xff]
    %v7068 = vld [vmem:[#allocation3 + $0x630] sm:$0xff]
    %v7069 = vld [vmem:[#allocation3 + $0x638] sm:$0xff]
    %v7070 = vld [vmem:[#allocation3 + $0x640] sm:$0xff]
    %v7071 = vld [vmem:[#allocation3 + $0x648] sm:$0xff]
    %v7072 = vld [vmem:[#allocation3 + $0x650] sm:$0xff]
    %v7073 = vld [vmem:[#allocation3 + $0x658] sm:$0xff]
    %v7074 = vld [vmem:[#allocation3 + $0x660] sm:$0xff]
    %v7075 = vld [vmem:[#allocation3 + $0x668] sm:$0xff]
    %v7076 = vld [vmem:[#allocation3 + $0x670] sm:$0xff]
    %v7077 = vld [vmem:[#allocation3 + $0x678] sm:$0xff]
    %v7078 = vld [vmem:[#allocation3 + $0x680] sm:$0xff]
    %v7079 = vld [vmem:[#allocation3 + $0x688] sm:$0xff]
    %v7080 = vld [vmem:[#allocation3 + $0x690] sm:$0xff]
    %v7081 = vld [vmem:[#allocation3 + $0x698] sm:$0xff]
    %v7082 = vld [vmem:[#allocation3 + $0x6a0] sm:$0xff]
    %v7083 = vld [vmem:[#allocation3 + $0x6a8] sm:$0xff]
    %v7084 = vld [vmem:[#allocation3 + $0x6b0] sm:$0xff]
    %v7085 = vld [vmem:[#allocation3 + $0x6b8] sm:$0xff]
    %v7086 = vld [vmem:[#allocation3 + $0x6c0] sm:$0xff]
    %v7087 = vld [vmem:[#allocation3 + $0x6c8] sm:$0xff]
    %v7088 = vld [vmem:[#allocation3 + $0x6d0] sm:$0xff]
    %v7089 = vld [vmem:[#allocation3 + $0x6d8] sm:$0xff]
    %v7090 = vld [vmem:[#allocation3 + $0x6e0] sm:$0xff]
    %v7091 = vld [vmem:[#allocation3 + $0x6e8] sm:$0xff]
    %v7092 = vld [vmem:[#allocation3 + $0x6f0] sm:$0xff]
    %v7093 = vld [vmem:[#allocation3 + $0x6f8] sm:$0xff]
    %v7094 = vld [vmem:[#allocation3 + $0x700] sm:$0xff]
    %v7095 = vld [vmem:[#allocation3 + $0x708] sm:$0xff]
    %v7096 = vld [vmem:[#allocation3 + $0x710] sm:$0xff]
    %v7097 = vld [vmem:[#allocation3 + $0x718] sm:$0xff]
    %v7098 = vld [vmem:[#allocation3 + $0x720] sm:$0xff]
    %v7099 = vld [vmem:[#allocation3 + $0x728] sm:$0xff]
    %v7100 = vld [vmem:[#allocation3 + $0x730] sm:$0xff]
    %v7101 = vld [vmem:[#allocation3 + $0x738] sm:$0xff]
    %v7102 = vld [vmem:[#allocation3 + $0x740] sm:$0xff]
    %v7103 = vld [vmem:[#allocation3 + $0x748] sm:$0xff]
    %v7104 = vld [vmem:[#allocation3 + $0x750] sm:$0xff]
    %v7105 = vld [vmem:[#allocation3 + $0x758] sm:$0xff]
    %v7106 = vld [vmem:[#allocation3 + $0x760] sm:$0xff]
    %v7107 = vld [vmem:[#allocation3 + $0x768] sm:$0xff]
    %v7108 = vld [vmem:[#allocation3 + $0x770] sm:$0xff]
    %v7109 = vld [vmem:[#allocation3 + $0x778] sm:$0xff]
    %v7110 = vld [vmem:[#allocation3 + $0x780] sm:$0xff]
    %v7111 = vld [vmem:[#allocation3 + $0x788] sm:$0xff]
    %v7112 = vld [vmem:[#allocation3 + $0x790] sm:$0xff]
    %v7113 = vld [vmem:[#allocation3 + $0x798] sm:$0xff]
    %v7114 = vld [vmem:[#allocation3 + $0x7a0] sm:$0xff]
    %v7115 = vld [vmem:[#allocation3 + $0x7a8] sm:$0xff]
    %v7116 = vld [vmem:[#allocation3 + $0x7b0] sm:$0xff]
    %v7117 = vld [vmem:[#allocation3 + $0x7b8] sm:$0xff]
    %v7118 = vld [vmem:[#allocation3 + $0x7c0] sm:$0xff]
    %v7119 = vld [vmem:[#allocation3 + $0x7c8] sm:$0xff]
    %v7120 = vld [vmem:[#allocation3 + $0x7d0] sm:$0xff]
    %v7121 = vld [vmem:[#allocation3 + $0x7d8] sm:$0xff]
    %v7122 = vld [vmem:[#allocation3 + $0x7e0] sm:$0xff]
    %v7123 = vld [vmem:[#allocation3 + $0x7e8] sm:$0xff]
    %v7124 = vld [vmem:[#allocation3 + $0x7f0] sm:$0xff]
    %v7125 = vld [vmem:[#allocation3 + $0x7f8] sm:$0xff]
    %v7126 = vld [vmem:[#allocation3 + $0x800] sm:$0xff]
    %v7127 = vld [vmem:[#allocation3 + $0x808] sm:$0xff]
    %v7128 = vld [vmem:[#allocation3 + $0x810] sm:$0xff]
    %v7129 = vld [vmem:[#allocation3 + $0x818] sm:$0xff]
    %v7130 = vld [vmem:[#allocation3 + $0x820] sm:$0xff]
    %v7131 = vld [vmem:[#allocation3 + $0x828] sm:$0xff]
    %v7132 = vld [vmem:[#allocation3 + $0x830] sm:$0xff]
    %v7133 = vld [vmem:[#allocation3 + $0x838] sm:$0xff]
    %v7134 = vld [vmem:[#allocation3 + $0x840] sm:$0xff]
    %v7135 = vld [vmem:[#allocation3 + $0x848] sm:$0xff]
    %v7136 = vld [vmem:[#allocation3 + $0x850] sm:$0xff]
    %v7137 = vld [vmem:[#allocation3 + $0x858] sm:$0xff]
    %v7138 = vld [vmem:[#allocation3 + $0x860] sm:$0xff]
    %v7139 = vld [vmem:[#allocation3 + $0x868] sm:$0xff]
    %v7140 = vld [vmem:[#allocation3 + $0x870] sm:$0xff]
    %v7141 = vld [vmem:[#allocation3 + $0x878] sm:$0xff]
    %v7142 = vld [vmem:[#allocation3 + $0x880] sm:$0xff]
    %v7143 = vld [vmem:[#allocation3 + $0x888] sm:$0xff]
    %v7144 = vld [vmem:[#allocation3 + $0x890] sm:$0xff]
    %v7145 = vld [vmem:[#allocation3 + $0x898] sm:$0xff]
    %v7146 = vld [vmem:[#allocation3 + $0x8a0] sm:$0xff]
    %v7147 = vld [vmem:[#allocation3 + $0x8a8] sm:$0xff]
    %v7148 = vld [vmem:[#allocation3 + $0x8b0] sm:$0xff]
    %v7149 = vld [vmem:[#allocation3 + $0x8b8] sm:$0xff]
    %v7150 = vld [vmem:[#allocation3 + $0x8c0] sm:$0xff]
    %v7151 = vld [vmem:[#allocation3 + $0x8c8] sm:$0xff]
    %v7152 = vld [vmem:[#allocation3 + $0x8d0] sm:$0xff]
    %v7153 = vld [vmem:[#allocation3 + $0x8d8] sm:$0xff]
    %v7154 = vld [vmem:[#allocation3 + $0x8e0] sm:$0xff]
    %v7155 = vld [vmem:[#allocation3 + $0x8e8] sm:$0xff]
    %v7156 = vld [vmem:[#allocation3 + $0x8f0] sm:$0xff]
    %v7157 = vld [vmem:[#allocation3 + $0x8f8] sm:$0xff]
    %v7158 = vld [vmem:[#allocation7] sm:$0xf]
    %v7159 = vld [vmem:[#allocation7 + $0x4] sm:$0xf]
    %v7160 = vld [vmem:[#allocation7 + $0x8] sm:$0xf]
    %v7161 = vld [vmem:[#allocation7 + $0xc] sm:$0xf]
    %v7162 = vld [vmem:[#allocation7 + $0x10] sm:$0xf]
    %v7163 = vld [vmem:[#allocation7 + $0x14] sm:$0xf]
    %v7164 = vld [vmem:[#allocation7 + $0x18] sm:$0xf]
    %v7165 = vld [vmem:[#allocation7 + $0x1c] sm:$0xf]
    %v7166 = vld [vmem:[#allocation7 + $0x20] sm:$0xf]
    %v7167 = vld [vmem:[#allocation7 + $0x24] sm:$0xf]
    %v7168 = vld [vmem:[#allocation7 + $0x28] sm:$0xf]
    %v7169 = vld [vmem:[#allocation7 + $0x2c] sm:$0xf]
    %v7170 = vld [vmem:[#allocation7 + $0x30] sm:$0xf]
    %v7171 = vld [vmem:[#allocation7 + $0x34] sm:$0xf]
    %v7172 = vld [vmem:[#allocation7 + $0x38] sm:$0xf]
    %v7173 = vld [vmem:[#allocation7 + $0x3c] sm:$0xf]
    %v7174 = vld [vmem:[#allocation7 + $0x40] sm:$0xf]
    %v7175 = vld [vmem:[#allocation7 + $0x44] sm:$0xf]
    %v7176 = vld [vmem:[#allocation7 + $0x48] sm:$0xf]
    %v7177 = vld [vmem:[#allocation7 + $0x4c] sm:$0xf]
    %v7178 = vld [vmem:[#allocation7 + $0x50] sm:$0xf]
    %v7179 = vld [vmem:[#allocation7 + $0x54] sm:$0xf]
    %v7180 = vld [vmem:[#allocation7 + $0x58] sm:$0xf]
    %v7181 = vld [vmem:[#allocation7 + $0x5c] sm:$0xf]
    %v7182 = vld [vmem:[#allocation7 + $0x60] sm:$0xf]
    %v7183 = vld [vmem:[#allocation7 + $0x64] sm:$0xf]
    %v7184 = vld [vmem:[#allocation7 + $0x68] sm:$0xf]
    %v7185 = vld [vmem:[#allocation7 + $0x6c] sm:$0xf]
    %v7186 = vld [vmem:[#allocation7 + $0x70] sm:$0xf]
    %v7187 = vld [vmem:[#allocation7 + $0x74] sm:$0xf]
    %v7188 = vld [vmem:[#allocation7 + $0x78] sm:$0xf]
    %v7189 = vld [vmem:[#allocation7 + $0x7c] sm:$0xf]
    %v7190 = vld [vmem:[#allocation7 + $0x80] sm:$0xf]
    %v7191 = vld [vmem:[#allocation7 + $0x84] sm:$0xf]
    %v7192 = vld [vmem:[#allocation7 + $0x88] sm:$0xf]
    %v7193 = vld [vmem:[#allocation7 + $0x8c] sm:$0xf]
    %v7194 = vld [vmem:[#allocation7 + $0x90] sm:$0xf]
    %v7195 = vld [vmem:[#allocation7 + $0x94] sm:$0xf]
    %v7196 = vld [vmem:[#allocation7 + $0x98] sm:$0xf]
    %v7197 = vld [vmem:[#allocation7 + $0x9c] sm:$0xf]
    %v7198 = vld [vmem:[#allocation7 + $0xa0] sm:$0xf]
    %v7199 = vld [vmem:[#allocation7 + $0xa4] sm:$0xf]
    %v7200 = vld [vmem:[#allocation7 + $0xa8] sm:$0xf]
    %v7201 = vld [vmem:[#allocation7 + $0xac] sm:$0xf]
    %v7202 = vld [vmem:[#allocation7 + $0xb0] sm:$0xf]
    %v7203 = vld [vmem:[#allocation7 + $0xb4] sm:$0xf]
    %v7204 = vld [vmem:[#allocation7 + $0xb8] sm:$0xf]
    %v7205 = vld [vmem:[#allocation7 + $0xbc] sm:$0xf]
    %v7206 = vld [vmem:[#allocation7 + $0xc0] sm:$0xf]
    %v7207 = vld [vmem:[#allocation7 + $0xc4] sm:$0xf]
    %v7208 = vld [vmem:[#allocation7 + $0xc8] sm:$0xf]
    %v7209 = vld [vmem:[#allocation7 + $0xcc] sm:$0xf]
    %v7210 = vld [vmem:[#allocation7 + $0xd0] sm:$0xf]
    %v7211 = vld [vmem:[#allocation7 + $0xd4] sm:$0xf]
    %v7212 = vld [vmem:[#allocation7 + $0xd8] sm:$0xf]
    %v7213 = vld [vmem:[#allocation7 + $0xdc] sm:$0xf]
    %v7214 = vld [vmem:[#allocation7 + $0xe0] sm:$0xf]
    %v7215 = vld [vmem:[#allocation7 + $0xe4] sm:$0xf]
    %v7216 = vld [vmem:[#allocation7 + $0xe8] sm:$0xf]
    %v7217 = vld [vmem:[#allocation7 + $0xec] sm:$0xf]
    %v7218 = vld [vmem:[#allocation7 + $0xf0] sm:$0xf]
    %v7219 = vld [vmem:[#allocation7 + $0xf4] sm:$0xf]
    %v7220 = vld [vmem:[#allocation7 + $0xf8] sm:$0xf]
    %v7221 = vld [vmem:[#allocation7 + $0xfc] sm:$0xf]
    %v7222 = vld [vmem:[#allocation7 + $0x100] sm:$0xf]
    %v7223 = vld [vmem:[#allocation7 + $0x104] sm:$0xf]
    %v7224 = vld [vmem:[#allocation7 + $0x108] sm:$0xf]
    %v7225 = vld [vmem:[#allocation7 + $0x10c] sm:$0xf]
    %v7226 = vld [vmem:[#allocation7 + $0x110] sm:$0xf]
    %v7227 = vld [vmem:[#allocation7 + $0x114] sm:$0xf]
    %v7228 = vld [vmem:[#allocation7 + $0x118] sm:$0xf]
    %v7229 = vld [vmem:[#allocation7 + $0x11c] sm:$0xf]
    %v7230 = vld [vmem:[#allocation7 + $0x120] sm:$0xf]
    %v7231 = vld [vmem:[#allocation7 + $0x124] sm:$0xf]
    %v7232 = vld [vmem:[#allocation7 + $0x128] sm:$0xf]
    %v7233 = vld [vmem:[#allocation7 + $0x12c] sm:$0xf]
    %v7234 = vld [vmem:[#allocation7 + $0x130] sm:$0xf]
    %v7235 = vld [vmem:[#allocation7 + $0x134] sm:$0xf]
    %v7236 = vld [vmem:[#allocation7 + $0x138] sm:$0xf]
    %v7237 = vld [vmem:[#allocation7 + $0x13c] sm:$0xf]
    %v7238 = vld [vmem:[#allocation7 + $0x140] sm:$0xf]
    %v7239 = vld [vmem:[#allocation7 + $0x144] sm:$0xf]
    %v7240 = vld [vmem:[#allocation7 + $0x148] sm:$0xf]
    %v7241 = vld [vmem:[#allocation7 + $0x14c] sm:$0xf]
    %v7242 = vld [vmem:[#allocation7 + $0x150] sm:$0xf]
    %v7243 = vld [vmem:[#allocation7 + $0x154] sm:$0xf]
    %v7244 = vld [vmem:[#allocation7 + $0x158] sm:$0xf]
    %v7245 = vld [vmem:[#allocation7 + $0x15c] sm:$0xf]
    %v7246 = vld [vmem:[#allocation7 + $0x160] sm:$0xf]
    %v7247 = vld [vmem:[#allocation7 + $0x164] sm:$0xf]
    %v7248 = vld [vmem:[#allocation7 + $0x168] sm:$0xf]
    %v7249 = vld [vmem:[#allocation7 + $0x16c] sm:$0xf]
    %v7250 = vld [vmem:[#allocation7 + $0x170] sm:$0xf]
    %v7251 = vld [vmem:[#allocation7 + $0x174] sm:$0xf]
    %v7252 = vld [vmem:[#allocation7 + $0x178] sm:$0xf]
    %v7253 = vld [vmem:[#allocation7 + $0x17c] sm:$0xf]
    %v7254 = vld [vmem:[#allocation7 + $0x180] sm:$0xf]
    %v7255 = vld [vmem:[#allocation7 + $0x184] sm:$0xf]
    %v7256 = vld [vmem:[#allocation7 + $0x188] sm:$0xf]
    %v7257 = vld [vmem:[#allocation7 + $0x18c] sm:$0xf]
    %v7258 = vld [vmem:[#allocation7 + $0x190] sm:$0xf]
    %v7259 = vld [vmem:[#allocation7 + $0x194] sm:$0xf]
    %v7260 = vld [vmem:[#allocation7 + $0x198] sm:$0xf]
    %v7261 = vld [vmem:[#allocation7 + $0x19c] sm:$0xf]
    %v7262 = vld [vmem:[#allocation7 + $0x1a0] sm:$0xf]
    %v7263 = vld [vmem:[#allocation7 + $0x1a4] sm:$0xf]
    %v7264 = vld [vmem:[#allocation7 + $0x1a8] sm:$0xf]
    %v7265 = vld [vmem:[#allocation7 + $0x1ac] sm:$0xf]
    %v7266 = vld [vmem:[#allocation7 + $0x1b0] sm:$0xf]
    %v7267 = vld [vmem:[#allocation7 + $0x1b4] sm:$0xf]
    %v7268 = vld [vmem:[#allocation7 + $0x1b8] sm:$0xf]
    %v7269 = vld [vmem:[#allocation7 + $0x1bc] sm:$0xf]
    %v7270 = vld [vmem:[#allocation7 + $0x1c0] sm:$0xf]
    %v7271 = vld [vmem:[#allocation7 + $0x1c4] sm:$0xf]
    %v7272 = vld [vmem:[#allocation7 + $0x1c8] sm:$0xf]
    %v7273 = vld [vmem:[#allocation7 + $0x1cc] sm:$0xf]
    %v7274 = vld [vmem:[#allocation7 + $0x1d0] sm:$0xf]
    %v7275 = vld [vmem:[#allocation7 + $0x1d4] sm:$0xf]
    %v7276 = vld [vmem:[#allocation7 + $0x1d8] sm:$0xf]
    %v7277 = vld [vmem:[#allocation7 + $0x1dc] sm:$0xf]
    %v7278 = vld [vmem:[#allocation7 + $0x1e0] sm:$0xf]
    %v7279 = vld [vmem:[#allocation7 + $0x1e4] sm:$0xf]
    %v7280 = vld [vmem:[#allocation7 + $0x1e8] sm:$0xf]
    %v7281 = vld [vmem:[#allocation7 + $0x1ec] sm:$0xf]
    %v7282 = vld [vmem:[#allocation7 + $0x1f0] sm:$0xf]
    %v7283 = vld [vmem:[#allocation7 + $0x1f4] sm:$0xf]
    %v7284 = vld [vmem:[#allocation7 + $0x1f8] sm:$0xf]
    %v7285 = vld [vmem:[#allocation7 + $0x1fc] sm:$0xf]
    %v7286 = vld [vmem:[#allocation7 + $0x200] sm:$0xf]
    %v7287 = vld [vmem:[#allocation7 + $0x204] sm:$0xf]
    %v7288 = vld [vmem:[#allocation7 + $0x208] sm:$0xf]
    %v7289 = vld [vmem:[#allocation7 + $0x20c] sm:$0xf]
    %v7290 = vld [vmem:[#allocation7 + $0x210] sm:$0xf]
    %v7291 = vld [vmem:[#allocation7 + $0x214] sm:$0xf]
    %v7292 = vld [vmem:[#allocation7 + $0x218] sm:$0xf]
    %v7293 = vld [vmem:[#allocation7 + $0x21c] sm:$0xf]
    %v7294 = vld [vmem:[#allocation7 + $0x220] sm:$0xf]
    %v7295 = vld [vmem:[#allocation7 + $0x224] sm:$0xf]
    %v7296 = vld [vmem:[#allocation7 + $0x228] sm:$0xf]
    %v7297 = vld [vmem:[#allocation7 + $0x22c] sm:$0xf]
    %v7298 = vld [vmem:[#allocation7 + $0x230] sm:$0xf]
    %v7299 = vld [vmem:[#allocation7 + $0x234] sm:$0xf]
    %v7300 = vld [vmem:[#allocation7 + $0x238] sm:$0xf]
    %v7301 = vld [vmem:[#allocation7 + $0x23c] sm:$0xf]
    %v7446 = vunpack.c.l.b16 %v7158
    %v7447 = vunpack.c.l.b16 %v7159
    %v7448 = vunpack.c.l.b16 %v7160
    %v7449 = vunpack.c.l.b16 %v7161
    %v7450 = vunpack.c.l.b16 %v7162
    %v7451 = vunpack.c.l.b16 %v7163
    %v7452 = vunpack.c.l.b16 %v7164
    %v7453 = vunpack.c.l.b16 %v7165
    %v7454 = vunpack.c.l.b16 %v7166
    %v7455 = vunpack.c.l.b16 %v7167
    %v7456 = vunpack.c.l.b16 %v7168
    %v7457 = vunpack.c.l.b16 %v7169
    %v7458 = vunpack.c.l.b16 %v7170
    %v7459 = vunpack.c.l.b16 %v7171
    %v7460 = vunpack.c.l.b16 %v7172
    %v7461 = vunpack.c.l.b16 %v7173
    %v7462 = vunpack.c.l.b16 %v7174
    %v7463 = vunpack.c.l.b16 %v7175
    %v7464 = vunpack.c.l.b16 %v7176
    %v7465 = vunpack.c.l.b16 %v7177
    %v7466 = vunpack.c.l.b16 %v7178
    %v7467 = vunpack.c.l.b16 %v7179
    %v7468 = vunpack.c.l.b16 %v7180
    %v7469 = vunpack.c.l.b16 %v7181
    %v7470 = vunpack.c.l.b16 %v7182
    %v7471 = vunpack.c.l.b16 %v7183
    %v7472 = vunpack.c.l.b16 %v7184
    %v7473 = vunpack.c.l.b16 %v7185
    %v7474 = vunpack.c.l.b16 %v7186
    %v7475 = vunpack.c.l.b16 %v7187
    %v7476 = vunpack.c.l.b16 %v7188
    %v7477 = vunpack.c.l.b16 %v7189
    %v7478 = vunpack.c.l.b16 %v7190
    %v7479 = vunpack.c.l.b16 %v7191
    %v7480 = vunpack.c.l.b16 %v7192
    %v7481 = vunpack.c.l.b16 %v7193
    %v7482 = vunpack.c.l.b16 %v7194
    %v7483 = vunpack.c.l.b16 %v7195
    %v7484 = vunpack.c.l.b16 %v7196
    %v7485 = vunpack.c.l.b16 %v7197
    %v7486 = vunpack.c.l.b16 %v7198
    %v7487 = vunpack.c.l.b16 %v7199
    %v7488 = vunpack.c.l.b16 %v7200
    %v7489 = vunpack.c.l.b16 %v7201
    %v7490 = vunpack.c.l.b16 %v7202
    %v7491 = vunpack.c.l.b16 %v7203
    %v7492 = vunpack.c.l.b16 %v7204
    %v7493 = vunpack.c.l.b16 %v7205
    %v7494 = vunpack.c.l.b16 %v7206
    %v7495 = vunpack.c.l.b16 %v7207
    %v7496 = vunpack.c.l.b16 %v7208
    %v7497 = vunpack.c.l.b16 %v7209
    %v7498 = vunpack.c.l.b16 %v7210
    %v7499 = vunpack.c.l.b16 %v7211
    %v7500 = vunpack.c.l.b16 %v7212
    %v7501 = vunpack.c.l.b16 %v7213
    %v7502 = vunpack.c.l.b16 %v7214
    %v7503 = vunpack.c.l.b16 %v7215
    %v7504 = vunpack.c.l.b16 %v7216
    %v7505 = vunpack.c.l.b16 %v7217
    %v7506 = vunpack.c.l.b16 %v7218
    %v7507 = vunpack.c.l.b16 %v7219
    %v7508 = vunpack.c.l.b16 %v7220
    %v7509 = vunpack.c.l.b16 %v7221
    %v7510 = vunpack.c.l.b16 %v7222
    %v7511 = vunpack.c.l.b16 %v7223
    %v7512 = vunpack.c.l.b16 %v7224
    %v7513 = vunpack.c.l.b16 %v7225
    %v7514 = vunpack.c.l.b16 %v7226
    %v7515 = vunpack.c.l.b16 %v7227
    %v7516 = vunpack.c.l.b16 %v7228
    %v7517 = vunpack.c.l.b16 %v7229
    %v7518 = vunpack.c.l.b16 %v7230
    %v7519 = vunpack.c.l.b16 %v7231
    %v7520 = vunpack.c.l.b16 %v7232
    %v7521 = vunpack.c.l.b16 %v7233
    %v7522 = vunpack.c.l.b16 %v7234
    %v7523 = vunpack.c.l.b16 %v7235
    %v7524 = vunpack.c.l.b16 %v7236
    %v7525 = vunpack.c.l.b16 %v7237
    %v7526 = vunpack.c.l.b16 %v7238
    %v7527 = vunpack.c.l.b16 %v7239
    %v7528 = vunpack.c.l.b16 %v7240
    %v7529 = vunpack.c.l.b16 %v7241
    %v7530 = vunpack.c.l.b16 %v7242
    %v7531 = vunpack.c.l.b16 %v7243
    %v7532 = vunpack.c.l.b16 %v7244
    %v7533 = vunpack.c.l.b16 %v7245
    %v7534 = vunpack.c.l.b16 %v7246
    %v7535 = vunpack.c.l.b16 %v7247
    %v7536 = vunpack.c.l.b16 %v7248
    %v7537 = vunpack.c.l.b16 %v7249
    %v7538 = vunpack.c.l.b16 %v7250
    %v7539 = vunpack.c.l.b16 %v7251
    %v7540 = vunpack.c.l.b16 %v7252
    %v7541 = vunpack.c.l.b16 %v7253
    %v7542 = vunpack.c.l.b16 %v7254
    %v7543 = vunpack.c.l.b16 %v7255
    %v7544 = vunpack.c.l.b16 %v7256
    %v7545 = vunpack.c.l.b16 %v7257
    %v7546 = vunpack.c.l.b16 %v7258
    %v7547 = vunpack.c.l.b16 %v7259
    %v7548 = vunpack.c.l.b16 %v7260
    %v7549 = vunpack.c.l.b16 %v7261
    %v7550 = vunpack.c.l.b16 %v7262
    %v7551 = vunpack.c.l.b16 %v7263
    %v7552 = vunpack.c.l.b16 %v7264
    %v7553 = vunpack.c.l.b16 %v7265
    %v7554 = vunpack.c.l.b16 %v7266
    %v7555 = vunpack.c.l.b16 %v7267
    %v7556 = vunpack.c.l.b16 %v7268
    %v7557 = vunpack.c.l.b16 %v7269
    %v7558 = vunpack.c.l.b16 %v7270
    %v7559 = vunpack.c.l.b16 %v7271
    %v7560 = vunpack.c.l.b16 %v7272
    %v7561 = vunpack.c.l.b16 %v7273
    %v7562 = vunpack.c.l.b16 %v7274
    %v7563 = vunpack.c.l.b16 %v7275
    %v7564 = vunpack.c.l.b16 %v7276
    %v7565 = vunpack.c.l.b16 %v7277
    %v7566 = vunpack.c.l.b16 %v7278
    %v7567 = vunpack.c.l.b16 %v7279
    %v7568 = vunpack.c.l.b16 %v7280
    %v7569 = vunpack.c.l.b16 %v7281
    %v7570 = vunpack.c.l.b16 %v7282
    %v7571 = vunpack.c.l.b16 %v7283
    %v7572 = vunpack.c.l.b16 %v7284
    %v7573 = vunpack.c.l.b16 %v7285
    %v7574 = vunpack.c.l.b16 %v7286
    %v7575 = vunpack.c.l.b16 %v7287
    %v7576 = vunpack.c.l.b16 %v7288
    %v7577 = vunpack.c.l.b16 %v7289
    %v7578 = vunpack.c.l.b16 %v7290
    %v7579 = vunpack.c.l.b16 %v7291
    %v7580 = vunpack.c.l.b16 %v7292
    %v7581 = vunpack.c.l.b16 %v7293
    %v7582 = vunpack.c.l.b16 %v7294
    %v7583 = vunpack.c.l.b16 %v7295
    %v7584 = vunpack.c.l.b16 %v7296
    %v7585 = vunpack.c.l.b16 %v7297
    %v7586 = vunpack.c.l.b16 %v7298
    %v7587 = vunpack.c.l.b16 %v7299
    %v7588 = vunpack.c.l.b16 %v7300
    %v7589 = vunpack.c.l.b16 %v7301
    %v7590 = vpack.c.b16 %v7447, %v7446
    %v7591 = vpack.c.b16 %v7449, %v7448
    %v7592 = vpack.c.b16 %v7451, %v7450
    %v7593 = vpack.c.b16 %v7453, %v7452
    %v7594 = vpack.c.b16 %v7455, %v7454
    %v7595 = vpack.c.b16 %v7457, %v7456
    %v7596 = vpack.c.b16 %v7459, %v7458
    %v7597 = vpack.c.b16 %v7461, %v7460
    %v7598 = vpack.c.b16 %v7463, %v7462
    %v7599 = vpack.c.b16 %v7465, %v7464
    %v7600 = vpack.c.b16 %v7467, %v7466
    %v7601 = vpack.c.b16 %v7469, %v7468
    %v7602 = vpack.c.b16 %v7471, %v7470
    %v7603 = vpack.c.b16 %v7473, %v7472
    %v7604 = vpack.c.b16 %v7475, %v7474
    %v7605 = vpack.c.b16 %v7477, %v7476
    %v7606 = vpack.c.b16 %v7479, %v7478
    %v7607 = vpack.c.b16 %v7481, %v7480
    %v7608 = vpack.c.b16 %v7483, %v7482
    %v7609 = vpack.c.b16 %v7485, %v7484
    %v7610 = vpack.c.b16 %v7487, %v7486
    %v7611 = vpack.c.b16 %v7489, %v7488
    %v7612 = vpack.c.b16 %v7491, %v7490
    %v7613 = vpack.c.b16 %v7493, %v7492
    %v7614 = vpack.c.b16 %v7495, %v7494
    %v7615 = vpack.c.b16 %v7497, %v7496
    %v7616 = vpack.c.b16 %v7499, %v7498
    %v7617 = vpack.c.b16 %v7501, %v7500
    %v7618 = vpack.c.b16 %v7503, %v7502
    %v7619 = vpack.c.b16 %v7505, %v7504
    %v7620 = vpack.c.b16 %v7507, %v7506
    %v7621 = vpack.c.b16 %v7509, %v7508
    %v7622 = vpack.c.b16 %v7511, %v7510
    %v7623 = vpack.c.b16 %v7513, %v7512
    %v7624 = vpack.c.b16 %v7515, %v7514
    %v7625 = vpack.c.b16 %v7517, %v7516
    %v7626 = vpack.c.b16 %v7519, %v7518
    %v7627 = vpack.c.b16 %v7521, %v7520
    %v7628 = vpack.c.b16 %v7523, %v7522
    %v7629 = vpack.c.b16 %v7525, %v7524
    %v7630 = vpack.c.b16 %v7527, %v7526
    %v7631 = vpack.c.b16 %v7529, %v7528
    %v7632 = vpack.c.b16 %v7531, %v7530
    %v7633 = vpack.c.b16 %v7533, %v7532
    %v7634 = vpack.c.b16 %v7535, %v7534
    %v7635 = vpack.c.b16 %v7537, %v7536
    %v7636 = vpack.c.b16 %v7539, %v7538
    %v7637 = vpack.c.b16 %v7541, %v7540
    %v7638 = vpack.c.b16 %v7543, %v7542
    %v7639 = vpack.c.b16 %v7545, %v7544
    %v7640 = vpack.c.b16 %v7547, %v7546
    %v7641 = vpack.c.b16 %v7549, %v7548
    %v7642 = vpack.c.b16 %v7551, %v7550
    %v7643 = vpack.c.b16 %v7553, %v7552
    %v7644 = vpack.c.b16 %v7555, %v7554
    %v7645 = vpack.c.b16 %v7557, %v7556
    %v7646 = vpack.c.b16 %v7559, %v7558
    %v7647 = vpack.c.b16 %v7561, %v7560
    %v7648 = vpack.c.b16 %v7563, %v7562
    %v7649 = vpack.c.b16 %v7565, %v7564
    %v7650 = vpack.c.b16 %v7567, %v7566
    %v7651 = vpack.c.b16 %v7569, %v7568
    %v7652 = vpack.c.b16 %v7571, %v7570
    %v7653 = vpack.c.b16 %v7573, %v7572
    %v7654 = vpack.c.b16 %v7575, %v7574
    %v7655 = vpack.c.b16 %v7577, %v7576
    %v7656 = vpack.c.b16 %v7579, %v7578
    %v7657 = vpack.c.b16 %v7581, %v7580
    %v7658 = vpack.c.b16 %v7583, %v7582
    %v7659 = vpack.c.b16 %v7585, %v7584
    %v7660 = vpack.c.b16 %v7587, %v7586
    %v7661 = vpack.c.b16 %v7589, %v7588
    %7734 = vmatprep.subr.bf16.mxu0 0
    %7735 = vmatpush1.bf16.msra.mxu0 %v7590
    %7736 = vmatprep.subr.bf16.mxu0 0
    %7737 = vmatpush1.bf16.msra.mxu0 %v7591
    %7738 = vmatprep.subr.bf16.mxu0 0
    %7739 = vmatpush1.bf16.msra.mxu0 %v7592
    %7740 = vmatprep.subr.bf16.mxu0 0
    %7741 = vmatpush1.bf16.msra.mxu0 %v7593
    %7742 = vmatprep.subr.bf16.mxu0 0
    %7743 = vmatpush1.bf16.msra.mxu0 %v7594
    %7744 = vmatprep.subr.bf16.mxu0 0
    %7745 = vmatpush1.bf16.msra.mxu0 %v7595
    %7746 = vmatprep.subr.bf16.mxu0 0
    %7747 = vmatpush1.bf16.msra.mxu0 %v7596
    %7748 = vmatprep.subr.bf16.mxu0 0
    %7749 = vmatpush1.bf16.msra.mxu0 %v7597
    %7750 = vmatprep.subr.bf16.mxu0 0
    %7751 = vmatpush1.bf16.msra.mxu0 %v7598
    %7752 = vmatprep.subr.bf16.mxu0 0
    %7753 = vmatpush1.bf16.msra.mxu0 %v7599
    %7754 = vmatprep.subr.bf16.mxu0 0
    %7755 = vmatpush1.bf16.msra.mxu0 %v7600
    %7756 = vmatprep.subr.bf16.mxu0 0
    %7757 = vmatpush1.bf16.msra.mxu0 %v7601
    %7758 = vmatprep.subr.bf16.mxu0 0
    %7759 = vmatpush1.bf16.msra.mxu0 %v7602
    %7760 = vmatprep.subr.bf16.mxu0 0
    %7761 = vmatpush1.bf16.msra.mxu0 %v7603
    %7762 = vmatprep.subr.bf16.mxu0 0
    %7763 = vmatpush1.bf16.msra.mxu0 %v7604
    %7764 = vmatprep.subr.bf16.mxu0 0
    %7765 = vmatpush1.bf16.msra.mxu0 %v7605
    %7766 = vmatprep.mubr.bf16.mxu0 %v6871
    %7767 = vmatmul.mubr.bf16.gmra.mrb[0].mxu0 %v6870
    %v7768 = vpop.f32.mrb[0].mxu0
    %v7769 = vadd.f32 0.0, %v7768
    %v7770 = vpop.f32.mrb[0].mxu0
    %v7771 = vpop.f32.mrb[0].mxu0
    %v7772 = vadd.f32 0.0, %v7771
    %v7773 = vpop.f32.mrb[0].mxu0
    %7774 = vmatprep.mubr.bf16.mxu0 %v6880
    %7775 = vmatmul.mubr.bf16.gmra.mrb[0].mxu0 %v6879
    %v7776 = vpop.f32.mrb[0].mxu0
    %v7777 = vadd.f32 0.0, %v7776
    %v7778 = vpop.f32.mrb[0].mxu0
    %v7779 = vpop.f32.mrb[0].mxu0
    %v7780 = vadd.f32 0.0, %v7779
    %v7781 = vpop.f32.mrb[0].mxu0
    %7782 = vmatprep.mubr.bf16.mxu0 %v6889
    %7783 = vmatmul.mubr.bf16.gmra.mrb[0].mxu0 %v6888
    %v7784 = vpop.f32.mrb[0].mxu0
    %v7785 = vadd.f32 0.0, %v7784
    %v7786 = vpop.f32.mrb[0].mxu0
    %v7787 = vpop.f32.mrb[0].mxu0
    %v7788 = vadd.f32 0.0, %v7787
    %v7789 = vpop.f32.mrb[0].mxu0
    %7790 = vmatprep.mubr.bf16.mxu0 %v6898
    %7791 = vmatmul.mubr.bf16.gmra.mrb[0].mxu0 %v6897
    %v7792 = vpop.f32.mrb[0].mxu0
    %v7793 = vadd.f32 0.0, %v7792
    %v7794 = vpop.f32.mrb[0].mxu0
    %v7795 = vpop.f32.mrb[0].mxu0
    %v7796 = vadd.f32 0.0, %v7795
    %v7797 = vpop.f32.mrb[0].mxu0
    %7798 = vmatprep.mubr.bf16.mxu0 %v6907
    %7799 = vmatmul.mubr.bf16.gmra.mrb[0].mxu0 %v6906
    %v7800 = vpop.f32.mrb[0].mxu0
    %v7801 = vadd.f32 0.0, %v7800
    %v7802 = vpop.f32.mrb[0].mxu0
    %v7803 = vpop.f32.mrb[0].mxu0
    %v7804 = vadd.f32 0.0, %v7803
    %v7805 = vpop.f32.mrb[0].mxu0
    %7806 = vmatprep.mubr.bf16.mxu0 %v6916
    %7807 = vmatmul.mubr.bf16.gmra.mrb[0].mxu0 %v6915
    %v7808 = vpop.f32.mrb[0].mxu0
    %v7809 = vadd.f32 0.0, %v7808
    %v7810 = vpop.f32.mrb[0].mxu0
    %v7811 = vpop.f32.mrb[0].mxu0
    %v7812 = vadd.f32 0.0, %v7811
    %v7813 = vpop.f32.mrb[0].mxu0
    %7814 = vmatprep.mubr.bf16.mxu0 %v6925
    %7815 = vmatmul.mubr.bf16.gmra.mrb[0].mxu0 %v6924
    %v7816 = vpop.f32.mrb[0].mxu0
    %v7817 = vadd.f32 0.0, %v7816
    %v7818 = vpop.f32.mrb[0].mxu0
    %v7819 = vpop.f32.mrb[0].mxu0
    %v7820 = vadd.f32 0.0, %v7819
    %v7821 = vpop.f32.mrb[0].mxu0
    %7822 = vmatprep.mubr.bf16.mxu0 %v6934
    %7823 = vmatmul.mubr.bf16.gmra.mrb[0].mxu0 %v6933
    %v7824 = vpop.f32.mrb[0].mxu0
    %v7825 = vadd.f32 0.0, %v7824
    %v7826 = vpop.f32.mrb[0].mxu0
    %v7827 = vpop.f32.mrb[0].mxu0
    %v7828 = vadd.f32 0.0, %v7827
    %v7829 = vpop.f32.mrb[0].mxu0
    %7830 = vmatprep.mubr.bf16.mxu0 %v6943
    %7831 = vmatmul.mubr.bf16.gmra.mrb[0].mxu0 %v6942
    %v7832 = vpop.f32.mrb[0].mxu0
    %v7833 = vadd.f32 0.0, %v7832
    %v7834 = vpop.f32.mrb[0].mxu0
    %v7835 = vpop.f32.mrb[0].mxu0
    %v7836 = vadd.f32 0.0, %v7835
    %v7837 = vpop.f32.mrb[0].mxu0
    %7838 = vmatprep.mubr.bf16.mxu0 %v6952
    %7839 = vmatmul.mubr.bf16.gmra.mrb[0].mxu0 %v6951
    %v7840 = vpop.f32.mrb[0].mxu0
    %v7841 = vadd.f32 0.0, %v7840
    %v7842 = vpop.f32.mrb[0].mxu0
    %v7843 = vpop.f32.mrb[0].mxu0
    %v7844 = vadd.f32 0.0, %v7843
    %v7845 = vpop.f32.mrb[0].mxu0
    %7846 = vmatprep.mubr.bf16.mxu0 %v6961
    %7847 = vmatmul.mubr.bf16.gmra.mrb[0].mxu0 %v6960
    %v7848 = vpop.f32.mrb[0].mxu0
    %v7849 = vadd.f32 0.0, %v7848
    %v7850 = vpop.f32.mrb[0].mxu0
    %v7851 = vpop.f32.mrb[0].mxu0
    %v7852 = vadd.f32 0.0, %v7851
    %v7853 = vpop.f32.mrb[0].mxu0
    %7854 = vmatprep.mubr.bf16.mxu0 %v6970
    %7855 = vmatmul.mubr.bf16.gmra.mrb[0].mxu0 %v6969
    %v7856 = vpop.f32.mrb[0].mxu0
    %v7857 = vadd.f32 0.0, %v7856
    %v7858 = vpop.f32.mrb[0].mxu0
    %v7859 = vpop.f32.mrb[0].mxu0
    %v7860 = vadd.f32 0.0, %v7859
    %v7861 = vpop.f32.mrb[0].mxu0
    %7862 = vmatprep.mubr.bf16.mxu0 %v6979
    %7863 = vmatmul.mubr.bf16.gmra.mrb[0].mxu0 %v6978
    %v7864 = vpop.f32.mrb[0].mxu0
    %v7865 = vadd.f32 0.0, %v7864
    %v7866 = vpop.f32.mrb[0].mxu0
    %v7867 = vpop.f32.mrb[0].mxu0
    %v7868 = vadd.f32 0.0, %v7867
    %v7869 = vpop.f32.mrb[0].mxu0
    %7870 = vmatprep.mubr.bf16.mxu0 %v6988
    %7871 = vmatmul.mubr.bf16.gmra.mrb[0].mxu0 %v6987
    %v7872 = vpop.f32.mrb[0].mxu0
    %v7873 = vadd.f32 0.0, %v7872
    %v7874 = vpop.f32.mrb[0].mxu0
    %v7875 = vpop.f32.mrb[0].mxu0
    %v7876 = vadd.f32 0.0, %v7875
    %v7877 = vpop.f32.mrb[0].mxu0
    %7878 = vmatprep.mubr.bf16.mxu0 %v6997
    %7879 = vmatmul.mubr.bf16.gmra.mrb[0].mxu0 %v6996
    %v7880 = vpop.f32.mrb[0].mxu0
    %v7881 = vadd.f32 0.0, %v7880
    %v7882 = vpop.f32.mrb[0].mxu0
    %v7883 = vpop.f32.mrb[0].mxu0
    %v7884 = vadd.f32 0.0, %v7883
    %v7885 = vpop.f32.mrb[0].mxu0
    %7886 = vmatprep.mubr.bf16.mxu0 %v7006
    %7887 = vmatmul.mubr.bf16.gmra.mrb[0].mxu0 %v7005
    %v7888 = vpop.f32.mrb[0].mxu0
    %v7889 = vadd.f32 0.0, %v7888
    %v7890 = vpop.f32.mrb[0].mxu0
    %v7891 = vpop.f32.mrb[0].mxu0
    %v7892 = vadd.f32 0.0, %v7891
    %v7893 = vpop.f32.mrb[0].mxu0
    %7894 = vmatprep.mubr.bf16.mxu0 %v7015
    %7895 = vmatmul.mubr.bf16.gmra.mrb[0].mxu0 %v7014
    %v7896 = vpop.f32.mrb[0].mxu0
    %v7897 = vadd.f32 0.0, %v7896
    %v7898 = vpop.f32.mrb[0].mxu0
    %v7899 = vpop.f32.mrb[0].mxu0
    %v7900 = vadd.f32 0.0, %v7899
    %v7901 = vpop.f32.mrb[0].mxu0
    %7902 = vmatprep.mubr.bf16.mxu0 %v7024
    %7903 = vmatmul.mubr.bf16.gmra.mrb[0].mxu0 %v7023
    %v7904 = vpop.f32.mrb[0].mxu0
    %v7905 = vadd.f32 0.0, %v7904
    %v7906 = vpop.f32.mrb[0].mxu0
    %v7907 = vpop.f32.mrb[0].mxu0
    %v7908 = vadd.f32 0.0, %v7907
    %v7909 = vpop.f32.mrb[0].mxu0
    %7910 = vmatprep.mubr.bf16.mxu0 %v7033
    %7911 = vmatmul.mubr.bf16.gmra.mrb[0].mxu0 %v7032
    %v7912 = vpop.f32.mrb[0].mxu0
    %v7913 = vadd.f32 0.0, %v7912
    %v7914 = vpop.f32.mrb[0].mxu0
    %v7915 = vpop.f32.mrb[0].mxu0
    %v7916 = vadd.f32 0.0, %v7915
    %v7917 = vpop.f32.mrb[0].mxu0
    %7918 = vmatprep.mubr.bf16.mxu0 %v7042
    %7919 = vmatmul.mubr.bf16.gmra.mrb[0].mxu0 %v7041
    %v7920 = vpop.f32.mrb[0].mxu0
    %v7921 = vadd.f32 0.0, %v7920
    %v7922 = vpop.f32.mrb[0].mxu0
    %v7923 = vpop.f32.mrb[0].mxu0
    %v7924 = vadd.f32 0.0, %v7923
    %v7925 = vpop.f32.mrb[0].mxu0
    %7926 = vmatprep.mubr.bf16.mxu0 %v7051
    %7927 = vmatmul.mubr.bf16.gmra.mrb[0].mxu0 %v7050
    %v7928 = vpop.f32.mrb[0].mxu0
    %v7929 = vadd.f32 0.0, %v7928
    %v7930 = vpop.f32.mrb[0].mxu0
    %v7931 = vpop.f32.mrb[0].mxu0
    %v7932 = vadd.f32 0.0, %v7931
    %v7933 = vpop.f32.mrb[0].mxu0
    %7934 = vmatprep.mubr.bf16.mxu0 %v7060
    %7935 = vmatmul.mubr.bf16.gmra.mrb[0].mxu0 %v7059
    %v7936 = vpop.f32.mrb[0].mxu0
    %v7937 = vadd.f32 0.0, %v7936
    %v7938 = vpop.f32.mrb[0].mxu0
    %v7939 = vpop.f32.mrb[0].mxu0
    %v7940 = vadd.f32 0.0, %v7939
    %v7941 = vpop.f32.mrb[0].mxu0
    %7942 = vmatprep.mubr.bf16.mxu0 %v7069
    %7943 = vmatmul.mubr.bf16.gmra.mrb[0].mxu0 %v7068
    %v7944 = vpop.f32.mrb[0].mxu0
    %v7945 = vadd.f32 0.0, %v7944
    %v7946 = vpop.f32.mrb[0].mxu0
    %v7947 = vpop.f32.mrb[0].mxu0
    %v7948 = vadd.f32 0.0, %v7947
    %v7949 = vpop.f32.mrb[0].mxu0
    %7950 = vmatprep.mubr.bf16.mxu0 %v7078
    %7951 = vmatmul.mubr.bf16.gmra.mrb[0].mxu0 %v7077
    %v7952 = vpop.f32.mrb[0].mxu0
    %v7953 = vadd.f32 0.0, %v7952
    %v7954 = vpop.f32.mrb[0].mxu0
    %v7955 = vpop.f32.mrb[0].mxu0
    %v7956 = vadd.f32 0.0, %v7955
    %v7957 = vpop.f32.mrb[0].mxu0
    %7958 = vmatprep.mubr.bf16.mxu0 %v7087
    %7959 = vmatmul.mubr.bf16.gmra.mrb[0].mxu0 %v7086
    %v7960 = vpop.f32.mrb[0].mxu0
    %v7961 = vadd.f32 0.0, %v7960
    %v7962 = vpop.f32.mrb[0].mxu0
    %v7963 = vpop.f32.mrb[0].mxu0
    %v7964 = vadd.f32 0.0, %v7963
    %v7965 = vpop.f32.mrb[0].mxu0
    %7966 = vmatprep.mubr.bf16.mxu0 %v7096
    %7967 = vmatmul.mubr.bf16.gmra.mrb[0].mxu0 %v7095
    %v7968 = vpop.f32.mrb[0].mxu0
    %v7969 = vadd.f32 0.0, %v7968
    %v7970 = vpop.f32.mrb[0].mxu0
    %v7971 = vpop.f32.mrb[0].mxu0
    %v7972 = vadd.f32 0.0, %v7971
    %v7973 = vpop.f32.mrb[0].mxu0
    %7974 = vmatprep.mubr.bf16.mxu0 %v7105
    %7975 = vmatmul.mubr.bf16.gmra.mrb[0].mxu0 %v7104
    %v7976 = vpop.f32.mrb[0].mxu0
    %v7977 = vadd.f32 0.0, %v7976
    %v7978 = vpop.f32.mrb[0].mxu0
    %v7979 = vpop.f32.mrb[0].mxu0
    %v7980 = vadd.f32 0.0, %v7979
    %v7981 = vpop.f32.mrb[0].mxu0
    %7982 = vmatprep.mubr.bf16.mxu0 %v7114
    %7983 = vmatmul.mubr.bf16.gmra.mrb[0].mxu0 %v7113
    %v7984 = vpop.f32.mrb[0].mxu0
    %v7985 = vadd.f32 0.0, %v7984
    %v7986 = vpop.f32.mrb[0].mxu0
    %v7987 = vpop.f32.mrb[0].mxu0
    %v7988 = vadd.f32 0.0, %v7987
    %v7989 = vpop.f32.mrb[0].mxu0
    %7990 = vmatprep.mubr.bf16.mxu0 %v7123
    %7991 = vmatmul.mubr.bf16.gmra.mrb[0].mxu0 %v7122
    %v7992 = vpop.f32.mrb[0].mxu0
    %v7993 = vadd.f32 0.0, %v7992
    %v7994 = vpop.f32.mrb[0].mxu0
    %v7995 = vpop.f32.mrb[0].mxu0
    %v7996 = vadd.f32 0.0, %v7995
    %v7997 = vpop.f32.mrb[0].mxu0
    %7998 = vmatprep.mubr.bf16.mxu0 %v7132
    %7999 = vmatmul.mubr.bf16.gmra.mrb[0].mxu0 %v7131
    %v8000 = vpop.f32.mrb[0].mxu0
    %v8001 = vadd.f32 0.0, %v8000
    %v8002 = vpop.f32.mrb[0].mxu0
    %v8003 = vpop.f32.mrb[0].mxu0
    %v8004 = vadd.f32 0.0, %v8003
    %v8005 = vpop.f32.mrb[0].mxu0
    %8006 = vmatprep.mubr.bf16.mxu0 %v7141
    %8007 = vmatmul.mubr.bf16.gmra.mrb[0].mxu0 %v7140
    %v8008 = vpop.f32.mrb[0].mxu0
    %v8009 = vadd.f32 0.0, %v8008
    %v8010 = vpop.f32.mrb[0].mxu0
    %v8011 = vpop.f32.mrb[0].mxu0
    %v8012 = vadd.f32 0.0, %v8011
    %v8013 = vpop.f32.mrb[0].mxu0
    %8014 = vmatprep.mubr.bf16.mxu0 %v7150
    %8015 = vmatmul.mubr.bf16.gmra.mrb[0].mxu0 %v7149
    %v8016 = vpop.f32.mrb[0].mxu0
    %v8017 = vadd.f32 0.0, %v8016
    %v8018 = vpop.f32.mrb[0].mxu0
    %v8019 = vpop.f32.mrb[0].mxu0
    %v8020 = vadd.f32 0.0, %v8019
    %v8021 = vpop.f32.mrb[0].mxu0
    %8022 = vdwg.mxu0
    %8023 = vmatprep.subr.bf16.mxu0 0
    %8024 = vmatpush1.bf16.msra.mxu0 %v7606
    %8025 = vmatprep.subr.bf16.mxu0 0
    %8026 = vmatpush1.bf16.msra.mxu0 %v7607
    %8027 = vmatprep.subr.bf16.mxu0 0
    %8028 = vmatpush1.bf16.msra.mxu0 %v7608
    %8029 = vmatprep.subr.bf16.mxu0 0
    %8030 = vmatpush1.bf16.msra.mxu0 %v7609
    %8031 = vmatprep.subr.bf16.mxu0 0
    %8032 = vmatpush1.bf16.msra.mxu0 %v7610
    %8033 = vmatprep.subr.bf16.mxu0 0
    %8034 = vmatpush1.bf16.msra.mxu0 %v7611
    %8035 = vmatprep.subr.bf16.mxu0 0
    %8036 = vmatpush1.bf16.msra.mxu0 %v7612
    %8037 = vmatprep.subr.bf16.mxu0 0
    %8038 = vmatpush1.bf16.msra.mxu0 %v7613
    %8039 = vmatprep.subr.bf16.mxu0 0
    %8040 = vmatpush1.bf16.msra.mxu0 %v7614
    %8041 = vmatprep.subr.bf16.mxu0 0
    %8042 = vmatpush1.bf16.msra.mxu0 %v7615
    %8043 = vmatprep.subr.bf16.mxu0 0
    %8044 = vmatpush1.bf16.msra.mxu0 %v7616
    %8045 = vmatprep.subr.bf16.mxu0 0
    %8046 = vmatpush1.bf16.msra.mxu0 %v7617
    %8047 = vmatprep.subr.bf16.mxu0 0
    %8048 = vmatpush1.bf16.msra.mxu0 %v7618
    %8049 = vmatprep.subr.bf16.mxu0 0
    %8050 = vmatpush1.bf16.msra.mxu0 %v7619
    %8051 = vmatprep.subr.bf16.mxu0 0
    %8052 = vmatpush1.bf16.msra.mxu0 %v7620
    %8053 = vmatprep.subr.bf16.mxu0 0
    %8054 = vmatpush1.bf16.msra.mxu0 %v7621
    %8055 = vmatprep.mubr.bf16.mxu0 %v6873
    %8056 = vmatmul.mubr.bf16.gmra.mrb[0].mxu0 %v6872
    %v8057 = vpop.f32.mrb[0].mxu0
    %v8058 = vadd.f32 %v7769, %v8057
    %v8059 = vpop.f32.mrb[0].mxu0
    %v8060 = vpop.f32.mrb[0].mxu0
    %v8061 = vadd.f32 %v7772, %v8060
    %v8062 = vpop.f32.mrb[0].mxu0
    %8063 = vmatprep.mubr.bf16.mxu0 %v6882
    %8064 = vmatmul.mubr.bf16.gmra.mrb[0].mxu0 %v6881
    %v8065 = vpop.f32.mrb[0].mxu0
    %v8066 = vadd.f32 %v7777, %v8065
    %v8067 = vpop.f32.mrb[0].mxu0
    %v8068 = vpop.f32.mrb[0].mxu0
    %v8069 = vadd.f32 %v7780, %v8068
    %v8070 = vpop.f32.mrb[0].mxu0
    %8071 = vmatprep.mubr.bf16.mxu0 %v6891
    %8072 = vmatmul.mubr.bf16.gmra.mrb[0].mxu0 %v6890
    %v8073 = vpop.f32.mrb[0].mxu0
    %v8074 = vadd.f32 %v7785, %v8073
    %v8075 = vpop.f32.mrb[0].mxu0
    %v8076 = vpop.f32.mrb[0].mxu0
    %v8077 = vadd.f32 %v7788, %v8076
    %v8078 = vpop.f32.mrb[0].mxu0
    %8079 = vmatprep.mubr.bf16.mxu0 %v6900
    %8080 = vmatmul.mubr.bf16.gmra.mrb[0].mxu0 %v6899
    %v8081 = vpop.f32.mrb[0].mxu0
    %v8082 = vadd.f32 %v7793, %v8081
    %v8083 = vpop.f32.mrb[0].mxu0
    %v8084 = vpop.f32.mrb[0].mxu0
    %v8085 = vadd.f32 %v7796, %v8084
    %v8086 = vpop.f32.mrb[0].mxu0
    %8087 = vmatprep.mubr.bf16.mxu0 %v6909
    %8088 = vmatmul.mubr.bf16.gmra.mrb[0].mxu0 %v6908
    %v8089 = vpop.f32.mrb[0].mxu0
    %v8090 = vadd.f32 %v7801, %v8089
    %v8091 = vpop.f32.mrb[0].mxu0
    %v8092 = vpop.f32.mrb[0].mxu0
    %v8093 = vadd.f32 %v7804, %v8092
    %v8094 = vpop.f32.mrb[0].mxu0
    %8095 = vmatprep.mubr.bf16.mxu0 %v6918
    %8096 = vmatmul.mubr.bf16.gmra.mrb[0].mxu0 %v6917
    %v8097 = vpop.f32.mrb[0].mxu0
    %v8098 = vadd.f32 %v7809, %v8097
    %v8099 = vpop.f32.mrb[0].mxu0
    %v8100 = vpop.f32.mrb[0].mxu0
    %v8101 = vadd.f32 %v7812, %v8100
    %v8102 = vpop.f32.mrb[0].mxu0
    %8103 = vmatprep.mubr.bf16.mxu0 %v6927
    %8104 = vmatmul.mubr.bf16.gmra.mrb[0].mxu0 %v6926
    %v8105 = vpop.f32.mrb[0].mxu0
    %v8106 = vadd.f32 %v7817, %v8105
    %v8107 = vpop.f32.mrb[0].mxu0
    %v8108 = vpop.f32.mrb[0].mxu0
    %v8109 = vadd.f32 %v7820, %v8108
    %v8110 = vpop.f32.mrb[0].mxu0
    %8111 = vmatprep.mubr.bf16.mxu0 %v6936
    %8112 = vmatmul.mubr.bf16.gmra.mrb[0].mxu0 %v6935
    %v8113 = vpop.f32.mrb[0].mxu0
    %v8114 = vadd.f32 %v7825, %v8113
    %v8115 = vpop.f32.mrb[0].mxu0
    %v8116 = vpop.f32.mrb[0].mxu0
    %v8117 = vadd.f32 %v7828, %v8116
    %v8118 = vpop.f32.mrb[0].mxu0
    %8119 = vmatprep.mubr.bf16.mxu0 %v6945
    %8120 = vmatmul.mubr.bf16.gmra.mrb[0].mxu0 %v6944
    %v8121 = vpop.f32.mrb[0].mxu0
    %v8122 = vadd.f32 %v7833, %v8121
    %v8123 = vpop.f32.mrb[0].mxu0
    %v8124 = vpop.f32.mrb[0].mxu0
    %v8125 = vadd.f32 %v7836, %v8124
    %v8126 = vpop.f32.mrb[0].mxu0
    %8127 = vmatprep.mubr.bf16.mxu0 %v6954
    %8128 = vmatmul.mubr.bf16.gmra.mrb[0].mxu0 %v6953
    %v8129 = vpop.f32.mrb[0].mxu0
    %v8130 = vadd.f32 %v7841, %v8129
    %v8131 = vpop.f32.mrb[0].mxu0
    %v8132 = vpop.f32.mrb[0].mxu0
    %v8133 = vadd.f32 %v7844, %v8132
    %v8134 = vpop.f32.mrb[0].mxu0
    %8135 = vmatprep.mubr.bf16.mxu0 %v6963
    %8136 = vmatmul.mubr.bf16.gmra.mrb[0].mxu0 %v6962
    %v8137 = vpop.f32.mrb[0].mxu0
    %v8138 = vadd.f32 %v7849, %v8137
    %v8139 = vpop.f32.mrb[0].mxu0
    %v8140 = vpop.f32.mrb[0].mxu0
    %v8141 = vadd.f32 %v7852, %v8140
    %v8142 = vpop.f32.mrb[0].mxu0
    %8143 = vmatprep.mubr.bf16.mxu0 %v6972
    %8144 = vmatmul.mubr.bf16.gmra.mrb[0].mxu0 %v6971
    %v8145 = vpop.f32.mrb[0].mxu0
    %v8146 = vadd.f32 %v7857, %v8145
    %v8147 = vpop.f32.mrb[0].mxu0
    %v8148 = vpop.f32.mrb[0].mxu0
    %v8149 = vadd.f32 %v7860, %v8148
    %v8150 = vpop.f32.mrb[0].mxu0
    %8151 = vmatprep.mubr.bf16.mxu0 %v6981
    %8152 = vmatmul.mubr.bf16.gmra.mrb[0].mxu0 %v6980
    %v8153 = vpop.f32.mrb[0].mxu0
    %v8154 = vadd.f32 %v7865, %v8153
    %v8155 = vpop.f32.mrb[0].mxu0
    %v8156 = vpop.f32.mrb[0].mxu0
    %v8157 = vadd.f32 %v7868, %v8156
    %v8158 = vpop.f32.mrb[0].mxu0
    %8159 = vmatprep.mubr.bf16.mxu0 %v6990
    %8160 = vmatmul.mubr.bf16.gmra.mrb[0].mxu0 %v6989
    %v8161 = vpop.f32.mrb[0].mxu0
    %v8162 = vadd.f32 %v7873, %v8161
    %v8163 = vpop.f32.mrb[0].mxu0
    %v8164 = vpop.f32.mrb[0].mxu0
    %v8165 = vadd.f32 %v7876, %v8164
    %v8166 = vpop.f32.mrb[0].mxu0
    %8167 = vmatprep.mubr.bf16.mxu0 %v6999
    %8168 = vmatmul.mubr.bf16.gmra.mrb[0].mxu0 %v6998
    %v8169 = vpop.f32.mrb[0].mxu0
    %v8170 = vadd.f32 %v7881, %v8169
    %v8171 = vpop.f32.mrb[0].mxu0
    %v8172 = vpop.f32.mrb[0].mxu0
    %v8173 = vadd.f32 %v7884, %v8172
    %v8174 = vpop.f32.mrb[0].mxu0
    %8175 = vmatprep.mubr.bf16.mxu0 %v7008
    %8176 = vmatmul.mubr.bf16.gmra.mrb[0].mxu0 %v7007
    %v8177 = vpop.f32.mrb[0].mxu0
    %v8178 = vadd.f32 %v7889, %v8177
    %v8179 = vpop.f32.mrb[0].mxu0
    %v8180 = vpop.f32.mrb[0].mxu0
    %v8181 = vadd.f32 %v7892, %v8180
    %v8182 = vpop.f32.mrb[0].mxu0
    %8183 = vmatprep.mubr.bf16.mxu0 %v7017
    %8184 = vmatmul.mubr.bf16.gmra.mrb[0].mxu0 %v7016
    %v8185 = vpop.f32.mrb[0].mxu0
    %v8186 = vadd.f32 %v7897, %v8185
    %v8187 = vpop.f32.mrb[0].mxu0
    %v8188 = vpop.f32.mrb[0].mxu0
    %v8189 = vadd.f32 %v7900, %v8188
    %v8190 = vpop.f32.mrb[0].mxu0
    %8191 = vmatprep.mubr.bf16.mxu0 %v7026
    %8192 = vmatmul.mubr.bf16.gmra.mrb[0].mxu0 %v7025
    %v8193 = vpop.f32.mrb[0].mxu0
    %v8194 = vadd.f32 %v7905, %v8193
    %v8195 = vpop.f32.mrb[0].mxu0
    %v8196 = vpop.f32.mrb[0].mxu0
    %v8197 = vadd.f32 %v7908, %v8196
    %v8198 = vpop.f32.mrb[0].mxu0
    %8199 = vmatprep.mubr.bf16.mxu0 %v7035
    %8200 = vmatmul.mubr.bf16.gmra.mrb[0].mxu0 %v7034
    %v8201 = vpop.f32.mrb[0].mxu0
    %v8202 = vadd.f32 %v7913, %v8201
    %v8203 = vpop.f32.mrb[0].mxu0
    %v8204 = vpop.f32.mrb[0].mxu0
    %v8205 = vadd.f32 %v7916, %v8204
    %v8206 = vpop.f32.mrb[0].mxu0
    %8207 = vmatprep.mubr.bf16.mxu0 %v7044
    %8208 = vmatmul.mubr.bf16.gmra.mrb[0].mxu0 %v7043
    %v8209 = vpop.f32.mrb[0].mxu0
    %v8210 = vadd.f32 %v7921, %v8209
    %v8211 = vpop.f32.mrb[0].mxu0
    %v8212 = vpop.f32.mrb[0].mxu0
    %v8213 = vadd.f32 %v7924, %v8212
    %v8214 = vpop.f32.mrb[0].mxu0
    %8215 = vmatprep.mubr.bf16.mxu0 %v7053
    %8216 = vmatmul.mubr.bf16.gmra.mrb[0].mxu0 %v7052
    %v8217 = vpop.f32.mrb[0].mxu0
    %v8218 = vadd.f32 %v7929, %v8217
    %v8219 = vpop.f32.mrb[0].mxu0
    %v8220 = vpop.f32.mrb[0].mxu0
    %v8221 = vadd.f32 %v7932, %v8220
    %v8222 = vpop.f32.mrb[0].mxu0
    %8223 = vmatprep.mubr.bf16.mxu0 %v7062
    %8224 = vmatmul.mubr.bf16.gmra.mrb[0].mxu0 %v7061
    %v8225 = vpop.f32.mrb[0].mxu0
    %v8226 = vadd.f32 %v7937, %v8225
    %v8227 = vpop.f32.mrb[0].mxu0
    %v8228 = vpop.f32.mrb[0].mxu0
    %v8229 = vadd.f32 %v7940, %v8228
    %v8230 = vpop.f32.mrb[0].mxu0
    %8231 = vmatprep.mubr.bf16.mxu0 %v7071
    %8232 = vmatmul.mubr.bf16.gmra.mrb[0].mxu0 %v7070
    %v8233 = vpop.f32.mrb[0].mxu0
    %v8234 = vadd.f32 %v7945, %v8233
    %v8235 = vpop.f32.mrb[0].mxu0
    %v8236 = vpop.f32.mrb[0].mxu0
    %v8237 = vadd.f32 %v7948, %v8236
    %v8238 = vpop.f32.mrb[0].mxu0
    %8239 = vmatprep.mubr.bf16.mxu0 %v7080
    %8240 = vmatmul.mubr.bf16.gmra.mrb[0].mxu0 %v7079
    %v8241 = vpop.f32.mrb[0].mxu0
    %v8242 = vadd.f32 %v7953, %v8241
    %v8243 = vpop.f32.mrb[0].mxu0
    %v8244 = vpop.f32.mrb[0].mxu0
    %v8245 = vadd.f32 %v7956, %v8244
    %v8246 = vpop.f32.mrb[0].mxu0
    %8247 = vmatprep.mubr.bf16.mxu0 %v7089
    %8248 = vmatmul.mubr.bf16.gmra.mrb[0].mxu0 %v7088
    %v8249 = vpop.f32.mrb[0].mxu0
    %v8250 = vadd.f32 %v7961, %v8249
    %v8251 = vpop.f32.mrb[0].mxu0
    %v8252 = vpop.f32.mrb[0].mxu0
    %v8253 = vadd.f32 %v7964, %v8252
    %v8254 = vpop.f32.mrb[0].mxu0
    %8255 = vmatprep.mubr.bf16.mxu0 %v7098
    %8256 = vmatmul.mubr.bf16.gmra.mrb[0].mxu0 %v7097
    %v8257 = vpop.f32.mrb[0].mxu0
    %v8258 = vadd.f32 %v7969, %v8257
    %v8259 = vpop.f32.mrb[0].mxu0
    %v8260 = vpop.f32.mrb[0].mxu0
    %v8261 = vadd.f32 %v7972, %v8260
    %v8262 = vpop.f32.mrb[0].mxu0
    %8263 = vmatprep.mubr.bf16.mxu0 %v7107
    %8264 = vmatmul.mubr.bf16.gmra.mrb[0].mxu0 %v7106
    %v8265 = vpop.f32.mrb[0].mxu0
    %v8266 = vadd.f32 %v7977, %v8265
    %v8267 = vpop.f32.mrb[0].mxu0
    %v8268 = vpop.f32.mrb[0].mxu0
    %v8269 = vadd.f32 %v7980, %v8268
    %v8270 = vpop.f32.mrb[0].mxu0
    %8271 = vmatprep.mubr.bf16.mxu0 %v7116
    %8272 = vmatmul.mubr.bf16.gmra.mrb[0].mxu0 %v7115
    %v8273 = vpop.f32.mrb[0].mxu0
    %v8274 = vadd.f32 %v7985, %v8273
    %v8275 = vpop.f32.mrb[0].mxu0
    %v8276 = vpop.f32.mrb[0].mxu0
    %v8277 = vadd.f32 %v7988, %v8276
    %v8278 = vpop.f32.mrb[0].mxu0
    %8279 = vmatprep.mubr.bf16.mxu0 %v7125
    %8280 = vmatmul.mubr.bf16.gmra.mrb[0].mxu0 %v7124
    %v8281 = vpop.f32.mrb[0].mxu0
    %v8282 = vadd.f32 %v7993, %v8281
    %v8283 = vpop.f32.mrb[0].mxu0
    %v8284 = vpop.f32.mrb[0].mxu0
    %v8285 = vadd.f32 %v7996, %v8284
    %v8286 = vpop.f32.mrb[0].mxu0
    %8287 = vmatprep.mubr.bf16.mxu0 %v7134
    %8288 = vmatmul.mubr.bf16.gmra.mrb[0].mxu0 %v7133
    %v8289 = vpop.f32.mrb[0].mxu0
    %v8290 = vadd.f32 %v8001, %v8289
    %v8291 = vpop.f32.mrb[0].mxu0
    %v8292 = vpop.f32.mrb[0].mxu0
    %v8293 = vadd.f32 %v8004, %v8292
    %v8294 = vpop.f32.mrb[0].mxu0
    %8295 = vmatprep.mubr.bf16.mxu0 %v7143
    %8296 = vmatmul.mubr.bf16.gmra.mrb[0].mxu0 %v7142
    %v8297 = vpop.f32.mrb[0].mxu0
    %v8298 = vadd.f32 %v8009, %v8297
    %v8299 = vpop.f32.mrb[0].mxu0
    %v8300 = vpop.f32.mrb[0].mxu0
    %v8301 = vadd.f32 %v8012, %v8300
    %v8302 = vpop.f32.mrb[0].mxu0
    %8303 = vmatprep.mubr.bf16.mxu0 %v7152
    %8304 = vmatmul.mubr.bf16.gmra.mrb[0].mxu0 %v7151
    %v8305 = vpop.f32.mrb[0].mxu0
    %v8306 = vadd.f32 %v8017, %v8305
    %v8307 = vpop.f32.mrb[0].mxu0
    %v8308 = vpop.f32.mrb[0].mxu0
    %v8309 = vadd.f32 %v8020, %v8308
    %v8310 = vpop.f32.mrb[0].mxu0
    %8311 = vdwg.mxu0
    %8312 = vmatprep.subr.bf16.mxu0 0
    %8313 = vmatpush1.bf16.msra.mxu0 %v7622
    %8314 = vmatprep.subr.bf16.mxu0 0
    %8315 = vmatpush1.bf16.msra.mxu0 %v7623
    %8316 = vmatprep.subr.bf16.mxu0 0
    %8317 = vmatpush1.bf16.msra.mxu0 %v7624
    %8318 = vmatprep.subr.bf16.mxu0 0
    %8319 = vmatpush1.bf16.msra.mxu0 %v7625
    %8320 = vmatprep.subr.bf16.mxu0 0
    %8321 = vmatpush1.bf16.msra.mxu0 %v7626
    %8322 = vmatprep.subr.bf16.mxu0 0
    %8323 = vmatpush1.bf16.msra.mxu0 %v7627
    %8324 = vmatprep.subr.bf16.mxu0 0
    %8325 = vmatpush1.bf16.msra.mxu0 %v7628
    %8326 = vmatprep.subr.bf16.mxu0 0
    %8327 = vmatpush1.bf16.msra.mxu0 %v7629
    %8328 = vmatprep.subr.bf16.mxu0 0
    %8329 = vmatpush1.bf16.msra.mxu0 %v7630
    %8330 = vmatprep.subr.bf16.mxu0 0
    %8331 = vmatpush1.bf16.msra.mxu0 %v7631
    %8332 = vmatprep.subr.bf16.mxu0 0
    %8333 = vmatpush1.bf16.msra.mxu0 %v7632
    %8334 = vmatprep.subr.bf16.mxu0 0
    %8335 = vmatpush1.bf16.msra.mxu0 %v7633
    %8336 = vmatprep.subr.bf16.mxu0 0
    %8337 = vmatpush1.bf16.msra.mxu0 %v7634
    %8338 = vmatprep.subr.bf16.mxu0 0
    %8339 = vmatpush1.bf16.msra.mxu0 %v7635
    %8340 = vmatprep.subr.bf16.mxu0 0
    %8341 = vmatpush1.bf16.msra.mxu0 %v7636
    %8342 = vmatprep.subr.bf16.mxu0 0
    %8343 = vmatpush1.bf16.msra.mxu0 %v7637
    %8344 = vmatprep.mubr.bf16.mxu0 %v6875
    %8345 = vmatmul.mubr.bf16.gmra.mrb[0].mxu0 %v6874
    %v8346 = vpop.f32.mrb[0].mxu0
    %v8347 = vadd.f32 %v8058, %v8346
    %v8348 = vpop.f32.mrb[0].mxu0
    %v8349 = vpop.f32.mrb[0].mxu0
    %v8350 = vadd.f32 %v8061, %v8349
    %v8351 = vpop.f32.mrb[0].mxu0
    %8352 = vmatprep.mubr.bf16.mxu0 %v6884
    %8353 = vmatmul.mubr.bf16.gmra.mrb[0].mxu0 %v6883
    %v8354 = vpop.f32.mrb[0].mxu0
    %v8355 = vadd.f32 %v8066, %v8354
    %v8356 = vpop.f32.mrb[0].mxu0
    %v8357 = vpop.f32.mrb[0].mxu0
    %v8358 = vadd.f32 %v8069, %v8357
    %v8359 = vpop.f32.mrb[0].mxu0
    %8360 = vmatprep.mubr.bf16.mxu0 %v6893
    %8361 = vmatmul.mubr.bf16.gmra.mrb[0].mxu0 %v6892
    %v8362 = vpop.f32.mrb[0].mxu0
    %v8363 = vadd.f32 %v8074, %v8362
    %v8364 = vpop.f32.mrb[0].mxu0
    %v8365 = vpop.f32.mrb[0].mxu0
    %v8366 = vadd.f32 %v8077, %v8365
    %v8367 = vpop.f32.mrb[0].mxu0
    %8368 = vmatprep.mubr.bf16.mxu0 %v6902
    %8369 = vmatmul.mubr.bf16.gmra.mrb[0].mxu0 %v6901
    %v8370 = vpop.f32.mrb[0].mxu0
    %v8371 = vadd.f32 %v8082, %v8370
    %v8372 = vpop.f32.mrb[0].mxu0
    %v8373 = vpop.f32.mrb[0].mxu0
    %v8374 = vadd.f32 %v8085, %v8373
    %v8375 = vpop.f32.mrb[0].mxu0
    %8376 = vmatprep.mubr.bf16.mxu0 %v6911
    %8377 = vmatmul.mubr.bf16.gmra.mrb[0].mxu0 %v6910
    %v8378 = vpop.f32.mrb[0].mxu0
    %v8379 = vadd.f32 %v8090, %v8378
    %v8380 = vpop.f32.mrb[0].mxu0
    %v8381 = vpop.f32.mrb[0].mxu0
    %v8382 = vadd.f32 %v8093, %v8381
    %v8383 = vpop.f32.mrb[0].mxu0
    %8384 = vmatprep.mubr.bf16.mxu0 %v6920
    %8385 = vmatmul.mubr.bf16.gmra.mrb[0].mxu0 %v6919
    %v8386 = vpop.f32.mrb[0].mxu0
    %v8387 = vadd.f32 %v8098, %v8386
    %v8388 = vpop.f32.mrb[0].mxu0
    %v8389 = vpop.f32.mrb[0].mxu0
    %v8390 = vadd.f32 %v8101, %v8389
    %v8391 = vpop.f32.mrb[0].mxu0
    %8392 = vmatprep.mubr.bf16.mxu0 %v6929
    %8393 = vmatmul.mubr.bf16.gmra.mrb[0].mxu0 %v6928
    %v8394 = vpop.f32.mrb[0].mxu0
    %v8395 = vadd.f32 %v8106, %v8394
    %v8396 = vpop.f32.mrb[0].mxu0
    %v8397 = vpop.f32.mrb[0].mxu0
    %v8398 = vadd.f32 %v8109, %v8397
    %v8399 = vpop.f32.mrb[0].mxu0
    %8400 = vmatprep.mubr.bf16.mxu0 %v6938
    %8401 = vmatmul.mubr.bf16.gmra.mrb[0].mxu0 %v6937
    %v8402 = vpop.f32.mrb[0].mxu0
    %v8403 = vadd.f32 %v8114, %v8402
    %v8404 = vpop.f32.mrb[0].mxu0
    %v8405 = vpop.f32.mrb[0].mxu0
    %v8406 = vadd.f32 %v8117, %v8405
    %v8407 = vpop.f32.mrb[0].mxu0
    %8408 = vmatprep.mubr.bf16.mxu0 %v6947
    %8409 = vmatmul.mubr.bf16.gmra.mrb[0].mxu0 %v6946
    %v8410 = vpop.f32.mrb[0].mxu0
    %v8411 = vadd.f32 %v8122, %v8410
    %v8412 = vpop.f32.mrb[0].mxu0
    %v8413 = vpop.f32.mrb[0].mxu0
    %v8414 = vadd.f32 %v8125, %v8413
    %v8415 = vpop.f32.mrb[0].mxu0
    %8416 = vmatprep.mubr.bf16.mxu0 %v6956
    %8417 = vmatmul.mubr.bf16.gmra.mrb[0].mxu0 %v6955
    %v8418 = vpop.f32.mrb[0].mxu0
    %v8419 = vadd.f32 %v8130, %v8418
    %v8420 = vpop.f32.mrb[0].mxu0
    %v8421 = vpop.f32.mrb[0].mxu0
    %v8422 = vadd.f32 %v8133, %v8421
    %v8423 = vpop.f32.mrb[0].mxu0
    %8424 = vmatprep.mubr.bf16.mxu0 %v6965
    %8425 = vmatmul.mubr.bf16.gmra.mrb[0].mxu0 %v6964
    %v8426 = vpop.f32.mrb[0].mxu0
    %v8427 = vadd.f32 %v8138, %v8426
    %v8428 = vpop.f32.mrb[0].mxu0
    %v8429 = vpop.f32.mrb[0].mxu0
    %v8430 = vadd.f32 %v8141, %v8429
    %v8431 = vpop.f32.mrb[0].mxu0
    %8432 = vmatprep.mubr.bf16.mxu0 %v6974
    %8433 = vmatmul.mubr.bf16.gmra.mrb[0].mxu0 %v6973
    %v8434 = vpop.f32.mrb[0].mxu0
    %v8435 = vadd.f32 %v8146, %v8434
    %v8436 = vpop.f32.mrb[0].mxu0
    %v8437 = vpop.f32.mrb[0].mxu0
    %v8438 = vadd.f32 %v8149, %v8437
    %v8439 = vpop.f32.mrb[0].mxu0
    %8440 = vmatprep.mubr.bf16.mxu0 %v6983
    %8441 = vmatmul.mubr.bf16.gmra.mrb[0].mxu0 %v6982
    %v8442 = vpop.f32.mrb[0].mxu0
    %v8443 = vadd.f32 %v8154, %v8442
    %v8444 = vpop.f32.mrb[0].mxu0
    %v8445 = vpop.f32.mrb[0].mxu0
    %v8446 = vadd.f32 %v8157, %v8445
    %v8447 = vpop.f32.mrb[0].mxu0
    %8448 = vmatprep.mubr.bf16.mxu0 %v6992
    %8449 = vmatmul.mubr.bf16.gmra.mrb[0].mxu0 %v6991
    %v8450 = vpop.f32.mrb[0].mxu0
    %v8451 = vadd.f32 %v8162, %v8450
    %v8452 = vpop.f32.mrb[0].mxu0
    %v8453 = vpop.f32.mrb[0].mxu0
    %v8454 = vadd.f32 %v8165, %v8453
    %v8455 = vpop.f32.mrb[0].mxu0
    %8456 = vmatprep.mubr.bf16.mxu0 %v7001
    %8457 = vmatmul.mubr.bf16.gmra.mrb[0].mxu0 %v7000
    %v8458 = vpop.f32.mrb[0].mxu0
    %v8459 = vadd.f32 %v8170, %v8458
    %v8460 = vpop.f32.mrb[0].mxu0
    %v8461 = vpop.f32.mrb[0].mxu0
    %v8462 = vadd.f32 %v8173, %v8461
    %v8463 = vpop.f32.mrb[0].mxu0
    %8464 = vmatprep.mubr.bf16.mxu0 %v7010
    %8465 = vmatmul.mubr.bf16.gmra.mrb[0].mxu0 %v7009
    %v8466 = vpop.f32.mrb[0].mxu0
    %v8467 = vadd.f32 %v8178, %v8466
    %v8468 = vpop.f32.mrb[0].mxu0
    %v8469 = vpop.f32.mrb[0].mxu0
    %v8470 = vadd.f32 %v8181, %v8469
    %v8471 = vpop.f32.mrb[0].mxu0
    %8472 = vmatprep.mubr.bf16.mxu0 %v7019
    %8473 = vmatmul.mubr.bf16.gmra.mrb[0].mxu0 %v7018
    %v8474 = vpop.f32.mrb[0].mxu0
    %v8475 = vadd.f32 %v8186, %v8474
    %v8476 = vpop.f32.mrb[0].mxu0
    %v8477 = vpop.f32.mrb[0].mxu0
    %v8478 = vadd.f32 %v8189, %v8477
    %v8479 = vpop.f32.mrb[0].mxu0
    %8480 = vmatprep.mubr.bf16.mxu0 %v7028
    %8481 = vmatmul.mubr.bf16.gmra.mrb[0].mxu0 %v7027
    %v8482 = vpop.f32.mrb[0].mxu0
    %v8483 = vadd.f32 %v8194, %v8482
    %v8484 = vpop.f32.mrb[0].mxu0
    %v8485 = vpop.f32.mrb[0].mxu0
    %v8486 = vadd.f32 %v8197, %v8485
    %v8487 = vpop.f32.mrb[0].mxu0
    %8488 = vmatprep.mubr.bf16.mxu0 %v7037
    %8489 = vmatmul.mubr.bf16.gmra.mrb[0].mxu0 %v7036
    %v8490 = vpop.f32.mrb[0].mxu0
    %v8491 = vadd.f32 %v8202, %v8490
    %v8492 = vpop.f32.mrb[0].mxu0
    %v8493 = vpop.f32.mrb[0].mxu0
    %v8494 = vadd.f32 %v8205, %v8493
    %v8495 = vpop.f32.mrb[0].mxu0
    %8496 = vmatprep.mubr.bf16.mxu0 %v7046
    %8497 = vmatmul.mubr.bf16.gmra.mrb[0].mxu0 %v7045
    %v8498 = vpop.f32.mrb[0].mxu0
    %v8499 = vadd.f32 %v8210, %v8498
    %v8500 = vpop.f32.mrb[0].mxu0
    %v8501 = vpop.f32.mrb[0].mxu0
    %v8502 = vadd.f32 %v8213, %v8501
    %v8503 = vpop.f32.mrb[0].mxu0
    %8504 = vmatprep.mubr.bf16.mxu0 %v7055
    %8505 = vmatmul.mubr.bf16.gmra.mrb[0].mxu0 %v7054
    %v8506 = vpop.f32.mrb[0].mxu0
    %v8507 = vadd.f32 %v8218, %v8506
    %v8508 = vpop.f32.mrb[0].mxu0
    %v8509 = vpop.f32.mrb[0].mxu0
    %v8510 = vadd.f32 %v8221, %v8509
    %v8511 = vpop.f32.mrb[0].mxu0
    %8512 = vmatprep.mubr.bf16.mxu0 %v7064
    %8513 = vmatmul.mubr.bf16.gmra.mrb[0].mxu0 %v7063
    %v8514 = vpop.f32.mrb[0].mxu0
    %v8515 = vadd.f32 %v8226, %v8514
    %v8516 = vpop.f32.mrb[0].mxu0
    %v8517 = vpop.f32.mrb[0].mxu0
    %v8518 = vadd.f32 %v8229, %v8517
    %v8519 = vpop.f32.mrb[0].mxu0
    %8520 = vmatprep.mubr.bf16.mxu0 %v7073
    %8521 = vmatmul.mubr.bf16.gmra.mrb[0].mxu0 %v7072
    %v8522 = vpop.f32.mrb[0].mxu0
    %v8523 = vadd.f32 %v8234, %v8522
    %v8524 = vpop.f32.mrb[0].mxu0
    %v8525 = vpop.f32.mrb[0].mxu0
    %v8526 = vadd.f32 %v8237, %v8525
    %v8527 = vpop.f32.mrb[0].mxu0
    %8528 = vmatprep.mubr.bf16.mxu0 %v7082
    %8529 = vmatmul.mubr.bf16.gmra.mrb[0].mxu0 %v7081
    %v8530 = vpop.f32.mrb[0].mxu0
    %v8531 = vadd.f32 %v8242, %v8530
    %v8532 = vpop.f32.mrb[0].mxu0
    %v8533 = vpop.f32.mrb[0].mxu0
    %v8534 = vadd.f32 %v8245, %v8533
    %v8535 = vpop.f32.mrb[0].mxu0
    %8536 = vmatprep.mubr.bf16.mxu0 %v7091
    %8537 = vmatmul.mubr.bf16.gmra.mrb[0].mxu0 %v7090
    %v8538 = vpop.f32.mrb[0].mxu0
    %v8539 = vadd.f32 %v8250, %v8538
    %v8540 = vpop.f32.mrb[0].mxu0
    %v8541 = vpop.f32.mrb[0].mxu0
    %v8542 = vadd.f32 %v8253, %v8541
    %v8543 = vpop.f32.mrb[0].mxu0
    %8544 = vmatprep.mubr.bf16.mxu0 %v7100
    %8545 = vmatmul.mubr.bf16.gmra.mrb[0].mxu0 %v7099
    %v8546 = vpop.f32.mrb[0].mxu0
    %v8547 = vadd.f32 %v8258, %v8546
    %v8548 = vpop.f32.mrb[0].mxu0
    %v8549 = vpop.f32.mrb[0].mxu0
    %v8550 = vadd.f32 %v8261, %v8549
    %v8551 = vpop.f32.mrb[0].mxu0
    %8552 = vmatprep.mubr.bf16.mxu0 %v7109
    %8553 = vmatmul.mubr.bf16.gmra.mrb[0].mxu0 %v7108
    %v8554 = vpop.f32.mrb[0].mxu0
    %v8555 = vadd.f32 %v8266, %v8554
    %v8556 = vpop.f32.mrb[0].mxu0
    %v8557 = vpop.f32.mrb[0].mxu0
    %v8558 = vadd.f32 %v8269, %v8557
    %v8559 = vpop.f32.mrb[0].mxu0
    %8560 = vmatprep.mubr.bf16.mxu0 %v7118
    %8561 = vmatmul.mubr.bf16.gmra.mrb[0].mxu0 %v7117
    %v8562 = vpop.f32.mrb[0].mxu0
    %v8563 = vadd.f32 %v8274, %v8562
    %v8564 = vpop.f32.mrb[0].mxu0
    %v8565 = vpop.f32.mrb[0].mxu0
    %v8566 = vadd.f32 %v8277, %v8565
    %v8567 = vpop.f32.mrb[0].mxu0
    %8568 = vmatprep.mubr.bf16.mxu0 %v7127
    %8569 = vmatmul.mubr.bf16.gmra.mrb[0].mxu0 %v7126
    %v8570 = vpop.f32.mrb[0].mxu0
    %v8571 = vadd.f32 %v8282, %v8570
    %v8572 = vpop.f32.mrb[0].mxu0
    %v8573 = vpop.f32.mrb[0].mxu0
    %v8574 = vadd.f32 %v8285, %v8573
    %v8575 = vpop.f32.mrb[0].mxu0
    %8576 = vmatprep.mubr.bf16.mxu0 %v7136
    %8577 = vmatmul.mubr.bf16.gmra.mrb[0].mxu0 %v7135
    %v8578 = vpop.f32.mrb[0].mxu0
    %v8579 = vadd.f32 %v8290, %v8578
    %v8580 = vpop.f32.mrb[0].mxu0
    %v8581 = vpop.f32.mrb[0].mxu0
    %v8582 = vadd.f32 %v8293, %v8581
    %v8583 = vpop.f32.mrb[0].mxu0
    %8584 = vmatprep.mubr.bf16.mxu0 %v7145
    %8585 = vmatmul.mubr.bf16.gmra.mrb[0].mxu0 %v7144
    %v8586 = vpop.f32.mrb[0].mxu0
    %v8587 = vadd.f32 %v8298, %v8586
    %v8588 = vpop.f32.mrb[0].mxu0
    %v8589 = vpop.f32.mrb[0].mxu0
    %v8590 = vadd.f32 %v8301, %v8589
    %v8591 = vpop.f32.mrb[0].mxu0
    %8592 = vmatprep.mubr.bf16.mxu0 %v7154
    %8593 = vmatmul.mubr.bf16.gmra.mrb[0].mxu0 %v7153
    %v8594 = vpop.f32.mrb[0].mxu0
    %v8595 = vadd.f32 %v8306, %v8594
    %v8596 = vpop.f32.mrb[0].mxu0
    %v8597 = vpop.f32.mrb[0].mxu0
    %v8598 = vadd.f32 %v8309, %v8597
    %v8599 = vpop.f32.mrb[0].mxu0
    %8600 = vdwg.mxu0
    %8601 = vmatprep.subr.bf16.mxu0 0
    %8602 = vmatpush1.bf16.msra.mxu0 %v7638
    %8603 = vmatprep.subr.bf16.mxu0 0
    %8604 = vmatpush1.bf16.msra.mxu0 %v7639
    %8605 = vmatprep.subr.bf16.mxu0 0
    %8606 = vmatpush1.bf16.msra.mxu0 %v7640
    %8607 = vmatprep.subr.bf16.mxu0 0
    %8608 = vmatpush1.bf16.msra.mxu0 %v7641
    %8609 = vmatprep.subr.bf16.mxu0 0
    %8610 = vmatpush1.bf16.msra.mxu0 %v7642
    %8611 = vmatprep.subr.bf16.mxu0 0
    %8612 = vmatpush1.bf16.msra.mxu0 %v7643
    %8613 = vmatprep.subr.bf16.mxu0 0
    %8614 = vmatpush1.bf16.msra.mxu0 %v7644
    %8615 = vmatprep.subr.bf16.mxu0 0
    %8616 = vmatpush1.bf16.msra.mxu0 %v7645
    %8617 = vmatprep.subr.bf16.mxu0 0
    %8618 = vmatpush1.bf16.msra.mxu0 %v7646
    %8619 = vmatprep.subr.bf16.mxu0 0
    %8620 = vmatpush1.bf16.msra.mxu0 %v7647
    %8621 = vmatprep.subr.bf16.mxu0 0
    %8622 = vmatpush1.bf16.msra.mxu0 %v7648
    %8623 = vmatprep.subr.bf16.mxu0 0
    %8624 = vmatpush1.bf16.msra.mxu0 %v7649
    %8625 = vmatprep.subr.bf16.mxu0 0
    %8626 = vmatpush1.bf16.msra.mxu0 %v7650
    %8627 = vmatprep.subr.bf16.mxu0 0
    %8628 = vmatpush1.bf16.msra.mxu0 %v7651
    %8629 = vmatprep.subr.bf16.mxu0 0
    %8630 = vmatpush1.bf16.msra.mxu0 %v7652
    %8631 = vmatprep.subr.bf16.mxu0 0
    %8632 = vmatpush1.bf16.msra.mxu0 %v7653
    %8633 = vmatprep.mubr.bf16.mxu0 %v6877
    %8634 = vmatmul.mubr.bf16.gmra.mrb[0].mxu0 %v6876
    %v8635 = vpop.f32.mrb[0].mxu0
    %v8636 = vadd.f32 %v8347, %v8635
    %v8637 = vpop.f32.mrb[0].mxu0
    %v8638 = vpop.f32.mrb[0].mxu0
    %v8639 = vadd.f32 %v8350, %v8638
    %v8640 = vpop.f32.mrb[0].mxu0
    %8641 = vmatprep.mubr.bf16.mxu0 %v6886
    %8642 = vmatmul.mubr.bf16.gmra.mrb[0].mxu0 %v6885
    %v8643 = vpop.f32.mrb[0].mxu0
    %v8644 = vadd.f32 %v8355, %v8643
    %v8645 = vpop.f32.mrb[0].mxu0
    %v8646 = vpop.f32.mrb[0].mxu0
    %v8647 = vadd.f32 %v8358, %v8646
    %v8648 = vpop.f32.mrb[0].mxu0
    %8649 = vmatprep.mubr.bf16.mxu0 %v6895
    %8650 = vmatmul.mubr.bf16.gmra.mrb[0].mxu0 %v6894
    %v8651 = vpop.f32.mrb[0].mxu0
    %v8652 = vadd.f32 %v8363, %v8651
    %v8653 = vpop.f32.mrb[0].mxu0
    %v8654 = vpop.f32.mrb[0].mxu0
    %v8655 = vadd.f32 %v8366, %v8654
    %v8656 = vpop.f32.mrb[0].mxu0
    %8657 = vmatprep.mubr.bf16.mxu0 %v6904
    %8658 = vmatmul.mubr.bf16.gmra.mrb[0].mxu0 %v6903
    %v8659 = vpop.f32.mrb[0].mxu0
    %v8660 = vadd.f32 %v8371, %v8659
    %v8661 = vpop.f32.mrb[0].mxu0
    %v8662 = vpop.f32.mrb[0].mxu0
    %v8663 = vadd.f32 %v8374, %v8662
    %v8664 = vpop.f32.mrb[0].mxu0
    %8665 = vmatprep.mubr.bf16.mxu0 %v6913
    %8666 = vmatmul.mubr.bf16.gmra.mrb[0].mxu0 %v6912
    %v8667 = vpop.f32.mrb[0].mxu0
    %v8668 = vadd.f32 %v8379, %v8667
    %v8669 = vpop.f32.mrb[0].mxu0
    %v8670 = vpop.f32.mrb[0].mxu0
    %v8671 = vadd.f32 %v8382, %v8670
    %v8672 = vpop.f32.mrb[0].mxu0
    %8673 = vmatprep.mubr.bf16.mxu0 %v6922
    %8674 = vmatmul.mubr.bf16.gmra.mrb[0].mxu0 %v6921
    %v8675 = vpop.f32.mrb[0].mxu0
    %v8676 = vadd.f32 %v8387, %v8675
    %v8677 = vpop.f32.mrb[0].mxu0
    %v8678 = vpop.f32.mrb[0].mxu0
    %v8679 = vadd.f32 %v8390, %v8678
    %v8680 = vpop.f32.mrb[0].mxu0
    %8681 = vmatprep.mubr.bf16.mxu0 %v6931
    %8682 = vmatmul.mubr.bf16.gmra.mrb[0].mxu0 %v6930
    %v8683 = vpop.f32.mrb[0].mxu0
    %v8684 = vadd.f32 %v8395, %v8683
    %v8685 = vpop.f32.mrb[0].mxu0
    %v8686 = vpop.f32.mrb[0].mxu0
    %v8687 = vadd.f32 %v8398, %v8686
    %v8688 = vpop.f32.mrb[0].mxu0
    %8689 = vmatprep.mubr.bf16.mxu0 %v6940
    %8690 = vmatmul.mubr.bf16.gmra.mrb[0].mxu0 %v6939
    %v8691 = vpop.f32.mrb[0].mxu0
    %v8692 = vadd.f32 %v8403, %v8691
    %v8693 = vpop.f32.mrb[0].mxu0
    %v8694 = vpop.f32.mrb[0].mxu0
    %v8695 = vadd.f32 %v8406, %v8694
    %v8696 = vpop.f32.mrb[0].mxu0
    %8697 = vmatprep.mubr.bf16.mxu0 %v6949
    %8698 = vmatmul.mubr.bf16.gmra.mrb[0].mxu0 %v6948
    %v8699 = vpop.f32.mrb[0].mxu0
    %v8700 = vadd.f32 %v8411, %v8699
    %v8701 = vpop.f32.mrb[0].mxu0
    %v8702 = vpop.f32.mrb[0].mxu0
    %v8703 = vadd.f32 %v8414, %v8702
    %v8704 = vpop.f32.mrb[0].mxu0
    %8705 = vmatprep.mubr.bf16.mxu0 %v6958
    %8706 = vmatmul.mubr.bf16.gmra.mrb[0].mxu0 %v6957
    %v8707 = vpop.f32.mrb[0].mxu0
    %v8708 = vadd.f32 %v8419, %v8707
    %v8709 = vpop.f32.mrb[0].mxu0
    %v8710 = vpop.f32.mrb[0].mxu0
    %v8711 = vadd.f32 %v8422, %v8710
    %v8712 = vpop.f32.mrb[0].mxu0
    %8713 = vmatprep.mubr.bf16.mxu0 %v6967
    %8714 = vmatmul.mubr.bf16.gmra.mrb[0].mxu0 %v6966
    %v8715 = vpop.f32.mrb[0].mxu0
    %v8716 = vadd.f32 %v8427, %v8715
    %v8717 = vpop.f32.mrb[0].mxu0
    %v8718 = vpop.f32.mrb[0].mxu0
    %v8719 = vadd.f32 %v8430, %v8718
    %v8720 = vpop.f32.mrb[0].mxu0
    %8721 = vmatprep.mubr.bf16.mxu0 %v6976
    %8722 = vmatmul.mubr.bf16.gmra.mrb[0].mxu0 %v6975
    %v8723 = vpop.f32.mrb[0].mxu0
    %v8724 = vadd.f32 %v8435, %v8723
    %v8725 = vpop.f32.mrb[0].mxu0
    %v8726 = vpop.f32.mrb[0].mxu0
    %v8727 = vadd.f32 %v8438, %v8726
    %v8728 = vpop.f32.mrb[0].mxu0
    %8729 = vmatprep.mubr.bf16.mxu0 %v6985
    %8730 = vmatmul.mubr.bf16.gmra.mrb[0].mxu0 %v6984
    %v8731 = vpop.f32.mrb[0].mxu0
    %v8732 = vadd.f32 %v8443, %v8731
    %v8733 = vpop.f32.mrb[0].mxu0
    %v8734 = vpop.f32.mrb[0].mxu0
    %v8735 = vadd.f32 %v8446, %v8734
    %v8736 = vpop.f32.mrb[0].mxu0
    %8737 = vmatprep.mubr.bf16.mxu0 %v6994
    %8738 = vmatmul.mubr.bf16.gmra.mrb[0].mxu0 %v6993
    %v8739 = vpop.f32.mrb[0].mxu0
    %v8740 = vadd.f32 %v8451, %v8739
    %v8741 = vpop.f32.mrb[0].mxu0
    %v8742 = vpop.f32.mrb[0].mxu0
    %v8743 = vadd.f32 %v8454, %v8742
    %v8744 = vpop.f32.mrb[0].mxu0
    %8745 = vmatprep.mubr.bf16.mxu0 %v7003
    %8746 = vmatmul.mubr.bf16.gmra.mrb[0].mxu0 %v7002
    %v8747 = vpop.f32.mrb[0].mxu0
    %v8748 = vadd.f32 %v8459, %v8747
    %v8749 = vpop.f32.mrb[0].mxu0
    %v8750 = vpop.f32.mrb[0].mxu0
    %v8751 = vadd.f32 %v8462, %v8750
    %v8752 = vpop.f32.mrb[0].mxu0
    %8753 = vmatprep.mubr.bf16.mxu0 %v7012
    %8754 = vmatmul.mubr.bf16.gmra.mrb[0].mxu0 %v7011
    %v8755 = vpop.f32.mrb[0].mxu0
    %v8756 = vadd.f32 %v8467, %v8755
    %v8757 = vpop.f32.mrb[0].mxu0
    %v8758 = vpop.f32.mrb[0].mxu0
    %v8759 = vadd.f32 %v8470, %v8758
    %v8760 = vpop.f32.mrb[0].mxu0
    %8761 = vmatprep.mubr.bf16.mxu0 %v7021
    %8762 = vmatmul.mubr.bf16.gmra.mrb[0].mxu0 %v7020
    %v8763 = vpop.f32.mrb[0].mxu0
    %v8764 = vadd.f32 %v8475, %v8763
    %v8765 = vpop.f32.mrb[0].mxu0
    %v8766 = vpop.f32.mrb[0].mxu0
    %v8767 = vadd.f32 %v8478, %v8766
    %v8768 = vpop.f32.mrb[0].mxu0
    %8769 = vmatprep.mubr.bf16.mxu0 %v7030
    %8770 = vmatmul.mubr.bf16.gmra.mrb[0].mxu0 %v7029
    %v8771 = vpop.f32.mrb[0].mxu0
    %v8772 = vadd.f32 %v8483, %v8771
    %v8773 = vpop.f32.mrb[0].mxu0
    %v8774 = vpop.f32.mrb[0].mxu0
    %v8775 = vadd.f32 %v8486, %v8774
    %v8776 = vpop.f32.mrb[0].mxu0
    %8777 = vmatprep.mubr.bf16.mxu0 %v7039
    %8778 = vmatmul.mubr.bf16.gmra.mrb[0].mxu0 %v7038
    %v8779 = vpop.f32.mrb[0].mxu0
    %v8780 = vadd.f32 %v8491, %v8779
    %v8781 = vpop.f32.mrb[0].mxu0
    %v8782 = vpop.f32.mrb[0].mxu0
    %v8783 = vadd.f32 %v8494, %v8782
    %v8784 = vpop.f32.mrb[0].mxu0
    %8785 = vmatprep.mubr.bf16.mxu0 %v7048
    %8786 = vmatmul.mubr.bf16.gmra.mrb[0].mxu0 %v7047
    %v8787 = vpop.f32.mrb[0].mxu0
    %v8788 = vadd.f32 %v8499, %v8787
    %v8789 = vpop.f32.mrb[0].mxu0
    %v8790 = vpop.f32.mrb[0].mxu0
    %v8791 = vadd.f32 %v8502, %v8790
    %v8792 = vpop.f32.mrb[0].mxu0
    %8793 = vmatprep.mubr.bf16.mxu0 %v7057
    %8794 = vmatmul.mubr.bf16.gmra.mrb[0].mxu0 %v7056
    %v8795 = vpop.f32.mrb[0].mxu0
    %v8796 = vadd.f32 %v8507, %v8795
    %v8797 = vpop.f32.mrb[0].mxu0
    %v8798 = vpop.f32.mrb[0].mxu0
    %v8799 = vadd.f32 %v8510, %v8798
    %v8800 = vpop.f32.mrb[0].mxu0
    %8801 = vmatprep.mubr.bf16.mxu0 %v7066
    %8802 = vmatmul.mubr.bf16.gmra.mrb[0].mxu0 %v7065
    %v8803 = vpop.f32.mrb[0].mxu0
    %v8804 = vadd.f32 %v8515, %v8803
    %v8805 = vpop.f32.mrb[0].mxu0
    %v8806 = vpop.f32.mrb[0].mxu0
    %v8807 = vadd.f32 %v8518, %v8806
    %v8808 = vpop.f32.mrb[0].mxu0
    %8809 = vmatprep.mubr.bf16.mxu0 %v7075
    %8810 = vmatmul.mubr.bf16.gmra.mrb[0].mxu0 %v7074
    %v8811 = vpop.f32.mrb[0].mxu0
    %v8812 = vadd.f32 %v8523, %v8811
    %v8813 = vpop.f32.mrb[0].mxu0
    %v8814 = vpop.f32.mrb[0].mxu0
    %v8815 = vadd.f32 %v8526, %v8814
    %v8816 = vpop.f32.mrb[0].mxu0
    %8817 = vmatprep.mubr.bf16.mxu0 %v7084
    %8818 = vmatmul.mubr.bf16.gmra.mrb[0].mxu0 %v7083
    %v8819 = vpop.f32.mrb[0].mxu0
    %v8820 = vadd.f32 %v8531, %v8819
    %v8821 = vpop.f32.mrb[0].mxu0
    %v8822 = vpop.f32.mrb[0].mxu0
    %v8823 = vadd.f32 %v8534, %v8822
    %v8824 = vpop.f32.mrb[0].mxu0
    %8825 = vmatprep.mubr.bf16.mxu0 %v7093
    %8826 = vmatmul.mubr.bf16.gmra.mrb[0].mxu0 %v7092
    %v8827 = vpop.f32.mrb[0].mxu0
    %v8828 = vadd.f32 %v8539, %v8827
    %v8829 = vpop.f32.mrb[0].mxu0
    %v8830 = vpop.f32.mrb[0].mxu0
    %v8831 = vadd.f32 %v8542, %v8830
    %v8832 = vpop.f32.mrb[0].mxu0
    %8833 = vmatprep.mubr.bf16.mxu0 %v7102
    %8834 = vmatmul.mubr.bf16.gmra.mrb[0].mxu0 %v7101
    %v8835 = vpop.f32.mrb[0].mxu0
    %v8836 = vadd.f32 %v8547, %v8835
    %v8837 = vpop.f32.mrb[0].mxu0
    %v8838 = vpop.f32.mrb[0].mxu0
    %v8839 = vadd.f32 %v8550, %v8838
    %v8840 = vpop.f32.mrb[0].mxu0
    %8841 = vmatprep.mubr.bf16.mxu0 %v7111
    %8842 = vmatmul.mubr.bf16.gmra.mrb[0].mxu0 %v7110
    %v8843 = vpop.f32.mrb[0].mxu0
    %v8844 = vadd.f32 %v8555, %v8843
    %v8845 = vpop.f32.mrb[0].mxu0
    %v8846 = vpop.f32.mrb[0].mxu0
    %v8847 = vadd.f32 %v8558, %v8846
    %v8848 = vpop.f32.mrb[0].mxu0
    %8849 = vmatprep.mubr.bf16.mxu0 %v7120
    %8850 = vmatmul.mubr.bf16.gmra.mrb[0].mxu0 %v7119
    %v8851 = vpop.f32.mrb[0].mxu0
    %v8852 = vadd.f32 %v8563, %v8851
    %v8853 = vpop.f32.mrb[0].mxu0
    %v8854 = vpop.f32.mrb[0].mxu0
    %v8855 = vadd.f32 %v8566, %v8854
    %v8856 = vpop.f32.mrb[0].mxu0
    %8857 = vmatprep.mubr.bf16.mxu0 %v7129
    %8858 = vmatmul.mubr.bf16.gmra.mrb[0].mxu0 %v7128
    %v8859 = vpop.f32.mrb[0].mxu0
    %v8860 = vadd.f32 %v8571, %v8859
    %v8861 = vpop.f32.mrb[0].mxu0
    %v8862 = vpop.f32.mrb[0].mxu0
    %v8863 = vadd.f32 %v8574, %v8862
    %v8864 = vpop.f32.mrb[0].mxu0
    %8865 = vmatprep.mubr.bf16.mxu0 %v7138
    %8866 = vmatmul.mubr.bf16.gmra.mrb[0].mxu0 %v7137
    %v8867 = vpop.f32.mrb[0].mxu0
    %v8868 = vadd.f32 %v8579, %v8867
    %v8869 = vpop.f32.mrb[0].mxu0
    %v8870 = vpop.f32.mrb[0].mxu0
    %v8871 = vadd.f32 %v8582, %v8870
    %v8872 = vpop.f32.mrb[0].mxu0
    %8873 = vmatprep.mubr.bf16.mxu0 %v7147
    %8874 = vmatmul.mubr.bf16.gmra.mrb[0].mxu0 %v7146
    %v8875 = vpop.f32.mrb[0].mxu0
    %v8876 = vadd.f32 %v8587, %v8875
    %v8877 = vpop.f32.mrb[0].mxu0
    %v8878 = vpop.f32.mrb[0].mxu0
    %v8879 = vadd.f32 %v8590, %v8878
    %v8880 = vpop.f32.mrb[0].mxu0
    %8881 = vmatprep.mubr.bf16.mxu0 %v7156
    %8882 = vmatmul.mubr.bf16.gmra.mrb[0].mxu0 %v7155
    %v8883 = vpop.f32.mrb[0].mxu0
    %v8884 = vadd.f32 %v8595, %v8883
    %v8885 = vpop.f32.mrb[0].mxu0
    %v8886 = vpop.f32.mrb[0].mxu0
    %v8887 = vadd.f32 %v8598, %v8886
    %v8888 = vpop.f32.mrb[0].mxu0
    %8889 = vdwg.mxu0
    %8890 = vmatprep.subr.bf16.mxu0 0
    %8891 = vmatpush1.bf16.msra.mxu0 %v7654
    %8892 = vmatprep.subr.bf16.mxu0 0
    %8893 = vmatpush1.bf16.msra.mxu0 %v7655
    %8894 = vmatprep.subr.bf16.mxu0 0
    %8895 = vmatpush1.bf16.msra.mxu0 %v7656
    %8896 = vmatprep.subr.bf16.mxu0 0
    %8897 = vmatpush1.bf16.msra.mxu0 %v7657
    %8898 = vmatprep.subr.bf16.mxu0 0
    %8899 = vmatpush1.bf16.msra.mxu0 %v7658
    %8900 = vmatprep.subr.bf16.mxu0 0
    %8901 = vmatpush1.bf16.msra.mxu0 %v7659
    %8902 = vmatprep.subr.bf16.mxu0 0
    %8903 = vmatpush1.bf16.msra.mxu0 %v7660
    %8904 = vmatprep.subr.bf16.mxu0 0
    %8905 = vmatpush1.bf16.msra.mxu0 %v7661
    %8906 = vmatprep.subr.bf16.mxu0 0
    %8907 = vmatpush1.bf16.msra.mxu0 0
    %8908 = vmatprep.subr.bf16.mxu0 0
    %8909 = vmatpush1.bf16.msra.mxu0 0
    %8910 = vmatprep.subr.bf16.mxu0 0
    %8911 = vmatpush1.bf16.msra.mxu0 0
    %8912 = vmatprep.subr.bf16.mxu0 0
    %8913 = vmatpush1.bf16.msra.mxu0 0
    %8914 = vmatprep.subr.bf16.mxu0 0
    %8915 = vmatpush1.bf16.msra.mxu0 0
    %8916 = vmatprep.subr.bf16.mxu0 0
    %8917 = vmatpush1.bf16.msra.mxu0 0
    %8918 = vmatprep.subr.bf16.mxu0 0
    %8919 = vmatpush1.bf16.msra.mxu0 0
    %8920 = vmatprep.subr.bf16.mxu0 0
    %8921 = vmatpush1.bf16.msra.mxu0 0
    %8922 = vmatprep.mubr.bf16.mxu0 0
    %8923 = vmatmul.mubr.bf16.gmra.mrb[0].mxu0 %v6878
    %v8924 = vpop.f32.mrb[0].mxu0
    %v8925 = vadd.f32 %v8636, %v8924
    %v8926 = vpop.f32.mrb[0].mxu0
    %v8927 = vpop.f32.mrb[0].mxu0
    %v8928 = vadd.f32 %v8639, %v8927
    %v8929 = vpop.f32.mrb[0].mxu0
    %8930 = vmatprep.mubr.bf16.mxu0 0
    %8931 = vmatmul.mubr.bf16.gmra.mrb[0].mxu0 %v6887
    %v8932 = vpop.f32.mrb[0].mxu0
    %v8933 = vadd.f32 %v8644, %v8932
    %v8934 = vpop.f32.mrb[0].mxu0
    %v8935 = vpop.f32.mrb[0].mxu0
    %v8936 = vadd.f32 %v8647, %v8935
    %v8937 = vpop.f32.mrb[0].mxu0
    %8938 = vmatprep.mubr.bf16.mxu0 0
    %8939 = vmatmul.mubr.bf16.gmra.mrb[0].mxu0 %v6896
    %v8940 = vpop.f32.mrb[0].mxu0
    %v8941 = vadd.f32 %v8652, %v8940
    %v8942 = vpop.f32.mrb[0].mxu0
    %v8943 = vpop.f32.mrb[0].mxu0
    %v8944 = vadd.f32 %v8655, %v8943
    %v8945 = vpop.f32.mrb[0].mxu0
    %8946 = vmatprep.mubr.bf16.mxu0 0
    %8947 = vmatmul.mubr.bf16.gmra.mrb[0].mxu0 %v6905
    %v8948 = vpop.f32.mrb[0].mxu0
    %v8949 = vadd.f32 %v8660, %v8948
    %v8950 = vpop.f32.mrb[0].mxu0
    %v8951 = vpop.f32.mrb[0].mxu0
    %v8952 = vadd.f32 %v8663, %v8951
    %v8953 = vpop.f32.mrb[0].mxu0
    %8954 = vmatprep.mubr.bf16.mxu0 0
    %8955 = vmatmul.mubr.bf16.gmra.mrb[0].mxu0 %v6914
    %v8956 = vpop.f32.mrb[0].mxu0
    %v8957 = vadd.f32 %v8668, %v8956
    %v8958 = vpop.f32.mrb[0].mxu0
    %v8959 = vpop.f32.mrb[0].mxu0
    %v8960 = vadd.f32 %v8671, %v8959
    %v8961 = vpop.f32.mrb[0].mxu0
    %8962 = vmatprep.mubr.bf16.mxu0 0
    %8963 = vmatmul.mubr.bf16.gmra.mrb[0].mxu0 %v6923
    %v8964 = vpop.f32.mrb[0].mxu0
    %v8965 = vadd.f32 %v8676, %v8964
    %v8966 = vpop.f32.mrb[0].mxu0
    %v8967 = vpop.f32.mrb[0].mxu0
    %v8968 = vadd.f32 %v8679, %v8967
    %v8969 = vpop.f32.mrb[0].mxu0
    %8970 = vmatprep.mubr.bf16.mxu0 0
    %8971 = vmatmul.mubr.bf16.gmra.mrb[0].mxu0 %v6932
    %v8972 = vpop.f32.mrb[0].mxu0
    %v8973 = vadd.f32 %v8684, %v8972
    %v8974 = vpop.f32.mrb[0].mxu0
    %v8975 = vpop.f32.mrb[0].mxu0
    %v8976 = vadd.f32 %v8687, %v8975
    %v8977 = vpop.f32.mrb[0].mxu0
    %8978 = vmatprep.mubr.bf16.mxu0 0
    %8979 = vmatmul.mubr.bf16.gmra.mrb[0].mxu0 %v6941
    %v8980 = vpop.f32.mrb[0].mxu0
    %v8981 = vadd.f32 %v8692, %v8980
    %v8982 = vpop.f32.mrb[0].mxu0
    %v8983 = vpop.f32.mrb[0].mxu0
    %v8984 = vadd.f32 %v8695, %v8983
    %v8985 = vpop.f32.mrb[0].mxu0
    %8986 = vmatprep.mubr.bf16.mxu0 0
    %8987 = vmatmul.mubr.bf16.gmra.mrb[0].mxu0 %v6950
    %v8988 = vpop.f32.mrb[0].mxu0
    %v8989 = vadd.f32 %v8700, %v8988
    %v8990 = vpop.f32.mrb[0].mxu0
    %v8991 = vpop.f32.mrb[0].mxu0
    %v8992 = vadd.f32 %v8703, %v8991
    %v8993 = vpop.f32.mrb[0].mxu0
    %8994 = vmatprep.mubr.bf16.mxu0 0
    %8995 = vmatmul.mubr.bf16.gmra.mrb[0].mxu0 %v6959
    %v8996 = vpop.f32.mrb[0].mxu0
    %v8997 = vadd.f32 %v8708, %v8996
    %v8998 = vpop.f32.mrb[0].mxu0
    %v8999 = vpop.f32.mrb[0].mxu0
    %v9000 = vadd.f32 %v8711, %v8999
    %v9001 = vpop.f32.mrb[0].mxu0
    %9002 = vmatprep.mubr.bf16.mxu0 0
    %9003 = vmatmul.mubr.bf16.gmra.mrb[0].mxu0 %v6968
    %v9004 = vpop.f32.mrb[0].mxu0
    %v9005 = vadd.f32 %v8716, %v9004
    %v9006 = vpop.f32.mrb[0].mxu0
    %v9007 = vpop.f32.mrb[0].mxu0
    %v9008 = vadd.f32 %v8719, %v9007
    %v9009 = vpop.f32.mrb[0].mxu0
    %9010 = vmatprep.mubr.bf16.mxu0 0
    %9011 = vmatmul.mubr.bf16.gmra.mrb[0].mxu0 %v6977
    %v9012 = vpop.f32.mrb[0].mxu0
    %v9013 = vadd.f32 %v8724, %v9012
    %v9014 = vpop.f32.mrb[0].mxu0
    %v9015 = vpop.f32.mrb[0].mxu0
    %v9016 = vadd.f32 %v8727, %v9015
    %v9017 = vpop.f32.mrb[0].mxu0
    %9018 = vmatprep.mubr.bf16.mxu0 0
    %9019 = vmatmul.mubr.bf16.gmra.mrb[0].mxu0 %v6986
    %v9020 = vpop.f32.mrb[0].mxu0
    %v9021 = vadd.f32 %v8732, %v9020
    %v9022 = vpop.f32.mrb[0].mxu0
    %v9023 = vpop.f32.mrb[0].mxu0
    %v9024 = vadd.f32 %v8735, %v9023
    %v9025 = vpop.f32.mrb[0].mxu0
    %9026 = vmatprep.mubr.bf16.mxu0 0
    %9027 = vmatmul.mubr.bf16.gmra.mrb[0].mxu0 %v6995
    %v9028 = vpop.f32.mrb[0].mxu0
    %v9029 = vadd.f32 %v8740, %v9028
    %v9030 = vpop.f32.mrb[0].mxu0
    %v9031 = vpop.f32.mrb[0].mxu0
    %v9032 = vadd.f32 %v8743, %v9031
    %v9033 = vpop.f32.mrb[0].mxu0
    %9034 = vmatprep.mubr.bf16.mxu0 0
    %9035 = vmatmul.mubr.bf16.gmra.mrb[0].mxu0 %v7004
    %v9036 = vpop.f32.mrb[0].mxu0
    %v9037 = vadd.f32 %v8748, %v9036
    %v9038 = vpop.f32.mrb[0].mxu0
    %v9039 = vpop.f32.mrb[0].mxu0
    %v9040 = vadd.f32 %v8751, %v9039
    %v9041 = vpop.f32.mrb[0].mxu0
    %9042 = vmatprep.mubr.bf16.mxu0 0
    %9043 = vmatmul.mubr.bf16.gmra.mrb[0].mxu0 %v7013
    %v9044 = vpop.f32.mrb[0].mxu0
    %v9045 = vadd.f32 %v8756, %v9044
    %v9046 = vpop.f32.mrb[0].mxu0
    %v9047 = vpop.f32.mrb[0].mxu0
    %v9048 = vadd.f32 %v8759, %v9047
    %v9049 = vpop.f32.mrb[0].mxu0
    %9050 = vmatprep.mubr.bf16.mxu0 0
    %9051 = vmatmul.mubr.bf16.gmra.mrb[0].mxu0 %v7022
    %v9052 = vpop.f32.mrb[0].mxu0
    %v9053 = vadd.f32 %v8764, %v9052
    %v9054 = vpop.f32.mrb[0].mxu0
    %v9055 = vpop.f32.mrb[0].mxu0
    %v9056 = vadd.f32 %v8767, %v9055
    %v9057 = vpop.f32.mrb[0].mxu0
    %9058 = vmatprep.mubr.bf16.mxu0 0
    %9059 = vmatmul.mubr.bf16.gmra.mrb[0].mxu0 %v7031
    %v9060 = vpop.f32.mrb[0].mxu0
    %v9061 = vadd.f32 %v8772, %v9060
    %v9062 = vpop.f32.mrb[0].mxu0
    %v9063 = vpop.f32.mrb[0].mxu0
    %v9064 = vadd.f32 %v8775, %v9063
    %v9065 = vpop.f32.mrb[0].mxu0
    %9066 = vmatprep.mubr.bf16.mxu0 0
    %9067 = vmatmul.mubr.bf16.gmra.mrb[0].mxu0 %v7040
    %v9068 = vpop.f32.mrb[0].mxu0
    %v9069 = vadd.f32 %v8780, %v9068
    %v9070 = vpop.f32.mrb[0].mxu0
    %v9071 = vpop.f32.mrb[0].mxu0
    %v9072 = vadd.f32 %v8783, %v9071
    %v9073 = vpop.f32.mrb[0].mxu0
    %9074 = vmatprep.mubr.bf16.mxu0 0
    %9075 = vmatmul.mubr.bf16.gmra.mrb[0].mxu0 %v7049
    %v9076 = vpop.f32.mrb[0].mxu0
    %v9077 = vadd.f32 %v8788, %v9076
    %v9078 = vpop.f32.mrb[0].mxu0
    %v9079 = vpop.f32.mrb[0].mxu0
    %v9080 = vadd.f32 %v8791, %v9079
    %v9081 = vpop.f32.mrb[0].mxu0
    %9082 = vmatprep.mubr.bf16.mxu0 0
    %9083 = vmatmul.mubr.bf16.gmra.mrb[0].mxu0 %v7058
    %v9084 = vpop.f32.mrb[0].mxu0
    %v9085 = vadd.f32 %v8796, %v9084
    %v9086 = vpop.f32.mrb[0].mxu0
    %v9087 = vpop.f32.mrb[0].mxu0
    %v9088 = vadd.f32 %v8799, %v9087
    %v9089 = vpop.f32.mrb[0].mxu0
    %9090 = vmatprep.mubr.bf16.mxu0 0
    %9091 = vmatmul.mubr.bf16.gmra.mrb[0].mxu0 %v7067
    %v9092 = vpop.f32.mrb[0].mxu0
    %v9093 = vadd.f32 %v8804, %v9092
    %v9094 = vpop.f32.mrb[0].mxu0
    %v9095 = vpop.f32.mrb[0].mxu0
    %v9096 = vadd.f32 %v8807, %v9095
    %v9097 = vpop.f32.mrb[0].mxu0
    %9098 = vmatprep.mubr.bf16.mxu0 0
    %9099 = vmatmul.mubr.bf16.gmra.mrb[0].mxu0 %v7076
    %v9100 = vpop.f32.mrb[0].mxu0
    %v9101 = vadd.f32 %v8812, %v9100
    %v9102 = vpop.f32.mrb[0].mxu0
    %v9103 = vpop.f32.mrb[0].mxu0
    %v9104 = vadd.f32 %v8815, %v9103
    %v9105 = vpop.f32.mrb[0].mxu0
    %9106 = vmatprep.mubr.bf16.mxu0 0
    %9107 = vmatmul.mubr.bf16.gmra.mrb[0].mxu0 %v7085
    %v9108 = vpop.f32.mrb[0].mxu0
    %v9109 = vadd.f32 %v8820, %v9108
    %v9110 = vpop.f32.mrb[0].mxu0
    %v9111 = vpop.f32.mrb[0].mxu0
    %v9112 = vadd.f32 %v8823, %v9111
    %v9113 = vpop.f32.mrb[0].mxu0
    %9114 = vmatprep.mubr.bf16.mxu0 0
    %9115 = vmatmul.mubr.bf16.gmra.mrb[0].mxu0 %v7094
    %v9116 = vpop.f32.mrb[0].mxu0
    %v9117 = vadd.f32 %v8828, %v9116
    %v9118 = vpop.f32.mrb[0].mxu0
    %v9119 = vpop.f32.mrb[0].mxu0
    %v9120 = vadd.f32 %v8831, %v9119
    %v9121 = vpop.f32.mrb[0].mxu0
    %9122 = vmatprep.mubr.bf16.mxu0 0
    %9123 = vmatmul.mubr.bf16.gmra.mrb[0].mxu0 %v7103
    %v9124 = vpop.f32.mrb[0].mxu0
    %v9125 = vadd.f32 %v8836, %v9124
    %v9126 = vpop.f32.mrb[0].mxu0
    %v9127 = vpop.f32.mrb[0].mxu0
    %v9128 = vadd.f32 %v8839, %v9127
    %v9129 = vpop.f32.mrb[0].mxu0
    %9130 = vmatprep.mubr.bf16.mxu0 0
    %9131 = vmatmul.mubr.bf16.gmra.mrb[0].mxu0 %v7112
    %v9132 = vpop.f32.mrb[0].mxu0
    %v9133 = vadd.f32 %v8844, %v9132
    %v9134 = vpop.f32.mrb[0].mxu0
    %v9135 = vpop.f32.mrb[0].mxu0
    %v9136 = vadd.f32 %v8847, %v9135
    %v9137 = vpop.f32.mrb[0].mxu0
    %9138 = vmatprep.mubr.bf16.mxu0 0
    %9139 = vmatmul.mubr.bf16.gmra.mrb[0].mxu0 %v7121
    %v9140 = vpop.f32.mrb[0].mxu0
    %v9141 = vadd.f32 %v8852, %v9140
    %v9142 = vpop.f32.mrb[0].mxu0
    %v9143 = vpop.f32.mrb[0].mxu0
    %v9144 = vadd.f32 %v8855, %v9143
    %v9145 = vpop.f32.mrb[0].mxu0
    %9146 = vmatprep.mubr.bf16.mxu0 0
    %9147 = vmatmul.mubr.bf16.gmra.mrb[0].mxu0 %v7130
    %v9148 = vpop.f32.mrb[0].mxu0
    %v9149 = vadd.f32 %v8860, %v9148
    %v9150 = vpop.f32.mrb[0].mxu0
    %v9151 = vpop.f32.mrb[0].mxu0
    %v9152 = vadd.f32 %v8863, %v9151
    %v9153 = vpop.f32.mrb[0].mxu0
    %9154 = vmatprep.mubr.bf16.mxu0 0
    %9155 = vmatmul.mubr.bf16.gmra.mrb[0].mxu0 %v7139
    %v9156 = vpop.f32.mrb[0].mxu0
    %v9157 = vadd.f32 %v8868, %v9156
    %v9158 = vpop.f32.mrb[0].mxu0
    %v9159 = vpop.f32.mrb[0].mxu0
    %v9160 = vadd.f32 %v8871, %v9159
    %v9161 = vpop.f32.mrb[0].mxu0
    %9162 = vmatprep.mubr.bf16.mxu0 0
    %9163 = vmatmul.mubr.bf16.gmra.mrb[0].mxu0 %v7148
    %v9164 = vpop.f32.mrb[0].mxu0
    %v9165 = vadd.f32 %v8876, %v9164
    %v9166 = vpop.f32.mrb[0].mxu0
    %v9167 = vpop.f32.mrb[0].mxu0
    %v9168 = vadd.f32 %v8879, %v9167
    %v9169 = vpop.f32.mrb[0].mxu0
    %9170 = vmatprep.mubr.bf16.mxu0 0
    %9171 = vmatmul.mubr.bf16.gmra.mrb[0].mxu0 %v7157
    %v9172 = vpop.f32.mrb[0].mxu0
    %v9173 = vadd.f32 %v8884, %v9172
    %v9174 = vpop.f32.mrb[0].mxu0
    %v9175 = vpop.f32.mrb[0].mxu0
    %v9176 = vadd.f32 %v8887, %v9175
    %v9177 = vpop.f32.mrb[0].mxu0
    %9178 = vdwg.mxu0
    %v9179 = vld [vmem:[%s2] sm:$0x1]
    %v9181 = vlaneseq
    %v9182 = vshrl.u32 %v9181, 7
    %v9183 = vsub.s32 0, %v9182
    %v9184 = vrot.slane %v9179, %v9183
    %v9186 = vmul.f32 %v8925, %v9184
    %v9187 = vmul.f32 %v8928, %v9184
    %v9188 = vmul.f32 %v8933, %v9184
    %v9189 = vmul.f32 %v8936, %v9184
    %v9190 = vmul.f32 %v8941, %v9184
    %v9191 = vmul.f32 %v8944, %v9184
    %v9192 = vmul.f32 %v8949, %v9184
    %v9193 = vmul.f32 %v8952, %v9184
    %v9194 = vmul.f32 %v8957, %v9184
    %v9195 = vmul.f32 %v8960, %v9184
    %v9196 = vmul.f32 %v8965, %v9184
    %v9197 = vmul.f32 %v8968, %v9184
    %v9198 = vmul.f32 %v8973, %v9184
    %v9199 = vmul.f32 %v8976, %v9184
    %v9200 = vmul.f32 %v8981, %v9184
    %v9201 = vmul.f32 %v8984, %v9184
    %v9202 = vmul.f32 %v8989, %v9184
    %v9203 = vmul.f32 %v8992, %v9184
    %v9204 = vmul.f32 %v8997, %v9184
    %v9205 = vmul.f32 %v9000, %v9184
    %v9206 = vmul.f32 %v9005, %v9184
    %v9207 = vmul.f32 %v9008, %v9184
    %v9208 = vmul.f32 %v9013, %v9184
    %v9209 = vmul.f32 %v9016, %v9184
    %v9210 = vmul.f32 %v9021, %v9184
    %v9211 = vmul.f32 %v9024, %v9184
    %v9212 = vmul.f32 %v9029, %v9184
    %v9213 = vmul.f32 %v9032, %v9184
    %v9214 = vmul.f32 %v9037, %v9184
    %v9215 = vmul.f32 %v9040, %v9184
    %v9216 = vmul.f32 %v9045, %v9184
    %v9217 = vmul.f32 %v9048, %v9184
    %v9218 = vmul.f32 %v9053, %v9184
    %v9219 = vmul.f32 %v9056, %v9184
    %v9220 = vmul.f32 %v9061, %v9184
    %v9221 = vmul.f32 %v9064, %v9184
    %v9222 = vmul.f32 %v9069, %v9184
    %v9223 = vmul.f32 %v9072, %v9184
    %v9224 = vmul.f32 %v9077, %v9184
    %v9225 = vmul.f32 %v9080, %v9184
    %v9226 = vmul.f32 %v9085, %v9184
    %v9227 = vmul.f32 %v9088, %v9184
    %v9228 = vmul.f32 %v9093, %v9184
    %v9229 = vmul.f32 %v9096, %v9184
    %v9230 = vmul.f32 %v9101, %v9184
    %v9231 = vmul.f32 %v9104, %v9184
    %v9232 = vmul.f32 %v9109, %v9184
    %v9233 = vmul.f32 %v9112, %v9184
    %v9234 = vmul.f32 %v9117, %v9184
    %v9235 = vmul.f32 %v9120, %v9184
    %v9236 = vmul.f32 %v9125, %v9184
    %v9237 = vmul.f32 %v9128, %v9184
    %v9238 = vmul.f32 %v9133, %v9184
    %v9239 = vmul.f32 %v9136, %v9184
    %v9240 = vmul.f32 %v9141, %v9184
    %v9241 = vmul.f32 %v9144, %v9184
    %v9242 = vmul.f32 %v9149, %v9184
    %v9243 = vmul.f32 %v9152, %v9184
    %v9244 = vmul.f32 %v9157, %v9184
    %v9245 = vmul.f32 %v9160, %v9184
    %v9246 = vmul.f32 %v9165, %v9184
    %v9247 = vmul.f32 %v9168, %v9184
    %v9248 = vmul.f32 %v9173, %v9184
    %v9249 = vmul.f32 %v9176, %v9184
    %v9250 = vld [vmem:[%s3] sm:$0x1]
    %v9252 = vlaneseq
    %v9253 = vshrl.u32 %v9252, 7
    %v9254 = vsub.s32 0, %v9253
    %v9255 = vrot.slane %v9250, %v9254
    %v9257 = vadd.f32 %v9186, %v9255
    %v9258 = vadd.f32 %v9187, %v9255
    %v9259 = vadd.f32 %v9188, %v9255
    %v9260 = vadd.f32 %v9189, %v9255
    %v9261 = vadd.f32 %v9190, %v9255
    %v9262 = vadd.f32 %v9191, %v9255
    %v9263 = vadd.f32 %v9192, %v9255
    %v9264 = vadd.f32 %v9193, %v9255
    %v9265 = vadd.f32 %v9194, %v9255
    %v9266 = vadd.f32 %v9195, %v9255
    %v9267 = vadd.f32 %v9196, %v9255
    %v9268 = vadd.f32 %v9197, %v9255
    %v9269 = vadd.f32 %v9198, %v9255
    %v9270 = vadd.f32 %v9199, %v9255
    %v9271 = vadd.f32 %v9200, %v9255
    %v9272 = vadd.f32 %v9201, %v9255
    %v9273 = vadd.f32 %v9202, %v9255
    %v9274 = vadd.f32 %v9203, %v9255
    %v9275 = vadd.f32 %v9204, %v9255
    %v9276 = vadd.f32 %v9205, %v9255
    %v9277 = vadd.f32 %v9206, %v9255
    %v9278 = vadd.f32 %v9207, %v9255
    %v9279 = vadd.f32 %v9208, %v9255
    %v9280 = vadd.f32 %v9209, %v9255
    %v9281 = vadd.f32 %v9210, %v9255
    %v9282 = vadd.f32 %v9211, %v9255
    %v9283 = vadd.f32 %v9212, %v9255
    %v9284 = vadd.f32 %v9213, %v9255
    %v9285 = vadd.f32 %v9214, %v9255
    %v9286 = vadd.f32 %v9215, %v9255
    %v9287 = vadd.f32 %v9216, %v9255
    %v9288 = vadd.f32 %v9217, %v9255
    %v9289 = vadd.f32 %v9218, %v9255
    %v9290 = vadd.f32 %v9219, %v9255
    %v9291 = vadd.f32 %v9220, %v9255
    %v9292 = vadd.f32 %v9221, %v9255
    %v9293 = vadd.f32 %v9222, %v9255
    %v9294 = vadd.f32 %v9223, %v9255
    %v9295 = vadd.f32 %v9224, %v9255
    %v9296 = vadd.f32 %v9225, %v9255
    %v9297 = vadd.f32 %v9226, %v9255
    %v9298 = vadd.f32 %v9227, %v9255
    %v9299 = vadd.f32 %v9228, %v9255
    %v9300 = vadd.f32 %v9229, %v9255
    %v9301 = vadd.f32 %v9230, %v9255
    %v9302 = vadd.f32 %v9231, %v9255
    %v9303 = vadd.f32 %v9232, %v9255
    %v9304 = vadd.f32 %v9233, %v9255
    %v9305 = vadd.f32 %v9234, %v9255
    %v9306 = vadd.f32 %v9235, %v9255
    %v9307 = vadd.f32 %v9236, %v9255
    %v9308 = vadd.f32 %v9237, %v9255
    %v9309 = vadd.f32 %v9238, %v9255
    %v9310 = vadd.f32 %v9239, %v9255
    %v9311 = vadd.f32 %v9240, %v9255
    %v9312 = vadd.f32 %v9241, %v9255
    %v9313 = vadd.f32 %v9242, %v9255
    %v9314 = vadd.f32 %v9243, %v9255
    %v9315 = vadd.f32 %v9244, %v9255
    %v9316 = vadd.f32 %v9245, %v9255
    %v9317 = vadd.f32 %v9246, %v9255
    %v9318 = vadd.f32 %v9247, %v9255
    %v9319 = vadd.f32 %v9248, %v9255
    %v9320 = vadd.f32 %v9249, %v9255
    %v9321 = vmax.f32 %v9257, 0.0
    %v9322 = vmax.f32 %v9258, 0.0
    %v9323 = vmax.f32 %v9259, 0.0
    %v9324 = vmax.f32 %v9260, 0.0
    %v9325 = vmax.f32 %v9261, 0.0
    %v9326 = vmax.f32 %v9262, 0.0
    %v9327 = vmax.f32 %v9263, 0.0
    %v9328 = vmax.f32 %v9264, 0.0
    %v9329 = vmax.f32 %v9265, 0.0
    %v9330 = vmax.f32 %v9266, 0.0
    %v9331 = vmax.f32 %v9267, 0.0
    %v9332 = vmax.f32 %v9268, 0.0
    %v9333 = vmax.f32 %v9269, 0.0
    %v9334 = vmax.f32 %v9270, 0.0
    %v9335 = vmax.f32 %v9271, 0.0
    %v9336 = vmax.f32 %v9272, 0.0
    %v9337 = vmax.f32 %v9273, 0.0
    %v9338 = vmax.f32 %v9274, 0.0
    %v9339 = vmax.f32 %v9275, 0.0
    %v9340 = vmax.f32 %v9276, 0.0
    %v9341 = vmax.f32 %v9277, 0.0
    %v9342 = vmax.f32 %v9278, 0.0
    %v9343 = vmax.f32 %v9279, 0.0
    %v9344 = vmax.f32 %v9280, 0.0
    %v9345 = vmax.f32 %v9281, 0.0
    %v9346 = vmax.f32 %v9282, 0.0
    %v9347 = vmax.f32 %v9283, 0.0
    %v9348 = vmax.f32 %v9284, 0.0
    %v9349 = vmax.f32 %v9285, 0.0
    %v9350 = vmax.f32 %v9286, 0.0
    %v9351 = vmax.f32 %v9287, 0.0
    %v9352 = vmax.f32 %v9288, 0.0
    %v9353 = vmax.f32 %v9289, 0.0
    %v9354 = vmax.f32 %v9290, 0.0
    %v9355 = vmax.f32 %v9291, 0.0
    %v9356 = vmax.f32 %v9292, 0.0
    %v9357 = vmax.f32 %v9293, 0.0
    %v9358 = vmax.f32 %v9294, 0.0
    %v9359 = vmax.f32 %v9295, 0.0
    %v9360 = vmax.f32 %v9296, 0.0
    %v9361 = vmax.f32 %v9297, 0.0
    %v9362 = vmax.f32 %v9298, 0.0
    %v9363 = vmax.f32 %v9299, 0.0
    %v9364 = vmax.f32 %v9300, 0.0
    %v9365 = vmax.f32 %v9301, 0.0
    %v9366 = vmax.f32 %v9302, 0.0
    %v9367 = vmax.f32 %v9303, 0.0
    %v9368 = vmax.f32 %v9304, 0.0
    %v9369 = vmax.f32 %v9305, 0.0
    %v9370 = vmax.f32 %v9306, 0.0
    %v9371 = vmax.f32 %v9307, 0.0
    %v9372 = vmax.f32 %v9308, 0.0
    %v9373 = vmax.f32 %v9309, 0.0
    %v9374 = vmax.f32 %v9310, 0.0
    %v9375 = vmax.f32 %v9311, 0.0
    %v9376 = vmax.f32 %v9312, 0.0
    %v9377 = vmax.f32 %v9313, 0.0
    %v9378 = vmax.f32 %v9314, 0.0
    %v9379 = vmax.f32 %v9315, 0.0
    %v9380 = vmax.f32 %v9316, 0.0
    %v9381 = vmax.f32 %v9317, 0.0
    %v9382 = vmax.f32 %v9318, 0.0
    %v9383 = vmax.f32 %v9319, 0.0
    %v9384 = vmax.f32 %v9320, 0.0
    %v9417 = vcombine.high %v9321, %v9321
    %v9419 = vunpack.c.l.s4 1983009808
    %v9420 = vunpack.c.0.s8 %v9419
    %v9421 = vlaneseq
    %v9422 = vshrl.u32 %v9421, 7
    %v9423 = vsub.s32 %v9420, %v9422
    %v9424 = vrot.slane %v9321, %v9423
    %v9426 = vunpack.c.l.s4 1983009808
    %v9427 = vunpack.c.0.s8 %v9426
    %v9428 = vlaneseq
    %v9429 = vshrl.u32 %v9428, 7
    %v9430 = vsub.s32 %v9427, %v9429
    %v9431 = vrot.slane %v9417, %v9430
    %v9432 = vcombine.high %v9424, %v9424
    %v9433 = vcombine.high %v9431, %v9431
    %v9434 = vcombine.high %v9322, %v9322
    %v9436 = vunpack.c.l.s4 1983009808
    %v9437 = vunpack.c.0.s8 %v9436
    %v9438 = vlaneseq
    %v9439 = vshrl.u32 %v9438, 7
    %v9440 = vsub.s32 %v9437, %v9439
    %v9441 = vrot.slane %v9322, %v9440
    %v9443 = vunpack.c.l.s4 1983009808
    %v9444 = vunpack.c.0.s8 %v9443
    %v9445 = vlaneseq
    %v9446 = vshrl.u32 %v9445, 7
    %v9447 = vsub.s32 %v9444, %v9446
    %v9448 = vrot.slane %v9434, %v9447
    %v9449 = vcombine.high %v9441, %v9441
    %v9450 = vcombine.high %v9448, %v9448
    %v9451 = vcombine.high %v9323, %v9323
    %v9453 = vunpack.c.l.s4 1983009808
    %v9454 = vunpack.c.0.s8 %v9453
    %v9455 = vlaneseq
    %v9456 = vshrl.u32 %v9455, 7
    %v9457 = vsub.s32 %v9454, %v9456
    %v9458 = vrot.slane %v9323, %v9457
    %v9460 = vunpack.c.l.s4 1983009808
    %v9461 = vunpack.c.0.s8 %v9460
    %v9462 = vlaneseq
    %v9463 = vshrl.u32 %v9462, 7
    %v9464 = vsub.s32 %v9461, %v9463
    %v9465 = vrot.slane %v9451, %v9464
    %v9466 = vcombine.high %v9458, %v9458
    %v9467 = vcombine.high %v9465, %v9465
    %v9468 = vcombine.high %v9324, %v9324
    %v9470 = vunpack.c.l.s4 1983009808
    %v9471 = vunpack.c.0.s8 %v9470
    %v9472 = vlaneseq
    %v9473 = vshrl.u32 %v9472, 7
    %v9474 = vsub.s32 %v9471, %v9473
    %v9475 = vrot.slane %v9324, %v9474
    %v9477 = vunpack.c.l.s4 1983009808
    %v9478 = vunpack.c.0.s8 %v9477
    %v9479 = vlaneseq
    %v9480 = vshrl.u32 %v9479, 7
    %v9481 = vsub.s32 %v9478, %v9480
    %v9482 = vrot.slane %v9468, %v9481
    %v9483 = vcombine.high %v9475, %v9475
    %v9484 = vcombine.high %v9482, %v9482
    %v9485 = vcombine.high %v9325, %v9325
    %v9487 = vunpack.c.l.s4 1983009808
    %v9488 = vunpack.c.0.s8 %v9487
    %v9489 = vlaneseq
    %v9490 = vshrl.u32 %v9489, 7
    %v9491 = vsub.s32 %v9488, %v9490
    %v9492 = vrot.slane %v9325, %v9491
    %v9494 = vunpack.c.l.s4 1983009808
    %v9495 = vunpack.c.0.s8 %v9494
    %v9496 = vlaneseq
    %v9497 = vshrl.u32 %v9496, 7
    %v9498 = vsub.s32 %v9495, %v9497
    %v9499 = vrot.slane %v9485, %v9498
    %v9500 = vcombine.high %v9492, %v9492
    %v9501 = vcombine.high %v9499, %v9499
    %v9502 = vcombine.high %v9326, %v9326
    %v9504 = vunpack.c.l.s4 1983009808
    %v9505 = vunpack.c.0.s8 %v9504
    %v9506 = vlaneseq
    %v9507 = vshrl.u32 %v9506, 7
    %v9508 = vsub.s32 %v9505, %v9507
    %v9509 = vrot.slane %v9326, %v9508
    %v9511 = vunpack.c.l.s4 1983009808
    %v9512 = vunpack.c.0.s8 %v9511
    %v9513 = vlaneseq
    %v9514 = vshrl.u32 %v9513, 7
    %v9515 = vsub.s32 %v9512, %v9514
    %v9516 = vrot.slane %v9502, %v9515
    %v9517 = vcombine.high %v9509, %v9509
    %v9518 = vcombine.high %v9516, %v9516
    %v9519 = vcombine.high %v9327, %v9327
    %v9521 = vunpack.c.l.s4 1983009808
    %v9522 = vunpack.c.0.s8 %v9521
    %v9523 = vlaneseq
    %v9524 = vshrl.u32 %v9523, 7
    %v9525 = vsub.s32 %v9522, %v9524
    %v9526 = vrot.slane %v9327, %v9525
    %v9528 = vunpack.c.l.s4 1983009808
    %v9529 = vunpack.c.0.s8 %v9528
    %v9530 = vlaneseq
    %v9531 = vshrl.u32 %v9530, 7
    %v9532 = vsub.s32 %v9529, %v9531
    %v9533 = vrot.slane %v9519, %v9532
    %v9534 = vcombine.high %v9526, %v9526
    %v9535 = vcombine.high %v9533, %v9533
    %v9536 = vcombine.high %v9328, %v9328
    %v9538 = vunpack.c.l.s4 1983009808
    %v9539 = vunpack.c.0.s8 %v9538
    %v9540 = vlaneseq
    %v9541 = vshrl.u32 %v9540, 7
    %v9542 = vsub.s32 %v9539, %v9541
    %v9543 = vrot.slane %v9328, %v9542
    %v9545 = vunpack.c.l.s4 1983009808
    %v9546 = vunpack.c.0.s8 %v9545
    %v9547 = vlaneseq
    %v9548 = vshrl.u32 %v9547, 7
    %v9549 = vsub.s32 %v9546, %v9548
    %v9550 = vrot.slane %v9536, %v9549
    %v9551 = vcombine.high %v9543, %v9543
    %v9552 = vcombine.high %v9550, %v9550
    %v9553 = vcombine.high %v9329, %v9329
    %v9555 = vunpack.c.l.s4 1983009808
    %v9556 = vunpack.c.0.s8 %v9555
    %v9557 = vlaneseq
    %v9558 = vshrl.u32 %v9557, 7
    %v9559 = vsub.s32 %v9556, %v9558
    %v9560 = vrot.slane %v9329, %v9559
    %v9562 = vunpack.c.l.s4 1983009808
    %v9563 = vunpack.c.0.s8 %v9562
    %v9564 = vlaneseq
    %v9565 = vshrl.u32 %v9564, 7
    %v9566 = vsub.s32 %v9563, %v9565
    %v9567 = vrot.slane %v9553, %v9566
    %v9568 = vcombine.high %v9560, %v9560
    %v9569 = vcombine.high %v9567, %v9567
    %v9570 = vcombine.high %v9330, %v9330
    %v9572 = vunpack.c.l.s4 1983009808
    %v9573 = vunpack.c.0.s8 %v9572
    %v9574 = vlaneseq
    %v9575 = vshrl.u32 %v9574, 7
    %v9576 = vsub.s32 %v9573, %v9575
    %v9577 = vrot.slane %v9330, %v9576
    %v9579 = vunpack.c.l.s4 1983009808
    %v9580 = vunpack.c.0.s8 %v9579
    %v9581 = vlaneseq
    %v9582 = vshrl.u32 %v9581, 7
    %v9583 = vsub.s32 %v9580, %v9582
    %v9584 = vrot.slane %v9570, %v9583
    %v9585 = vcombine.high %v9577, %v9577
    %v9586 = vcombine.high %v9584, %v9584
    %v9587 = vcombine.high %v9331, %v9331
    %v9589 = vunpack.c.l.s4 1983009808
    %v9590 = vunpack.c.0.s8 %v9589
    %v9591 = vlaneseq
    %v9592 = vshrl.u32 %v9591, 7
    %v9593 = vsub.s32 %v9590, %v9592
    %v9594 = vrot.slane %v9331, %v9593
    %v9596 = vunpack.c.l.s4 1983009808
    %v9597 = vunpack.c.0.s8 %v9596
    %v9598 = vlaneseq
    %v9599 = vshrl.u32 %v9598, 7
    %v9600 = vsub.s32 %v9597, %v9599
    %v9601 = vrot.slane %v9587, %v9600
    %v9602 = vcombine.high %v9594, %v9594
    %v9603 = vcombine.high %v9601, %v9601
    %v9604 = vcombine.high %v9332, %v9332
    %v9606 = vunpack.c.l.s4 1983009808
    %v9607 = vunpack.c.0.s8 %v9606
    %v9608 = vlaneseq
    %v9609 = vshrl.u32 %v9608, 7
    %v9610 = vsub.s32 %v9607, %v9609
    %v9611 = vrot.slane %v9332, %v9610
    %v9613 = vunpack.c.l.s4 1983009808
    %v9614 = vunpack.c.0.s8 %v9613
    %v9615 = vlaneseq
    %v9616 = vshrl.u32 %v9615, 7
    %v9617 = vsub.s32 %v9614, %v9616
    %v9618 = vrot.slane %v9604, %v9617
    %v9619 = vcombine.high %v9611, %v9611
    %v9620 = vcombine.high %v9618, %v9618
    %v9621 = vcombine.high %v9333, %v9333
    %v9623 = vunpack.c.l.s4 1983009808
    %v9624 = vunpack.c.0.s8 %v9623
    %v9625 = vlaneseq
    %v9626 = vshrl.u32 %v9625, 7
    %v9627 = vsub.s32 %v9624, %v9626
    %v9628 = vrot.slane %v9333, %v9627
    %v9630 = vunpack.c.l.s4 1983009808
    %v9631 = vunpack.c.0.s8 %v9630
    %v9632 = vlaneseq
    %v9633 = vshrl.u32 %v9632, 7
    %v9634 = vsub.s32 %v9631, %v9633
    %v9635 = vrot.slane %v9621, %v9634
    %v9636 = vcombine.high %v9628, %v9628
    %v9637 = vcombine.high %v9635, %v9635
    %v9638 = vcombine.high %v9334, %v9334
    %v9640 = vunpack.c.l.s4 1983009808
    %v9641 = vunpack.c.0.s8 %v9640
    %v9642 = vlaneseq
    %v9643 = vshrl.u32 %v9642, 7
    %v9644 = vsub.s32 %v9641, %v9643
    %v9645 = vrot.slane %v9334, %v9644
    %v9647 = vunpack.c.l.s4 1983009808
    %v9648 = vunpack.c.0.s8 %v9647
    %v9649 = vlaneseq
    %v9650 = vshrl.u32 %v9649, 7
    %v9651 = vsub.s32 %v9648, %v9650
    %v9652 = vrot.slane %v9638, %v9651
    %v9653 = vcombine.high %v9645, %v9645
    %v9654 = vcombine.high %v9652, %v9652
    %v9655 = vcombine.high %v9335, %v9335
    %v9657 = vunpack.c.l.s4 1983009808
    %v9658 = vunpack.c.0.s8 %v9657
    %v9659 = vlaneseq
    %v9660 = vshrl.u32 %v9659, 7
    %v9661 = vsub.s32 %v9658, %v9660
    %v9662 = vrot.slane %v9335, %v9661
    %v9664 = vunpack.c.l.s4 1983009808
    %v9665 = vunpack.c.0.s8 %v9664
    %v9666 = vlaneseq
    %v9667 = vshrl.u32 %v9666, 7
    %v9668 = vsub.s32 %v9665, %v9667
    %v9669 = vrot.slane %v9655, %v9668
    %v9670 = vcombine.high %v9662, %v9662
    %v9671 = vcombine.high %v9669, %v9669
    %v9672 = vcombine.high %v9336, %v9336
    %v9674 = vunpack.c.l.s4 1983009808
    %v9675 = vunpack.c.0.s8 %v9674
    %v9676 = vlaneseq
    %v9677 = vshrl.u32 %v9676, 7
    %v9678 = vsub.s32 %v9675, %v9677
    %v9679 = vrot.slane %v9336, %v9678
    %v9681 = vunpack.c.l.s4 1983009808
    %v9682 = vunpack.c.0.s8 %v9681
    %v9683 = vlaneseq
    %v9684 = vshrl.u32 %v9683, 7
    %v9685 = vsub.s32 %v9682, %v9684
    %v9686 = vrot.slane %v9672, %v9685
    %v9687 = vcombine.high %v9679, %v9679
    %v9688 = vcombine.high %v9686, %v9686
    %v9689 = vcombine.high %v9337, %v9337
    %v9691 = vunpack.c.l.s4 1983009808
    %v9692 = vunpack.c.0.s8 %v9691
    %v9693 = vlaneseq
    %v9694 = vshrl.u32 %v9693, 7
    %v9695 = vsub.s32 %v9692, %v9694
    %v9696 = vrot.slane %v9337, %v9695
    %v9698 = vunpack.c.l.s4 1983009808
    %v9699 = vunpack.c.0.s8 %v9698
    %v9700 = vlaneseq
    %v9701 = vshrl.u32 %v9700, 7
    %v9702 = vsub.s32 %v9699, %v9701
    %v9703 = vrot.slane %v9689, %v9702
    %v9704 = vcombine.high %v9696, %v9696
    %v9705 = vcombine.high %v9703, %v9703
    %v9706 = vcombine.high %v9338, %v9338
    %v9708 = vunpack.c.l.s4 1983009808
    %v9709 = vunpack.c.0.s8 %v9708
    %v9710 = vlaneseq
    %v9711 = vshrl.u32 %v9710, 7
    %v9712 = vsub.s32 %v9709, %v9711
    %v9713 = vrot.slane %v9338, %v9712
    %v9715 = vunpack.c.l.s4 1983009808
    %v9716 = vunpack.c.0.s8 %v9715
    %v9717 = vlaneseq
    %v9718 = vshrl.u32 %v9717, 7
    %v9719 = vsub.s32 %v9716, %v9718
    %v9720 = vrot.slane %v9706, %v9719
    %v9721 = vcombine.high %v9713, %v9713
    %v9722 = vcombine.high %v9720, %v9720
    %v9723 = vcombine.high %v9339, %v9339
    %v9725 = vunpack.c.l.s4 1983009808
    %v9726 = vunpack.c.0.s8 %v9725
    %v9727 = vlaneseq
    %v9728 = vshrl.u32 %v9727, 7
    %v9729 = vsub.s32 %v9726, %v9728
    %v9730 = vrot.slane %v9339, %v9729
    %v9732 = vunpack.c.l.s4 1983009808
    %v9733 = vunpack.c.0.s8 %v9732
    %v9734 = vlaneseq
    %v9735 = vshrl.u32 %v9734, 7
    %v9736 = vsub.s32 %v9733, %v9735
    %v9737 = vrot.slane %v9723, %v9736
    %v9738 = vcombine.high %v9730, %v9730
    %v9739 = vcombine.high %v9737, %v9737
    %v9740 = vcombine.high %v9340, %v9340
    %v9742 = vunpack.c.l.s4 1983009808
    %v9743 = vunpack.c.0.s8 %v9742
    %v9744 = vlaneseq
    %v9745 = vshrl.u32 %v9744, 7
    %v9746 = vsub.s32 %v9743, %v9745
    %v9747 = vrot.slane %v9340, %v9746
    %v9749 = vunpack.c.l.s4 1983009808
    %v9750 = vunpack.c.0.s8 %v9749
    %v9751 = vlaneseq
    %v9752 = vshrl.u32 %v9751, 7
    %v9753 = vsub.s32 %v9750, %v9752
    %v9754 = vrot.slane %v9740, %v9753
    %v9755 = vcombine.high %v9747, %v9747
    %v9756 = vcombine.high %v9754, %v9754
    %v9757 = vcombine.high %v9341, %v9341
    %v9759 = vunpack.c.l.s4 1983009808
    %v9760 = vunpack.c.0.s8 %v9759
    %v9761 = vlaneseq
    %v9762 = vshrl.u32 %v9761, 7
    %v9763 = vsub.s32 %v9760, %v9762
    %v9764 = vrot.slane %v9341, %v9763
    %v9766 = vunpack.c.l.s4 1983009808
    %v9767 = vunpack.c.0.s8 %v9766
    %v9768 = vlaneseq
    %v9769 = vshrl.u32 %v9768, 7
    %v9770 = vsub.s32 %v9767, %v9769
    %v9771 = vrot.slane %v9757, %v9770
    %v9772 = vcombine.high %v9764, %v9764
    %v9773 = vcombine.high %v9771, %v9771
    %v9774 = vcombine.high %v9342, %v9342
    %v9776 = vunpack.c.l.s4 1983009808
    %v9777 = vunpack.c.0.s8 %v9776
    %v9778 = vlaneseq
    %v9779 = vshrl.u32 %v9778, 7
    %v9780 = vsub.s32 %v9777, %v9779
    %v9781 = vrot.slane %v9342, %v9780
    %v9783 = vunpack.c.l.s4 1983009808
    %v9784 = vunpack.c.0.s8 %v9783
    %v9785 = vlaneseq
    %v9786 = vshrl.u32 %v9785, 7
    %v9787 = vsub.s32 %v9784, %v9786
    %v9788 = vrot.slane %v9774, %v9787
    %v9789 = vcombine.high %v9781, %v9781
    %v9790 = vcombine.high %v9788, %v9788
    %v9791 = vcombine.high %v9343, %v9343
    %v9793 = vunpack.c.l.s4 1983009808
    %v9794 = vunpack.c.0.s8 %v9793
    %v9795 = vlaneseq
    %v9796 = vshrl.u32 %v9795, 7
    %v9797 = vsub.s32 %v9794, %v9796
    %v9798 = vrot.slane %v9343, %v9797
    %v9800 = vunpack.c.l.s4 1983009808
    %v9801 = vunpack.c.0.s8 %v9800
    %v9802 = vlaneseq
    %v9803 = vshrl.u32 %v9802, 7
    %v9804 = vsub.s32 %v9801, %v9803
    %v9805 = vrot.slane %v9791, %v9804
    %v9806 = vcombine.high %v9798, %v9798
    %v9807 = vcombine.high %v9805, %v9805
    %v9808 = vcombine.high %v9344, %v9344
    %v9810 = vunpack.c.l.s4 1983009808
    %v9811 = vunpack.c.0.s8 %v9810
    %v9812 = vlaneseq
    %v9813 = vshrl.u32 %v9812, 7
    %v9814 = vsub.s32 %v9811, %v9813
    %v9815 = vrot.slane %v9344, %v9814
    %v9817 = vunpack.c.l.s4 1983009808
    %v9818 = vunpack.c.0.s8 %v9817
    %v9819 = vlaneseq
    %v9820 = vshrl.u32 %v9819, 7
    %v9821 = vsub.s32 %v9818, %v9820
    %v9822 = vrot.slane %v9808, %v9821
    %v9823 = vcombine.high %v9815, %v9815
    %v9824 = vcombine.high %v9822, %v9822
    %v9825 = vcombine.high %v9345, %v9345
    %v9827 = vunpack.c.l.s4 1983009808
    %v9828 = vunpack.c.0.s8 %v9827
    %v9829 = vlaneseq
    %v9830 = vshrl.u32 %v9829, 7
    %v9831 = vsub.s32 %v9828, %v9830
    %v9832 = vrot.slane %v9345, %v9831
    %v9834 = vunpack.c.l.s4 1983009808
    %v9835 = vunpack.c.0.s8 %v9834
    %v9836 = vlaneseq
    %v9837 = vshrl.u32 %v9836, 7
    %v9838 = vsub.s32 %v9835, %v9837
    %v9839 = vrot.slane %v9825, %v9838
    %v9840 = vcombine.high %v9832, %v9832
    %v9841 = vcombine.high %v9839, %v9839
    %v9842 = vcombine.high %v9346, %v9346
    %v9844 = vunpack.c.l.s4 1983009808
    %v9845 = vunpack.c.0.s8 %v9844
    %v9846 = vlaneseq
    %v9847 = vshrl.u32 %v9846, 7
    %v9848 = vsub.s32 %v9845, %v9847
    %v9849 = vrot.slane %v9346, %v9848
    %v9851 = vunpack.c.l.s4 1983009808
    %v9852 = vunpack.c.0.s8 %v9851
    %v9853 = vlaneseq
    %v9854 = vshrl.u32 %v9853, 7
    %v9855 = vsub.s32 %v9852, %v9854
    %v9856 = vrot.slane %v9842, %v9855
    %v9857 = vcombine.high %v9849, %v9849
    %v9858 = vcombine.high %v9856, %v9856
    %v9859 = vcombine.high %v9347, %v9347
    %v9861 = vunpack.c.l.s4 1983009808
    %v9862 = vunpack.c.0.s8 %v9861
    %v9863 = vlaneseq
    %v9864 = vshrl.u32 %v9863, 7
    %v9865 = vsub.s32 %v9862, %v9864
    %v9866 = vrot.slane %v9347, %v9865
    %v9868 = vunpack.c.l.s4 1983009808
    %v9869 = vunpack.c.0.s8 %v9868
    %v9870 = vlaneseq
    %v9871 = vshrl.u32 %v9870, 7
    %v9872 = vsub.s32 %v9869, %v9871
    %v9873 = vrot.slane %v9859, %v9872
    %v9874 = vcombine.high %v9866, %v9866
    %v9875 = vcombine.high %v9873, %v9873
    %v9876 = vcombine.high %v9348, %v9348
    %v9878 = vunpack.c.l.s4 1983009808
    %v9879 = vunpack.c.0.s8 %v9878
    %v9880 = vlaneseq
    %v9881 = vshrl.u32 %v9880, 7
    %v9882 = vsub.s32 %v9879, %v9881
    %v9883 = vrot.slane %v9348, %v9882
    %v9885 = vunpack.c.l.s4 1983009808
    %v9886 = vunpack.c.0.s8 %v9885
    %v9887 = vlaneseq
    %v9888 = vshrl.u32 %v9887, 7
    %v9889 = vsub.s32 %v9886, %v9888
    %v9890 = vrot.slane %v9876, %v9889
    %v9891 = vcombine.high %v9883, %v9883
    %v9892 = vcombine.high %v9890, %v9890
    %v9893 = vcombine.high %v9349, %v9349
    %v9895 = vunpack.c.l.s4 1983009808
    %v9896 = vunpack.c.0.s8 %v9895
    %v9897 = vlaneseq
    %v9898 = vshrl.u32 %v9897, 7
    %v9899 = vsub.s32 %v9896, %v9898
    %v9900 = vrot.slane %v9349, %v9899
    %v9902 = vunpack.c.l.s4 1983009808
    %v9903 = vunpack.c.0.s8 %v9902
    %v9904 = vlaneseq
    %v9905 = vshrl.u32 %v9904, 7
    %v9906 = vsub.s32 %v9903, %v9905
    %v9907 = vrot.slane %v9893, %v9906
    %v9908 = vcombine.high %v9900, %v9900
    %v9909 = vcombine.high %v9907, %v9907
    %v9910 = vcombine.high %v9350, %v9350
    %v9912 = vunpack.c.l.s4 1983009808
    %v9913 = vunpack.c.0.s8 %v9912
    %v9914 = vlaneseq
    %v9915 = vshrl.u32 %v9914, 7
    %v9916 = vsub.s32 %v9913, %v9915
    %v9917 = vrot.slane %v9350, %v9916
    %v9919 = vunpack.c.l.s4 1983009808
    %v9920 = vunpack.c.0.s8 %v9919
    %v9921 = vlaneseq
    %v9922 = vshrl.u32 %v9921, 7
    %v9923 = vsub.s32 %v9920, %v9922
    %v9924 = vrot.slane %v9910, %v9923
    %v9925 = vcombine.high %v9917, %v9917
    %v9926 = vcombine.high %v9924, %v9924
    %v9927 = vcombine.high %v9351, %v9351
    %v9929 = vunpack.c.l.s4 1983009808
    %v9930 = vunpack.c.0.s8 %v9929
    %v9931 = vlaneseq
    %v9932 = vshrl.u32 %v9931, 7
    %v9933 = vsub.s32 %v9930, %v9932
    %v9934 = vrot.slane %v9351, %v9933
    %v9936 = vunpack.c.l.s4 1983009808
    %v9937 = vunpack.c.0.s8 %v9936
    %v9938 = vlaneseq
    %v9939 = vshrl.u32 %v9938, 7
    %v9940 = vsub.s32 %v9937, %v9939
    %v9941 = vrot.slane %v9927, %v9940
    %v9942 = vcombine.high %v9934, %v9934
    %v9943 = vcombine.high %v9941, %v9941
    %v9944 = vcombine.high %v9352, %v9352
    %v9946 = vunpack.c.l.s4 1983009808
    %v9947 = vunpack.c.0.s8 %v9946
    %v9948 = vlaneseq
    %v9949 = vshrl.u32 %v9948, 7
    %v9950 = vsub.s32 %v9947, %v9949
    %v9951 = vrot.slane %v9352, %v9950
    %v9953 = vunpack.c.l.s4 1983009808
    %v9954 = vunpack.c.0.s8 %v9953
    %v9955 = vlaneseq
    %v9956 = vshrl.u32 %v9955, 7
    %v9957 = vsub.s32 %v9954, %v9956
    %v9958 = vrot.slane %v9944, %v9957
    %v9959 = vcombine.high %v9951, %v9951
    %v9960 = vcombine.high %v9958, %v9958
    %vm10089 = vcmask 1041408
    %v10090 = vsel %vm10089, %v9424, -inf
    %v10091 = vrot.slane %v10090, 4
    %v10092 = vmax.f32 %v10090, %v10091
    %v10093 = vrot.slane %v10092, 2
    %v10094 = vmax.f32 %v10092, %v10093
    %v10095 = vrot.slane %v10094, 1
    %v10096 = vmax.f32 %v10094, %v10095
    %v10097 = vsel %vm10089, %v9432, -inf
    %v10098 = vrot.slane %v10097, 4
    %v10099 = vmax.f32 %v10097, %v10098
    %v10100 = vrot.slane %v10099, 2
    %v10101 = vmax.f32 %v10099, %v10100
    %v10102 = vrot.slane %v10101, 1
    %v10103 = vmax.f32 %v10101, %v10102
    %v10104 = vsel %vm10089, %v9431, -inf
    %v10105 = vrot.slane %v10104, 4
    %v10106 = vmax.f32 %v10104, %v10105
    %v10107 = vrot.slane %v10106, 2
    %v10108 = vmax.f32 %v10106, %v10107
    %v10109 = vrot.slane %v10108, 1
    %v10110 = vmax.f32 %v10108, %v10109
    %v10111 = vsel %vm10089, %v9433, -inf
    %v10112 = vrot.slane %v10111, 4
    %v10113 = vmax.f32 %v10111, %v10112
    %v10114 = vrot.slane %v10113, 2
    %v10115 = vmax.f32 %v10113, %v10114
    %v10116 = vrot.slane %v10115, 1
    %v10117 = vmax.f32 %v10115, %v10116
    %v10118 = vsel %vm10089, %v9441, -inf
    %v10119 = vrot.slane %v10118, 4
    %v10120 = vmax.f32 %v10118, %v10119
    %v10121 = vrot.slane %v10120, 2
    %v10122 = vmax.f32 %v10120, %v10121
    %v10123 = vrot.slane %v10122, 1
    %v10124 = vmax.f32 %v10122, %v10123
    %v10125 = vsel %vm10089, %v9449, -inf
    %v10126 = vrot.slane %v10125, 4
    %v10127 = vmax.f32 %v10125, %v10126
    %v10128 = vrot.slane %v10127, 2
    %v10129 = vmax.f32 %v10127, %v10128
    %v10130 = vrot.slane %v10129, 1
    %v10131 = vmax.f32 %v10129, %v10130
    %v10132 = vsel %vm10089, %v9448, -inf
    %v10133 = vrot.slane %v10132, 4
    %v10134 = vmax.f32 %v10132, %v10133
    %v10135 = vrot.slane %v10134, 2
    %v10136 = vmax.f32 %v10134, %v10135
    %v10137 = vrot.slane %v10136, 1
    %v10138 = vmax.f32 %v10136, %v10137
    %v10139 = vsel %vm10089, %v9450, -inf
    %v10140 = vrot.slane %v10139, 4
    %v10141 = vmax.f32 %v10139, %v10140
    %v10142 = vrot.slane %v10141, 2
    %v10143 = vmax.f32 %v10141, %v10142
    %v10144 = vrot.slane %v10143, 1
    %v10145 = vmax.f32 %v10143, %v10144
    %v10146 = vsel %vm10089, %v9458, -inf
    %v10147 = vrot.slane %v10146, 4
    %v10148 = vmax.f32 %v10146, %v10147
    %v10149 = vrot.slane %v10148, 2
    %v10150 = vmax.f32 %v10148, %v10149
    %v10151 = vrot.slane %v10150, 1
    %v10152 = vmax.f32 %v10150, %v10151
    %v10153 = vsel %vm10089, %v9466, -inf
    %v10154 = vrot.slane %v10153, 4
    %v10155 = vmax.f32 %v10153, %v10154
    %v10156 = vrot.slane %v10155, 2
    %v10157 = vmax.f32 %v10155, %v10156
    %v10158 = vrot.slane %v10157, 1
    %v10159 = vmax.f32 %v10157, %v10158
    %v10160 = vsel %vm10089, %v9465, -inf
    %v10161 = vrot.slane %v10160, 4
    %v10162 = vmax.f32 %v10160, %v10161
    %v10163 = vrot.slane %v10162, 2
    %v10164 = vmax.f32 %v10162, %v10163
    %v10165 = vrot.slane %v10164, 1
    %v10166 = vmax.f32 %v10164, %v10165
    %v10167 = vsel %vm10089, %v9467, -inf
    %v10168 = vrot.slane %v10167, 4
    %v10169 = vmax.f32 %v10167, %v10168
    %v10170 = vrot.slane %v10169, 2
    %v10171 = vmax.f32 %v10169, %v10170
    %v10172 = vrot.slane %v10171, 1
    %v10173 = vmax.f32 %v10171, %v10172
    %v10174 = vsel %vm10089, %v9475, -inf
    %v10175 = vrot.slane %v10174, 4
    %v10176 = vmax.f32 %v10174, %v10175
    %v10177 = vrot.slane %v10176, 2
    %v10178 = vmax.f32 %v10176, %v10177
    %v10179 = vrot.slane %v10178, 1
    %v10180 = vmax.f32 %v10178, %v10179
    %v10181 = vsel %vm10089, %v9483, -inf
    %v10182 = vrot.slane %v10181, 4
    %v10183 = vmax.f32 %v10181, %v10182
    %v10184 = vrot.slane %v10183, 2
    %v10185 = vmax.f32 %v10183, %v10184
    %v10186 = vrot.slane %v10185, 1
    %v10187 = vmax.f32 %v10185, %v10186
    %v10188 = vsel %vm10089, %v9482, -inf
    %v10189 = vrot.slane %v10188, 4
    %v10190 = vmax.f32 %v10188, %v10189
    %v10191 = vrot.slane %v10190, 2
    %v10192 = vmax.f32 %v10190, %v10191
    %v10193 = vrot.slane %v10192, 1
    %v10194 = vmax.f32 %v10192, %v10193
    %v10195 = vsel %vm10089, %v9484, -inf
    %v10196 = vrot.slane %v10195, 4
    %v10197 = vmax.f32 %v10195, %v10196
    %v10198 = vrot.slane %v10197, 2
    %v10199 = vmax.f32 %v10197, %v10198
    %v10200 = vrot.slane %v10199, 1
    %v10201 = vmax.f32 %v10199, %v10200
    %v10202 = vsel %vm10089, %v9492, -inf
    %v10203 = vrot.slane %v10202, 4
    %v10204 = vmax.f32 %v10202, %v10203
    %v10205 = vrot.slane %v10204, 2
    %v10206 = vmax.f32 %v10204, %v10205
    %v10207 = vrot.slane %v10206, 1
    %v10208 = vmax.f32 %v10206, %v10207
    %v10209 = vsel %vm10089, %v9500, -inf
    %v10210 = vrot.slane %v10209, 4
    %v10211 = vmax.f32 %v10209, %v10210
    %v10212 = vrot.slane %v10211, 2
    %v10213 = vmax.f32 %v10211, %v10212
    %v10214 = vrot.slane %v10213, 1
    %v10215 = vmax.f32 %v10213, %v10214
    %v10216 = vsel %vm10089, %v9499, -inf
    %v10217 = vrot.slane %v10216, 4
    %v10218 = vmax.f32 %v10216, %v10217
    %v10219 = vrot.slane %v10218, 2
    %v10220 = vmax.f32 %v10218, %v10219
    %v10221 = vrot.slane %v10220, 1
    %v10222 = vmax.f32 %v10220, %v10221
    %v10223 = vsel %vm10089, %v9501, -inf
    %v10224 = vrot.slane %v10223, 4
    %v10225 = vmax.f32 %v10223, %v10224
    %v10226 = vrot.slane %v10225, 2
    %v10227 = vmax.f32 %v10225, %v10226
    %v10228 = vrot.slane %v10227, 1
    %v10229 = vmax.f32 %v10227, %v10228
    %v10230 = vsel %vm10089, %v9509, -inf
    %v10231 = vrot.slane %v10230, 4
    %v10232 = vmax.f32 %v10230, %v10231
    %v10233 = vrot.slane %v10232, 2
    %v10234 = vmax.f32 %v10232, %v10233
    %v10235 = vrot.slane %v10234, 1
    %v10236 = vmax.f32 %v10234, %v10235
    %v10237 = vsel %vm10089, %v9517, -inf
    %v10238 = vrot.slane %v10237, 4
    %v10239 = vmax.f32 %v10237, %v10238
    %v10240 = vrot.slane %v10239, 2
    %v10241 = vmax.f32 %v10239, %v10240
    %v10242 = vrot.slane %v10241, 1
    %v10243 = vmax.f32 %v10241, %v10242
    %v10244 = vsel %vm10089, %v9516, -inf
    %v10245 = vrot.slane %v10244, 4
    %v10246 = vmax.f32 %v10244, %v10245
    %v10247 = vrot.slane %v10246, 2
    %v10248 = vmax.f32 %v10246, %v10247
    %v10249 = vrot.slane %v10248, 1
    %v10250 = vmax.f32 %v10248, %v10249
    %v10251 = vsel %vm10089, %v9518, -inf
    %v10252 = vrot.slane %v10251, 4
    %v10253 = vmax.f32 %v10251, %v10252
    %v10254 = vrot.slane %v10253, 2
    %v10255 = vmax.f32 %v10253, %v10254
    %v10256 = vrot.slane %v10255, 1
    %v10257 = vmax.f32 %v10255, %v10256
    %v10258 = vsel %vm10089, %v9526, -inf
    %v10259 = vrot.slane %v10258, 4
    %v10260 = vmax.f32 %v10258, %v10259
    %v10261 = vrot.slane %v10260, 2
    %v10262 = vmax.f32 %v10260, %v10261
    %v10263 = vrot.slane %v10262, 1
    %v10264 = vmax.f32 %v10262, %v10263
    %v10265 = vsel %vm10089, %v9534, -inf
    %v10266 = vrot.slane %v10265, 4
    %v10267 = vmax.f32 %v10265, %v10266
    %v10268 = vrot.slane %v10267, 2
    %v10269 = vmax.f32 %v10267, %v10268
    %v10270 = vrot.slane %v10269, 1
    %v10271 = vmax.f32 %v10269, %v10270
    %v10272 = vsel %vm10089, %v9533, -inf
    %v10273 = vrot.slane %v10272, 4
    %v10274 = vmax.f32 %v10272, %v10273
    %v10275 = vrot.slane %v10274, 2
    %v10276 = vmax.f32 %v10274, %v10275
    %v10277 = vrot.slane %v10276, 1
    %v10278 = vmax.f32 %v10276, %v10277
    %v10279 = vsel %vm10089, %v9535, -inf
    %v10280 = vrot.slane %v10279, 4
    %v10281 = vmax.f32 %v10279, %v10280
    %v10282 = vrot.slane %v10281, 2
    %v10283 = vmax.f32 %v10281, %v10282
    %v10284 = vrot.slane %v10283, 1
    %v10285 = vmax.f32 %v10283, %v10284
    %v10286 = vsel %vm10089, %v9543, -inf
    %v10287 = vrot.slane %v10286, 4
    %v10288 = vmax.f32 %v10286, %v10287
    %v10289 = vrot.slane %v10288, 2
    %v10290 = vmax.f32 %v10288, %v10289
    %v10291 = vrot.slane %v10290, 1
    %v10292 = vmax.f32 %v10290, %v10291
    %v10293 = vsel %vm10089, %v9551, -inf
    %v10294 = vrot.slane %v10293, 4
    %v10295 = vmax.f32 %v10293, %v10294
    %v10296 = vrot.slane %v10295, 2
    %v10297 = vmax.f32 %v10295, %v10296
    %v10298 = vrot.slane %v10297, 1
    %v10299 = vmax.f32 %v10297, %v10298
    %v10300 = vsel %vm10089, %v9550, -inf
    %v10301 = vrot.slane %v10300, 4
    %v10302 = vmax.f32 %v10300, %v10301
    %v10303 = vrot.slane %v10302, 2
    %v10304 = vmax.f32 %v10302, %v10303
    %v10305 = vrot.slane %v10304, 1
    %v10306 = vmax.f32 %v10304, %v10305
    %v10307 = vsel %vm10089, %v9552, -inf
    %v10308 = vrot.slane %v10307, 4
    %v10309 = vmax.f32 %v10307, %v10308
    %v10310 = vrot.slane %v10309, 2
    %v10311 = vmax.f32 %v10309, %v10310
    %v10312 = vrot.slane %v10311, 1
    %v10313 = vmax.f32 %v10311, %v10312
    %v10314 = vsel %vm10089, %v9560, -inf
    %v10315 = vrot.slane %v10314, 4
    %v10316 = vmax.f32 %v10314, %v10315
    %v10317 = vrot.slane %v10316, 2
    %v10318 = vmax.f32 %v10316, %v10317
    %v10319 = vrot.slane %v10318, 1
    %v10320 = vmax.f32 %v10318, %v10319
    %v10321 = vsel %vm10089, %v9568, -inf
    %v10322 = vrot.slane %v10321, 4
    %v10323 = vmax.f32 %v10321, %v10322
    %v10324 = vrot.slane %v10323, 2
    %v10325 = vmax.f32 %v10323, %v10324
    %v10326 = vrot.slane %v10325, 1
    %v10327 = vmax.f32 %v10325, %v10326
    %v10328 = vsel %vm10089, %v9567, -inf
    %v10329 = vrot.slane %v10328, 4
    %v10330 = vmax.f32 %v10328, %v10329
    %v10331 = vrot.slane %v10330, 2
    %v10332 = vmax.f32 %v10330, %v10331
    %v10333 = vrot.slane %v10332, 1
    %v10334 = vmax.f32 %v10332, %v10333
    %v10335 = vsel %vm10089, %v9569, -inf
    %v10336 = vrot.slane %v10335, 4
    %v10337 = vmax.f32 %v10335, %v10336
    %v10338 = vrot.slane %v10337, 2
    %v10339 = vmax.f32 %v10337, %v10338
    %v10340 = vrot.slane %v10339, 1
    %v10341 = vmax.f32 %v10339, %v10340
    %v10342 = vsel %vm10089, %v9577, -inf
    %v10343 = vrot.slane %v10342, 4
    %v10344 = vmax.f32 %v10342, %v10343
    %v10345 = vrot.slane %v10344, 2
    %v10346 = vmax.f32 %v10344, %v10345
    %v10347 = vrot.slane %v10346, 1
    %v10348 = vmax.f32 %v10346, %v10347
    %v10349 = vsel %vm10089, %v9585, -inf
    %v10350 = vrot.slane %v10349, 4
    %v10351 = vmax.f32 %v10349, %v10350
    %v10352 = vrot.slane %v10351, 2
    %v10353 = vmax.f32 %v10351, %v10352
    %v10354 = vrot.slane %v10353, 1
    %v10355 = vmax.f32 %v10353, %v10354
    %v10356 = vsel %vm10089, %v9584, -inf
    %v10357 = vrot.slane %v10356, 4
    %v10358 = vmax.f32 %v10356, %v10357
    %v10359 = vrot.slane %v10358, 2
    %v10360 = vmax.f32 %v10358, %v10359
    %v10361 = vrot.slane %v10360, 1
    %v10362 = vmax.f32 %v10360, %v10361
    %v10363 = vsel %vm10089, %v9586, -inf
    %v10364 = vrot.slane %v10363, 4
    %v10365 = vmax.f32 %v10363, %v10364
    %v10366 = vrot.slane %v10365, 2
    %v10367 = vmax.f32 %v10365, %v10366
    %v10368 = vrot.slane %v10367, 1
    %v10369 = vmax.f32 %v10367, %v10368
    %v10370 = vsel %vm10089, %v9594, -inf
    %v10371 = vrot.slane %v10370, 4
    %v10372 = vmax.f32 %v10370, %v10371
    %v10373 = vrot.slane %v10372, 2
    %v10374 = vmax.f32 %v10372, %v10373
    %v10375 = vrot.slane %v10374, 1
    %v10376 = vmax.f32 %v10374, %v10375
    %v10377 = vsel %vm10089, %v9602, -inf
    %v10378 = vrot.slane %v10377, 4
    %v10379 = vmax.f32 %v10377, %v10378
    %v10380 = vrot.slane %v10379, 2
    %v10381 = vmax.f32 %v10379, %v10380
    %v10382 = vrot.slane %v10381, 1
    %v10383 = vmax.f32 %v10381, %v10382
    %v10384 = vsel %vm10089, %v9601, -inf
    %v10385 = vrot.slane %v10384, 4
    %v10386 = vmax.f32 %v10384, %v10385
    %v10387 = vrot.slane %v10386, 2
    %v10388 = vmax.f32 %v10386, %v10387
    %v10389 = vrot.slane %v10388, 1
    %v10390 = vmax.f32 %v10388, %v10389
    %v10391 = vsel %vm10089, %v9603, -inf
    %v10392 = vrot.slane %v10391, 4
    %v10393 = vmax.f32 %v10391, %v10392
    %v10394 = vrot.slane %v10393, 2
    %v10395 = vmax.f32 %v10393, %v10394
    %v10396 = vrot.slane %v10395, 1
    %v10397 = vmax.f32 %v10395, %v10396
    %v10398 = vsel %vm10089, %v9611, -inf
    %v10399 = vrot.slane %v10398, 4
    %v10400 = vmax.f32 %v10398, %v10399
    %v10401 = vrot.slane %v10400, 2
    %v10402 = vmax.f32 %v10400, %v10401
    %v10403 = vrot.slane %v10402, 1
    %v10404 = vmax.f32 %v10402, %v10403
    %v10405 = vsel %vm10089, %v9619, -inf
    %v10406 = vrot.slane %v10405, 4
    %v10407 = vmax.f32 %v10405, %v10406
    %v10408 = vrot.slane %v10407, 2
    %v10409 = vmax.f32 %v10407, %v10408
    %v10410 = vrot.slane %v10409, 1
    %v10411 = vmax.f32 %v10409, %v10410
    %v10412 = vsel %vm10089, %v9618, -inf
    %v10413 = vrot.slane %v10412, 4
    %v10414 = vmax.f32 %v10412, %v10413
    %v10415 = vrot.slane %v10414, 2
    %v10416 = vmax.f32 %v10414, %v10415
    %v10417 = vrot.slane %v10416, 1
    %v10418 = vmax.f32 %v10416, %v10417
    %v10419 = vsel %vm10089, %v9620, -inf
    %v10420 = vrot.slane %v10419, 4
    %v10421 = vmax.f32 %v10419, %v10420
    %v10422 = vrot.slane %v10421, 2
    %v10423 = vmax.f32 %v10421, %v10422
    %v10424 = vrot.slane %v10423, 1
    %v10425 = vmax.f32 %v10423, %v10424
    %v10426 = vsel %vm10089, %v9628, -inf
    %v10427 = vrot.slane %v10426, 4
    %v10428 = vmax.f32 %v10426, %v10427
    %v10429 = vrot.slane %v10428, 2
    %v10430 = vmax.f32 %v10428, %v10429
    %v10431 = vrot.slane %v10430, 1
    %v10432 = vmax.f32 %v10430, %v10431
    %v10433 = vsel %vm10089, %v9636, -inf
    %v10434 = vrot.slane %v10433, 4
    %v10435 = vmax.f32 %v10433, %v10434
    %v10436 = vrot.slane %v10435, 2
    %v10437 = vmax.f32 %v10435, %v10436
    %v10438 = vrot.slane %v10437, 1
    %v10439 = vmax.f32 %v10437, %v10438
    %v10440 = vsel %vm10089, %v9635, -inf
    %v10441 = vrot.slane %v10440, 4
    %v10442 = vmax.f32 %v10440, %v10441
    %v10443 = vrot.slane %v10442, 2
    %v10444 = vmax.f32 %v10442, %v10443
    %v10445 = vrot.slane %v10444, 1
    %v10446 = vmax.f32 %v10444, %v10445
    %v10447 = vsel %vm10089, %v9637, -inf
    %v10448 = vrot.slane %v10447, 4
    %v10449 = vmax.f32 %v10447, %v10448
    %v10450 = vrot.slane %v10449, 2
    %v10451 = vmax.f32 %v10449, %v10450
    %v10452 = vrot.slane %v10451, 1
    %v10453 = vmax.f32 %v10451, %v10452
    %v10454 = vsel %vm10089, %v9645, -inf
    %v10455 = vrot.slane %v10454, 4
    %v10456 = vmax.f32 %v10454, %v10455
    %v10457 = vrot.slane %v10456, 2
    %v10458 = vmax.f32 %v10456, %v10457
    %v10459 = vrot.slane %v10458, 1
    %v10460 = vmax.f32 %v10458, %v10459
    %v10461 = vsel %vm10089, %v9653, -inf
    %v10462 = vrot.slane %v10461, 4
    %v10463 = vmax.f32 %v10461, %v10462
    %v10464 = vrot.slane %v10463, 2
    %v10465 = vmax.f32 %v10463, %v10464
    %v10466 = vrot.slane %v10465, 1
    %v10467 = vmax.f32 %v10465, %v10466
    %v10468 = vsel %vm10089, %v9652, -inf
    %v10469 = vrot.slane %v10468, 4
    %v10470 = vmax.f32 %v10468, %v10469
    %v10471 = vrot.slane %v10470, 2
    %v10472 = vmax.f32 %v10470, %v10471
    %v10473 = vrot.slane %v10472, 1
    %v10474 = vmax.f32 %v10472, %v10473
    %v10475 = vsel %vm10089, %v9654, -inf
    %v10476 = vrot.slane %v10475, 4
    %v10477 = vmax.f32 %v10475, %v10476
    %v10478 = vrot.slane %v10477, 2
    %v10479 = vmax.f32 %v10477, %v10478
    %v10480 = vrot.slane %v10479, 1
    %v10481 = vmax.f32 %v10479, %v10480
    %v10482 = vsel %vm10089, %v9662, -inf
    %v10483 = vrot.slane %v10482, 4
    %v10484 = vmax.f32 %v10482, %v10483
    %v10485 = vrot.slane %v10484, 2
    %v10486 = vmax.f32 %v10484, %v10485
    %v10487 = vrot.slane %v10486, 1
    %v10488 = vmax.f32 %v10486, %v10487
    %v10489 = vsel %vm10089, %v9670, -inf
    %v10490 = vrot.slane %v10489, 4
    %v10491 = vmax.f32 %v10489, %v10490
    %v10492 = vrot.slane %v10491, 2
    %v10493 = vmax.f32 %v10491, %v10492
    %v10494 = vrot.slane %v10493, 1
    %v10495 = vmax.f32 %v10493, %v10494
    %v10496 = vsel %vm10089, %v9669, -inf
    %v10497 = vrot.slane %v10496, 4
    %v10498 = vmax.f32 %v10496, %v10497
    %v10499 = vrot.slane %v10498, 2
    %v10500 = vmax.f32 %v10498, %v10499
    %v10501 = vrot.slane %v10500, 1
    %v10502 = vmax.f32 %v10500, %v10501
    %v10503 = vsel %vm10089, %v9671, -inf
    %v10504 = vrot.slane %v10503, 4
    %v10505 = vmax.f32 %v10503, %v10504
    %v10506 = vrot.slane %v10505, 2
    %v10507 = vmax.f32 %v10505, %v10506
    %v10508 = vrot.slane %v10507, 1
    %v10509 = vmax.f32 %v10507, %v10508
    %v10510 = vsel %vm10089, %v9679, -inf
    %v10511 = vrot.slane %v10510, 4
    %v10512 = vmax.f32 %v10510, %v10511
    %v10513 = vrot.slane %v10512, 2
    %v10514 = vmax.f32 %v10512, %v10513
    %v10515 = vrot.slane %v10514, 1
    %v10516 = vmax.f32 %v10514, %v10515
    %v10517 = vsel %vm10089, %v9687, -inf
    %v10518 = vrot.slane %v10517, 4
    %v10519 = vmax.f32 %v10517, %v10518
    %v10520 = vrot.slane %v10519, 2
    %v10521 = vmax.f32 %v10519, %v10520
    %v10522 = vrot.slane %v10521, 1
    %v10523 = vmax.f32 %v10521, %v10522
    %v10524 = vsel %vm10089, %v9686, -inf
    %v10525 = vrot.slane %v10524, 4
    %v10526 = vmax.f32 %v10524, %v10525
    %v10527 = vrot.slane %v10526, 2
    %v10528 = vmax.f32 %v10526, %v10527
    %v10529 = vrot.slane %v10528, 1
    %v10530 = vmax.f32 %v10528, %v10529
    %v10531 = vsel %vm10089, %v9688, -inf
    %v10532 = vrot.slane %v10531, 4
    %v10533 = vmax.f32 %v10531, %v10532
    %v10534 = vrot.slane %v10533, 2
    %v10535 = vmax.f32 %v10533, %v10534
    %v10536 = vrot.slane %v10535, 1
    %v10537 = vmax.f32 %v10535, %v10536
    %v10538 = vsel %vm10089, %v9696, -inf
    %v10539 = vrot.slane %v10538, 4
    %v10540 = vmax.f32 %v10538, %v10539
    %v10541 = vrot.slane %v10540, 2
    %v10542 = vmax.f32 %v10540, %v10541
    %v10543 = vrot.slane %v10542, 1
    %v10544 = vmax.f32 %v10542, %v10543
    %v10545 = vsel %vm10089, %v9704, -inf
    %v10546 = vrot.slane %v10545, 4
    %v10547 = vmax.f32 %v10545, %v10546
    %v10548 = vrot.slane %v10547, 2
    %v10549 = vmax.f32 %v10547, %v10548
    %v10550 = vrot.slane %v10549, 1
    %v10551 = vmax.f32 %v10549, %v10550
    %v10552 = vsel %vm10089, %v9703, -inf
    %v10553 = vrot.slane %v10552, 4
    %v10554 = vmax.f32 %v10552, %v10553
    %v10555 = vrot.slane %v10554, 2
    %v10556 = vmax.f32 %v10554, %v10555
    %v10557 = vrot.slane %v10556, 1
    %v10558 = vmax.f32 %v10556, %v10557
    %v10559 = vsel %vm10089, %v9705, -inf
    %v10560 = vrot.slane %v10559, 4
    %v10561 = vmax.f32 %v10559, %v10560
    %v10562 = vrot.slane %v10561, 2
    %v10563 = vmax.f32 %v10561, %v10562
    %v10564 = vrot.slane %v10563, 1
    %v10565 = vmax.f32 %v10563, %v10564
    %v10566 = vsel %vm10089, %v9713, -inf
    %v10567 = vrot.slane %v10566, 4
    %v10568 = vmax.f32 %v10566, %v10567
    %v10569 = vrot.slane %v10568, 2
    %v10570 = vmax.f32 %v10568, %v10569
    %v10571 = vrot.slane %v10570, 1
    %v10572 = vmax.f32 %v10570, %v10571
    %v10573 = vsel %vm10089, %v9721, -inf
    %v10574 = vrot.slane %v10573, 4
    %v10575 = vmax.f32 %v10573, %v10574
    %v10576 = vrot.slane %v10575, 2
    %v10577 = vmax.f32 %v10575, %v10576
    %v10578 = vrot.slane %v10577, 1
    %v10579 = vmax.f32 %v10577, %v10578
    %v10580 = vsel %vm10089, %v9720, -inf
    %v10581 = vrot.slane %v10580, 4
    %v10582 = vmax.f32 %v10580, %v10581
    %v10583 = vrot.slane %v10582, 2
    %v10584 = vmax.f32 %v10582, %v10583
    %v10585 = vrot.slane %v10584, 1
    %v10586 = vmax.f32 %v10584, %v10585
    %v10587 = vsel %vm10089, %v9722, -inf
    %v10588 = vrot.slane %v10587, 4
    %v10589 = vmax.f32 %v10587, %v10588
    %v10590 = vrot.slane %v10589, 2
    %v10591 = vmax.f32 %v10589, %v10590
    %v10592 = vrot.slane %v10591, 1
    %v10593 = vmax.f32 %v10591, %v10592
    %v10594 = vsel %vm10089, %v9730, -inf
    %v10595 = vrot.slane %v10594, 4
    %v10596 = vmax.f32 %v10594, %v10595
    %v10597 = vrot.slane %v10596, 2
    %v10598 = vmax.f32 %v10596, %v10597
    %v10599 = vrot.slane %v10598, 1
    %v10600 = vmax.f32 %v10598, %v10599
    %v10601 = vsel %vm10089, %v9738, -inf
    %v10602 = vrot.slane %v10601, 4
    %v10603 = vmax.f32 %v10601, %v10602
    %v10604 = vrot.slane %v10603, 2
    %v10605 = vmax.f32 %v10603, %v10604
    %v10606 = vrot.slane %v10605, 1
    %v10607 = vmax.f32 %v10605, %v10606
    %v10608 = vsel %vm10089, %v9737, -inf
    %v10609 = vrot.slane %v10608, 4
    %v10610 = vmax.f32 %v10608, %v10609
    %v10611 = vrot.slane %v10610, 2
    %v10612 = vmax.f32 %v10610, %v10611
    %v10613 = vrot.slane %v10612, 1
    %v10614 = vmax.f32 %v10612, %v10613
    %v10615 = vsel %vm10089, %v9739, -inf
    %v10616 = vrot.slane %v10615, 4
    %v10617 = vmax.f32 %v10615, %v10616
    %v10618 = vrot.slane %v10617, 2
    %v10619 = vmax.f32 %v10617, %v10618
    %v10620 = vrot.slane %v10619, 1
    %v10621 = vmax.f32 %v10619, %v10620
    %v10622 = vsel %vm10089, %v9747, -inf
    %v10623 = vrot.slane %v10622, 4
    %v10624 = vmax.f32 %v10622, %v10623
    %v10625 = vrot.slane %v10624, 2
    %v10626 = vmax.f32 %v10624, %v10625
    %v10627 = vrot.slane %v10626, 1
    %v10628 = vmax.f32 %v10626, %v10627
    %v10629 = vsel %vm10089, %v9755, -inf
    %v10630 = vrot.slane %v10629, 4
    %v10631 = vmax.f32 %v10629, %v10630
    %v10632 = vrot.slane %v10631, 2
    %v10633 = vmax.f32 %v10631, %v10632
    %v10634 = vrot.slane %v10633, 1
    %v10635 = vmax.f32 %v10633, %v10634
    %v10636 = vsel %vm10089, %v9754, -inf
    %v10637 = vrot.slane %v10636, 4
    %v10638 = vmax.f32 %v10636, %v10637
    %v10639 = vrot.slane %v10638, 2
    %v10640 = vmax.f32 %v10638, %v10639
    %v10641 = vrot.slane %v10640, 1
    %v10642 = vmax.f32 %v10640, %v10641
    %v10643 = vsel %vm10089, %v9756, -inf
    %v10644 = vrot.slane %v10643, 4
    %v10645 = vmax.f32 %v10643, %v10644
    %v10646 = vrot.slane %v10645, 2
    %v10647 = vmax.f32 %v10645, %v10646
    %v10648 = vrot.slane %v10647, 1
    %v10649 = vmax.f32 %v10647, %v10648
    %v10650 = vsel %vm10089, %v9764, -inf
    %v10651 = vrot.slane %v10650, 4
    %v10652 = vmax.f32 %v10650, %v10651
    %v10653 = vrot.slane %v10652, 2
    %v10654 = vmax.f32 %v10652, %v10653
    %v10655 = vrot.slane %v10654, 1
    %v10656 = vmax.f32 %v10654, %v10655
    %v10657 = vsel %vm10089, %v9772, -inf
    %v10658 = vrot.slane %v10657, 4
    %v10659 = vmax.f32 %v10657, %v10658
    %v10660 = vrot.slane %v10659, 2
    %v10661 = vmax.f32 %v10659, %v10660
    %v10662 = vrot.slane %v10661, 1
    %v10663 = vmax.f32 %v10661, %v10662
    %v10664 = vsel %vm10089, %v9771, -inf
    %v10665 = vrot.slane %v10664, 4
    %v10666 = vmax.f32 %v10664, %v10665
    %v10667 = vrot.slane %v10666, 2
    %v10668 = vmax.f32 %v10666, %v10667
    %v10669 = vrot.slane %v10668, 1
    %v10670 = vmax.f32 %v10668, %v10669
    %v10671 = vsel %vm10089, %v9773, -inf
    %v10672 = vrot.slane %v10671, 4
    %v10673 = vmax.f32 %v10671, %v10672
    %v10674 = vrot.slane %v10673, 2
    %v10675 = vmax.f32 %v10673, %v10674
    %v10676 = vrot.slane %v10675, 1
    %v10677 = vmax.f32 %v10675, %v10676
    %v10678 = vsel %vm10089, %v9781, -inf
    %v10679 = vrot.slane %v10678, 4
    %v10680 = vmax.f32 %v10678, %v10679
    %v10681 = vrot.slane %v10680, 2
    %v10682 = vmax.f32 %v10680, %v10681
    %v10683 = vrot.slane %v10682, 1
    %v10684 = vmax.f32 %v10682, %v10683
    %v10685 = vsel %vm10089, %v9789, -inf
    %v10686 = vrot.slane %v10685, 4
    %v10687 = vmax.f32 %v10685, %v10686
    %v10688 = vrot.slane %v10687, 2
    %v10689 = vmax.f32 %v10687, %v10688
    %v10690 = vrot.slane %v10689, 1
    %v10691 = vmax.f32 %v10689, %v10690
    %v10692 = vsel %vm10089, %v9788, -inf
    %v10693 = vrot.slane %v10692, 4
    %v10694 = vmax.f32 %v10692, %v10693
    %v10695 = vrot.slane %v10694, 2
    %v10696 = vmax.f32 %v10694, %v10695
    %v10697 = vrot.slane %v10696, 1
    %v10698 = vmax.f32 %v10696, %v10697
    %v10699 = vsel %vm10089, %v9790, -inf
    %v10700 = vrot.slane %v10699, 4
    %v10701 = vmax.f32 %v10699, %v10700
    %v10702 = vrot.slane %v10701, 2
    %v10703 = vmax.f32 %v10701, %v10702
    %v10704 = vrot.slane %v10703, 1
    %v10705 = vmax.f32 %v10703, %v10704
    %v10706 = vsel %vm10089, %v9798, -inf
    %v10707 = vrot.slane %v10706, 4
    %v10708 = vmax.f32 %v10706, %v10707
    %v10709 = vrot.slane %v10708, 2
    %v10710 = vmax.f32 %v10708, %v10709
    %v10711 = vrot.slane %v10710, 1
    %v10712 = vmax.f32 %v10710, %v10711
    %v10713 = vsel %vm10089, %v9806, -inf
    %v10714 = vrot.slane %v10713, 4
    %v10715 = vmax.f32 %v10713, %v10714
    %v10716 = vrot.slane %v10715, 2
    %v10717 = vmax.f32 %v10715, %v10716
    %v10718 = vrot.slane %v10717, 1
    %v10719 = vmax.f32 %v10717, %v10718
    %v10720 = vsel %vm10089, %v9805, -inf
    %v10721 = vrot.slane %v10720, 4
    %v10722 = vmax.f32 %v10720, %v10721
    %v10723 = vrot.slane %v10722, 2
    %v10724 = vmax.f32 %v10722, %v10723
    %v10725 = vrot.slane %v10724, 1
    %v10726 = vmax.f32 %v10724, %v10725
    %v10727 = vsel %vm10089, %v9807, -inf
    %v10728 = vrot.slane %v10727, 4
    %v10729 = vmax.f32 %v10727, %v10728
    %v10730 = vrot.slane %v10729, 2
    %v10731 = vmax.f32 %v10729, %v10730
    %v10732 = vrot.slane %v10731, 1
    %v10733 = vmax.f32 %v10731, %v10732
    %v10734 = vsel %vm10089, %v9815, -inf
    %v10735 = vrot.slane %v10734, 4
    %v10736 = vmax.f32 %v10734, %v10735
    %v10737 = vrot.slane %v10736, 2
    %v10738 = vmax.f32 %v10736, %v10737
    %v10739 = vrot.slane %v10738, 1
    %v10740 = vmax.f32 %v10738, %v10739
    %v10741 = vsel %vm10089, %v9823, -inf
    %v10742 = vrot.slane %v10741, 4
    %v10743 = vmax.f32 %v10741, %v10742
    %v10744 = vrot.slane %v10743, 2
    %v10745 = vmax.f32 %v10743, %v10744
    %v10746 = vrot.slane %v10745, 1
    %v10747 = vmax.f32 %v10745, %v10746
    %v10748 = vsel %vm10089, %v9822, -inf
    %v10749 = vrot.slane %v10748, 4
    %v10750 = vmax.f32 %v10748, %v10749
    %v10751 = vrot.slane %v10750, 2
    %v10752 = vmax.f32 %v10750, %v10751
    %v10753 = vrot.slane %v10752, 1
    %v10754 = vmax.f32 %v10752, %v10753
    %v10755 = vsel %vm10089, %v9824, -inf
    %v10756 = vrot.slane %v10755, 4
    %v10757 = vmax.f32 %v10755, %v10756
    %v10758 = vrot.slane %v10757, 2
    %v10759 = vmax.f32 %v10757, %v10758
    %v10760 = vrot.slane %v10759, 1
    %v10761 = vmax.f32 %v10759, %v10760
    %v10762 = vsel %vm10089, %v9832, -inf
    %v10763 = vrot.slane %v10762, 4
    %v10764 = vmax.f32 %v10762, %v10763
    %v10765 = vrot.slane %v10764, 2
    %v10766 = vmax.f32 %v10764, %v10765
    %v10767 = vrot.slane %v10766, 1
    %v10768 = vmax.f32 %v10766, %v10767
    %v10769 = vsel %vm10089, %v9840, -inf
    %v10770 = vrot.slane %v10769, 4
    %v10771 = vmax.f32 %v10769, %v10770
    %v10772 = vrot.slane %v10771, 2
    %v10773 = vmax.f32 %v10771, %v10772
    %v10774 = vrot.slane %v10773, 1
    %v10775 = vmax.f32 %v10773, %v10774
    %v10776 = vsel %vm10089, %v9839, -inf
    %v10777 = vrot.slane %v10776, 4
    %v10778 = vmax.f32 %v10776, %v10777
    %v10779 = vrot.slane %v10778, 2
    %v10780 = vmax.f32 %v10778, %v10779
    %v10781 = vrot.slane %v10780, 1
    %v10782 = vmax.f32 %v10780, %v10781
    %v10783 = vsel %vm10089, %v9841, -inf
    %v10784 = vrot.slane %v10783, 4
    %v10785 = vmax.f32 %v10783, %v10784
    %v10786 = vrot.slane %v10785, 2
    %v10787 = vmax.f32 %v10785, %v10786
    %v10788 = vrot.slane %v10787, 1
    %v10789 = vmax.f32 %v10787, %v10788
    %v10790 = vsel %vm10089, %v9849, -inf
    %v10791 = vrot.slane %v10790, 4
    %v10792 = vmax.f32 %v10790, %v10791
    %v10793 = vrot.slane %v10792, 2
    %v10794 = vmax.f32 %v10792, %v10793
    %v10795 = vrot.slane %v10794, 1
    %v10796 = vmax.f32 %v10794, %v10795
    %v10797 = vsel %vm10089, %v9857, -inf
    %v10798 = vrot.slane %v10797, 4
    %v10799 = vmax.f32 %v10797, %v10798
    %v10800 = vrot.slane %v10799, 2
    %v10801 = vmax.f32 %v10799, %v10800
    %v10802 = vrot.slane %v10801, 1
    %v10803 = vmax.f32 %v10801, %v10802
    %v10804 = vsel %vm10089, %v9856, -inf
    %v10805 = vrot.slane %v10804, 4
    %v10806 = vmax.f32 %v10804, %v10805
    %v10807 = vrot.slane %v10806, 2
    %v10808 = vmax.f32 %v10806, %v10807
    %v10809 = vrot.slane %v10808, 1
    %v10810 = vmax.f32 %v10808, %v10809
    %v10811 = vsel %vm10089, %v9858, -inf
    %v10812 = vrot.slane %v10811, 4
    %v10813 = vmax.f32 %v10811, %v10812
    %v10814 = vrot.slane %v10813, 2
    %v10815 = vmax.f32 %v10813, %v10814
    %v10816 = vrot.slane %v10815, 1
    %v10817 = vmax.f32 %v10815, %v10816
    %v10818 = vsel %vm10089, %v9866, -inf
    %v10819 = vrot.slane %v10818, 4
    %v10820 = vmax.f32 %v10818, %v10819
    %v10821 = vrot.slane %v10820, 2
    %v10822 = vmax.f32 %v10820, %v10821
    %v10823 = vrot.slane %v10822, 1
    %v10824 = vmax.f32 %v10822, %v10823
    %v10825 = vsel %vm10089, %v9874, -inf
    %v10826 = vrot.slane %v10825, 4
    %v10827 = vmax.f32 %v10825, %v10826
    %v10828 = vrot.slane %v10827, 2
    %v10829 = vmax.f32 %v10827, %v10828
    %v10830 = vrot.slane %v10829, 1
    %v10831 = vmax.f32 %v10829, %v10830
    %v10832 = vsel %vm10089, %v9873, -inf
    %v10833 = vrot.slane %v10832, 4
    %v10834 = vmax.f32 %v10832, %v10833
    %v10835 = vrot.slane %v10834, 2
    %v10836 = vmax.f32 %v10834, %v10835
    %v10837 = vrot.slane %v10836, 1
    %v10838 = vmax.f32 %v10836, %v10837
    %v10839 = vsel %vm10089, %v9875, -inf
    %v10840 = vrot.slane %v10839, 4
    %v10841 = vmax.f32 %v10839, %v10840
    %v10842 = vrot.slane %v10841, 2
    %v10843 = vmax.f32 %v10841, %v10842
    %v10844 = vrot.slane %v10843, 1
    %v10845 = vmax.f32 %v10843, %v10844
    %v10846 = vsel %vm10089, %v9883, -inf
    %v10847 = vrot.slane %v10846, 4
    %v10848 = vmax.f32 %v10846, %v10847
    %v10849 = vrot.slane %v10848, 2
    %v10850 = vmax.f32 %v10848, %v10849
    %v10851 = vrot.slane %v10850, 1
    %v10852 = vmax.f32 %v10850, %v10851
    %v10853 = vsel %vm10089, %v9891, -inf
    %v10854 = vrot.slane %v10853, 4
    %v10855 = vmax.f32 %v10853, %v10854
    %v10856 = vrot.slane %v10855, 2
    %v10857 = vmax.f32 %v10855, %v10856
    %v10858 = vrot.slane %v10857, 1
    %v10859 = vmax.f32 %v10857, %v10858
    %v10860 = vsel %vm10089, %v9890, -inf
    %v10861 = vrot.slane %v10860, 4
    %v10862 = vmax.f32 %v10860, %v10861
    %v10863 = vrot.slane %v10862, 2
    %v10864 = vmax.f32 %v10862, %v10863
    %v10865 = vrot.slane %v10864, 1
    %v10866 = vmax.f32 %v10864, %v10865
    %v10867 = vsel %vm10089, %v9892, -inf
    %v10868 = vrot.slane %v10867, 4
    %v10869 = vmax.f32 %v10867, %v10868
    %v10870 = vrot.slane %v10869, 2
    %v10871 = vmax.f32 %v10869, %v10870
    %v10872 = vrot.slane %v10871, 1
    %v10873 = vmax.f32 %v10871, %v10872
    %v10874 = vsel %vm10089, %v9900, -inf
    %v10875 = vrot.slane %v10874, 4
    %v10876 = vmax.f32 %v10874, %v10875
    %v10877 = vrot.slane %v10876, 2
    %v10878 = vmax.f32 %v10876, %v10877
    %v10879 = vrot.slane %v10878, 1
    %v10880 = vmax.f32 %v10878, %v10879
    %v10881 = vsel %vm10089, %v9908, -inf
    %v10882 = vrot.slane %v10881, 4
    %v10883 = vmax.f32 %v10881, %v10882
    %v10884 = vrot.slane %v10883, 2
    %v10885 = vmax.f32 %v10883, %v10884
    %v10886 = vrot.slane %v10885, 1
    %v10887 = vmax.f32 %v10885, %v10886
    %v10888 = vsel %vm10089, %v9907, -inf
    %v10889 = vrot.slane %v10888, 4
    %v10890 = vmax.f32 %v10888, %v10889
    %v10891 = vrot.slane %v10890, 2
    %v10892 = vmax.f32 %v10890, %v10891
    %v10893 = vrot.slane %v10892, 1
    %v10894 = vmax.f32 %v10892, %v10893
    %v10895 = vsel %vm10089, %v9909, -inf
    %v10896 = vrot.slane %v10895, 4
    %v10897 = vmax.f32 %v10895, %v10896
    %v10898 = vrot.slane %v10897, 2
    %v10899 = vmax.f32 %v10897, %v10898
    %v10900 = vrot.slane %v10899, 1
    %v10901 = vmax.f32 %v10899, %v10900
    %v10902 = vsel %vm10089, %v9917, -inf
    %v10903 = vrot.slane %v10902, 4
    %v10904 = vmax.f32 %v10902, %v10903
    %v10905 = vrot.slane %v10904, 2
    %v10906 = vmax.f32 %v10904, %v10905
    %v10907 = vrot.slane %v10906, 1
    %v10908 = vmax.f32 %v10906, %v10907
    %v10909 = vsel %vm10089, %v9925, -inf
    %v10910 = vrot.slane %v10909, 4
    %v10911 = vmax.f32 %v10909, %v10910
    %v10912 = vrot.slane %v10911, 2
    %v10913 = vmax.f32 %v10911, %v10912
    %v10914 = vrot.slane %v10913, 1
    %v10915 = vmax.f32 %v10913, %v10914
    %v10916 = vsel %vm10089, %v9924, -inf
    %v10917 = vrot.slane %v10916, 4
    %v10918 = vmax.f32 %v10916, %v10917
    %v10919 = vrot.slane %v10918, 2
    %v10920 = vmax.f32 %v10918, %v10919
    %v10921 = vrot.slane %v10920, 1
    %v10922 = vmax.f32 %v10920, %v10921
    %v10923 = vsel %vm10089, %v9926, -inf
    %v10924 = vrot.slane %v10923, 4
    %v10925 = vmax.f32 %v10923, %v10924
    %v10926 = vrot.slane %v10925, 2
    %v10927 = vmax.f32 %v10925, %v10926
    %v10928 = vrot.slane %v10927, 1
    %v10929 = vmax.f32 %v10927, %v10928
    %v10930 = vsel %vm10089, %v9934, -inf
    %v10931 = vrot.slane %v10930, 4
    %v10932 = vmax.f32 %v10930, %v10931
    %v10933 = vrot.slane %v10932, 2
    %v10934 = vmax.f32 %v10932, %v10933
    %v10935 = vrot.slane %v10934, 1
    %v10936 = vmax.f32 %v10934, %v10935
    %v10937 = vsel %vm10089, %v9942, -inf
    %v10938 = vrot.slane %v10937, 4
    %v10939 = vmax.f32 %v10937, %v10938
    %v10940 = vrot.slane %v10939, 2
    %v10941 = vmax.f32 %v10939, %v10940
    %v10942 = vrot.slane %v10941, 1
    %v10943 = vmax.f32 %v10941, %v10942
    %v10944 = vsel %vm10089, %v9941, -inf
    %v10945 = vrot.slane %v10944, 4
    %v10946 = vmax.f32 %v10944, %v10945
    %v10947 = vrot.slane %v10946, 2
    %v10948 = vmax.f32 %v10946, %v10947
    %v10949 = vrot.slane %v10948, 1
    %v10950 = vmax.f32 %v10948, %v10949
    %v10951 = vsel %vm10089, %v9943, -inf
    %v10952 = vrot.slane %v10951, 4
    %v10953 = vmax.f32 %v10951, %v10952
    %v10954 = vrot.slane %v10953, 2
    %v10955 = vmax.f32 %v10953, %v10954
    %v10956 = vrot.slane %v10955, 1
    %v10957 = vmax.f32 %v10955, %v10956
    %v10958 = vsel %vm10089, %v9951, -inf
    %v10959 = vrot.slane %v10958, 4
    %v10960 = vmax.f32 %v10958, %v10959
    %v10961 = vrot.slane %v10960, 2
    %v10962 = vmax.f32 %v10960, %v10961
    %v10963 = vrot.slane %v10962, 1
    %v10964 = vmax.f32 %v10962, %v10963
    %v10965 = vsel %vm10089, %v9959, -inf
    %v10966 = vrot.slane %v10965, 4
    %v10967 = vmax.f32 %v10965, %v10966
    %v10968 = vrot.slane %v10967, 2
    %v10969 = vmax.f32 %v10967, %v10968
    %v10970 = vrot.slane %v10969, 1
    %v10971 = vmax.f32 %v10969, %v10970
    %v10972 = vsel %vm10089, %v9958, -inf
    %v10973 = vrot.slane %v10972, 4
    %v10974 = vmax.f32 %v10972, %v10973
    %v10975 = vrot.slane %v10974, 2
    %v10976 = vmax.f32 %v10974, %v10975
    %v10977 = vrot.slane %v10976, 1
    %v10978 = vmax.f32 %v10976, %v10977
    %v10979 = vsel %vm10089, %v9960, -inf
    %v10980 = vrot.slane %v10979, 4
    %v10981 = vmax.f32 %v10979, %v10980
    %v10982 = vrot.slane %v10981, 2
    %v10983 = vmax.f32 %v10981, %v10982
    %v10984 = vrot.slane %v10983, 1
    %v10985 = vmax.f32 %v10983, %v10984
    %v10986 = vmax.f32 %v10096, %v10152
    %v10987 = vmax.f32 %v10103, %v10159
    %v10988 = vmax.f32 %v10110, %v10166
    %v10989 = vmax.f32 %v10117, %v10173
    %v10990 = vmax.f32 %v10124, %v10180
    %v10991 = vmax.f32 %v10131, %v10187
    %v10992 = vmax.f32 %v10138, %v10194
    %v10993 = vmax.f32 %v10145, %v10201
    %v10994 = vmax.f32 %v10208, %v10264
    %v10995 = vmax.f32 %v10215, %v10271
    %v10996 = vmax.f32 %v10222, %v10278
    %v10997 = vmax.f32 %v10229, %v10285
    %v10998 = vmax.f32 %v10236, %v10292
    %v10999 = vmax.f32 %v10243, %v10299
    %v11000 = vmax.f32 %v10250, %v10306
    %v11001 = vmax.f32 %v10257, %v10313
    %v11002 = vmax.f32 %v10320, %v10376
    %v11003 = vmax.f32 %v10327, %v10383
    %v11004 = vmax.f32 %v10334, %v10390
    %v11005 = vmax.f32 %v10341, %v10397
    %v11006 = vmax.f32 %v10348, %v10404
    %v11007 = vmax.f32 %v10355, %v10411
    %v11008 = vmax.f32 %v10362, %v10418
    %v11009 = vmax.f32 %v10369, %v10425
    %v11010 = vmax.f32 %v10432, %v10488
    %v11011 = vmax.f32 %v10439, %v10495
    %v11012 = vmax.f32 %v10446, %v10502
    %v11013 = vmax.f32 %v10453, %v10509
    %v11014 = vmax.f32 %v10460, %v10516
    %v11015 = vmax.f32 %v10467, %v10523
    %v11016 = vmax.f32 %v10474, %v10530
    %v11017 = vmax.f32 %v10481, %v10537
    %v11018 = vmax.f32 %v10544, %v10600
    %v11019 = vmax.f32 %v10551, %v10607
    %v11020 = vmax.f32 %v10558, %v10614
    %v11021 = vmax.f32 %v10565, %v10621
    %v11022 = vmax.f32 %v10572, %v10628
    %v11023 = vmax.f32 %v10579, %v10635
    %v11024 = vmax.f32 %v10586, %v10642
    %v11025 = vmax.f32 %v10593, %v10649
    %v11026 = vmax.f32 %v10656, %v10712
    %v11027 = vmax.f32 %v10663, %v10719
    %v11028 = vmax.f32 %v10670, %v10726
    %v11029 = vmax.f32 %v10677, %v10733
    %v11030 = vmax.f32 %v10684, %v10740
    %v11031 = vmax.f32 %v10691, %v10747
    %v11032 = vmax.f32 %v10698, %v10754
    %v11033 = vmax.f32 %v10705, %v10761
    %v11034 = vmax.f32 %v10768, %v10824
    %v11035 = vmax.f32 %v10775, %v10831
    %v11036 = vmax.f32 %v10782, %v10838
    %v11037 = vmax.f32 %v10789, %v10845
    %v11038 = vmax.f32 %v10796, %v10852
    %v11039 = vmax.f32 %v10803, %v10859
    %v11040 = vmax.f32 %v10810, %v10866
    %v11041 = vmax.f32 %v10817, %v10873
    %v11042 = vmax.f32 %v10880, %v10936
    %v11043 = vmax.f32 %v10887, %v10943
    %v11044 = vmax.f32 %v10894, %v10950
    %v11045 = vmax.f32 %v10901, %v10957
    %v11046 = vmax.f32 %v10908, %v10964
    %v11047 = vmax.f32 %v10915, %v10971
    %v11048 = vmax.f32 %v10922, %v10978
    %v11049 = vmax.f32 %v10929, %v10985
    %v11050 = vpack.c.bf16 %v10986, %v10986
    %v11051 = vpack.c.bf16 %v10987, %v10987
    %v11052 = vpack.c.bf16 %v10988, %v10988
    %v11053 = vpack.c.bf16 %v10989, %v10989
    %v11054 = vpack.c.bf16 %v10990, %v10990
    %v11055 = vpack.c.bf16 %v10991, %v10991
    %v11056 = vpack.c.bf16 %v10992, %v10992
    %v11057 = vpack.c.bf16 %v10993, %v10993
    %v11058 = vpack.c.bf16 %v10994, %v10994
    %v11059 = vpack.c.bf16 %v10995, %v10995
    %v11060 = vpack.c.bf16 %v10996, %v10996
    %v11061 = vpack.c.bf16 %v10997, %v10997
    %v11062 = vpack.c.bf16 %v10998, %v10998
    %v11063 = vpack.c.bf16 %v10999, %v10999
    %v11064 = vpack.c.bf16 %v11000, %v11000
    %v11065 = vpack.c.bf16 %v11001, %v11001
    %v11066 = vpack.c.bf16 %v11002, %v11002
    %v11067 = vpack.c.bf16 %v11003, %v11003
    %v11068 = vpack.c.bf16 %v11004, %v11004
    %v11069 = vpack.c.bf16 %v11005, %v11005
    %v11070 = vpack.c.bf16 %v11006, %v11006
    %v11071 = vpack.c.bf16 %v11007, %v11007
    %v11072 = vpack.c.bf16 %v11008, %v11008
    %v11073 = vpack.c.bf16 %v11009, %v11009
    %v11074 = vpack.c.bf16 %v11010, %v11010
    %v11075 = vpack.c.bf16 %v11011, %v11011
    %v11076 = vpack.c.bf16 %v11012, %v11012
    %v11077 = vpack.c.bf16 %v11013, %v11013
    %v11078 = vpack.c.bf16 %v11014, %v11014
    %v11079 = vpack.c.bf16 %v11015, %v11015
    %v11080 = vpack.c.bf16 %v11016, %v11016
    %v11081 = vpack.c.bf16 %v11017, %v11017
    %v11082 = vpack.c.bf16 %v11018, %v11018
    %v11083 = vpack.c.bf16 %v11019, %v11019
    %v11084 = vpack.c.bf16 %v11020, %v11020
    %v11085 = vpack.c.bf16 %v11021, %v11021
    %v11086 = vpack.c.bf16 %v11022, %v11022
    %v11087 = vpack.c.bf16 %v11023, %v11023
    %v11088 = vpack.c.bf16 %v11024, %v11024
    %v11089 = vpack.c.bf16 %v11025, %v11025
    %v11090 = vpack.c.bf16 %v11026, %v11026
    %v11091 = vpack.c.bf16 %v11027, %v11027
    %v11092 = vpack.c.bf16 %v11028, %v11028
    %v11093 = vpack.c.bf16 %v11029, %v11029
    %v11094 = vpack.c.bf16 %v11030, %v11030
    %v11095 = vpack.c.bf16 %v11031, %v11031
    %v11096 = vpack.c.bf16 %v11032, %v11032
    %v11097 = vpack.c.bf16 %v11033, %v11033
    %v11098 = vpack.c.bf16 %v11034, %v11034
    %v11099 = vpack.c.bf16 %v11035, %v11035
    %v11100 = vpack.c.bf16 %v11036, %v11036
    %v11101 = vpack.c.bf16 %v11037, %v11037
    %v11102 = vpack.c.bf16 %v11038, %v11038
    %v11103 = vpack.c.bf16 %v11039, %v11039
    %v11104 = vpack.c.bf16 %v11040, %v11040
    %v11105 = vpack.c.bf16 %v11041, %v11041
    %v11106 = vpack.c.bf16 %v11042, %v11042
    %v11107 = vpack.c.bf16 %v11043, %v11043
    %v11108 = vpack.c.bf16 %v11044, %v11044
    %v11109 = vpack.c.bf16 %v11045, %v11045
    %v11110 = vpack.c.bf16 %v11046, %v11046
    %v11111 = vpack.c.bf16 %v11047, %v11047
    %v11112 = vpack.c.bf16 %v11048, %v11048
    %v11113 = vpack.c.bf16 %v11049, %v11049
    %v11178 = vunpack.c.l.b16 %v11050
    %v11179 = vunpack.c.l.b16 %v11051
    %v11180 = vunpack.c.l.b16 %v11052
    %v11181 = vunpack.c.l.b16 %v11053
    %v11182 = vunpack.c.l.b16 %v11054
    %v11183 = vunpack.c.l.b16 %v11055
    %v11184 = vunpack.c.l.b16 %v11056
    %v11185 = vunpack.c.l.b16 %v11057
    %v11186 = vunpack.c.l.b16 %v11058
    %v11187 = vunpack.c.l.b16 %v11059
    %v11188 = vunpack.c.l.b16 %v11060
    %v11189 = vunpack.c.l.b16 %v11061
    %v11190 = vunpack.c.l.b16 %v11062
    %v11191 = vunpack.c.l.b16 %v11063
    %v11192 = vunpack.c.l.b16 %v11064
    %v11193 = vunpack.c.l.b16 %v11065
    %v11194 = vunpack.c.l.b16 %v11066
    %v11195 = vunpack.c.l.b16 %v11067
    %v11196 = vunpack.c.l.b16 %v11068
    %v11197 = vunpack.c.l.b16 %v11069
    %v11198 = vunpack.c.l.b16 %v11070
    %v11199 = vunpack.c.l.b16 %v11071
    %v11200 = vunpack.c.l.b16 %v11072
    %v11201 = vunpack.c.l.b16 %v11073
    %v11202 = vunpack.c.l.b16 %v11074
    %v11203 = vunpack.c.l.b16 %v11075
    %v11204 = vunpack.c.l.b16 %v11076
    %v11205 = vunpack.c.l.b16 %v11077
    %v11206 = vunpack.c.l.b16 %v11078
    %v11207 = vunpack.c.l.b16 %v11079
    %v11208 = vunpack.c.l.b16 %v11080
    %v11209 = vunpack.c.l.b16 %v11081
    %v11210 = vunpack.c.l.b16 %v11082
    %v11211 = vunpack.c.l.b16 %v11083
    %v11212 = vunpack.c.l.b16 %v11084
    %v11213 = vunpack.c.l.b16 %v11085
    %v11214 = vunpack.c.l.b16 %v11086
    %v11215 = vunpack.c.l.b16 %v11087
    %v11216 = vunpack.c.l.b16 %v11088
    %v11217 = vunpack.c.l.b16 %v11089
    %v11218 = vunpack.c.l.b16 %v11090
    %v11219 = vunpack.c.l.b16 %v11091
    %v11220 = vunpack.c.l.b16 %v11092
    %v11221 = vunpack.c.l.b16 %v11093
    %v11222 = vunpack.c.l.b16 %v11094
    %v11223 = vunpack.c.l.b16 %v11095
    %v11224 = vunpack.c.l.b16 %v11096
    %v11225 = vunpack.c.l.b16 %v11097
    %v11226 = vunpack.c.l.b16 %v11098
    %v11227 = vunpack.c.l.b16 %v11099
    %v11228 = vunpack.c.l.b16 %v11100
    %v11229 = vunpack.c.l.b16 %v11101
    %v11230 = vunpack.c.l.b16 %v11102
    %v11231 = vunpack.c.l.b16 %v11103
    %v11232 = vunpack.c.l.b16 %v11104
    %v11233 = vunpack.c.l.b16 %v11105
    %v11234 = vunpack.c.l.b16 %v11106
    %v11235 = vunpack.c.l.b16 %v11107
    %v11236 = vunpack.c.l.b16 %v11108
    %v11237 = vunpack.c.l.b16 %v11109
    %v11238 = vunpack.c.l.b16 %v11110
    %v11239 = vunpack.c.l.b16 %v11111
    %v11240 = vunpack.c.l.b16 %v11112
    %v11241 = vunpack.c.l.b16 %v11113
    %v11242 = vpack.c.b16 %v11178, %v11178
    %v11243 = vpack.c.b16 %v11179, %v11179
    %v11244 = vpack.c.b16 %v11180, %v11180
    %v11245 = vpack.c.b16 %v11181, %v11181
    %v11246 = vpack.c.b16 %v11182, %v11182
    %v11247 = vpack.c.b16 %v11183, %v11183
    %v11248 = vpack.c.b16 %v11184, %v11184
    %v11249 = vpack.c.b16 %v11185, %v11185
    %v11250 = vpack.c.b16 %v11186, %v11186
    %v11251 = vpack.c.b16 %v11187, %v11187
    %v11252 = vpack.c.b16 %v11188, %v11188
    %v11253 = vpack.c.b16 %v11189, %v11189
    %v11254 = vpack.c.b16 %v11190, %v11190
    %v11255 = vpack.c.b16 %v11191, %v11191
    %v11256 = vpack.c.b16 %v11192, %v11192
    %v11257 = vpack.c.b16 %v11193, %v11193
    %v11258 = vpack.c.b16 %v11194, %v11194
    %v11259 = vpack.c.b16 %v11195, %v11195
    %v11260 = vpack.c.b16 %v11196, %v11196
    %v11261 = vpack.c.b16 %v11197, %v11197
    %v11262 = vpack.c.b16 %v11198, %v11198
    %v11263 = vpack.c.b16 %v11199, %v11199
    %v11264 = vpack.c.b16 %v11200, %v11200
    %v11265 = vpack.c.b16 %v11201, %v11201
    %v11266 = vpack.c.b16 %v11202, %v11202
    %v11267 = vpack.c.b16 %v11203, %v11203
    %v11268 = vpack.c.b16 %v11204, %v11204
    %v11269 = vpack.c.b16 %v11205, %v11205
    %v11270 = vpack.c.b16 %v11206, %v11206
    %v11271 = vpack.c.b16 %v11207, %v11207
    %v11272 = vpack.c.b16 %v11208, %v11208
    %v11273 = vpack.c.b16 %v11209, %v11209
    %v11274 = vpack.c.b16 %v11210, %v11210
    %v11275 = vpack.c.b16 %v11211, %v11211
    %v11276 = vpack.c.b16 %v11212, %v11212
    %v11277 = vpack.c.b16 %v11213, %v11213
    %v11278 = vpack.c.b16 %v11214, %v11214
    %v11279 = vpack.c.b16 %v11215, %v11215
    %v11280 = vpack.c.b16 %v11216, %v11216
    %v11281 = vpack.c.b16 %v11217, %v11217
    %v11282 = vpack.c.b16 %v11218, %v11218
    %v11283 = vpack.c.b16 %v11219, %v11219
    %v11284 = vpack.c.b16 %v11220, %v11220
    %v11285 = vpack.c.b16 %v11221, %v11221
    %v11286 = vpack.c.b16 %v11222, %v11222
    %v11287 = vpack.c.b16 %v11223, %v11223
    %v11288 = vpack.c.b16 %v11224, %v11224
    %v11289 = vpack.c.b16 %v11225, %v11225
    %v11290 = vpack.c.b16 %v11226, %v11226
    %v11291 = vpack.c.b16 %v11227, %v11227
    %v11292 = vpack.c.b16 %v11228, %v11228
    %v11293 = vpack.c.b16 %v11229, %v11229
    %v11294 = vpack.c.b16 %v11230, %v11230
    %v11295 = vpack.c.b16 %v11231, %v11231
    %v11296 = vpack.c.b16 %v11232, %v11232
    %v11297 = vpack.c.b16 %v11233, %v11233
    %v11298 = vpack.c.b16 %v11234, %v11234
    %v11299 = vpack.c.b16 %v11235, %v11235
    %v11300 = vpack.c.b16 %v11236, %v11236
    %v11301 = vpack.c.b16 %v11237, %v11237
    %v11302 = vpack.c.b16 %v11238, %v11238
    %v11303 = vpack.c.b16 %v11239, %v11239
    %v11304 = vpack.c.b16 %v11240, %v11240
    %v11305 = vpack.c.b16 %v11241, %v11241
    %v11306 = vunpack.c.l.b16 %v11242
    %v11307 = vunpack.c.l.b16 %v11243
    %v11308 = vunpack.c.l.b16 %v11244
    %v11309 = vunpack.c.l.b16 %v11245
    %v11310 = vunpack.c.l.b16 %v11246
    %v11311 = vunpack.c.l.b16 %v11247
    %v11312 = vunpack.c.l.b16 %v11248
    %v11313 = vunpack.c.l.b16 %v11249
    %v11314 = vunpack.c.l.b16 %v11250
    %v11315 = vunpack.c.l.b16 %v11251
    %v11316 = vunpack.c.l.b16 %v11252
    %v11317 = vunpack.c.l.b16 %v11253
    %v11318 = vunpack.c.l.b16 %v11254
    %v11319 = vunpack.c.l.b16 %v11255
    %v11320 = vunpack.c.l.b16 %v11256
    %v11321 = vunpack.c.l.b16 %v11257
    %v11322 = vunpack.c.l.b16 %v11258
    %v11323 = vunpack.c.l.b16 %v11259
    %v11324 = vunpack.c.l.b16 %v11260
    %v11325 = vunpack.c.l.b16 %v11261
    %v11326 = vunpack.c.l.b16 %v11262
    %v11327 = vunpack.c.l.b16 %v11263
    %v11328 = vunpack.c.l.b16 %v11264
    %v11329 = vunpack.c.l.b16 %v11265
    %v11330 = vunpack.c.l.b16 %v11266
    %v11331 = vunpack.c.l.b16 %v11267
    %v11332 = vunpack.c.l.b16 %v11268
    %v11333 = vunpack.c.l.b16 %v11269
    %v11334 = vunpack.c.l.b16 %v11270
    %v11335 = vunpack.c.l.b16 %v11271
    %v11336 = vunpack.c.l.b16 %v11272
    %v11337 = vunpack.c.l.b16 %v11273
    %v11338 = vunpack.c.l.b16 %v11274
    %v11339 = vunpack.c.l.b16 %v11275
    %v11340 = vunpack.c.l.b16 %v11276
    %v11341 = vunpack.c.l.b16 %v11277
    %v11342 = vunpack.c.l.b16 %v11278
    %v11343 = vunpack.c.l.b16 %v11279
    %v11344 = vunpack.c.l.b16 %v11280
    %v11345 = vunpack.c.l.b16 %v11281
    %v11346 = vunpack.c.l.b16 %v11282
    %v11347 = vunpack.c.l.b16 %v11283
    %v11348 = vunpack.c.l.b16 %v11284
    %v11349 = vunpack.c.l.b16 %v11285
    %v11350 = vunpack.c.l.b16 %v11286
    %v11351 = vunpack.c.l.b16 %v11287
    %v11352 = vunpack.c.l.b16 %v11288
    %v11353 = vunpack.c.l.b16 %v11289
    %v11354 = vunpack.c.l.b16 %v11290
    %v11355 = vunpack.c.l.b16 %v11291
    %v11356 = vunpack.c.l.b16 %v11292
    %v11357 = vunpack.c.l.b16 %v11293
    %v11358 = vunpack.c.l.b16 %v11294
    %v11359 = vunpack.c.l.b16 %v11295
    %v11360 = vunpack.c.l.b16 %v11296
    %v11361 = vunpack.c.l.b16 %v11297
    %v11362 = vunpack.c.l.b16 %v11298
    %v11363 = vunpack.c.l.b16 %v11299
    %v11364 = vunpack.c.l.b16 %v11300
    %v11365 = vunpack.c.l.b16 %v11301
    %v11366 = vunpack.c.l.b16 %v11302
    %v11367 = vunpack.c.l.b16 %v11303
    %v11368 = vunpack.c.l.b16 %v11304
    %v11369 = vunpack.c.l.b16 %v11305
    %vm11370 = vcmask 1041409
    %v11371 = vsel %vm11370, %v11307, %v11306
    %vm11372 = vcmask 1042434
    %v11373 = vsel %vm11372, %v11308, %v11371
    %vm11374 = vcmask 1043459
    %v11375 = vsel %vm11374, %v11309, %v11373
    %vm11376 = vcmask 1044484
    %v11377 = vsel %vm11376, %v11310, %v11375
    %vm11378 = vcmask 1045509
    %v11379 = vsel %vm11378, %v11311, %v11377
    %vm11380 = vcmask 1046534
    %v11381 = vsel %vm11380, %v11312, %v11379
    %vm11382 = vcmask 1047559
    %v11383 = vsel %vm11382, %v11313, %v11381
    %v11384 = vsel %vm11370, %v11315, %v11314
    %v11385 = vsel %vm11372, %v11316, %v11384
    %v11386 = vsel %vm11374, %v11317, %v11385
    %v11387 = vsel %vm11376, %v11318, %v11386
    %v11388 = vsel %vm11378, %v11319, %v11387
    %v11389 = vsel %vm11380, %v11320, %v11388
    %v11390 = vsel %vm11382, %v11321, %v11389
    %v11391 = vsel %vm11370, %v11323, %v11322
    %v11392 = vsel %vm11372, %v11324, %v11391
    %v11393 = vsel %vm11374, %v11325, %v11392
    %v11394 = vsel %vm11376, %v11326, %v11393
    %v11395 = vsel %vm11378, %v11327, %v11394
    %v11396 = vsel %vm11380, %v11328, %v11395
    %v11397 = vsel %vm11382, %v11329, %v11396
    %v11398 = vsel %vm11370, %v11331, %v11330
    %v11399 = vsel %vm11372, %v11332, %v11398
    %v11400 = vsel %vm11374, %v11333, %v11399
    %v11401 = vsel %vm11376, %v11334, %v11400
    %v11402 = vsel %vm11378, %v11335, %v11401
    %v11403 = vsel %vm11380, %v11336, %v11402
    %v11404 = vsel %vm11382, %v11337, %v11403
    %v11405 = vsel %vm11370, %v11339, %v11338
    %v11406 = vsel %vm11372, %v11340, %v11405
    %v11407 = vsel %vm11374, %v11341, %v11406
    %v11408 = vsel %vm11376, %v11342, %v11407
    %v11409 = vsel %vm11378, %v11343, %v11408
    %v11410 = vsel %vm11380, %v11344, %v11409
    %v11411 = vsel %vm11382, %v11345, %v11410
    %v11412 = vsel %vm11370, %v11347, %v11346
    %v11413 = vsel %vm11372, %v11348, %v11412
    %v11414 = vsel %vm11374, %v11349, %v11413
    %v11415 = vsel %vm11376, %v11350, %v11414
    %v11416 = vsel %vm11378, %v11351, %v11415
    %v11417 = vsel %vm11380, %v11352, %v11416
    %v11418 = vsel %vm11382, %v11353, %v11417
    %v11419 = vsel %vm11370, %v11355, %v11354
    %v11420 = vsel %vm11372, %v11356, %v11419
    %v11421 = vsel %vm11374, %v11357, %v11420
    %v11422 = vsel %vm11376, %v11358, %v11421
    %v11423 = vsel %vm11378, %v11359, %v11422
    %v11424 = vsel %vm11380, %v11360, %v11423
    %v11425 = vsel %vm11382, %v11361, %v11424
    %v11426 = vsel %vm11370, %v11363, %v11362
    %v11427 = vsel %vm11372, %v11364, %v11426
    %v11428 = vsel %vm11374, %v11365, %v11427
    %v11429 = vsel %vm11376, %v11366, %v11428
    %v11430 = vsel %vm11378, %v11367, %v11429
    %v11431 = vsel %vm11380, %v11368, %v11430
    %v11432 = vsel %vm11382, %v11369, %v11431
    %v11433 = vpack.c.b16 %v11383, %v11383
    %v11434 = vpack.c.b16 %v11390, %v11390
    %v11435 = vpack.c.b16 %v11397, %v11397
    %v11436 = vpack.c.b16 %v11404, %v11404
    %v11437 = vpack.c.b16 %v11411, %v11411
    %v11438 = vpack.c.b16 %v11418, %v11418
    %v11439 = vpack.c.b16 %v11425, %v11425
    %v11440 = vpack.c.b16 %v11432, %v11432
    %11449 = vst [vmem:[#allocation9] sm:$0xf] %v11433
    %11450 = vst [vmem:[#allocation9 + $0x4] sm:$0xf] %v11434
    %11451 = vst [vmem:[#allocation9 + $0x8] sm:$0xf] %v11435
    %11452 = vst [vmem:[#allocation9 + $0xc] sm:$0xf] %v11436
    %11453 = vst [vmem:[#allocation9 + $0x10] sm:$0xf] %v11437
    %11454 = vst [vmem:[#allocation9 + $0x14] sm:$0xf] %v11438
    %11455 = vst [vmem:[#allocation9 + $0x18] sm:$0xf] %v11439
    %11456 = vst [vmem:[#allocation9 + $0x1c] sm:$0xf] %v11440
    %v11489 = vcombine.high %v9353, %v9353
    %v11491 = vunpack.c.l.s4 1983009808
    %v11492 = vunpack.c.0.s8 %v11491
    %v11493 = vlaneseq
    %v11494 = vshrl.u32 %v11493, 7
    %v11495 = vsub.s32 %v11492, %v11494
    %v11496 = vrot.slane %v9353, %v11495
    %v11498 = vunpack.c.l.s4 1983009808
    %v11499 = vunpack.c.0.s8 %v11498
    %v11500 = vlaneseq
    %v11501 = vshrl.u32 %v11500, 7
    %v11502 = vsub.s32 %v11499, %v11501
    %v11503 = vrot.slane %v11489, %v11502
    %v11504 = vcombine.high %v11496, %v11496
    %v11505 = vcombine.high %v11503, %v11503
    %v11506 = vcombine.high %v9354, %v9354
    %v11508 = vunpack.c.l.s4 1983009808
    %v11509 = vunpack.c.0.s8 %v11508
    %v11510 = vlaneseq
    %v11511 = vshrl.u32 %v11510, 7
    %v11512 = vsub.s32 %v11509, %v11511
    %v11513 = vrot.slane %v9354, %v11512
    %v11515 = vunpack.c.l.s4 1983009808
    %v11516 = vunpack.c.0.s8 %v11515
    %v11517 = vlaneseq
    %v11518 = vshrl.u32 %v11517, 7
    %v11519 = vsub.s32 %v11516, %v11518
    %v11520 = vrot.slane %v11506, %v11519
    %v11521 = vcombine.high %v11513, %v11513
    %v11522 = vcombine.high %v11520, %v11520
    %v11523 = vcombine.high %v9355, %v9355
    %v11525 = vunpack.c.l.s4 1983009808
    %v11526 = vunpack.c.0.s8 %v11525
    %v11527 = vlaneseq
    %v11528 = vshrl.u32 %v11527, 7
    %v11529 = vsub.s32 %v11526, %v11528
    %v11530 = vrot.slane %v9355, %v11529
    %v11532 = vunpack.c.l.s4 1983009808
    %v11533 = vunpack.c.0.s8 %v11532
    %v11534 = vlaneseq
    %v11535 = vshrl.u32 %v11534, 7
    %v11536 = vsub.s32 %v11533, %v11535
    %v11537 = vrot.slane %v11523, %v11536
    %v11538 = vcombine.high %v11530, %v11530
    %v11539 = vcombine.high %v11537, %v11537
    %v11540 = vcombine.high %v9356, %v9356
    %v11542 = vunpack.c.l.s4 1983009808
    %v11543 = vunpack.c.0.s8 %v11542
    %v11544 = vlaneseq
    %v11545 = vshrl.u32 %v11544, 7
    %v11546 = vsub.s32 %v11543, %v11545
    %v11547 = vrot.slane %v9356, %v11546
    %v11549 = vunpack.c.l.s4 1983009808
    %v11550 = vunpack.c.0.s8 %v11549
    %v11551 = vlaneseq
    %v11552 = vshrl.u32 %v11551, 7
    %v11553 = vsub.s32 %v11550, %v11552
    %v11554 = vrot.slane %v11540, %v11553
    %v11555 = vcombine.high %v11547, %v11547
    %v11556 = vcombine.high %v11554, %v11554
    %v11557 = vcombine.high %v9357, %v9357
    %v11559 = vunpack.c.l.s4 1983009808
    %v11560 = vunpack.c.0.s8 %v11559
    %v11561 = vlaneseq
    %v11562 = vshrl.u32 %v11561, 7
    %v11563 = vsub.s32 %v11560, %v11562
    %v11564 = vrot.slane %v9357, %v11563
    %v11566 = vunpack.c.l.s4 1983009808
    %v11567 = vunpack.c.0.s8 %v11566
    %v11568 = vlaneseq
    %v11569 = vshrl.u32 %v11568, 7
    %v11570 = vsub.s32 %v11567, %v11569
    %v11571 = vrot.slane %v11557, %v11570
    %v11572 = vcombine.high %v11564, %v11564
    %v11573 = vcombine.high %v11571, %v11571
    %v11574 = vcombine.high %v9358, %v9358
    %v11576 = vunpack.c.l.s4 1983009808
    %v11577 = vunpack.c.0.s8 %v11576
    %v11578 = vlaneseq
    %v11579 = vshrl.u32 %v11578, 7
    %v11580 = vsub.s32 %v11577, %v11579
    %v11581 = vrot.slane %v9358, %v11580
    %v11583 = vunpack.c.l.s4 1983009808
    %v11584 = vunpack.c.0.s8 %v11583
    %v11585 = vlaneseq
    %v11586 = vshrl.u32 %v11585, 7
    %v11587 = vsub.s32 %v11584, %v11586
    %v11588 = vrot.slane %v11574, %v11587
    %v11589 = vcombine.high %v11581, %v11581
    %v11590 = vcombine.high %v11588, %v11588
    %v11591 = vcombine.high %v9359, %v9359
    %v11593 = vunpack.c.l.s4 1983009808
    %v11594 = vunpack.c.0.s8 %v11593
    %v11595 = vlaneseq
    %v11596 = vshrl.u32 %v11595, 7
    %v11597 = vsub.s32 %v11594, %v11596
    %v11598 = vrot.slane %v9359, %v11597
    %v11600 = vunpack.c.l.s4 1983009808
    %v11601 = vunpack.c.0.s8 %v11600
    %v11602 = vlaneseq
    %v11603 = vshrl.u32 %v11602, 7
    %v11604 = vsub.s32 %v11601, %v11603
    %v11605 = vrot.slane %v11591, %v11604
    %v11606 = vcombine.high %v11598, %v11598
    %v11607 = vcombine.high %v11605, %v11605
    %v11608 = vcombine.high %v9360, %v9360
    %v11610 = vunpack.c.l.s4 1983009808
    %v11611 = vunpack.c.0.s8 %v11610
    %v11612 = vlaneseq
    %v11613 = vshrl.u32 %v11612, 7
    %v11614 = vsub.s32 %v11611, %v11613
    %v11615 = vrot.slane %v9360, %v11614
    %v11617 = vunpack.c.l.s4 1983009808
    %v11618 = vunpack.c.0.s8 %v11617
    %v11619 = vlaneseq
    %v11620 = vshrl.u32 %v11619, 7
    %v11621 = vsub.s32 %v11618, %v11620
    %v11622 = vrot.slane %v11608, %v11621
    %v11623 = vcombine.high %v11615, %v11615
    %v11624 = vcombine.high %v11622, %v11622
    %v11625 = vcombine.high %v9361, %v9361
    %v11627 = vunpack.c.l.s4 1983009808
    %v11628 = vunpack.c.0.s8 %v11627
    %v11629 = vlaneseq
    %v11630 = vshrl.u32 %v11629, 7
    %v11631 = vsub.s32 %v11628, %v11630
    %v11632 = vrot.slane %v9361, %v11631
    %v11634 = vunpack.c.l.s4 1983009808
    %v11635 = vunpack.c.0.s8 %v11634
    %v11636 = vlaneseq
    %v11637 = vshrl.u32 %v11636, 7
    %v11638 = vsub.s32 %v11635, %v11637
    %v11639 = vrot.slane %v11625, %v11638
    %v11640 = vcombine.high %v11632, %v11632
    %v11641 = vcombine.high %v11639, %v11639
    %v11642 = vcombine.high %v9362, %v9362
    %v11644 = vunpack.c.l.s4 1983009808
    %v11645 = vunpack.c.0.s8 %v11644
    %v11646 = vlaneseq
    %v11647 = vshrl.u32 %v11646, 7
    %v11648 = vsub.s32 %v11645, %v11647
    %v11649 = vrot.slane %v9362, %v11648
    %v11651 = vunpack.c.l.s4 1983009808
    %v11652 = vunpack.c.0.s8 %v11651
    %v11653 = vlaneseq
    %v11654 = vshrl.u32 %v11653, 7
    %v11655 = vsub.s32 %v11652, %v11654
    %v11656 = vrot.slane %v11642, %v11655
    %v11657 = vcombine.high %v11649, %v11649
    %v11658 = vcombine.high %v11656, %v11656
    %v11659 = vcombine.high %v9363, %v9363
    %v11661 = vunpack.c.l.s4 1983009808
    %v11662 = vunpack.c.0.s8 %v11661
    %v11663 = vlaneseq
    %v11664 = vshrl.u32 %v11663, 7
    %v11665 = vsub.s32 %v11662, %v11664
    %v11666 = vrot.slane %v9363, %v11665
    %v11668 = vunpack.c.l.s4 1983009808
    %v11669 = vunpack.c.0.s8 %v11668
    %v11670 = vlaneseq
    %v11671 = vshrl.u32 %v11670, 7
    %v11672 = vsub.s32 %v11669, %v11671
    %v11673 = vrot.slane %v11659, %v11672
    %v11674 = vcombine.high %v11666, %v11666
    %v11675 = vcombine.high %v11673, %v11673
    %v11676 = vcombine.high %v9364, %v9364
    %v11678 = vunpack.c.l.s4 1983009808
    %v11679 = vunpack.c.0.s8 %v11678
    %v11680 = vlaneseq
    %v11681 = vshrl.u32 %v11680, 7
    %v11682 = vsub.s32 %v11679, %v11681
    %v11683 = vrot.slane %v9364, %v11682
    %v11685 = vunpack.c.l.s4 1983009808
    %v11686 = vunpack.c.0.s8 %v11685
    %v11687 = vlaneseq
    %v11688 = vshrl.u32 %v11687, 7
    %v11689 = vsub.s32 %v11686, %v11688
    %v11690 = vrot.slane %v11676, %v11689
    %v11691 = vcombine.high %v11683, %v11683
    %v11692 = vcombine.high %v11690, %v11690
    %v11693 = vcombine.high %v9365, %v9365
    %v11695 = vunpack.c.l.s4 1983009808
    %v11696 = vunpack.c.0.s8 %v11695
    %v11697 = vlaneseq
    %v11698 = vshrl.u32 %v11697, 7
    %v11699 = vsub.s32 %v11696, %v11698
    %v11700 = vrot.slane %v9365, %v11699
    %v11702 = vunpack.c.l.s4 1983009808
    %v11703 = vunpack.c.0.s8 %v11702
    %v11704 = vlaneseq
    %v11705 = vshrl.u32 %v11704, 7
    %v11706 = vsub.s32 %v11703, %v11705
    %v11707 = vrot.slane %v11693, %v11706
    %v11708 = vcombine.high %v11700, %v11700
    %v11709 = vcombine.high %v11707, %v11707
    %v11710 = vcombine.high %v9366, %v9366
    %v11712 = vunpack.c.l.s4 1983009808
    %v11713 = vunpack.c.0.s8 %v11712
    %v11714 = vlaneseq
    %v11715 = vshrl.u32 %v11714, 7
    %v11716 = vsub.s32 %v11713, %v11715
    %v11717 = vrot.slane %v9366, %v11716
    %v11719 = vunpack.c.l.s4 1983009808
    %v11720 = vunpack.c.0.s8 %v11719
    %v11721 = vlaneseq
    %v11722 = vshrl.u32 %v11721, 7
    %v11723 = vsub.s32 %v11720, %v11722
    %v11724 = vrot.slane %v11710, %v11723
    %v11725 = vcombine.high %v11717, %v11717
    %v11726 = vcombine.high %v11724, %v11724
    %v11727 = vcombine.high %v9367, %v9367
    %v11729 = vunpack.c.l.s4 1983009808
    %v11730 = vunpack.c.0.s8 %v11729
    %v11731 = vlaneseq
    %v11732 = vshrl.u32 %v11731, 7
    %v11733 = vsub.s32 %v11730, %v11732
    %v11734 = vrot.slane %v9367, %v11733
    %v11736 = vunpack.c.l.s4 1983009808
    %v11737 = vunpack.c.0.s8 %v11736
    %v11738 = vlaneseq
    %v11739 = vshrl.u32 %v11738, 7
    %v11740 = vsub.s32 %v11737, %v11739
    %v11741 = vrot.slane %v11727, %v11740
    %v11742 = vcombine.high %v11734, %v11734
    %v11743 = vcombine.high %v11741, %v11741
    %v11744 = vcombine.high %v9368, %v9368
    %v11746 = vunpack.c.l.s4 1983009808
    %v11747 = vunpack.c.0.s8 %v11746
    %v11748 = vlaneseq
    %v11749 = vshrl.u32 %v11748, 7
    %v11750 = vsub.s32 %v11747, %v11749
    %v11751 = vrot.slane %v9368, %v11750
    %v11753 = vunpack.c.l.s4 1983009808
    %v11754 = vunpack.c.0.s8 %v11753
    %v11755 = vlaneseq
    %v11756 = vshrl.u32 %v11755, 7
    %v11757 = vsub.s32 %v11754, %v11756
    %v11758 = vrot.slane %v11744, %v11757
    %v11759 = vcombine.high %v11751, %v11751
    %v11760 = vcombine.high %v11758, %v11758
    %v11761 = vcombine.high %v9369, %v9369
    %v11763 = vunpack.c.l.s4 1983009808
    %v11764 = vunpack.c.0.s8 %v11763
    %v11765 = vlaneseq
    %v11766 = vshrl.u32 %v11765, 7
    %v11767 = vsub.s32 %v11764, %v11766
    %v11768 = vrot.slane %v9369, %v11767
    %v11770 = vunpack.c.l.s4 1983009808
    %v11771 = vunpack.c.0.s8 %v11770
    %v11772 = vlaneseq
    %v11773 = vshrl.u32 %v11772, 7
    %v11774 = vsub.s32 %v11771, %v11773
    %v11775 = vrot.slane %v11761, %v11774
    %v11776 = vcombine.high %v11768, %v11768
    %v11777 = vcombine.high %v11775, %v11775
    %v11778 = vcombine.high %v9370, %v9370
    %v11780 = vunpack.c.l.s4 1983009808
    %v11781 = vunpack.c.0.s8 %v11780
    %v11782 = vlaneseq
    %v11783 = vshrl.u32 %v11782, 7
    %v11784 = vsub.s32 %v11781, %v11783
    %v11785 = vrot.slane %v9370, %v11784
    %v11787 = vunpack.c.l.s4 1983009808
    %v11788 = vunpack.c.0.s8 %v11787
    %v11789 = vlaneseq
    %v11790 = vshrl.u32 %v11789, 7
    %v11791 = vsub.s32 %v11788, %v11790
    %v11792 = vrot.slane %v11778, %v11791
    %v11793 = vcombine.high %v11785, %v11785
    %v11794 = vcombine.high %v11792, %v11792
    %v11795 = vcombine.high %v9371, %v9371
    %v11797 = vunpack.c.l.s4 1983009808
    %v11798 = vunpack.c.0.s8 %v11797
    %v11799 = vlaneseq
    %v11800 = vshrl.u32 %v11799, 7
    %v11801 = vsub.s32 %v11798, %v11800
    %v11802 = vrot.slane %v9371, %v11801
    %v11804 = vunpack.c.l.s4 1983009808
    %v11805 = vunpack.c.0.s8 %v11804
    %v11806 = vlaneseq
    %v11807 = vshrl.u32 %v11806, 7
    %v11808 = vsub.s32 %v11805, %v11807
    %v11809 = vrot.slane %v11795, %v11808
    %v11810 = vcombine.high %v11802, %v11802
    %v11811 = vcombine.high %v11809, %v11809
    %v11812 = vcombine.high %v9372, %v9372
    %v11814 = vunpack.c.l.s4 1983009808
    %v11815 = vunpack.c.0.s8 %v11814
    %v11816 = vlaneseq
    %v11817 = vshrl.u32 %v11816, 7
    %v11818 = vsub.s32 %v11815, %v11817
    %v11819 = vrot.slane %v9372, %v11818
    %v11821 = vunpack.c.l.s4 1983009808
    %v11822 = vunpack.c.0.s8 %v11821
    %v11823 = vlaneseq
    %v11824 = vshrl.u32 %v11823, 7
    %v11825 = vsub.s32 %v11822, %v11824
    %v11826 = vrot.slane %v11812, %v11825
    %v11827 = vcombine.high %v11819, %v11819
    %v11828 = vcombine.high %v11826, %v11826
    %v11829 = vcombine.high %v9373, %v9373
    %v11831 = vunpack.c.l.s4 1983009808
    %v11832 = vunpack.c.0.s8 %v11831
    %v11833 = vlaneseq
    %v11834 = vshrl.u32 %v11833, 7
    %v11835 = vsub.s32 %v11832, %v11834
    %v11836 = vrot.slane %v9373, %v11835
    %v11838 = vunpack.c.l.s4 1983009808
    %v11839 = vunpack.c.0.s8 %v11838
    %v11840 = vlaneseq
    %v11841 = vshrl.u32 %v11840, 7
    %v11842 = vsub.s32 %v11839, %v11841
    %v11843 = vrot.slane %v11829, %v11842
    %v11844 = vcombine.high %v11836, %v11836
    %v11845 = vcombine.high %v11843, %v11843
    %v11846 = vcombine.high %v9374, %v9374
    %v11848 = vunpack.c.l.s4 1983009808
    %v11849 = vunpack.c.0.s8 %v11848
    %v11850 = vlaneseq
    %v11851 = vshrl.u32 %v11850, 7
    %v11852 = vsub.s32 %v11849, %v11851
    %v11853 = vrot.slane %v9374, %v11852
    %v11855 = vunpack.c.l.s4 1983009808
    %v11856 = vunpack.c.0.s8 %v11855
    %v11857 = vlaneseq
    %v11858 = vshrl.u32 %v11857, 7
    %v11859 = vsub.s32 %v11856, %v11858
    %v11860 = vrot.slane %v11846, %v11859
    %v11861 = vcombine.high %v11853, %v11853
    %v11862 = vcombine.high %v11860, %v11860
    %v11863 = vcombine.high %v9375, %v9375
    %v11865 = vunpack.c.l.s4 1983009808
    %v11866 = vunpack.c.0.s8 %v11865
    %v11867 = vlaneseq
    %v11868 = vshrl.u32 %v11867, 7
    %v11869 = vsub.s32 %v11866, %v11868
    %v11870 = vrot.slane %v9375, %v11869
    %v11872 = vunpack.c.l.s4 1983009808
    %v11873 = vunpack.c.0.s8 %v11872
    %v11874 = vlaneseq
    %v11875 = vshrl.u32 %v11874, 7
    %v11876 = vsub.s32 %v11873, %v11875
    %v11877 = vrot.slane %v11863, %v11876
    %v11878 = vcombine.high %v11870, %v11870
    %v11879 = vcombine.high %v11877, %v11877
    %v11880 = vcombine.high %v9376, %v9376
    %v11882 = vunpack.c.l.s4 1983009808
    %v11883 = vunpack.c.0.s8 %v11882
    %v11884 = vlaneseq
    %v11885 = vshrl.u32 %v11884, 7
    %v11886 = vsub.s32 %v11883, %v11885
    %v11887 = vrot.slane %v9376, %v11886
    %v11889 = vunpack.c.l.s4 1983009808
    %v11890 = vunpack.c.0.s8 %v11889
    %v11891 = vlaneseq
    %v11892 = vshrl.u32 %v11891, 7
    %v11893 = vsub.s32 %v11890, %v11892
    %v11894 = vrot.slane %v11880, %v11893
    %v11895 = vcombine.high %v11887, %v11887
    %v11896 = vcombine.high %v11894, %v11894
    %v11897 = vcombine.high %v9377, %v9377
    %v11899 = vunpack.c.l.s4 1983009808
    %v11900 = vunpack.c.0.s8 %v11899
    %v11901 = vlaneseq
    %v11902 = vshrl.u32 %v11901, 7
    %v11903 = vsub.s32 %v11900, %v11902
    %v11904 = vrot.slane %v9377, %v11903
    %v11906 = vunpack.c.l.s4 1983009808
    %v11907 = vunpack.c.0.s8 %v11906
    %v11908 = vlaneseq
    %v11909 = vshrl.u32 %v11908, 7
    %v11910 = vsub.s32 %v11907, %v11909
    %v11911 = vrot.slane %v11897, %v11910
    %v11912 = vcombine.high %v11904, %v11904
    %v11913 = vcombine.high %v11911, %v11911
    %v11914 = vcombine.high %v9378, %v9378
    %v11916 = vunpack.c.l.s4 1983009808
    %v11917 = vunpack.c.0.s8 %v11916
    %v11918 = vlaneseq
    %v11919 = vshrl.u32 %v11918, 7
    %v11920 = vsub.s32 %v11917, %v11919
    %v11921 = vrot.slane %v9378, %v11920
    %v11923 = vunpack.c.l.s4 1983009808
    %v11924 = vunpack.c.0.s8 %v11923
    %v11925 = vlaneseq
    %v11926 = vshrl.u32 %v11925, 7
    %v11927 = vsub.s32 %v11924, %v11926
    %v11928 = vrot.slane %v11914, %v11927
    %v11929 = vcombine.high %v11921, %v11921
    %v11930 = vcombine.high %v11928, %v11928
    %v11931 = vcombine.high %v9379, %v9379
    %v11933 = vunpack.c.l.s4 1983009808
    %v11934 = vunpack.c.0.s8 %v11933
    %v11935 = vlaneseq
    %v11936 = vshrl.u32 %v11935, 7
    %v11937 = vsub.s32 %v11934, %v11936
    %v11938 = vrot.slane %v9379, %v11937
    %v11940 = vunpack.c.l.s4 1983009808
    %v11941 = vunpack.c.0.s8 %v11940
    %v11942 = vlaneseq
    %v11943 = vshrl.u32 %v11942, 7
    %v11944 = vsub.s32 %v11941, %v11943
    %v11945 = vrot.slane %v11931, %v11944
    %v11946 = vcombine.high %v11938, %v11938
    %v11947 = vcombine.high %v11945, %v11945
    %v11948 = vcombine.high %v9380, %v9380
    %v11950 = vunpack.c.l.s4 1983009808
    %v11951 = vunpack.c.0.s8 %v11950
    %v11952 = vlaneseq
    %v11953 = vshrl.u32 %v11952, 7
    %v11954 = vsub.s32 %v11951, %v11953
    %v11955 = vrot.slane %v9380, %v11954
    %v11957 = vunpack.c.l.s4 1983009808
    %v11958 = vunpack.c.0.s8 %v11957
    %v11959 = vlaneseq
    %v11960 = vshrl.u32 %v11959, 7
    %v11961 = vsub.s32 %v11958, %v11960
    %v11962 = vrot.slane %v11948, %v11961
    %v11963 = vcombine.high %v11955, %v11955
    %v11964 = vcombine.high %v11962, %v11962
    %v11965 = vcombine.high %v9381, %v9381
    %v11967 = vunpack.c.l.s4 1983009808
    %v11968 = vunpack.c.0.s8 %v11967
    %v11969 = vlaneseq
    %v11970 = vshrl.u32 %v11969, 7
    %v11971 = vsub.s32 %v11968, %v11970
    %v11972 = vrot.slane %v9381, %v11971
    %v11974 = vunpack.c.l.s4 1983009808
    %v11975 = vunpack.c.0.s8 %v11974
    %v11976 = vlaneseq
    %v11977 = vshrl.u32 %v11976, 7
    %v11978 = vsub.s32 %v11975, %v11977
    %v11979 = vrot.slane %v11965, %v11978
    %v11980 = vcombine.high %v11972, %v11972
    %v11981 = vcombine.high %v11979, %v11979
    %v11982 = vcombine.high %v9382, %v9382
    %v11984 = vunpack.c.l.s4 1983009808
    %v11985 = vunpack.c.0.s8 %v11984
    %v11986 = vlaneseq
    %v11987 = vshrl.u32 %v11986, 7
    %v11988 = vsub.s32 %v11985, %v11987
    %v11989 = vrot.slane %v9382, %v11988
    %v11991 = vunpack.c.l.s4 1983009808
    %v11992 = vunpack.c.0.s8 %v11991
    %v11993 = vlaneseq
    %v11994 = vshrl.u32 %v11993, 7
    %v11995 = vsub.s32 %v11992, %v11994
    %v11996 = vrot.slane %v11982, %v11995
    %v11997 = vcombine.high %v11989, %v11989
    %v11998 = vcombine.high %v11996, %v11996
    %v11999 = vcombine.high %v9383, %v9383
    %v12001 = vunpack.c.l.s4 1983009808
    %v12002 = vunpack.c.0.s8 %v12001
    %v12003 = vlaneseq
    %v12004 = vshrl.u32 %v12003, 7
    %v12005 = vsub.s32 %v12002, %v12004
    %v12006 = vrot.slane %v9383, %v12005
    %v12008 = vunpack.c.l.s4 1983009808
    %v12009 = vunpack.c.0.s8 %v12008
    %v12010 = vlaneseq
    %v12011 = vshrl.u32 %v12010, 7
    %v12012 = vsub.s32 %v12009, %v12011
    %v12013 = vrot.slane %v11999, %v12012
    %v12014 = vcombine.high %v12006, %v12006
    %v12015 = vcombine.high %v12013, %v12013
    %v12016 = vcombine.high %v9384, %v9384
    %v12018 = vunpack.c.l.s4 1983009808
    %v12019 = vunpack.c.0.s8 %v12018
    %v12020 = vlaneseq
    %v12021 = vshrl.u32 %v12020, 7
    %v12022 = vsub.s32 %v12019, %v12021
    %v12023 = vrot.slane %v9384, %v12022
    %v12025 = vunpack.c.l.s4 1983009808
    %v12026 = vunpack.c.0.s8 %v12025
    %v12027 = vlaneseq
    %v12028 = vshrl.u32 %v12027, 7
    %v12029 = vsub.s32 %v12026, %v12028
    %v12030 = vrot.slane %v12016, %v12029
    %v12031 = vcombine.high %v12023, %v12023
    %v12032 = vcombine.high %v12030, %v12030
    %v12161 = vsel %vm10089, %v11496, -inf
    %v12162 = vrot.slane %v12161, 4
    %v12163 = vmax.f32 %v12161, %v12162
    %v12164 = vrot.slane %v12163, 2
    %v12165 = vmax.f32 %v12163, %v12164
    %v12166 = vrot.slane %v12165, 1
    %v12167 = vmax.f32 %v12165, %v12166
    %v12168 = vsel %vm10089, %v11504, -inf
    %v12169 = vrot.slane %v12168, 4
    %v12170 = vmax.f32 %v12168, %v12169
    %v12171 = vrot.slane %v12170, 2
    %v12172 = vmax.f32 %v12170, %v12171
    %v12173 = vrot.slane %v12172, 1
    %v12174 = vmax.f32 %v12172, %v12173
    %v12175 = vsel %vm10089, %v11503, -inf
    %v12176 = vrot.slane %v12175, 4
    %v12177 = vmax.f32 %v12175, %v12176
    %v12178 = vrot.slane %v12177, 2
    %v12179 = vmax.f32 %v12177, %v12178
    %v12180 = vrot.slane %v12179, 1
    %v12181 = vmax.f32 %v12179, %v12180
    %v12182 = vsel %vm10089, %v11505, -inf
    %v12183 = vrot.slane %v12182, 4
    %v12184 = vmax.f32 %v12182, %v12183
    %v12185 = vrot.slane %v12184, 2
    %v12186 = vmax.f32 %v12184, %v12185
    %v12187 = vrot.slane %v12186, 1
    %v12188 = vmax.f32 %v12186, %v12187
    %v12189 = vsel %vm10089, %v11513, -inf
    %v12190 = vrot.slane %v12189, 4
    %v12191 = vmax.f32 %v12189, %v12190
    %v12192 = vrot.slane %v12191, 2
    %v12193 = vmax.f32 %v12191, %v12192
    %v12194 = vrot.slane %v12193, 1
    %v12195 = vmax.f32 %v12193, %v12194
    %v12196 = vsel %vm10089, %v11521, -inf
    %v12197 = vrot.slane %v12196, 4
    %v12198 = vmax.f32 %v12196, %v12197
    %v12199 = vrot.slane %v12198, 2
    %v12200 = vmax.f32 %v12198, %v12199
    %v12201 = vrot.slane %v12200, 1
    %v12202 = vmax.f32 %v12200, %v12201
    %v12203 = vsel %vm10089, %v11520, -inf
    %v12204 = vrot.slane %v12203, 4
    %v12205 = vmax.f32 %v12203, %v12204
    %v12206 = vrot.slane %v12205, 2
    %v12207 = vmax.f32 %v12205, %v12206
    %v12208 = vrot.slane %v12207, 1
    %v12209 = vmax.f32 %v12207, %v12208
    %v12210 = vsel %vm10089, %v11522, -inf
    %v12211 = vrot.slane %v12210, 4
    %v12212 = vmax.f32 %v12210, %v12211
    %v12213 = vrot.slane %v12212, 2
    %v12214 = vmax.f32 %v12212, %v12213
    %v12215 = vrot.slane %v12214, 1
    %v12216 = vmax.f32 %v12214, %v12215
    %v12217 = vsel %vm10089, %v11530, -inf
    %v12218 = vrot.slane %v12217, 4
    %v12219 = vmax.f32 %v12217, %v12218
    %v12220 = vrot.slane %v12219, 2
    %v12221 = vmax.f32 %v12219, %v12220
    %v12222 = vrot.slane %v12221, 1
    %v12223 = vmax.f32 %v12221, %v12222
    %v12224 = vsel %vm10089, %v11538, -inf
    %v12225 = vrot.slane %v12224, 4
    %v12226 = vmax.f32 %v12224, %v12225
    %v12227 = vrot.slane %v12226, 2
    %v12228 = vmax.f32 %v12226, %v12227
    %v12229 = vrot.slane %v12228, 1
    %v12230 = vmax.f32 %v12228, %v12229
    %v12231 = vsel %vm10089, %v11537, -inf
    %v12232 = vrot.slane %v12231, 4
    %v12233 = vmax.f32 %v12231, %v12232
    %v12234 = vrot.slane %v12233, 2
    %v12235 = vmax.f32 %v12233, %v12234
    %v12236 = vrot.slane %v12235, 1
    %v12237 = vmax.f32 %v12235, %v12236
    %v12238 = vsel %vm10089, %v11539, -inf
    %v12239 = vrot.slane %v12238, 4
    %v12240 = vmax.f32 %v12238, %v12239
    %v12241 = vrot.slane %v12240, 2
    %v12242 = vmax.f32 %v12240, %v12241
    %v12243 = vrot.slane %v12242, 1
    %v12244 = vmax.f32 %v12242, %v12243
    %v12245 = vsel %vm10089, %v11547, -inf
    %v12246 = vrot.slane %v12245, 4
    %v12247 = vmax.f32 %v12245, %v12246
    %v12248 = vrot.slane %v12247, 2
    %v12249 = vmax.f32 %v12247, %v12248
    %v12250 = vrot.slane %v12249, 1
    %v12251 = vmax.f32 %v12249, %v12250
    %v12252 = vsel %vm10089, %v11555, -inf
    %v12253 = vrot.slane %v12252, 4
    %v12254 = vmax.f32 %v12252, %v12253
    %v12255 = vrot.slane %v12254, 2
    %v12256 = vmax.f32 %v12254, %v12255
    %v12257 = vrot.slane %v12256, 1
    %v12258 = vmax.f32 %v12256, %v12257
    %v12259 = vsel %vm10089, %v11554, -inf
    %v12260 = vrot.slane %v12259, 4
    %v12261 = vmax.f32 %v12259, %v12260
    %v12262 = vrot.slane %v12261, 2
    %v12263 = vmax.f32 %v12261, %v12262
    %v12264 = vrot.slane %v12263, 1
    %v12265 = vmax.f32 %v12263, %v12264
    %v12266 = vsel %vm10089, %v11556, -inf
    %v12267 = vrot.slane %v12266, 4
    %v12268 = vmax.f32 %v12266, %v12267
    %v12269 = vrot.slane %v12268, 2
    %v12270 = vmax.f32 %v12268, %v12269
    %v12271 = vrot.slane %v12270, 1
    %v12272 = vmax.f32 %v12270, %v12271
    %v12273 = vsel %vm10089, %v11564, -inf
    %v12274 = vrot.slane %v12273, 4
    %v12275 = vmax.f32 %v12273, %v12274
    %v12276 = vrot.slane %v12275, 2
    %v12277 = vmax.f32 %v12275, %v12276
    %v12278 = vrot.slane %v12277, 1
    %v12279 = vmax.f32 %v12277, %v12278
    %v12280 = vsel %vm10089, %v11572, -inf
    %v12281 = vrot.slane %v12280, 4
    %v12282 = vmax.f32 %v12280, %v12281
    %v12283 = vrot.slane %v12282, 2
    %v12284 = vmax.f32 %v12282, %v12283
    %v12285 = vrot.slane %v12284, 1
    %v12286 = vmax.f32 %v12284, %v12285
    %v12287 = vsel %vm10089, %v11571, -inf
    %v12288 = vrot.slane %v12287, 4
    %v12289 = vmax.f32 %v12287, %v12288
    %v12290 = vrot.slane %v12289, 2
    %v12291 = vmax.f32 %v12289, %v12290
    %v12292 = vrot.slane %v12291, 1
    %v12293 = vmax.f32 %v12291, %v12292
    %v12294 = vsel %vm10089, %v11573, -inf
    %v12295 = vrot.slane %v12294, 4
    %v12296 = vmax.f32 %v12294, %v12295
    %v12297 = vrot.slane %v12296, 2
    %v12298 = vmax.f32 %v12296, %v12297
    %v12299 = vrot.slane %v12298, 1
    %v12300 = vmax.f32 %v12298, %v12299
    %v12301 = vsel %vm10089, %v11581, -inf
    %v12302 = vrot.slane %v12301, 4
    %v12303 = vmax.f32 %v12301, %v12302
    %v12304 = vrot.slane %v12303, 2
    %v12305 = vmax.f32 %v12303, %v12304
    %v12306 = vrot.slane %v12305, 1
    %v12307 = vmax.f32 %v12305, %v12306
    %v12308 = vsel %vm10089, %v11589, -inf
    %v12309 = vrot.slane %v12308, 4
    %v12310 = vmax.f32 %v12308, %v12309
    %v12311 = vrot.slane %v12310, 2
    %v12312 = vmax.f32 %v12310, %v12311
    %v12313 = vrot.slane %v12312, 1
    %v12314 = vmax.f32 %v12312, %v12313
    %v12315 = vsel %vm10089, %v11588, -inf
    %v12316 = vrot.slane %v12315, 4
    %v12317 = vmax.f32 %v12315, %v12316
    %v12318 = vrot.slane %v12317, 2
    %v12319 = vmax.f32 %v12317, %v12318
    %v12320 = vrot.slane %v12319, 1
    %v12321 = vmax.f32 %v12319, %v12320
    %v12322 = vsel %vm10089, %v11590, -inf
    %v12323 = vrot.slane %v12322, 4
    %v12324 = vmax.f32 %v12322, %v12323
    %v12325 = vrot.slane %v12324, 2
    %v12326 = vmax.f32 %v12324, %v12325
    %v12327 = vrot.slane %v12326, 1
    %v12328 = vmax.f32 %v12326, %v12327
    %v12329 = vsel %vm10089, %v11598, -inf
    %v12330 = vrot.slane %v12329, 4
    %v12331 = vmax.f32 %v12329, %v12330
    %v12332 = vrot.slane %v12331, 2
    %v12333 = vmax.f32 %v12331, %v12332
    %v12334 = vrot.slane %v12333, 1
    %v12335 = vmax.f32 %v12333, %v12334
    %v12336 = vsel %vm10089, %v11606, -inf
    %v12337 = vrot.slane %v12336, 4
    %v12338 = vmax.f32 %v12336, %v12337
    %v12339 = vrot.slane %v12338, 2
    %v12340 = vmax.f32 %v12338, %v12339
    %v12341 = vrot.slane %v12340, 1
    %v12342 = vmax.f32 %v12340, %v12341
    %v12343 = vsel %vm10089, %v11605, -inf
    %v12344 = vrot.slane %v12343, 4
    %v12345 = vmax.f32 %v12343, %v12344
    %v12346 = vrot.slane %v12345, 2
    %v12347 = vmax.f32 %v12345, %v12346
    %v12348 = vrot.slane %v12347, 1
    %v12349 = vmax.f32 %v12347, %v12348
    %v12350 = vsel %vm10089, %v11607, -inf
    %v12351 = vrot.slane %v12350, 4
    %v12352 = vmax.f32 %v12350, %v12351
    %v12353 = vrot.slane %v12352, 2
    %v12354 = vmax.f32 %v12352, %v12353
    %v12355 = vrot.slane %v12354, 1
    %v12356 = vmax.f32 %v12354, %v12355
    %v12357 = vsel %vm10089, %v11615, -inf
    %v12358 = vrot.slane %v12357, 4
    %v12359 = vmax.f32 %v12357, %v12358
    %v12360 = vrot.slane %v12359, 2
    %v12361 = vmax.f32 %v12359, %v12360
    %v12362 = vrot.slane %v12361, 1
    %v12363 = vmax.f32 %v12361, %v12362
    %v12364 = vsel %vm10089, %v11623, -inf
    %v12365 = vrot.slane %v12364, 4
    %v12366 = vmax.f32 %v12364, %v12365
    %v12367 = vrot.slane %v12366, 2
    %v12368 = vmax.f32 %v12366, %v12367
    %v12369 = vrot.slane %v12368, 1
    %v12370 = vmax.f32 %v12368, %v12369
    %v12371 = vsel %vm10089, %v11622, -inf
    %v12372 = vrot.slane %v12371, 4
    %v12373 = vmax.f32 %v12371, %v12372
    %v12374 = vrot.slane %v12373, 2
    %v12375 = vmax.f32 %v12373, %v12374
    %v12376 = vrot.slane %v12375, 1
    %v12377 = vmax.f32 %v12375, %v12376
    %v12378 = vsel %vm10089, %v11624, -inf
    %v12379 = vrot.slane %v12378, 4
    %v12380 = vmax.f32 %v12378, %v12379
    %v12381 = vrot.slane %v12380, 2
    %v12382 = vmax.f32 %v12380, %v12381
    %v12383 = vrot.slane %v12382, 1
    %v12384 = vmax.f32 %v12382, %v12383
    %v12385 = vsel %vm10089, %v11632, -inf
    %v12386 = vrot.slane %v12385, 4
    %v12387 = vmax.f32 %v12385, %v12386
    %v12388 = vrot.slane %v12387, 2
    %v12389 = vmax.f32 %v12387, %v12388
    %v12390 = vrot.slane %v12389, 1
    %v12391 = vmax.f32 %v12389, %v12390
    %v12392 = vsel %vm10089, %v11640, -inf
    %v12393 = vrot.slane %v12392, 4
    %v12394 = vmax.f32 %v12392, %v12393
    %v12395 = vrot.slane %v12394, 2
    %v12396 = vmax.f32 %v12394, %v12395
    %v12397 = vrot.slane %v12396, 1
    %v12398 = vmax.f32 %v12396, %v12397
    %v12399 = vsel %vm10089, %v11639, -inf
    %v12400 = vrot.slane %v12399, 4
    %v12401 = vmax.f32 %v12399, %v12400
    %v12402 = vrot.slane %v12401, 2
    %v12403 = vmax.f32 %v12401, %v12402
    %v12404 = vrot.slane %v12403, 1
    %v12405 = vmax.f32 %v12403, %v12404
    %v12406 = vsel %vm10089, %v11641, -inf
    %v12407 = vrot.slane %v12406, 4
    %v12408 = vmax.f32 %v12406, %v12407
    %v12409 = vrot.slane %v12408, 2
    %v12410 = vmax.f32 %v12408, %v12409
    %v12411 = vrot.slane %v12410, 1
    %v12412 = vmax.f32 %v12410, %v12411
    %v12413 = vsel %vm10089, %v11649, -inf
    %v12414 = vrot.slane %v12413, 4
    %v12415 = vmax.f32 %v12413, %v12414
    %v12416 = vrot.slane %v12415, 2
    %v12417 = vmax.f32 %v12415, %v12416
    %v12418 = vrot.slane %v12417, 1
    %v12419 = vmax.f32 %v12417, %v12418
    %v12420 = vsel %vm10089, %v11657, -inf
    %v12421 = vrot.slane %v12420, 4
    %v12422 = vmax.f32 %v12420, %v12421
    %v12423 = vrot.slane %v12422, 2
    %v12424 = vmax.f32 %v12422, %v12423
    %v12425 = vrot.slane %v12424, 1
    %v12426 = vmax.f32 %v12424, %v12425
    %v12427 = vsel %vm10089, %v11656, -inf
    %v12428 = vrot.slane %v12427, 4
    %v12429 = vmax.f32 %v12427, %v12428
    %v12430 = vrot.slane %v12429, 2
    %v12431 = vmax.f32 %v12429, %v12430
    %v12432 = vrot.slane %v12431, 1
    %v12433 = vmax.f32 %v12431, %v12432
    %v12434 = vsel %vm10089, %v11658, -inf
    %v12435 = vrot.slane %v12434, 4
    %v12436 = vmax.f32 %v12434, %v12435
    %v12437 = vrot.slane %v12436, 2
    %v12438 = vmax.f32 %v12436, %v12437
    %v12439 = vrot.slane %v12438, 1
    %v12440 = vmax.f32 %v12438, %v12439
    %v12441 = vsel %vm10089, %v11666, -inf
    %v12442 = vrot.slane %v12441, 4
    %v12443 = vmax.f32 %v12441, %v12442
    %v12444 = vrot.slane %v12443, 2
    %v12445 = vmax.f32 %v12443, %v12444
    %v12446 = vrot.slane %v12445, 1
    %v12447 = vmax.f32 %v12445, %v12446
    %v12448 = vsel %vm10089, %v11674, -inf
    %v12449 = vrot.slane %v12448, 4
    %v12450 = vmax.f32 %v12448, %v12449
    %v12451 = vrot.slane %v12450, 2
    %v12452 = vmax.f32 %v12450, %v12451
    %v12453 = vrot.slane %v12452, 1
    %v12454 = vmax.f32 %v12452, %v12453
    %v12455 = vsel %vm10089, %v11673, -inf
    %v12456 = vrot.slane %v12455, 4
    %v12457 = vmax.f32 %v12455, %v12456
    %v12458 = vrot.slane %v12457, 2
    %v12459 = vmax.f32 %v12457, %v12458
    %v12460 = vrot.slane %v12459, 1
    %v12461 = vmax.f32 %v12459, %v12460
    %v12462 = vsel %vm10089, %v11675, -inf
    %v12463 = vrot.slane %v12462, 4
    %v12464 = vmax.f32 %v12462, %v12463
    %v12465 = vrot.slane %v12464, 2
    %v12466 = vmax.f32 %v12464, %v12465
    %v12467 = vrot.slane %v12466, 1
    %v12468 = vmax.f32 %v12466, %v12467
    %v12469 = vsel %vm10089, %v11683, -inf
    %v12470 = vrot.slane %v12469, 4
    %v12471 = vmax.f32 %v12469, %v12470
    %v12472 = vrot.slane %v12471, 2
    %v12473 = vmax.f32 %v12471, %v12472
    %v12474 = vrot.slane %v12473, 1
    %v12475 = vmax.f32 %v12473, %v12474
    %v12476 = vsel %vm10089, %v11691, -inf
    %v12477 = vrot.slane %v12476, 4
    %v12478 = vmax.f32 %v12476, %v12477
    %v12479 = vrot.slane %v12478, 2
    %v12480 = vmax.f32 %v12478, %v12479
    %v12481 = vrot.slane %v12480, 1
    %v12482 = vmax.f32 %v12480, %v12481
    %v12483 = vsel %vm10089, %v11690, -inf
    %v12484 = vrot.slane %v12483, 4
    %v12485 = vmax.f32 %v12483, %v12484
    %v12486 = vrot.slane %v12485, 2
    %v12487 = vmax.f32 %v12485, %v12486
    %v12488 = vrot.slane %v12487, 1
    %v12489 = vmax.f32 %v12487, %v12488
    %v12490 = vsel %vm10089, %v11692, -inf
    %v12491 = vrot.slane %v12490, 4
    %v12492 = vmax.f32 %v12490, %v12491
    %v12493 = vrot.slane %v12492, 2
    %v12494 = vmax.f32 %v12492, %v12493
    %v12495 = vrot.slane %v12494, 1
    %v12496 = vmax.f32 %v12494, %v12495
    %v12497 = vsel %vm10089, %v11700, -inf
    %v12498 = vrot.slane %v12497, 4
    %v12499 = vmax.f32 %v12497, %v12498
    %v12500 = vrot.slane %v12499, 2
    %v12501 = vmax.f32 %v12499, %v12500
    %v12502 = vrot.slane %v12501, 1
    %v12503 = vmax.f32 %v12501, %v12502
    %v12504 = vsel %vm10089, %v11708, -inf
    %v12505 = vrot.slane %v12504, 4
    %v12506 = vmax.f32 %v12504, %v12505
    %v12507 = vrot.slane %v12506, 2
    %v12508 = vmax.f32 %v12506, %v12507
    %v12509 = vrot.slane %v12508, 1
    %v12510 = vmax.f32 %v12508, %v12509
    %v12511 = vsel %vm10089, %v11707, -inf
    %v12512 = vrot.slane %v12511, 4
    %v12513 = vmax.f32 %v12511, %v12512
    %v12514 = vrot.slane %v12513, 2
    %v12515 = vmax.f32 %v12513, %v12514
    %v12516 = vrot.slane %v12515, 1
    %v12517 = vmax.f32 %v12515, %v12516
    %v12518 = vsel %vm10089, %v11709, -inf
    %v12519 = vrot.slane %v12518, 4
    %v12520 = vmax.f32 %v12518, %v12519
    %v12521 = vrot.slane %v12520, 2
    %v12522 = vmax.f32 %v12520, %v12521
    %v12523 = vrot.slane %v12522, 1
    %v12524 = vmax.f32 %v12522, %v12523
    %v12525 = vsel %vm10089, %v11717, -inf
    %v12526 = vrot.slane %v12525, 4
    %v12527 = vmax.f32 %v12525, %v12526
    %v12528 = vrot.slane %v12527, 2
    %v12529 = vmax.f32 %v12527, %v12528
    %v12530 = vrot.slane %v12529, 1
    %v12531 = vmax.f32 %v12529, %v12530
    %v12532 = vsel %vm10089, %v11725, -inf
    %v12533 = vrot.slane %v12532, 4
    %v12534 = vmax.f32 %v12532, %v12533
    %v12535 = vrot.slane %v12534, 2
    %v12536 = vmax.f32 %v12534, %v12535
    %v12537 = vrot.slane %v12536, 1
    %v12538 = vmax.f32 %v12536, %v12537
    %v12539 = vsel %vm10089, %v11724, -inf
    %v12540 = vrot.slane %v12539, 4
    %v12541 = vmax.f32 %v12539, %v12540
    %v12542 = vrot.slane %v12541, 2
    %v12543 = vmax.f32 %v12541, %v12542
    %v12544 = vrot.slane %v12543, 1
    %v12545 = vmax.f32 %v12543, %v12544
    %v12546 = vsel %vm10089, %v11726, -inf
    %v12547 = vrot.slane %v12546, 4
    %v12548 = vmax.f32 %v12546, %v12547
    %v12549 = vrot.slane %v12548, 2
    %v12550 = vmax.f32 %v12548, %v12549
    %v12551 = vrot.slane %v12550, 1
    %v12552 = vmax.f32 %v12550, %v12551
    %v12553 = vsel %vm10089, %v11734, -inf
    %v12554 = vrot.slane %v12553, 4
    %v12555 = vmax.f32 %v12553, %v12554
    %v12556 = vrot.slane %v12555, 2
    %v12557 = vmax.f32 %v12555, %v12556
    %v12558 = vrot.slane %v12557, 1
    %v12559 = vmax.f32 %v12557, %v12558
    %v12560 = vsel %vm10089, %v11742, -inf
    %v12561 = vrot.slane %v12560, 4
    %v12562 = vmax.f32 %v12560, %v12561
    %v12563 = vrot.slane %v12562, 2
    %v12564 = vmax.f32 %v12562, %v12563
    %v12565 = vrot.slane %v12564, 1
    %v12566 = vmax.f32 %v12564, %v12565
    %v12567 = vsel %vm10089, %v11741, -inf
    %v12568 = vrot.slane %v12567, 4
    %v12569 = vmax.f32 %v12567, %v12568
    %v12570 = vrot.slane %v12569, 2
    %v12571 = vmax.f32 %v12569, %v12570
    %v12572 = vrot.slane %v12571, 1
    %v12573 = vmax.f32 %v12571, %v12572
    %v12574 = vsel %vm10089, %v11743, -inf
    %v12575 = vrot.slane %v12574, 4
    %v12576 = vmax.f32 %v12574, %v12575
    %v12577 = vrot.slane %v12576, 2
    %v12578 = vmax.f32 %v12576, %v12577
    %v12579 = vrot.slane %v12578, 1
    %v12580 = vmax.f32 %v12578, %v12579
    %v12581 = vsel %vm10089, %v11751, -inf
    %v12582 = vrot.slane %v12581, 4
    %v12583 = vmax.f32 %v12581, %v12582
    %v12584 = vrot.slane %v12583, 2
    %v12585 = vmax.f32 %v12583, %v12584
    %v12586 = vrot.slane %v12585, 1
    %v12587 = vmax.f32 %v12585, %v12586
    %v12588 = vsel %vm10089, %v11759, -inf
    %v12589 = vrot.slane %v12588, 4
    %v12590 = vmax.f32 %v12588, %v12589
    %v12591 = vrot.slane %v12590, 2
    %v12592 = vmax.f32 %v12590, %v12591
    %v12593 = vrot.slane %v12592, 1
    %v12594 = vmax.f32 %v12592, %v12593
    %v12595 = vsel %vm10089, %v11758, -inf
    %v12596 = vrot.slane %v12595, 4
    %v12597 = vmax.f32 %v12595, %v12596
    %v12598 = vrot.slane %v12597, 2
    %v12599 = vmax.f32 %v12597, %v12598
    %v12600 = vrot.slane %v12599, 1
    %v12601 = vmax.f32 %v12599, %v12600
    %v12602 = vsel %vm10089, %v11760, -inf
    %v12603 = vrot.slane %v12602, 4
    %v12604 = vmax.f32 %v12602, %v12603
    %v12605 = vrot.slane %v12604, 2
    %v12606 = vmax.f32 %v12604, %v12605
    %v12607 = vrot.slane %v12606, 1
    %v12608 = vmax.f32 %v12606, %v12607
    %v12609 = vsel %vm10089, %v11768, -inf
    %v12610 = vrot.slane %v12609, 4
    %v12611 = vmax.f32 %v12609, %v12610
    %v12612 = vrot.slane %v12611, 2
    %v12613 = vmax.f32 %v12611, %v12612
    %v12614 = vrot.slane %v12613, 1
    %v12615 = vmax.f32 %v12613, %v12614
    %v12616 = vsel %vm10089, %v11776, -inf
    %v12617 = vrot.slane %v12616, 4
    %v12618 = vmax.f32 %v12616, %v12617
    %v12619 = vrot.slane %v12618, 2
    %v12620 = vmax.f32 %v12618, %v12619
    %v12621 = vrot.slane %v12620, 1
    %v12622 = vmax.f32 %v12620, %v12621
    %v12623 = vsel %vm10089, %v11775, -inf
    %v12624 = vrot.slane %v12623, 4
    %v12625 = vmax.f32 %v12623, %v12624
    %v12626 = vrot.slane %v12625, 2
    %v12627 = vmax.f32 %v12625, %v12626
    %v12628 = vrot.slane %v12627, 1
    %v12629 = vmax.f32 %v12627, %v12628
    %v12630 = vsel %vm10089, %v11777, -inf
    %v12631 = vrot.slane %v12630, 4
    %v12632 = vmax.f32 %v12630, %v12631
    %v12633 = vrot.slane %v12632, 2
    %v12634 = vmax.f32 %v12632, %v12633
    %v12635 = vrot.slane %v12634, 1
    %v12636 = vmax.f32 %v12634, %v12635
    %v12637 = vsel %vm10089, %v11785, -inf
    %v12638 = vrot.slane %v12637, 4
    %v12639 = vmax.f32 %v12637, %v12638
    %v12640 = vrot.slane %v12639, 2
    %v12641 = vmax.f32 %v12639, %v12640
    %v12642 = vrot.slane %v12641, 1
    %v12643 = vmax.f32 %v12641, %v12642
    %v12644 = vsel %vm10089, %v11793, -inf
    %v12645 = vrot.slane %v12644, 4
    %v12646 = vmax.f32 %v12644, %v12645
    %v12647 = vrot.slane %v12646, 2
    %v12648 = vmax.f32 %v12646, %v12647
    %v12649 = vrot.slane %v12648, 1
    %v12650 = vmax.f32 %v12648, %v12649
    %v12651 = vsel %vm10089, %v11792, -inf
    %v12652 = vrot.slane %v12651, 4
    %v12653 = vmax.f32 %v12651, %v12652
    %v12654 = vrot.slane %v12653, 2
    %v12655 = vmax.f32 %v12653, %v12654
    %v12656 = vrot.slane %v12655, 1
    %v12657 = vmax.f32 %v12655, %v12656
    %v12658 = vsel %vm10089, %v11794, -inf
    %v12659 = vrot.slane %v12658, 4
    %v12660 = vmax.f32 %v12658, %v12659
    %v12661 = vrot.slane %v12660, 2
    %v12662 = vmax.f32 %v12660, %v12661
    %v12663 = vrot.slane %v12662, 1
    %v12664 = vmax.f32 %v12662, %v12663
    %v12665 = vsel %vm10089, %v11802, -inf
    %v12666 = vrot.slane %v12665, 4
    %v12667 = vmax.f32 %v12665, %v12666
    %v12668 = vrot.slane %v12667, 2
    %v12669 = vmax.f32 %v12667, %v12668
    %v12670 = vrot.slane %v12669, 1
    %v12671 = vmax.f32 %v12669, %v12670
    %v12672 = vsel %vm10089, %v11810, -inf
    %v12673 = vrot.slane %v12672, 4
    %v12674 = vmax.f32 %v12672, %v12673
    %v12675 = vrot.slane %v12674, 2
    %v12676 = vmax.f32 %v12674, %v12675
    %v12677 = vrot.slane %v12676, 1
    %v12678 = vmax.f32 %v12676, %v12677
    %v12679 = vsel %vm10089, %v11809, -inf
    %v12680 = vrot.slane %v12679, 4
    %v12681 = vmax.f32 %v12679, %v12680
    %v12682 = vrot.slane %v12681, 2
    %v12683 = vmax.f32 %v12681, %v12682
    %v12684 = vrot.slane %v12683, 1
    %v12685 = vmax.f32 %v12683, %v12684
    %v12686 = vsel %vm10089, %v11811, -inf
    %v12687 = vrot.slane %v12686, 4
    %v12688 = vmax.f32 %v12686, %v12687
    %v12689 = vrot.slane %v12688, 2
    %v12690 = vmax.f32 %v12688, %v12689
    %v12691 = vrot.slane %v12690, 1
    %v12692 = vmax.f32 %v12690, %v12691
    %v12693 = vsel %vm10089, %v11819, -inf
    %v12694 = vrot.slane %v12693, 4
    %v12695 = vmax.f32 %v12693, %v12694
    %v12696 = vrot.slane %v12695, 2
    %v12697 = vmax.f32 %v12695, %v12696
    %v12698 = vrot.slane %v12697, 1
    %v12699 = vmax.f32 %v12697, %v12698
    %v12700 = vsel %vm10089, %v11827, -inf
    %v12701 = vrot.slane %v12700, 4
    %v12702 = vmax.f32 %v12700, %v12701
    %v12703 = vrot.slane %v12702, 2
    %v12704 = vmax.f32 %v12702, %v12703
    %v12705 = vrot.slane %v12704, 1
    %v12706 = vmax.f32 %v12704, %v12705
    %v12707 = vsel %vm10089, %v11826, -inf
    %v12708 = vrot.slane %v12707, 4
    %v12709 = vmax.f32 %v12707, %v12708
    %v12710 = vrot.slane %v12709, 2
    %v12711 = vmax.f32 %v12709, %v12710
    %v12712 = vrot.slane %v12711, 1
    %v12713 = vmax.f32 %v12711, %v12712
    %v12714 = vsel %vm10089, %v11828, -inf
    %v12715 = vrot.slane %v12714, 4
    %v12716 = vmax.f32 %v12714, %v12715
    %v12717 = vrot.slane %v12716, 2
    %v12718 = vmax.f32 %v12716, %v12717
    %v12719 = vrot.slane %v12718, 1
    %v12720 = vmax.f32 %v12718, %v12719
    %v12721 = vsel %vm10089, %v11836, -inf
    %v12722 = vrot.slane %v12721, 4
    %v12723 = vmax.f32 %v12721, %v12722
    %v12724 = vrot.slane %v12723, 2
    %v12725 = vmax.f32 %v12723, %v12724
    %v12726 = vrot.slane %v12725, 1
    %v12727 = vmax.f32 %v12725, %v12726
    %v12728 = vsel %vm10089, %v11844, -inf
    %v12729 = vrot.slane %v12728, 4
    %v12730 = vmax.f32 %v12728, %v12729
    %v12731 = vrot.slane %v12730, 2
    %v12732 = vmax.f32 %v12730, %v12731
    %v12733 = vrot.slane %v12732, 1
    %v12734 = vmax.f32 %v12732, %v12733
    %v12735 = vsel %vm10089, %v11843, -inf
    %v12736 = vrot.slane %v12735, 4
    %v12737 = vmax.f32 %v12735, %v12736
    %v12738 = vrot.slane %v12737, 2
    %v12739 = vmax.f32 %v12737, %v12738
    %v12740 = vrot.slane %v12739, 1
    %v12741 = vmax.f32 %v12739, %v12740
    %v12742 = vsel %vm10089, %v11845, -inf
    %v12743 = vrot.slane %v12742, 4
    %v12744 = vmax.f32 %v12742, %v12743
    %v12745 = vrot.slane %v12744, 2
    %v12746 = vmax.f32 %v12744, %v12745
    %v12747 = vrot.slane %v12746, 1
    %v12748 = vmax.f32 %v12746, %v12747
    %v12749 = vsel %vm10089, %v11853, -inf
    %v12750 = vrot.slane %v12749, 4
    %v12751 = vmax.f32 %v12749, %v12750
    %v12752 = vrot.slane %v12751, 2
    %v12753 = vmax.f32 %v12751, %v12752
    %v12754 = vrot.slane %v12753, 1
    %v12755 = vmax.f32 %v12753, %v12754
    %v12756 = vsel %vm10089, %v11861, -inf
    %v12757 = vrot.slane %v12756, 4
    %v12758 = vmax.f32 %v12756, %v12757
    %v12759 = vrot.slane %v12758, 2
    %v12760 = vmax.f32 %v12758, %v12759
    %v12761 = vrot.slane %v12760, 1
    %v12762 = vmax.f32 %v12760, %v12761
    %v12763 = vsel %vm10089, %v11860, -inf
    %v12764 = vrot.slane %v12763, 4
    %v12765 = vmax.f32 %v12763, %v12764
    %v12766 = vrot.slane %v12765, 2
    %v12767 = vmax.f32 %v12765, %v12766
    %v12768 = vrot.slane %v12767, 1
    %v12769 = vmax.f32 %v12767, %v12768
    %v12770 = vsel %vm10089, %v11862, -inf
    %v12771 = vrot.slane %v12770, 4
    %v12772 = vmax.f32 %v12770, %v12771
    %v12773 = vrot.slane %v12772, 2
    %v12774 = vmax.f32 %v12772, %v12773
    %v12775 = vrot.slane %v12774, 1
    %v12776 = vmax.f32 %v12774, %v12775
    %v12777 = vsel %vm10089, %v11870, -inf
    %v12778 = vrot.slane %v12777, 4
    %v12779 = vmax.f32 %v12777, %v12778
    %v12780 = vrot.slane %v12779, 2
    %v12781 = vmax.f32 %v12779, %v12780
    %v12782 = vrot.slane %v12781, 1
    %v12783 = vmax.f32 %v12781, %v12782
    %v12784 = vsel %vm10089, %v11878, -inf
    %v12785 = vrot.slane %v12784, 4
    %v12786 = vmax.f32 %v12784, %v12785
    %v12787 = vrot.slane %v12786, 2
    %v12788 = vmax.f32 %v12786, %v12787
    %v12789 = vrot.slane %v12788, 1
    %v12790 = vmax.f32 %v12788, %v12789
    %v12791 = vsel %vm10089, %v11877, -inf
    %v12792 = vrot.slane %v12791, 4
    %v12793 = vmax.f32 %v12791, %v12792
    %v12794 = vrot.slane %v12793, 2
    %v12795 = vmax.f32 %v12793, %v12794
    %v12796 = vrot.slane %v12795, 1
    %v12797 = vmax.f32 %v12795, %v12796
    %v12798 = vsel %vm10089, %v11879, -inf
    %v12799 = vrot.slane %v12798, 4
    %v12800 = vmax.f32 %v12798, %v12799
    %v12801 = vrot.slane %v12800, 2
    %v12802 = vmax.f32 %v12800, %v12801
    %v12803 = vrot.slane %v12802, 1
    %v12804 = vmax.f32 %v12802, %v12803
    %v12805 = vsel %vm10089, %v11887, -inf
    %v12806 = vrot.slane %v12805, 4
    %v12807 = vmax.f32 %v12805, %v12806
    %v12808 = vrot.slane %v12807, 2
    %v12809 = vmax.f32 %v12807, %v12808
    %v12810 = vrot.slane %v12809, 1
    %v12811 = vmax.f32 %v12809, %v12810
    %v12812 = vsel %vm10089, %v11895, -inf
    %v12813 = vrot.slane %v12812, 4
    %v12814 = vmax.f32 %v12812, %v12813
    %v12815 = vrot.slane %v12814, 2
    %v12816 = vmax.f32 %v12814, %v12815
    %v12817 = vrot.slane %v12816, 1
    %v12818 = vmax.f32 %v12816, %v12817
    %v12819 = vsel %vm10089, %v11894, -inf
    %v12820 = vrot.slane %v12819, 4
    %v12821 = vmax.f32 %v12819, %v12820
    %v12822 = vrot.slane %v12821, 2
    %v12823 = vmax.f32 %v12821, %v12822
    %v12824 = vrot.slane %v12823, 1
    %v12825 = vmax.f32 %v12823, %v12824
    %v12826 = vsel %vm10089, %v11896, -inf
    %v12827 = vrot.slane %v12826, 4
    %v12828 = vmax.f32 %v12826, %v12827
    %v12829 = vrot.slane %v12828, 2
    %v12830 = vmax.f32 %v12828, %v12829
    %v12831 = vrot.slane %v12830, 1
    %v12832 = vmax.f32 %v12830, %v12831
    %v12833 = vsel %vm10089, %v11904, -inf
    %v12834 = vrot.slane %v12833, 4
    %v12835 = vmax.f32 %v12833, %v12834
    %v12836 = vrot.slane %v12835, 2
    %v12837 = vmax.f32 %v12835, %v12836
    %v12838 = vrot.slane %v12837, 1
    %v12839 = vmax.f32 %v12837, %v12838
    %v12840 = vsel %vm10089, %v11912, -inf
    %v12841 = vrot.slane %v12840, 4
    %v12842 = vmax.f32 %v12840, %v12841
    %v12843 = vrot.slane %v12842, 2
    %v12844 = vmax.f32 %v12842, %v12843
    %v12845 = vrot.slane %v12844, 1
    %v12846 = vmax.f32 %v12844, %v12845
    %v12847 = vsel %vm10089, %v11911, -inf
    %v12848 = vrot.slane %v12847, 4
    %v12849 = vmax.f32 %v12847, %v12848
    %v12850 = vrot.slane %v12849, 2
    %v12851 = vmax.f32 %v12849, %v12850
    %v12852 = vrot.slane %v12851, 1
    %v12853 = vmax.f32 %v12851, %v12852
    %v12854 = vsel %vm10089, %v11913, -inf
    %v12855 = vrot.slane %v12854, 4
    %v12856 = vmax.f32 %v12854, %v12855
    %v12857 = vrot.slane %v12856, 2
    %v12858 = vmax.f32 %v12856, %v12857
    %v12859 = vrot.slane %v12858, 1
    %v12860 = vmax.f32 %v12858, %v12859
    %v12861 = vsel %vm10089, %v11921, -inf
    %v12862 = vrot.slane %v12861, 4
    %v12863 = vmax.f32 %v12861, %v12862
    %v12864 = vrot.slane %v12863, 2
    %v12865 = vmax.f32 %v12863, %v12864
    %v12866 = vrot.slane %v12865, 1
    %v12867 = vmax.f32 %v12865, %v12866
    %v12868 = vsel %vm10089, %v11929, -inf
    %v12869 = vrot.slane %v12868, 4
    %v12870 = vmax.f32 %v12868, %v12869
    %v12871 = vrot.slane %v12870, 2
    %v12872 = vmax.f32 %v12870, %v12871
    %v12873 = vrot.slane %v12872, 1
    %v12874 = vmax.f32 %v12872, %v12873
    %v12875 = vsel %vm10089, %v11928, -inf
    %v12876 = vrot.slane %v12875, 4
    %v12877 = vmax.f32 %v12875, %v12876
    %v12878 = vrot.slane %v12877, 2
    %v12879 = vmax.f32 %v12877, %v12878
    %v12880 = vrot.slane %v12879, 1
    %v12881 = vmax.f32 %v12879, %v12880
    %v12882 = vsel %vm10089, %v11930, -inf
    %v12883 = vrot.slane %v12882, 4
    %v12884 = vmax.f32 %v12882, %v12883
    %v12885 = vrot.slane %v12884, 2
    %v12886 = vmax.f32 %v12884, %v12885
    %v12887 = vrot.slane %v12886, 1
    %v12888 = vmax.f32 %v12886, %v12887
    %v12889 = vsel %vm10089, %v11938, -inf
    %v12890 = vrot.slane %v12889, 4
    %v12891 = vmax.f32 %v12889, %v12890
    %v12892 = vrot.slane %v12891, 2
    %v12893 = vmax.f32 %v12891, %v12892
    %v12894 = vrot.slane %v12893, 1
    %v12895 = vmax.f32 %v12893, %v12894
    %v12896 = vsel %vm10089, %v11946, -inf
    %v12897 = vrot.slane %v12896, 4
    %v12898 = vmax.f32 %v12896, %v12897
    %v12899 = vrot.slane %v12898, 2
    %v12900 = vmax.f32 %v12898, %v12899
    %v12901 = vrot.slane %v12900, 1
    %v12902 = vmax.f32 %v12900, %v12901
    %v12903 = vsel %vm10089, %v11945, -inf
    %v12904 = vrot.slane %v12903, 4
    %v12905 = vmax.f32 %v12903, %v12904
    %v12906 = vrot.slane %v12905, 2
    %v12907 = vmax.f32 %v12905, %v12906
    %v12908 = vrot.slane %v12907, 1
    %v12909 = vmax.f32 %v12907, %v12908
    %v12910 = vsel %vm10089, %v11947, -inf
    %v12911 = vrot.slane %v12910, 4
    %v12912 = vmax.f32 %v12910, %v12911
    %v12913 = vrot.slane %v12912, 2
    %v12914 = vmax.f32 %v12912, %v12913
    %v12915 = vrot.slane %v12914, 1
    %v12916 = vmax.f32 %v12914, %v12915
    %v12917 = vsel %vm10089, %v11955, -inf
    %v12918 = vrot.slane %v12917, 4
    %v12919 = vmax.f32 %v12917, %v12918
    %v12920 = vrot.slane %v12919, 2
    %v12921 = vmax.f32 %v12919, %v12920
    %v12922 = vrot.slane %v12921, 1
    %v12923 = vmax.f32 %v12921, %v12922
    %v12924 = vsel %vm10089, %v11963, -inf
    %v12925 = vrot.slane %v12924, 4
    %v12926 = vmax.f32 %v12924, %v12925
    %v12927 = vrot.slane %v12926, 2
    %v12928 = vmax.f32 %v12926, %v12927
    %v12929 = vrot.slane %v12928, 1
    %v12930 = vmax.f32 %v12928, %v12929
    %v12931 = vsel %vm10089, %v11962, -inf
    %v12932 = vrot.slane %v12931, 4
    %v12933 = vmax.f32 %v12931, %v12932
    %v12934 = vrot.slane %v12933, 2
    %v12935 = vmax.f32 %v12933, %v12934
    %v12936 = vrot.slane %v12935, 1
    %v12937 = vmax.f32 %v12935, %v12936
    %v12938 = vsel %vm10089, %v11964, -inf
    %v12939 = vrot.slane %v12938, 4
    %v12940 = vmax.f32 %v12938, %v12939
    %v12941 = vrot.slane %v12940, 2
    %v12942 = vmax.f32 %v12940, %v12941
    %v12943 = vrot.slane %v12942, 1
    %v12944 = vmax.f32 %v12942, %v12943
    %v12945 = vsel %vm10089, %v11972, -inf
    %v12946 = vrot.slane %v12945, 4
    %v12947 = vmax.f32 %v12945, %v12946
    %v12948 = vrot.slane %v12947, 2
    %v12949 = vmax.f32 %v12947, %v12948
    %v12950 = vrot.slane %v12949, 1
    %v12951 = vmax.f32 %v12949, %v12950
    %v12952 = vsel %vm10089, %v11980, -inf
    %v12953 = vrot.slane %v12952, 4
    %v12954 = vmax.f32 %v12952, %v12953
    %v12955 = vrot.slane %v12954, 2
    %v12956 = vmax.f32 %v12954, %v12955
    %v12957 = vrot.slane %v12956, 1
    %v12958 = vmax.f32 %v12956, %v12957
    %v12959 = vsel %vm10089, %v11979, -inf
    %v12960 = vrot.slane %v12959, 4
    %v12961 = vmax.f32 %v12959, %v12960
    %v12962 = vrot.slane %v12961, 2
    %v12963 = vmax.f32 %v12961, %v12962
    %v12964 = vrot.slane %v12963, 1
    %v12965 = vmax.f32 %v12963, %v12964
    %v12966 = vsel %vm10089, %v11981, -inf
    %v12967 = vrot.slane %v12966, 4
    %v12968 = vmax.f32 %v12966, %v12967
    %v12969 = vrot.slane %v12968, 2
    %v12970 = vmax.f32 %v12968, %v12969
    %v12971 = vrot.slane %v12970, 1
    %v12972 = vmax.f32 %v12970, %v12971
    %v12973 = vsel %vm10089, %v11989, -inf
    %v12974 = vrot.slane %v12973, 4
    %v12975 = vmax.f32 %v12973, %v12974
    %v12976 = vrot.slane %v12975, 2
    %v12977 = vmax.f32 %v12975, %v12976
    %v12978 = vrot.slane %v12977, 1
    %v12979 = vmax.f32 %v12977, %v12978
    %v12980 = vsel %vm10089, %v11997, -inf
    %v12981 = vrot.slane %v12980, 4
    %v12982 = vmax.f32 %v12980, %v12981
    %v12983 = vrot.slane %v12982, 2
    %v12984 = vmax.f32 %v12982, %v12983
    %v12985 = vrot.slane %v12984, 1
    %v12986 = vmax.f32 %v12984, %v12985
    %v12987 = vsel %vm10089, %v11996, -inf
    %v12988 = vrot.slane %v12987, 4
    %v12989 = vmax.f32 %v12987, %v12988
    %v12990 = vrot.slane %v12989, 2
    %v12991 = vmax.f32 %v12989, %v12990
    %v12992 = vrot.slane %v12991, 1
    %v12993 = vmax.f32 %v12991, %v12992
    %v12994 = vsel %vm10089, %v11998, -inf
    %v12995 = vrot.slane %v12994, 4
    %v12996 = vmax.f32 %v12994, %v12995
    %v12997 = vrot.slane %v12996, 2
    %v12998 = vmax.f32 %v12996, %v12997
    %v12999 = vrot.slane %v12998, 1
    %v13000 = vmax.f32 %v12998, %v12999
    %v13001 = vsel %vm10089, %v12006, -inf
    %v13002 = vrot.slane %v13001, 4
    %v13003 = vmax.f32 %v13001, %v13002
    %v13004 = vrot.slane %v13003, 2
    %v13005 = vmax.f32 %v13003, %v13004
    %v13006 = vrot.slane %v13005, 1
    %v13007 = vmax.f32 %v13005, %v13006
    %v13008 = vsel %vm10089, %v12014, -inf
    %v13009 = vrot.slane %v13008, 4
    %v13010 = vmax.f32 %v13008, %v13009
    %v13011 = vrot.slane %v13010, 2
    %v13012 = vmax.f32 %v13010, %v13011
    %v13013 = vrot.slane %v13012, 1
    %v13014 = vmax.f32 %v13012, %v13013
    %v13015 = vsel %vm10089, %v12013, -inf
    %v13016 = vrot.slane %v13015, 4
    %v13017 = vmax.f32 %v13015, %v13016
    %v13018 = vrot.slane %v13017, 2
    %v13019 = vmax.f32 %v13017, %v13018
    %v13020 = vrot.slane %v13019, 1
    %v13021 = vmax.f32 %v13019, %v13020
    %v13022 = vsel %vm10089, %v12015, -inf
    %v13023 = vrot.slane %v13022, 4
    %v13024 = vmax.f32 %v13022, %v13023
    %v13025 = vrot.slane %v13024, 2
    %v13026 = vmax.f32 %v13024, %v13025
    %v13027 = vrot.slane %v13026, 1
    %v13028 = vmax.f32 %v13026, %v13027
    %v13029 = vsel %vm10089, %v12023, -inf
    %v13030 = vrot.slane %v13029, 4
    %v13031 = vmax.f32 %v13029, %v13030
    %v13032 = vrot.slane %v13031, 2
    %v13033 = vmax.f32 %v13031, %v13032
    %v13034 = vrot.slane %v13033, 1
    %v13035 = vmax.f32 %v13033, %v13034
    %v13036 = vsel %vm10089, %v12031, -inf
    %v13037 = vrot.slane %v13036, 4
    %v13038 = vmax.f32 %v13036, %v13037
    %v13039 = vrot.slane %v13038, 2
    %v13040 = vmax.f32 %v13038, %v13039
    %v13041 = vrot.slane %v13040, 1
    %v13042 = vmax.f32 %v13040, %v13041
    %v13043 = vsel %vm10089, %v12030, -inf
    %v13044 = vrot.slane %v13043, 4
    %v13045 = vmax.f32 %v13043, %v13044
    %v13046 = vrot.slane %v13045, 2
    %v13047 = vmax.f32 %v13045, %v13046
    %v13048 = vrot.slane %v13047, 1
    %v13049 = vmax.f32 %v13047, %v13048
    %v13050 = vsel %vm10089, %v12032, -inf
    %v13051 = vrot.slane %v13050, 4
    %v13052 = vmax.f32 %v13050, %v13051
    %v13053 = vrot.slane %v13052, 2
    %v13054 = vmax.f32 %v13052, %v13053
    %v13055 = vrot.slane %v13054, 1
    %v13056 = vmax.f32 %v13054, %v13055
    %v13057 = vmax.f32 %v12167, %v12223
    %v13058 = vmax.f32 %v12174, %v12230
    %v13059 = vmax.f32 %v12181, %v12237
    %v13060 = vmax.f32 %v12188, %v12244
    %v13061 = vmax.f32 %v12195, %v12251
    %v13062 = vmax.f32 %v12202, %v12258
    %v13063 = vmax.f32 %v12209, %v12265
    %v13064 = vmax.f32 %v12216, %v12272
    %v13065 = vmax.f32 %v12279, %v12335
    %v13066 = vmax.f32 %v12286, %v12342
    %v13067 = vmax.f32 %v12293, %v12349
    %v13068 = vmax.f32 %v12300, %v12356
    %v13069 = vmax.f32 %v12307, %v12363
    %v13070 = vmax.f32 %v12314, %v12370
    %v13071 = vmax.f32 %v12321, %v12377
    %v13072 = vmax.f32 %v12328, %v12384
    %v13073 = vmax.f32 %v12391, %v12447
    %v13074 = vmax.f32 %v12398, %v12454
    %v13075 = vmax.f32 %v12405, %v12461
    %v13076 = vmax.f32 %v12412, %v12468
    %v13077 = vmax.f32 %v12419, %v12475
    %v13078 = vmax.f32 %v12426, %v12482
    %v13079 = vmax.f32 %v12433, %v12489
    %v13080 = vmax.f32 %v12440, %v12496
    %v13081 = vmax.f32 %v12503, %v12559
    %v13082 = vmax.f32 %v12510, %v12566
    %v13083 = vmax.f32 %v12517, %v12573
    %v13084 = vmax.f32 %v12524, %v12580
    %v13085 = vmax.f32 %v12531, %v12587
    %v13086 = vmax.f32 %v12538, %v12594
    %v13087 = vmax.f32 %v12545, %v12601
    %v13088 = vmax.f32 %v12552, %v12608
    %v13089 = vmax.f32 %v12615, %v12671
    %v13090 = vmax.f32 %v12622, %v12678
    %v13091 = vmax.f32 %v12629, %v12685
    %v13092 = vmax.f32 %v12636, %v12692
    %v13093 = vmax.f32 %v12643, %v12699
    %v13094 = vmax.f32 %v12650, %v12706
    %v13095 = vmax.f32 %v12657, %v12713
    %v13096 = vmax.f32 %v12664, %v12720
    %v13097 = vmax.f32 %v12727, %v12783
    %v13098 = vmax.f32 %v12734, %v12790
    %v13099 = vmax.f32 %v12741, %v12797
    %v13100 = vmax.f32 %v12748, %v12804
    %v13101 = vmax.f32 %v12755, %v12811
    %v13102 = vmax.f32 %v12762, %v12818
    %v13103 = vmax.f32 %v12769, %v12825
    %v13104 = vmax.f32 %v12776, %v12832
    %v13105 = vmax.f32 %v12839, %v12895
    %v13106 = vmax.f32 %v12846, %v12902
    %v13107 = vmax.f32 %v12853, %v12909
    %v13108 = vmax.f32 %v12860, %v12916
    %v13109 = vmax.f32 %v12867, %v12923
    %v13110 = vmax.f32 %v12874, %v12930
    %v13111 = vmax.f32 %v12881, %v12937
    %v13112 = vmax.f32 %v12888, %v12944
    %v13113 = vmax.f32 %v12951, %v13007
    %v13114 = vmax.f32 %v12958, %v13014
    %v13115 = vmax.f32 %v12965, %v13021
    %v13116 = vmax.f32 %v12972, %v13028
    %v13117 = vmax.f32 %v12979, %v13035
    %v13118 = vmax.f32 %v12986, %v13042
    %v13119 = vmax.f32 %v12993, %v13049
    %v13120 = vmax.f32 %v13000, %v13056
    %v13121 = vpack.c.bf16 %v13057, %v13057
    %v13122 = vpack.c.bf16 %v13058, %v13058
    %v13123 = vpack.c.bf16 %v13059, %v13059
    %v13124 = vpack.c.bf16 %v13060, %v13060
    %v13125 = vpack.c.bf16 %v13061, %v13061
    %v13126 = vpack.c.bf16 %v13062, %v13062
    %v13127 = vpack.c.bf16 %v13063, %v13063
    %v13128 = vpack.c.bf16 %v13064, %v13064
    %v13129 = vpack.c.bf16 %v13065, %v13065
    %v13130 = vpack.c.bf16 %v13066, %v13066
    %v13131 = vpack.c.bf16 %v13067, %v13067
    %v13132 = vpack.c.bf16 %v13068, %v13068
    %v13133 = vpack.c.bf16 %v13069, %v13069
    %v13134 = vpack.c.bf16 %v13070, %v13070
    %v13135 = vpack.c.bf16 %v13071, %v13071
    %v13136 = vpack.c.bf16 %v13072, %v13072
    %v13137 = vpack.c.bf16 %v13073, %v13073
    %v13138 = vpack.c.bf16 %v13074, %v13074
    %v13139 = vpack.c.bf16 %v13075, %v13075
    %v13140 = vpack.c.bf16 %v13076, %v13076
    %v13141 = vpack.c.bf16 %v13077, %v13077
    %v13142 = vpack.c.bf16 %v13078, %v13078
    %v13143 = vpack.c.bf16 %v13079, %v13079
    %v13144 = vpack.c.bf16 %v13080, %v13080
    %v13145 = vpack.c.bf16 %v13081, %v13081
    %v13146 = vpack.c.bf16 %v13082, %v13082
    %v13147 = vpack.c.bf16 %v13083, %v13083
    %v13148 = vpack.c.bf16 %v13084, %v13084
    %v13149 = vpack.c.bf16 %v13085, %v13085
    %v13150 = vpack.c.bf16 %v13086, %v13086
    %v13151 = vpack.c.bf16 %v13087, %v13087
    %v13152 = vpack.c.bf16 %v13088, %v13088
    %v13153 = vpack.c.bf16 %v13089, %v13089
    %v13154 = vpack.c.bf16 %v13090, %v13090
    %v13155 = vpack.c.bf16 %v13091, %v13091
    %v13156 = vpack.c.bf16 %v13092, %v13092
    %v13157 = vpack.c.bf16 %v13093, %v13093
    %v13158 = vpack.c.bf16 %v13094, %v13094
    %v13159 = vpack.c.bf16 %v13095, %v13095
    %v13160 = vpack.c.bf16 %v13096, %v13096
    %v13161 = vpack.c.bf16 %v13097, %v13097
    %v13162 = vpack.c.bf16 %v13098, %v13098
    %v13163 = vpack.c.bf16 %v13099, %v13099
    %v13164 = vpack.c.bf16 %v13100, %v13100
    %v13165 = vpack.c.bf16 %v13101, %v13101
    %v13166 = vpack.c.bf16 %v13102, %v13102
    %v13167 = vpack.c.bf16 %v13103, %v13103
    %v13168 = vpack.c.bf16 %v13104, %v13104
    %v13169 = vpack.c.bf16 %v13105, %v13105
    %v13170 = vpack.c.bf16 %v13106, %v13106
    %v13171 = vpack.c.bf16 %v13107, %v13107
    %v13172 = vpack.c.bf16 %v13108, %v13108
    %v13173 = vpack.c.bf16 %v13109, %v13109
    %v13174 = vpack.c.bf16 %v13110, %v13110
    %v13175 = vpack.c.bf16 %v13111, %v13111
    %v13176 = vpack.c.bf16 %v13112, %v13112
    %v13177 = vpack.c.bf16 %v13113, %v13113
    %v13178 = vpack.c.bf16 %v13114, %v13114
    %v13179 = vpack.c.bf16 %v13115, %v13115
    %v13180 = vpack.c.bf16 %v13116, %v13116
    %v13181 = vpack.c.bf16 %v13117, %v13117
    %v13182 = vpack.c.bf16 %v13118, %v13118
    %v13183 = vpack.c.bf16 %v13119, %v13119
    %v13184 = vpack.c.bf16 %v13120, %v13120
    %v13249 = vunpack.c.l.b16 %v13121
    %v13250 = vunpack.c.l.b16 %v13122
    %v13251 = vunpack.c.l.b16 %v13123
    %v13252 = vunpack.c.l.b16 %v13124
    %v13253 = vunpack.c.l.b16 %v13125
    %v13254 = vunpack.c.l.b16 %v13126
    %v13255 = vunpack.c.l.b16 %v13127
    %v13256 = vunpack.c.l.b16 %v13128
    %v13257 = vunpack.c.l.b16 %v13129
    %v13258 = vunpack.c.l.b16 %v13130
    %v13259 = vunpack.c.l.b16 %v13131
    %v13260 = vunpack.c.l.b16 %v13132
    %v13261 = vunpack.c.l.b16 %v13133
    %v13262 = vunpack.c.l.b16 %v13134
    %v13263 = vunpack.c.l.b16 %v13135
    %v13264 = vunpack.c.l.b16 %v13136
    %v13265 = vunpack.c.l.b16 %v13137
    %v13266 = vunpack.c.l.b16 %v13138
    %v13267 = vunpack.c.l.b16 %v13139
    %v13268 = vunpack.c.l.b16 %v13140
    %v13269 = vunpack.c.l.b16 %v13141
    %v13270 = vunpack.c.l.b16 %v13142
    %v13271 = vunpack.c.l.b16 %v13143
    %v13272 = vunpack.c.l.b16 %v13144
    %v13273 = vunpack.c.l.b16 %v13145
    %v13274 = vunpack.c.l.b16 %v13146
    %v13275 = vunpack.c.l.b16 %v13147
    %v13276 = vunpack.c.l.b16 %v13148
    %v13277 = vunpack.c.l.b16 %v13149
    %v13278 = vunpack.c.l.b16 %v13150
    %v13279 = vunpack.c.l.b16 %v13151
    %v13280 = vunpack.c.l.b16 %v13152
    %v13281 = vunpack.c.l.b16 %v13153
    %v13282 = vunpack.c.l.b16 %v13154
    %v13283 = vunpack.c.l.b16 %v13155
    %v13284 = vunpack.c.l.b16 %v13156
    %v13285 = vunpack.c.l.b16 %v13157
    %v13286 = vunpack.c.l.b16 %v13158
    %v13287 = vunpack.c.l.b16 %v13159
    %v13288 = vunpack.c.l.b16 %v13160
    %v13289 = vunpack.c.l.b16 %v13161
    %v13290 = vunpack.c.l.b16 %v13162
    %v13291 = vunpack.c.l.b16 %v13163
    %v13292 = vunpack.c.l.b16 %v13164
    %v13293 = vunpack.c.l.b16 %v13165
    %v13294 = vunpack.c.l.b16 %v13166
    %v13295 = vunpack.c.l.b16 %v13167
    %v13296 = vunpack.c.l.b16 %v13168
    %v13297 = vunpack.c.l.b16 %v13169
    %v13298 = vunpack.c.l.b16 %v13170
    %v13299 = vunpack.c.l.b16 %v13171
    %v13300 = vunpack.c.l.b16 %v13172
    %v13301 = vunpack.c.l.b16 %v13173
    %v13302 = vunpack.c.l.b16 %v13174
    %v13303 = vunpack.c.l.b16 %v13175
    %v13304 = vunpack.c.l.b16 %v13176
    %v13305 = vunpack.c.l.b16 %v13177
    %v13306 = vunpack.c.l.b16 %v13178
    %v13307 = vunpack.c.l.b16 %v13179
    %v13308 = vunpack.c.l.b16 %v13180
    %v13309 = vunpack.c.l.b16 %v13181
    %v13310 = vunpack.c.l.b16 %v13182
    %v13311 = vunpack.c.l.b16 %v13183
    %v13312 = vunpack.c.l.b16 %v13184
    %v13313 = vpack.c.b16 %v13249, %v13249
    %v13314 = vpack.c.b16 %v13250, %v13250
    %v13315 = vpack.c.b16 %v13251, %v13251
    %v13316 = vpack.c.b16 %v13252, %v13252
    %v13317 = vpack.c.b16 %v13253, %v13253
    %v13318 = vpack.c.b16 %v13254, %v13254
    %v13319 = vpack.c.b16 %v13255, %v13255
    %v13320 = vpack.c.b16 %v13256, %v13256
    %v13321 = vpack.c.b16 %v13257, %v13257
    %v13322 = vpack.c.b16 %v13258, %v13258
    %v13323 = vpack.c.b16 %v13259, %v13259
    %v13324 = vpack.c.b16 %v13260, %v13260
    %v13325 = vpack.c.b16 %v13261, %v13261
    %v13326 = vpack.c.b16 %v13262, %v13262
    %v13327 = vpack.c.b16 %v13263, %v13263
    %v13328 = vpack.c.b16 %v13264, %v13264
    %v13329 = vpack.c.b16 %v13265, %v13265
    %v13330 = vpack.c.b16 %v13266, %v13266
    %v13331 = vpack.c.b16 %v13267, %v13267
    %v13332 = vpack.c.b16 %v13268, %v13268
    %v13333 = vpack.c.b16 %v13269, %v13269
    %v13334 = vpack.c.b16 %v13270, %v13270
    %v13335 = vpack.c.b16 %v13271, %v13271
    %v13336 = vpack.c.b16 %v13272, %v13272
    %v13337 = vpack.c.b16 %v13273, %v13273
    %v13338 = vpack.c.b16 %v13274, %v13274
    %v13339 = vpack.c.b16 %v13275, %v13275
    %v13340 = vpack.c.b16 %v13276, %v13276
    %v13341 = vpack.c.b16 %v13277, %v13277
    %v13342 = vpack.c.b16 %v13278, %v13278
    %v13343 = vpack.c.b16 %v13279, %v13279
    %v13344 = vpack.c.b16 %v13280, %v13280
    %v13345 = vpack.c.b16 %v13281, %v13281
    %v13346 = vpack.c.b16 %v13282, %v13282
    %v13347 = vpack.c.b16 %v13283, %v13283
    %v13348 = vpack.c.b16 %v13284, %v13284
    %v13349 = vpack.c.b16 %v13285, %v13285
    %v13350 = vpack.c.b16 %v13286, %v13286
    %v13351 = vpack.c.b16 %v13287, %v13287
    %v13352 = vpack.c.b16 %v13288, %v13288
    %v13353 = vpack.c.b16 %v13289, %v13289
    %v13354 = vpack.c.b16 %v13290, %v13290
    %v13355 = vpack.c.b16 %v13291, %v13291
    %v13356 = vpack.c.b16 %v13292, %v13292
    %v13357 = vpack.c.b16 %v13293, %v13293
    %v13358 = vpack.c.b16 %v13294, %v13294
    %v13359 = vpack.c.b16 %v13295, %v13295
    %v13360 = vpack.c.b16 %v13296, %v13296
    %v13361 = vpack.c.b16 %v13297, %v13297
    %v13362 = vpack.c.b16 %v13298, %v13298
    %v13363 = vpack.c.b16 %v13299, %v13299
    %v13364 = vpack.c.b16 %v13300, %v13300
    %v13365 = vpack.c.b16 %v13301, %v13301
    %v13366 = vpack.c.b16 %v13302, %v13302
    %v13367 = vpack.c.b16 %v13303, %v13303
    %v13368 = vpack.c.b16 %v13304, %v13304
    %v13369 = vpack.c.b16 %v13305, %v13305
    %v13370 = vpack.c.b16 %v13306, %v13306
    %v13371 = vpack.c.b16 %v13307, %v13307
    %v13372 = vpack.c.b16 %v13308, %v13308
    %v13373 = vpack.c.b16 %v13309, %v13309
    %v13374 = vpack.c.b16 %v13310, %v13310
    %v13375 = vpack.c.b16 %v13311, %v13311
    %v13376 = vpack.c.b16 %v13312, %v13312
    %v13377 = vunpack.c.l.b16 %v13313
    %v13378 = vunpack.c.l.b16 %v13314
    %v13379 = vunpack.c.l.b16 %v13315
    %v13380 = vunpack.c.l.b16 %v13316
    %v13381 = vunpack.c.l.b16 %v13317
    %v13382 = vunpack.c.l.b16 %v13318
    %v13383 = vunpack.c.l.b16 %v13319
    %v13384 = vunpack.c.l.b16 %v13320
    %v13385 = vunpack.c.l.b16 %v13321
    %v13386 = vunpack.c.l.b16 %v13322
    %v13387 = vunpack.c.l.b16 %v13323
    %v13388 = vunpack.c.l.b16 %v13324
    %v13389 = vunpack.c.l.b16 %v13325
    %v13390 = vunpack.c.l.b16 %v13326
    %v13391 = vunpack.c.l.b16 %v13327
    %v13392 = vunpack.c.l.b16 %v13328
    %v13393 = vunpack.c.l.b16 %v13329
    %v13394 = vunpack.c.l.b16 %v13330
    %v13395 = vunpack.c.l.b16 %v13331
    %v13396 = vunpack.c.l.b16 %v13332
    %v13397 = vunpack.c.l.b16 %v13333
    %v13398 = vunpack.c.l.b16 %v13334
    %v13399 = vunpack.c.l.b16 %v13335
    %v13400 = vunpack.c.l.b16 %v13336
    %v13401 = vunpack.c.l.b16 %v13337
    %v13402 = vunpack.c.l.b16 %v13338
    %v13403 = vunpack.c.l.b16 %v13339
    %v13404 = vunpack.c.l.b16 %v13340
    %v13405 = vunpack.c.l.b16 %v13341
    %v13406 = vunpack.c.l.b16 %v13342
    %v13407 = vunpack.c.l.b16 %v13343
    %v13408 = vunpack.c.l.b16 %v13344
    %v13409 = vunpack.c.l.b16 %v13345
    %v13410 = vunpack.c.l.b16 %v13346
    %v13411 = vunpack.c.l.b16 %v13347
    %v13412 = vunpack.c.l.b16 %v13348
    %v13413 = vunpack.c.l.b16 %v13349
    %v13414 = vunpack.c.l.b16 %v13350
    %v13415 = vunpack.c.l.b16 %v13351
    %v13416 = vunpack.c.l.b16 %v13352
    %v13417 = vunpack.c.l.b16 %v13353
    %v13418 = vunpack.c.l.b16 %v13354
    %v13419 = vunpack.c.l.b16 %v13355
    %v13420 = vunpack.c.l.b16 %v13356
    %v13421 = vunpack.c.l.b16 %v13357
    %v13422 = vunpack.c.l.b16 %v13358
    %v13423 = vunpack.c.l.b16 %v13359
    %v13424 = vunpack.c.l.b16 %v13360
    %v13425 = vunpack.c.l.b16 %v13361
    %v13426 = vunpack.c.l.b16 %v13362
    %v13427 = vunpack.c.l.b16 %v13363
    %v13428 = vunpack.c.l.b16 %v13364
    %v13429 = vunpack.c.l.b16 %v13365
    %v13430 = vunpack.c.l.b16 %v13366
    %v13431 = vunpack.c.l.b16 %v13367
    %v13432 = vunpack.c.l.b16 %v13368
    %v13433 = vunpack.c.l.b16 %v13369
    %v13434 = vunpack.c.l.b16 %v13370
    %v13435 = vunpack.c.l.b16 %v13371
    %v13436 = vunpack.c.l.b16 %v13372
    %v13437 = vunpack.c.l.b16 %v13373
    %v13438 = vunpack.c.l.b16 %v13374
    %v13439 = vunpack.c.l.b16 %v13375
    %v13440 = vunpack.c.l.b16 %v13376
    %v13441 = vsel %vm11370, %v13378, %v13377
    %v13442 = vsel %vm11372, %v13379, %v13441
    %v13443 = vsel %vm11374, %v13380, %v13442
    %v13444 = vsel %vm11376, %v13381, %v13443
    %v13445 = vsel %vm11378, %v13382, %v13444
    %v13446 = vsel %vm11380, %v13383, %v13445
    %v13447 = vsel %vm11382, %v13384, %v13446
    %v13448 = vsel %vm11370, %v13386, %v13385
    %v13449 = vsel %vm11372, %v13387, %v13448
    %v13450 = vsel %vm11374, %v13388, %v13449
    %v13451 = vsel %vm11376, %v13389, %v13450
    %v13452 = vsel %vm11378, %v13390, %v13451
    %v13453 = vsel %vm11380, %v13391, %v13452
    %v13454 = vsel %vm11382, %v13392, %v13453
    %v13455 = vsel %vm11370, %v13394, %v13393
    %v13456 = vsel %vm11372, %v13395, %v13455
    %v13457 = vsel %vm11374, %v13396, %v13456
    %v13458 = vsel %vm11376, %v13397, %v13457
    %v13459 = vsel %vm11378, %v13398, %v13458
    %v13460 = vsel %vm11380, %v13399, %v13459
    %v13461 = vsel %vm11382, %v13400, %v13460
    %v13462 = vsel %vm11370, %v13402, %v13401
    %v13463 = vsel %vm11372, %v13403, %v13462
    %v13464 = vsel %vm11374, %v13404, %v13463
    %v13465 = vsel %vm11376, %v13405, %v13464
    %v13466 = vsel %vm11378, %v13406, %v13465
    %v13467 = vsel %vm11380, %v13407, %v13466
    %v13468 = vsel %vm11382, %v13408, %v13467
    %v13469 = vsel %vm11370, %v13410, %v13409
    %v13470 = vsel %vm11372, %v13411, %v13469
    %v13471 = vsel %vm11374, %v13412, %v13470
    %v13472 = vsel %vm11376, %v13413, %v13471
    %v13473 = vsel %vm11378, %v13414, %v13472
    %v13474 = vsel %vm11380, %v13415, %v13473
    %v13475 = vsel %vm11382, %v13416, %v13474
    %v13476 = vsel %vm11370, %v13418, %v13417
    %v13477 = vsel %vm11372, %v13419, %v13476
    %v13478 = vsel %vm11374, %v13420, %v13477
    %v13479 = vsel %vm11376, %v13421, %v13478
    %v13480 = vsel %vm11378, %v13422, %v13479
    %v13481 = vsel %vm11380, %v13423, %v13480
    %v13482 = vsel %vm11382, %v13424, %v13481
    %v13483 = vsel %vm11370, %v13426, %v13425
    %v13484 = vsel %vm11372, %v13427, %v13483
    %v13485 = vsel %vm11374, %v13428, %v13484
    %v13486 = vsel %vm11376, %v13429, %v13485
    %v13487 = vsel %vm11378, %v13430, %v13486
    %v13488 = vsel %vm11380, %v13431, %v13487
    %v13489 = vsel %vm11382, %v13432, %v13488
    %v13490 = vsel %vm11370, %v13434, %v13433
    %v13491 = vsel %vm11372, %v13435, %v13490
    %v13492 = vsel %vm11374, %v13436, %v13491
    %v13493 = vsel %vm11376, %v13437, %v13492
    %v13494 = vsel %vm11378, %v13438, %v13493
    %v13495 = vsel %vm11380, %v13439, %v13494
    %v13496 = vsel %vm11382, %v13440, %v13495
    %v13497 = vpack.c.b16 %v13447, %v13447
    %v13498 = vpack.c.b16 %v13454, %v13454
    %v13499 = vpack.c.b16 %v13461, %v13461
    %v13500 = vpack.c.b16 %v13468, %v13468
    %v13501 = vpack.c.b16 %v13475, %v13475
    %v13502 = vpack.c.b16 %v13482, %v13482
    %v13503 = vpack.c.b16 %v13489, %v13489
    %v13504 = vpack.c.b16 %v13496, %v13496
    %s13513 = scalar_lea.vmem [#allocation9], 32
    %13514 = vst [vmem:[%s13513] sm:$0xf] %v13497
    %13515 = vst [vmem:[%s13513 + $0x4] sm:$0xf] %v13498
    %13516 = vst [vmem:[%s13513 + $0x8] sm:$0xf] %v13499
    %13517 = vst [vmem:[%s13513 + $0xc] sm:$0xf] %v13500
    %13518 = vst [vmem:[%s13513 + $0x10] sm:$0xf] %v13501
    %13519 = vst [vmem:[%s13513 + $0x14] sm:$0xf] %v13502
    %13520 = vst [vmem:[%s13513 + $0x18] sm:$0xf] %v13503
    %13521 = vst [vmem:[%s13513 + $0x1c] sm:$0xf] %v13504
    // Predicated region
    $region30: #{tpu_custom_call.1} parent=1 // pred_check
      _
    $region31: #{tpu_custom_call.1} parent=1 // pred_check_branch
      %13523 = sbr.rel (0) target = $region33
    $region32: #{tpu_custom_call.1} parent=1 // pred_region
      %s13525 = ssub.s32 1024, 1024
      %13526 = vsyncadd [#allocation6], %s13525
      %s13527 = sshll.u32 [#allocation9], 4
      %s13528 = int_to_ptr.vmem [resolvable:$true] %s13527
      %13533 = dma.vmem_to_hbm [thread:$0]  %s13528, 1024, %s4, [#allocation6], 64, 64, 4
    $region33: #{tpu_custom_call.1} parent=1 // pred_fallthru
      _
    // Predicated region
    $region34: #{tpu_custom_call.1} parent=1 // pred_check
      _
    $region35: #{tpu_custom_call.1} parent=1 // pred_check_branch
      %13535 = sbr.rel (0) target = $region37
    $region36: #{tpu_custom_call.1} parent=1 // pred_region
      %13536 = dma.done [#allocation6], 1024
    $region37: #{tpu_custom_call.1} parent=1 // pred_fallthru
      _
    %13537 = vsyncpa [#allocation5], 1
    %13538 = vsyncpa [#allocation8], 1
    %13539 = vsyncpa [#allocation6], 1

</llo_original>
